<compile_context>
chip_gen: v6e
topology: v6e:2x2x1
jax: 0.10.0
libtpu: 0.0.40
codegen_flags: <defaults>
</compile_context>

<pallas_src>
import functools

import jax
import jax.numpy as jnp
from jax import lax
from jax.experimental import pallas as pl
from jax.experimental.pallas import tpu as pltpu

EMBED = 32
H1, H2, H3 = 1024, 512, 256
VOCAB = 128
LN_EPS = 1e-5


def _gelu(v):
    # nn.GELU() default = exact erf-based GELU, computed in f32.
    return 0.5 * v * (1.0 + lax.erf(v * (1.0 / jnp.sqrt(2.0)).astype(v.dtype)))


def _layernorm_noaffine(v):
    # gamma/beta are folded into the following Linear in the wrapper.
    mu = jnp.mean(v, axis=-1, keepdims=True)
    var = jnp.mean(jnp.square(v - mu), axis=-1, keepdims=True)
    return (v - mu) * lax.rsqrt(var + LN_EPS)


def mlp_block_kernel(x_ref,
                     w1_ref, b1_ref,
                     w2_ref, b2_ref,
                     w3_ref, b3_ref,
                     wo_ref, bo_ref,
                     out_ref):
    # Activations stay f32 for all VPU/EUP work; operands are cast to bf16 only
    # at each dot boundary, accumulation in f32 on the MXU.
    x = x_ref[...]

    # fc1 -> GELU -> LayerNorm(1024)   (dropout1 is identity at inference)
    h = jnp.dot(x.astype(jnp.bfloat16), w1_ref[...],
                preferred_element_type=jnp.float32) + b1_ref[...]
    h = _layernorm_noaffine(_gelu(h))          # LN1 affine folded into fc2

    # fc2 -> GELU -> LayerNorm(512)    (dropout2 is identity at inference)
    h = jnp.dot(h.astype(jnp.bfloat16), w2_ref[...],
                preferred_element_type=jnp.float32) + b2_ref[...]
    h = _layernorm_noaffine(_gelu(h))          # LN2 affine folded into fc3

    # fc3 -> GELU -> LayerNorm(256)
    h = jnp.dot(h.astype(jnp.bfloat16), w3_ref[...],
                preferred_element_type=jnp.float32) + b3_ref[...]
    h = _layernorm_noaffine(_gelu(h))          # LN3 affine folded into fc_out

    # fc_out
    out = jnp.dot(h.astype(jnp.bfloat16), wo_ref[...],
                  preferred_element_type=jnp.float32) + bo_ref[...]
    out_ref[...] = out.astype(out_ref.dtype)


def _fold_params(params):
    """Fold each LayerNorm's (gamma, beta) into the following Linear and cast
    weights to bf16 (biases stay f32).  Exact in f32:
        (LN0(x)*g + be) @ W + b  ==  LN0(x) @ (g[:,None]*W) + (be @ W + b)
    """
    (w1, b1, g1, be1, w2, b2, g2, be2, w3, b3, g3, be3, wo, bo) = params
    w2f = g1.reshape(-1, 1) * w2
    b2f = b2 + be1.reshape(1, -1) @ w2
    w3f = g2.reshape(-1, 1) * w3
    b3f = b3 + be2.reshape(1, -1) @ w3
    wof = g3.reshape(-1, 1) * wo
    bof = bo + be3.reshape(1, -1) @ wo
    bf16 = jnp.bfloat16
    return (w1.astype(bf16), b1,
            w2f.astype(bf16), b2f,
            w3f.astype(bf16), b3f,
            wof.astype(bf16), bof)


@functools.partial(jax.jit, static_argnames=("block_b",))
def mlp_block(x, params, block_b=256):
    B, E = x.shape
    w1, b1, w2, b2, w3, b3, wo, bo = _fold_params(params)
    V = wo.shape[1]

    # Zero-pad batch to a multiple of block_b so every grid step feeds a full
    # MXU tile; padded rows are discarded after the call.
    B_pad = pl.cdiv(B, block_b) * block_b
    if B_pad != B:
        x = jnp.pad(x, ((0, B_pad - B), (0, 0)))

    def row_spec(n):
        return pl.BlockSpec((block_b, n), lambda i: (i, 0))

    def full_spec(shape):
        # Constant index_map: same block every grid step -> DMA'd once, resident.
        return pl.BlockSpec(shape, lambda i: (0,) * len(shape))

    in_specs = [
        row_spec(E),
        full_spec(w1.shape), full_spec(b1.shape),
        full_spec(w2.shape), full_spec(b2.shape),
        full_spec(w3.shape), full_spec(b3.shape),
        full_spec(wo.shape), full_spec(bo.shape),
    ]

    flops = 2 * B_pad * (E * H1 + H1 * H2 + H2 * H3 + H3 * V)
    transcendentals = B_pad * (H1 + H2 + H3)          # one erf per hidden element
    bytes_accessed = (
        B_pad * E * 4 + B_pad * V * 4
        + sum(int(a.size) * a.dtype.itemsize
              for a in (w1, b1, w2, b2, w3, b3, wo, bo)))

    out = pl.pallas_call(
        mlp_block_kernel,
        out_shape=jax.ShapeDtypeStruct((B_pad, V), x.dtype),
        grid_spec=pltpu.PrefetchScalarGridSpec(
            num_scalar_prefetch=0,
            grid=(B_pad // block_b,),
            in_specs=in_specs,
            out_specs=row_spec(V),
        ),
        compiler_params=pltpu.CompilerParams(
            dimension_semantics=("parallel",)),
        cost_estimate=pl.CostEstimate(
            flops=flops,
            transcendentals=transcendentals,
            bytes_accessed=bytes_accessed),
    )(x, w1, b1, w2, b2, w3, b3, wo, bo)
    return out[:B]


def init_params(key):
    """Deterministic synthetic params. Linear weights stored as [in, out].
    LN params are non-trivial so the affine-folding path is actually tested."""
    ks = jax.random.split(key, 7)

    def linear(k, d_in, d_out):
        kw, kb = jax.random.split(k)
        scale = 1.0 / jnp.sqrt(d_in)
        w = jax.random.uniform(kw, (d_in, d_out), jnp.float32, -scale, scale)
        b = jax.random.uniform(kb, (1, d_out), jnp.float32, -scale, scale)
        return w, b

    def ln(k, d):
        kg, kb = jax.random.split(k)
        g = 1.0 + 0.1 * jax.random.normal(kg, (1, d), jnp.float32)
        b = 0.1 * jax.random.normal(kb, (1, d), jnp.float32)
        return g, b

    w1, b1 = linear(ks[0], EMBED, H1)
    g1, be1 = ln(ks[1], H1)
    w2, b2 = linear(ks[2], H1, H2)
    g2, be2 = ln(ks[3], H2)
    w3, b3 = linear(ks[4], H2, H3)
    g3, be3 = ln(ks[5], H3)
    wo, bo = linear(ks[6], H3, VOCAB)
    return (w1, b1, g1, be1, w2, b2, g2, be2, w3, b3, g3, be3, wo, bo)


def reference(x, params):
    """Pure-f32 reference matching the PyTorch forward (dropout = identity)."""
    (w1, b1, g1, be1, w2, b2, g2, be2, w3, b3, g3, be3, wo, bo) = params

    def gelu(v):
        return 0.5 * v * (1.0 + lax.erf(v / jnp.sqrt(2.0)))

    def lnorm(v, g, b):
        mu = v.mean(-1, keepdims=True)
        var = ((v - mu) ** 2).mean(-1, keepdims=True)
        return (v - mu) / jnp.sqrt(var + LN_EPS) * g + b

    h = lnorm(gelu(x @ w1 + b1), g1, be1)
    h = lnorm(gelu(h @ w2 + b2), g2, be2)
    h = lnorm(gelu(h @ w3 + b3), g3, be3)
    return h @ wo + bo


if __name__ == "__main__":
    key = jax.random.PRNGKey(0)
    kx, kp = jax.random.split(key)
    # B=300 exercises the batch-padding path and gives a 2-step parallel grid
    # (block_b=256), so both v7x TensorCores get work.
    B = 300
    x = jax.random.normal(kx, (B, EMBED), jnp.float32)
    params = init_params(kp)

    out = mlp_block(x, params)
    out = jax.block_until_ready(out)

    ref = reference(x, params)
    assert out.shape == (B, VOCAB)
    # bf16 matmul operands (f32 accumulation) -> loosened tolerance vs pure-f32 ref.
    rel_err = float(jnp.max(jnp.abs(out - ref)) / (jnp.max(jnp.abs(ref)) + 1e-6))
    assert rel_err < 5e-2, f"mismatch vs reference: max-normalized err {rel_err}"

    print("KERNEL_OK")
</pallas_src>

<mosaic_0001>
module attributes {stable_mosaic.version = 11 : i64} {
  func.func @mlp_block_kernel(%arg0: i32, %arg1: memref<256x32xf32, #tpu.memory_space<vmem>>, %arg2: memref<32x1024xbf16, #tpu.memory_space<vmem>>, %arg3: memref<1x1024xf32, #tpu.memory_space<vmem>>, %arg4: memref<1024x512xbf16, #tpu.memory_space<vmem>>, %arg5: memref<1x512xf32, #tpu.memory_space<vmem>>, %arg6: memref<512x256xbf16, #tpu.memory_space<vmem>>, %arg7: memref<1x256xf32, #tpu.memory_space<vmem>>, %arg8: memref<256x128xbf16, #tpu.memory_space<vmem>>, %arg9: memref<1x128xf32, #tpu.memory_space<vmem>>, %arg10: memref<256x128xf32, #tpu.memory_space<vmem>>) attributes {dimension_semantics = [#tpu.dimension_semantics<parallel>], iteration_bounds = array<i64: 2>, scalar_prefetch = 0 : i64, scratch_operands = 0 : i64, tpu.core_type = #tpu.core_type<tc>, window_params = [{transform_indices = @transform_0, window_bounds = array<i64: 256, 32>}, {pipeline_mode = #tpu.pipeline_mode<synchronous>, transform_indices = @transform_1, window_bounds = array<i64: 32, 1024>}, {pipeline_mode = #tpu.pipeline_mode<synchronous>, transform_indices = @transform_2, window_bounds = array<i64: 1, 1024>}, {pipeline_mode = #tpu.pipeline_mode<synchronous>, transform_indices = @transform_3, window_bounds = array<i64: 1024, 512>}, {pipeline_mode = #tpu.pipeline_mode<synchronous>, transform_indices = @transform_4, window_bounds = array<i64: 1, 512>}, {pipeline_mode = #tpu.pipeline_mode<synchronous>, transform_indices = @transform_5, window_bounds = array<i64: 512, 256>}, {pipeline_mode = #tpu.pipeline_mode<synchronous>, transform_indices = @transform_6, window_bounds = array<i64: 1, 256>}, {pipeline_mode = #tpu.pipeline_mode<synchronous>, transform_indices = @transform_7, window_bounds = array<i64: 256, 128>}, {pipeline_mode = #tpu.pipeline_mode<synchronous>, transform_indices = @transform_8, window_bounds = array<i64: 1, 128>}, {transform_indices = @transform_9, window_bounds = array<i64: 256, 128>}]} {
    %c0 = arith.constant 0 : index
    %c0_0 = arith.constant 0 : index
    %0 = vector.load %arg1[%c0, %c0_0] : memref<256x32xf32, #tpu.memory_space<vmem>>, vector<256x32xf32>
    %1 = arith.truncf %0 : vector<256x32xf32> to vector<256x32xbf16>
    %c0_1 = arith.constant 0 : index
    %c0_2 = arith.constant 0 : index
    %2 = vector.load %arg2[%c0_1, %c0_2] : memref<32x1024xbf16, #tpu.memory_space<vmem>>, vector<32x1024xbf16>
    %cst = arith.constant dense<0.000000e+00> : vector<256x1024xf32>
    %3 = tpu.matmul %1, %2, %cst {dimension_numbers = #tpu.dot_dimension_numbers<[1], [0], [0], [1], [0, 0, 1, 1], [], []>} : vector<256x32xbf16>, vector<32x1024xbf16>, vector<256x1024xf32> -> vector<256x1024xf32>
    %c0_3 = arith.constant 0 : index
    %c0_4 = arith.constant 0 : index
    %4 = vector.load %arg3[%c0_3, %c0_4] : memref<1x1024xf32, #tpu.memory_space<vmem>>, vector<1x1024xf32>
    %5 = vector.broadcast %4 : vector<1x1024xf32> to vector<256x1024xf32>
    %6 = arith.addf %3, %5 : vector<256x1024xf32>
    %cst_5 = arith.constant 5.000000e-01 : f32
    %7 = vector.broadcast %cst_5 : f32 to vector<256x1024xf32>
    %8 = arith.mulf %7, %6 : vector<256x1024xf32>
    %cst_6 = arith.constant 2.000000e+00 : f32
    %9 = math.sqrt %cst_6 : f32
    %cst_7 = arith.constant 1.000000e+00 : f32
    %10 = arith.divf %cst_7, %9 : f32
    %11 = vector.broadcast %10 : f32 to vector<256x1024xf32>
    %12 = arith.mulf %6, %11 : vector<256x1024xf32>
    %13 = math.erf %12 : vector<256x1024xf32>
    %cst_8 = arith.constant 1.000000e+00 : f32
    %14 = vector.broadcast %cst_8 : f32 to vector<256x1024xf32>
    %15 = arith.addf %14, %13 : vector<256x1024xf32>
    %16 = arith.mulf %8, %15 : vector<256x1024xf32>
    %cst_9 = arith.constant dense<0.000000e+00> : vector<256xf32>
    %17 = vector.multi_reduction <add>, %16, %cst_9 [1] : vector<256x1024xf32> to vector<256xf32>
    %18 = vector.shape_cast %17 : vector<256xf32> to vector<256x1xf32>
    %cst_10 = arith.constant 1.024000e+03 : f32
    %19 = vector.broadcast %cst_10 : f32 to vector<256x1xf32>
    %20 = arith.divf %18, %19 : vector<256x1xf32>
    %21 = vector.broadcast %20 : vector<256x1xf32> to vector<256x1024xf32>
    %22 = arith.subf %16, %21 : vector<256x1024xf32>
    %23 = arith.mulf %22, %22 : vector<256x1024xf32>
    %cst_11 = arith.constant dense<0.000000e+00> : vector<256xf32>
    %24 = vector.multi_reduction <add>, %23, %cst_11 [1] : vector<256x1024xf32> to vector<256xf32>
    %25 = vector.shape_cast %24 : vector<256xf32> to vector<256x1xf32>
    %cst_12 = arith.constant 1.024000e+03 : f32
    %26 = vector.broadcast %cst_12 : f32 to vector<256x1xf32>
    %27 = arith.divf %25, %26 : vector<256x1xf32>
    %28 = vector.broadcast %20 : vector<256x1xf32> to vector<256x1024xf32>
    %29 = arith.subf %16, %28 : vector<256x1024xf32>
    %cst_13 = arith.constant 9.99999974E-6 : f32
    %30 = vector.broadcast %cst_13 : f32 to vector<256x1xf32>
    %31 = arith.addf %27, %30 : vector<256x1xf32>
    %32 = math.rsqrt %31 : vector<256x1xf32>
    %33 = vector.broadcast %32 : vector<256x1xf32> to vector<256x1024xf32>
    %34 = arith.mulf %29, %33 : vector<256x1024xf32>
    %35 = arith.truncf %34 : vector<256x1024xf32> to vector<256x1024xbf16>
    %c0_14 = arith.constant 0 : index
    %c0_15 = arith.constant 0 : index
    %36 = vector.load %arg4[%c0_14, %c0_15] : memref<1024x512xbf16, #tpu.memory_space<vmem>>, vector<1024x512xbf16>
    %cst_16 = arith.constant dense<0.000000e+00> : vector<256x512xf32>
    %37 = tpu.matmul %35, %36, %cst_16 {dimension_numbers = #tpu.dot_dimension_numbers<[1], [0], [0], [1], [0, 0, 1, 1], [], []>} : vector<256x1024xbf16>, vector<1024x512xbf16>, vector<256x512xf32> -> vector<256x512xf32>
    %c0_17 = arith.constant 0 : index
    %c0_18 = arith.constant 0 : index
    %38 = vector.load %arg5[%c0_17, %c0_18] : memref<1x512xf32, #tpu.memory_space<vmem>>, vector<1x512xf32>
    %39 = vector.broadcast %38 : vector<1x512xf32> to vector<256x512xf32>
    %40 = arith.addf %37, %39 : vector<256x512xf32>
    %cst_19 = arith.constant 5.000000e-01 : f32
    %41 = vector.broadcast %cst_19 : f32 to vector<256x512xf32>
    %42 = arith.mulf %41, %40 : vector<256x512xf32>
    %cst_20 = arith.constant 2.000000e+00 : f32
    %43 = math.sqrt %cst_20 : f32
    %cst_21 = arith.constant 1.000000e+00 : f32
    %44 = arith.divf %cst_21, %43 : f32
    %45 = vector.broadcast %44 : f32 to vector<256x512xf32>
    %46 = arith.mulf %40, %45 : vector<256x512xf32>
    %47 = math.erf %46 : vector<256x512xf32>
    %cst_22 = arith.constant 1.000000e+00 : f32
    %48 = vector.broadcast %cst_22 : f32 to vector<256x512xf32>
    %49 = arith.addf %48, %47 : vector<256x512xf32>
    %50 = arith.mulf %42, %49 : vector<256x512xf32>
    %cst_23 = arith.constant dense<0.000000e+00> : vector<256xf32>
    %51 = vector.multi_reduction <add>, %50, %cst_23 [1] : vector<256x512xf32> to vector<256xf32>
    %52 = vector.shape_cast %51 : vector<256xf32> to vector<256x1xf32>
    %cst_24 = arith.constant 5.120000e+02 : f32
    %53 = vector.broadcast %cst_24 : f32 to vector<256x1xf32>
    %54 = arith.divf %52, %53 : vector<256x1xf32>
    %55 = vector.broadcast %54 : vector<256x1xf32> to vector<256x512xf32>
    %56 = arith.subf %50, %55 : vector<256x512xf32>
    %57 = arith.mulf %56, %56 : vector<256x512xf32>
    %cst_25 = arith.constant dense<0.000000e+00> : vector<256xf32>
    %58 = vector.multi_reduction <add>, %57, %cst_25 [1] : vector<256x512xf32> to vector<256xf32>
    %59 = vector.shape_cast %58 : vector<256xf32> to vector<256x1xf32>
    %cst_26 = arith.constant 5.120000e+02 : f32
    %60 = vector.broadcast %cst_26 : f32 to vector<256x1xf32>
    %61 = arith.divf %59, %60 : vector<256x1xf32>
    %62 = vector.broadcast %54 : vector<256x1xf32> to vector<256x512xf32>
    %63 = arith.subf %50, %62 : vector<256x512xf32>
    %cst_27 = arith.constant 9.99999974E-6 : f32
    %64 = vector.broadcast %cst_27 : f32 to vector<256x1xf32>
    %65 = arith.addf %61, %64 : vector<256x1xf32>
    %66 = math.rsqrt %65 : vector<256x1xf32>
    %67 = vector.broadcast %66 : vector<256x1xf32> to vector<256x512xf32>
    %68 = arith.mulf %63, %67 : vector<256x512xf32>
    %69 = arith.truncf %68 : vector<256x512xf32> to vector<256x512xbf16>
    %c0_28 = arith.constant 0 : index
    %c0_29 = arith.constant 0 : index
    %70 = vector.load %arg6[%c0_28, %c0_29] : memref<512x256xbf16, #tpu.memory_space<vmem>>, vector<512x256xbf16>
    %cst_30 = arith.constant dense<0.000000e+00> : vector<256x256xf32>
    %71 = tpu.matmul %69, %70, %cst_30 {dimension_numbers = #tpu.dot_dimension_numbers<[1], [0], [0], [1], [0, 0, 1, 1], [], []>} : vector<256x512xbf16>, vector<512x256xbf16>, vector<256x256xf32> -> vector<256x256xf32>
    %c0_31 = arith.constant 0 : index
    %c0_32 = arith.constant 0 : index
    %72 = vector.load %arg7[%c0_31, %c0_32] : memref<1x256xf32, #tpu.memory_space<vmem>>, vector<1x256xf32>
    %73 = vector.broadcast %72 : vector<1x256xf32> to vector<256x256xf32>
    %74 = arith.addf %71, %73 : vector<256x256xf32>
    %cst_33 = arith.constant 5.000000e-01 : f32
    %75 = vector.broadcast %cst_33 : f32 to vector<256x256xf32>
    %76 = arith.mulf %75, %74 : vector<256x256xf32>
    %cst_34 = arith.constant 2.000000e+00 : f32
    %77 = math.sqrt %cst_34 : f32
    %cst_35 = arith.constant 1.000000e+00 : f32
    %78 = arith.divf %cst_35, %77 : f32
    %79 = vector.broadcast %78 : f32 to vector<256x256xf32>
    %80 = arith.mulf %74, %79 : vector<256x256xf32>
    %81 = math.erf %80 : vector<256x256xf32>
    %cst_36 = arith.constant 1.000000e+00 : f32
    %82 = vector.broadcast %cst_36 : f32 to vector<256x256xf32>
    %83 = arith.addf %82, %81 : vector<256x256xf32>
    %84 = arith.mulf %76, %83 : vector<256x256xf32>
    %cst_37 = arith.constant dense<0.000000e+00> : vector<256xf32>
    %85 = vector.multi_reduction <add>, %84, %cst_37 [1] : vector<256x256xf32> to vector<256xf32>
    %86 = vector.shape_cast %85 : vector<256xf32> to vector<256x1xf32>
    %cst_38 = arith.constant 2.560000e+02 : f32
    %87 = vector.broadcast %cst_38 : f32 to vector<256x1xf32>
    %88 = arith.divf %86, %87 : vector<256x1xf32>
    %89 = vector.broadcast %88 : vector<256x1xf32> to vector<256x256xf32>
    %90 = arith.subf %84, %89 : vector<256x256xf32>
    %91 = arith.mulf %90, %90 : vector<256x256xf32>
    %cst_39 = arith.constant dense<0.000000e+00> : vector<256xf32>
    %92 = vector.multi_reduction <add>, %91, %cst_39 [1] : vector<256x256xf32> to vector<256xf32>
    %93 = vector.shape_cast %92 : vector<256xf32> to vector<256x1xf32>
    %cst_40 = arith.constant 2.560000e+02 : f32
    %94 = vector.broadcast %cst_40 : f32 to vector<256x1xf32>
    %95 = arith.divf %93, %94 : vector<256x1xf32>
    %96 = vector.broadcast %88 : vector<256x1xf32> to vector<256x256xf32>
    %97 = arith.subf %84, %96 : vector<256x256xf32>
    %cst_41 = arith.constant 9.99999974E-6 : f32
    %98 = vector.broadcast %cst_41 : f32 to vector<256x1xf32>
    %99 = arith.addf %95, %98 : vector<256x1xf32>
    %100 = math.rsqrt %99 : vector<256x1xf32>
    %101 = vector.broadcast %100 : vector<256x1xf32> to vector<256x256xf32>
    %102 = arith.mulf %97, %101 : vector<256x256xf32>
    %103 = arith.truncf %102 : vector<256x256xf32> to vector<256x256xbf16>
    %c0_42 = arith.constant 0 : index
    %c0_43 = arith.constant 0 : index
    %104 = vector.load %arg8[%c0_42, %c0_43] : memref<256x128xbf16, #tpu.memory_space<vmem>>, vector<256x128xbf16>
    %cst_44 = arith.constant dense<0.000000e+00> : vector<256x128xf32>
    %105 = tpu.matmul %103, %104, %cst_44 {dimension_numbers = #tpu.dot_dimension_numbers<[1], [0], [0], [1], [0, 0, 1, 1], [], []>} : vector<256x256xbf16>, vector<256x128xbf16>, vector<256x128xf32> -> vector<256x128xf32>
    %c0_45 = arith.constant 0 : index
    %c0_46 = arith.constant 0 : index
    %106 = vector.load %arg9[%c0_45, %c0_46] : memref<1x128xf32, #tpu.memory_space<vmem>>, vector<1x128xf32>
    %107 = vector.broadcast %106 : vector<1x128xf32> to vector<256x128xf32>
    %108 = arith.addf %105, %107 : vector<256x128xf32>
    %c0_47 = arith.constant 0 : index
    %c0_48 = arith.constant 0 : index
    %109 = vector.load %arg10[%c0_47, %c0_48] : memref<256x128xf32, #tpu.memory_space<vmem>>, vector<256x128xf32>
    tpu.vector_store %arg10[%c0_47, %c0_48], %108 {strides = array<i32>} : memref<256x128xf32, #tpu.memory_space<vmem>>, vector<256x128xf32>,
    return
  }
  func.func @transform_0(%arg0: i32) -> (i32, i32) {
    %c0_i32 = arith.constant 0 : i32
    %c0_i32_0 = arith.constant 0 : i32
    return %arg0, %c0_i32 : i32, i32
  }
  func.func @transform_1(%arg0: i32) -> (i32, i32) {
    %c0_i32 = arith.constant 0 : i32
    %c0_i32_0 = arith.constant 0 : i32
    %c0_i32_1 = arith.constant 0 : i32
    return %c0_i32, %c0_i32_0 : i32, i32
  }
  func.func @transform_2(%arg0: i32) -> (i32, i32) {
    %c0_i32 = arith.constant 0 : i32
    %c0_i32_0 = arith.constant 0 : i32
    %c0_i32_1 = arith.constant 0 : i32
    return %c0_i32, %c0_i32_0 : i32, i32
  }
  func.func @transform_3(%arg0: i32) -> (i32, i32) {
    %c0_i32 = arith.constant 0 : i32
    %c0_i32_0 = arith.constant 0 : i32
    %c0_i32_1 = arith.constant 0 : i32
    return %c0_i32, %c0_i32_0 : i32, i32
  }
  func.func @transform_4(%arg0: i32) -> (i32, i32) {
    %c0_i32 = arith.constant 0 : i32
    %c0_i32_0 = arith.constant 0 : i32
    %c0_i32_1 = arith.constant 0 : i32
    return %c0_i32, %c0_i32_0 : i32, i32
  }
  func.func @transform_5(%arg0: i32) -> (i32, i32) {
    %c0_i32 = arith.constant 0 : i32
    %c0_i32_0 = arith.constant 0 : i32
    %c0_i32_1 = arith.constant 0 : i32
    return %c0_i32, %c0_i32_0 : i32, i32
  }
  func.func @transform_6(%arg0: i32) -> (i32, i32) {
    %c0_i32 = arith.constant 0 : i32
    %c0_i32_0 = arith.constant 0 : i32
    %c0_i32_1 = arith.constant 0 : i32
    return %c0_i32, %c0_i32_0 : i32, i32
  }
  func.func @transform_7(%arg0: i32) -> (i32, i32) {
    %c0_i32 = arith.constant 0 : i32
    %c0_i32_0 = arith.constant 0 : i32
    %c0_i32_1 = arith.constant 0 : i32
    return %c0_i32, %c0_i32_0 : i32, i32
  }
  func.func @transform_8(%arg0: i32) -> (i32, i32) {
    %c0_i32 = arith.constant 0 : i32
    %c0_i32_0 = arith.constant 0 : i32
    %c0_i32_1 = arith.constant 0 : i32
    return %c0_i32, %c0_i32_0 : i32, i32
  }
  func.func @transform_9(%arg0: i32) -> (i32, i32) {
    %c0_i32 = arith.constant 0 : i32
    %c0_i32_0 = arith.constant 0 : i32
    return %arg0, %c0_i32 : i32, i32
  }
}

</mosaic_0001>

<llo_original>
// kernel: mlp_block.1
$region0: #{mlp_block.1}
  #allocation0 [shape = 'u32[]', space=smem, size = 0x4, offset = 0x4, fixed_abs, tag = 'smem constant byte address 0x4 - core index']
  #allocation1 [shape = 'u32[144,128]{1,0:T(1,128)}', space=vmem, size = 0x12000, scoped, tag = 'internal scratch']
  %s0 = inlined_call_operand.vmem [shape: f32[512,32], index: 0, kind: input, shape index: {}]
  %s1 = inlined_call_operand.vmem [shape: bf16[32,1024], index: 1, kind: input, shape index: {}]
  %s2 = inlined_call_operand.vmem [shape: f32[1,1024], index: 2, kind: input, shape index: {}]
  %s3 = inlined_call_operand.vmem [shape: bf16[1024,512], index: 3, kind: input, shape index: {}]
  %s4 = inlined_call_operand.vmem [shape: f32[1,512], index: 4, kind: input, shape index: {}]
  %s5 = inlined_call_operand.vmem [shape: bf16[512,256], index: 5, kind: input, shape index: {}]
  %s6 = inlined_call_operand.vmem [shape: f32[1,256], index: 6, kind: input, shape index: {}]
  %s7 = inlined_call_operand.vmem [shape: bf16[256,128], index: 7, kind: input, shape index: {}]
  %s8 = inlined_call_operand.vmem [shape: f32[1,128], index: 8, kind: input, shape index: {}]
  %s9 = inlined_call_operand.vmem [shape: f32[512,128], index: 9, kind: output, shape index: {}]
  %s10 = sld [smem:[#allocation0]]
  $region69: #{mlp_block.1} parent=0
    _
  %s12 = ssub.s32 1, %s10
  %s13 = scalar_select 0, %s12, %s10
  loop: start=0, step=1, limit=4
  $region2: #{mlp_block.1} parent=0 // loop_pre_header
    _
  $region3: #{mlp_block.1} parent=0 // loop_header
    %s15 = sphi 0, %s19
    %p16 = scmp.ge.s32.totalorder %s15, 4
    %s25 = sphi 0, %s27
    %s28 = sphi 0, %s25
    %s29 = sphi 0, %s28
    %s45 = sphi 0, %s29
    %s49 = sphi 0, %s49
    %s51 = sphi 0, %s49
    %s52 = sphi 0, %s51
    %s66 = sphi 0, %s52
    %s70 = sphi 0, %s70
    %s72 = sphi 0, %s70
    %s73 = sphi 0, %s72
    %s87 = sphi 0, %s73
    %s91 = sphi 0, %s91
    %s93 = sphi 0, %s91
    %s94 = sphi 0, %s93
    %s108 = sphi 0, %s94
    %s112 = sphi 0, %s112
    %s114 = sphi 0, %s112
    %s115 = sphi 0, %s114
    %s129 = sphi 0, %s115
    %s133 = sphi 0, %s133
    %s135 = sphi 0, %s133
    %s136 = sphi 0, %s135
    %s150 = sphi 0, %s136
    %s154 = sphi 0, %s154
    %s156 = sphi 0, %s154
    %s157 = sphi 0, %s156
    %s171 = sphi 0, %s157
    %s175 = sphi 0, %s175
    %s177 = sphi 0, %s175
    %s178 = sphi 0, %s177
    %s192 = sphi 0, %s178
    %s196 = sphi 0, %s196
    %s198 = sphi 0, %s196
    %s199 = sphi 0, %s198
    %s213 = sphi 0, %s199
    %s219 = sphi 0, %s221
    %s222 = sphi 0, %s219
    %s223 = sphi 0, %s222
    %s239 = sphi 0, %s223
  $region4: #{mlp_block.1} parent=0 // loop_header_branch
    %18 = sbr.rel (%p16) target = $region8
  $region5: #{mlp_block.1} parent=0 // loop_body
    %s20 = ssub.s32 %s15, 1
    %s21 = ssub.s32 %s15, 2
    %s22 = sadd.s32 %s15, 1
    %s23 = ssub.s32 %s15, %s22
    %p24 = scmp.eq.s32.totalorder %s23, 0
    %s26 = sadd.s32 %s25, 1
    %s27 = scalar_select %p24, %s25, %s26
    %p30 = pneg %p24
    %p31 = scmp.eq.s32.totalorder %s15, 1
    %p32 = por %p30, %p31
    %p33 = scmp.ne.s32.totalorder %s25, %s28
    %p34 = scmp.eq.s32.totalorder %s15, 0
    %p35 = por %p33, %p34
    %p36 = scmp.ne.s32.totalorder %s25, %s28
    %p37 = scmp.eq.s32.totalorder %s20, 1
    %p38 = por %p36, %p37
    %p39 = scmp.ne.s32.totalorder %s28, %s29
    %p40 = scmp.eq.s32.totalorder %s20, 0
    %p41 = por %p39, %p40
    %p42 = scmp.ne.s32.totalorder %s28, %s29
    %p43 = scmp.eq.s32.totalorder %s21, 1
    %p44 = por %p42, %p43
    %p46 = scmp.ne.s32.totalorder %s29, %s45
    %p47 = scmp.eq.s32.totalorder %s21, 0
    %p48 = por %p46, %p47
    %s50 = sadd.s32 %s49, 1
    %p53 = scmp.eq.s32.totalorder %s15, 1
    %p54 = scmp.ne.s32.totalorder %s49, %s51
    %p55 = scmp.eq.s32.totalorder %s15, 0
    %p56 = por %p54, %p55
    %p57 = scmp.ne.s32.totalorder %s49, %s51
    %p58 = scmp.eq.s32.totalorder %s20, 1
    %p59 = por %p57, %p58
    %p60 = scmp.ne.s32.totalorder %s51, %s52
    %p61 = scmp.eq.s32.totalorder %s20, 0
    %p62 = por %p60, %p61
    %p63 = scmp.ne.s32.totalorder %s51, %s52
    %p64 = scmp.eq.s32.totalorder %s21, 1
    %p65 = por %p63, %p64
    %p67 = scmp.ne.s32.totalorder %s52, %s66
    %p68 = scmp.eq.s32.totalorder %s21, 0
    %p69 = por %p67, %p68
    %s71 = sadd.s32 %s70, 1
    %p74 = scmp.eq.s32.totalorder %s15, 1
    %p75 = scmp.ne.s32.totalorder %s70, %s72
    %p76 = scmp.eq.s32.totalorder %s15, 0
    %p77 = por %p75, %p76
    %p78 = scmp.ne.s32.totalorder %s70, %s72
    %p79 = scmp.eq.s32.totalorder %s20, 1
    %p80 = por %p78, %p79
    %p81 = scmp.ne.s32.totalorder %s72, %s73
    %p82 = scmp.eq.s32.totalorder %s20, 0
    %p83 = por %p81, %p82
    %p84 = scmp.ne.s32.totalorder %s72, %s73
    %p85 = scmp.eq.s32.totalorder %s21, 1
    %p86 = por %p84, %p85
    %p88 = scmp.ne.s32.totalorder %s73, %s87
    %p89 = scmp.eq.s32.totalorder %s21, 0
    %p90 = por %p88, %p89
    %s92 = sadd.s32 %s91, 1
    %p95 = scmp.eq.s32.totalorder %s15, 1
    %p96 = scmp.ne.s32.totalorder %s91, %s93
    %p97 = scmp.eq.s32.totalorder %s15, 0
    %p98 = por %p96, %p97
    %p99 = scmp.ne.s32.totalorder %s91, %s93
    %p100 = scmp.eq.s32.totalorder %s20, 1
    %p101 = por %p99, %p100
    %p102 = scmp.ne.s32.totalorder %s93, %s94
    %p103 = scmp.eq.s32.totalorder %s20, 0
    %p104 = por %p102, %p103
    %p105 = scmp.ne.s32.totalorder %s93, %s94
    %p106 = scmp.eq.s32.totalorder %s21, 1
    %p107 = por %p105, %p106
    %p109 = scmp.ne.s32.totalorder %s94, %s108
    %p110 = scmp.eq.s32.totalorder %s21, 0
    %p111 = por %p109, %p110
    %s113 = sadd.s32 %s112, 1
    %p116 = scmp.eq.s32.totalorder %s15, 1
    %p117 = scmp.ne.s32.totalorder %s112, %s114
    %p118 = scmp.eq.s32.totalorder %s15, 0
    %p119 = por %p117, %p118
    %p120 = scmp.ne.s32.totalorder %s112, %s114
    %p121 = scmp.eq.s32.totalorder %s20, 1
    %p122 = por %p120, %p121
    %p123 = scmp.ne.s32.totalorder %s114, %s115
    %p124 = scmp.eq.s32.totalorder %s20, 0
    %p125 = por %p123, %p124
    %p126 = scmp.ne.s32.totalorder %s114, %s115
    %p127 = scmp.eq.s32.totalorder %s21, 1
    %p128 = por %p126, %p127
    %p130 = scmp.ne.s32.totalorder %s115, %s129
    %p131 = scmp.eq.s32.totalorder %s21, 0
    %p132 = por %p130, %p131
    %s134 = sadd.s32 %s133, 1
    %p137 = scmp.eq.s32.totalorder %s15, 1
    %p138 = scmp.ne.s32.totalorder %s133, %s135
    %p139 = scmp.eq.s32.totalorder %s15, 0
    %p140 = por %p138, %p139
    %p141 = scmp.ne.s32.totalorder %s133, %s135
    %p142 = scmp.eq.s32.totalorder %s20, 1
    %p143 = por %p141, %p142
    %p144 = scmp.ne.s32.totalorder %s135, %s136
    %p145 = scmp.eq.s32.totalorder %s20, 0
    %p146 = por %p144, %p145
    %p147 = scmp.ne.s32.totalorder %s135, %s136
    %p148 = scmp.eq.s32.totalorder %s21, 1
    %p149 = por %p147, %p148
    %p151 = scmp.ne.s32.totalorder %s136, %s150
    %p152 = scmp.eq.s32.totalorder %s21, 0
    %p153 = por %p151, %p152
    %s155 = sadd.s32 %s154, 1
    %p158 = scmp.eq.s32.totalorder %s15, 1
    %p159 = scmp.ne.s32.totalorder %s154, %s156
    %p160 = scmp.eq.s32.totalorder %s15, 0
    %p161 = por %p159, %p160
    %p162 = scmp.ne.s32.totalorder %s154, %s156
    %p163 = scmp.eq.s32.totalorder %s20, 1
    %p164 = por %p162, %p163
    %p165 = scmp.ne.s32.totalorder %s156, %s157
    %p166 = scmp.eq.s32.totalorder %s20, 0
    %p167 = por %p165, %p166
    %p168 = scmp.ne.s32.totalorder %s156, %s157
    %p169 = scmp.eq.s32.totalorder %s21, 1
    %p170 = por %p168, %p169
    %p172 = scmp.ne.s32.totalorder %s157, %s171
    %p173 = scmp.eq.s32.totalorder %s21, 0
    %p174 = por %p172, %p173
    %s176 = sadd.s32 %s175, 1
    %p179 = scmp.eq.s32.totalorder %s15, 1
    %p180 = scmp.ne.s32.totalorder %s175, %s177
    %p181 = scmp.eq.s32.totalorder %s15, 0
    %p182 = por %p180, %p181
    %p183 = scmp.ne.s32.totalorder %s175, %s177
    %p184 = scmp.eq.s32.totalorder %s20, 1
    %p185 = por %p183, %p184
    %p186 = scmp.ne.s32.totalorder %s177, %s178
    %p187 = scmp.eq.s32.totalorder %s20, 0
    %p188 = por %p186, %p187
    %p189 = scmp.ne.s32.totalorder %s177, %s178
    %p190 = scmp.eq.s32.totalorder %s21, 1
    %p191 = por %p189, %p190
    %p193 = scmp.ne.s32.totalorder %s178, %s192
    %p194 = scmp.eq.s32.totalorder %s21, 0
    %p195 = por %p193, %p194
    %s197 = sadd.s32 %s196, 1
    %p200 = scmp.eq.s32.totalorder %s15, 1
    %p201 = scmp.ne.s32.totalorder %s196, %s198
    %p202 = scmp.eq.s32.totalorder %s15, 0
    %p203 = por %p201, %p202
    %p204 = scmp.ne.s32.totalorder %s196, %s198
    %p205 = scmp.eq.s32.totalorder %s20, 1
    %p206 = por %p204, %p205
    %p207 = scmp.ne.s32.totalorder %s198, %s199
    %p208 = scmp.eq.s32.totalorder %s20, 0
    %p209 = por %p207, %p208
    %p210 = scmp.ne.s32.totalorder %s198, %s199
    %p211 = scmp.eq.s32.totalorder %s21, 1
    %p212 = por %p210, %p211
    %p214 = scmp.ne.s32.totalorder %s199, %s213
    %p215 = scmp.eq.s32.totalorder %s21, 0
    %p216 = por %p214, %p215
    %s217 = ssub.s32 %s15, %s22
    %p218 = scmp.eq.s32.totalorder %s217, 0
    %s220 = sadd.s32 %s219, 1
    %s221 = scalar_select %p218, %s219, %s220
    %p224 = pneg %p218
    %p225 = scmp.eq.s32.totalorder %s15, 1
    %p226 = por %p224, %p225
    %p227 = scmp.ne.s32.totalorder %s219, %s222
    %p228 = scmp.eq.s32.totalorder %s15, 0
    %p229 = por %p227, %p228
    %p230 = scmp.ne.s32.totalorder %s219, %s222
    %p231 = scmp.eq.s32.totalorder %s20, 1
    %p232 = por %p230, %p231
    %p233 = scmp.ne.s32.totalorder %s222, %s223
    %p234 = scmp.eq.s32.totalorder %s20, 0
    %p235 = por %p233, %p234
    %p236 = scmp.ne.s32.totalorder %s222, %s223
    %p237 = scmp.eq.s32.totalorder %s21, 1
    %p238 = por %p236, %p237
    %p240 = scmp.ne.s32.totalorder %s223, %s239
    %p241 = scmp.eq.s32.totalorder %s21, 0
    %p242 = por %p240, %p241
    %p243 = scmp.le.s32.totalorder 1, %s15
    %p244 = scmp.lt.s32.totalorder %s15, 3
    %p245 = pnand %p243, %p244
    %p246 = pneg %p245
    // Predicated region
    $region9: #{mlp_block.1} parent=5 // pred_check
      _
    $region10: #{mlp_block.1} parent=5 // pred_check_branch
      %248 = sbr.rel (%p245) target = $region12
    $region11: #{mlp_block.1} parent=5 // pred_region
      %s249 = ssub.s32 %s15, 1
      // Predicated region
      $region13: #{mlp_block.1} parent=11 // pred_check
        %p250 = pneg %p62
      $region14: #{mlp_block.1} parent=11 // pred_check_branch
        %252 = sbr.rel (%p250) target = $region16
      $region15: #{mlp_block.1} parent=11 // pred_region
        _
      $region16: #{mlp_block.1} parent=11 // pred_fallthru
        _
      // Predicated region
      $region17: #{mlp_block.1} parent=11 // pred_check
        %p253 = pneg %p83
      $region18: #{mlp_block.1} parent=11 // pred_check_branch
        %255 = sbr.rel (%p253) target = $region20
      $region19: #{mlp_block.1} parent=11 // pred_region
        _
      $region20: #{mlp_block.1} parent=11 // pred_fallthru
        _
      // Predicated region
      $region21: #{mlp_block.1} parent=11 // pred_check
        %p256 = pneg %p104
      $region22: #{mlp_block.1} parent=11 // pred_check_branch
        %258 = sbr.rel (%p256) target = $region24
      $region23: #{mlp_block.1} parent=11 // pred_region
        _
      $region24: #{mlp_block.1} parent=11 // pred_fallthru
        _
      // Predicated region
      $region25: #{mlp_block.1} parent=11 // pred_check
        %p259 = pneg %p125
      $region26: #{mlp_block.1} parent=11 // pred_check_branch
        %261 = sbr.rel (%p259) target = $region28
      $region27: #{mlp_block.1} parent=11 // pred_region
        _
      $region28: #{mlp_block.1} parent=11 // pred_fallthru
        _
      // Predicated region
      $region29: #{mlp_block.1} parent=11 // pred_check
        %p262 = pneg %p146
      $region30: #{mlp_block.1} parent=11 // pred_check_branch
        %264 = sbr.rel (%p262) target = $region32
      $region31: #{mlp_block.1} parent=11 // pred_region
        _
      $region32: #{mlp_block.1} parent=11 // pred_fallthru
        _
      // Predicated region
      $region33: #{mlp_block.1} parent=11 // pred_check
        %p265 = pneg %p167
      $region34: #{mlp_block.1} parent=11 // pred_check_branch
        %267 = sbr.rel (%p265) target = $region36
      $region35: #{mlp_block.1} parent=11 // pred_region
        _
      $region36: #{mlp_block.1} parent=11 // pred_fallthru
        _
      // Predicated region
      $region37: #{mlp_block.1} parent=11 // pred_check
        %p268 = pneg %p188
      $region38: #{mlp_block.1} parent=11 // pred_check_branch
        %270 = sbr.rel (%p268) target = $region40
      $region39: #{mlp_block.1} parent=11 // pred_region
        _
      $region40: #{mlp_block.1} parent=11 // pred_fallthru
        _
      // Predicated region
      $region41: #{mlp_block.1} parent=11 // pred_check
        %p271 = pneg %p209
      $region42: #{mlp_block.1} parent=11 // pred_check_branch
        %273 = sbr.rel (%p271) target = $region44
      $region43: #{mlp_block.1} parent=11 // pred_region
        _
      $region44: #{mlp_block.1} parent=11 // pred_fallthru
        _
    $region12: #{mlp_block.1} parent=5 // pred_fallthru
      _
    %p274 = scmp.lt.s32.totalorder %s15, 2
    // Predicated region
    $region45: #{mlp_block.1} parent=5 // pred_check
      %p275 = pneg %p274
    $region46: #{mlp_block.1} parent=5 // pred_check_branch
      %277 = sbr.rel (%p275) target = $region48
    $region47: #{mlp_block.1} parent=5 // pred_region
      // Predicated region
      $region49: #{mlp_block.1} parent=47 // pred_check
        %p278 = pneg %p35
      $region50: #{mlp_block.1} parent=47 // pred_check_branch
        %280 = sbr.rel (%p278) target = $region52
      $region51: #{mlp_block.1} parent=47 // pred_region
        %s281 = smul.u32 32, %s15
        %p282 = scmp.lt.s32.totalorder %s281, 63
        %s283 = scalar_select %p282, %s281, 63
        %s284 = smul.addr %s283, 8
        %s285 = scalar_lea.vmem %s0, %s284
        %s286 = smul.u32 32, %s15
      $region52: #{mlp_block.1} parent=47 // pred_fallthru
        _
    $region48: #{mlp_block.1} parent=5 // pred_fallthru
      _
    %p287 = scmp.le.s32.totalorder 1, %s15
    %p288 = scmp.lt.s32.totalorder %s15, 3
    %p289 = pnand %p287, %p288
    %p290 = pneg %p289
    // Predicated region
    $region53: #{mlp_block.1} parent=5 // pred_check
      _
    $region54: #{mlp_block.1} parent=5 // pred_check_branch
      %292 = sbr.rel (%p289) target = $region56
    $region55: #{mlp_block.1} parent=5 // pred_region
      %s293 = ssub.s32 %s15, 1
      %s294 = smul.u32 32, %s20
      %p295 = scmp.lt.s32.totalorder %s294, 63
      %s296 = scalar_select %p295, %s294, 63
      %s297 = smul.addr %s296, 8
      %s298 = scalar_lea.vmem %s0, %s297
      %p299 = pneg %p41
      %p300 = pneg %p38
      %p301 = pneg %p62
      %p302 = pneg %p59
      %p303 = pneg %p83
      %p304 = pneg %p80
      %p305 = pneg %p104
      %p306 = pneg %p101
      %p307 = pneg %p125
      %p308 = pneg %p122
      %p309 = pneg %p146
      %p310 = pneg %p143
      %p311 = pneg %p167
      %p312 = pneg %p164
      %p313 = pneg %p188
      %p314 = pneg %p185
      %p315 = pneg %p209
      %p316 = pneg %p206
      %p317 = pneg %p235
      %p318 = pneg %p232
      %s319 = smul.u32 32, %s20
      %p320 = scmp.lt.s32.totalorder %s319, 63
      %s321 = scalar_select %p320, %s319, 63
      %s322 = smul.addr %s321, 8
      %s323 = scalar_lea.vmem %s9, %s322
      %s324 = smul.u32 32, %s20
      %p325 = scmp.lt.s32.totalorder %s324, 63
      %s326 = scalar_select %p325, %s324, 63
      %s327 = smul.addr %s326, 8
      %s328 = scalar_lea.vmem %s0, %s327
      %s329 = smul.u32 32, %s20
      %s330 = smul.u32 32, %s20
      %p331 = scmp.lt.s32.totalorder %s330, 63
      %s332 = scalar_select %p331, %s330, 63
      %s333 = smul.addr %s332, 8
      %s334 = scalar_lea.vmem %s9, %s333
      %s335 = smul.u32 32, %s20
      %v337 = vld [vmem:[%s328] sm:$0xff]
      %v338 = vld [vmem:[%s328 + $0x8] sm:$0xff]
      %v339 = vld [vmem:[%s328 + $0x10] sm:$0xff]
      %v340 = vld [vmem:[%s328 + $0x18] sm:$0xff]
      %v341 = vld [vmem:[%s328 + $0x20] sm:$0xff]
      %v342 = vld [vmem:[%s328 + $0x28] sm:$0xff]
      %v343 = vld [vmem:[%s328 + $0x30] sm:$0xff]
      %v344 = vld [vmem:[%s328 + $0x38] sm:$0xff]
      %v345 = vld [vmem:[%s328 + $0x40] sm:$0xff]
      %v346 = vld [vmem:[%s328 + $0x48] sm:$0xff]
      %v347 = vld [vmem:[%s328 + $0x50] sm:$0xff]
      %v348 = vld [vmem:[%s328 + $0x58] sm:$0xff]
      %v349 = vld [vmem:[%s328 + $0x60] sm:$0xff]
      %v350 = vld [vmem:[%s328 + $0x68] sm:$0xff]
      %v351 = vld [vmem:[%s328 + $0x70] sm:$0xff]
      %v352 = vld [vmem:[%s328 + $0x78] sm:$0xff]
      %v353 = vld [vmem:[%s328 + $0x80] sm:$0xff]
      %v354 = vld [vmem:[%s328 + $0x88] sm:$0xff]
      %v355 = vld [vmem:[%s328 + $0x90] sm:$0xff]
      %v356 = vld [vmem:[%s328 + $0x98] sm:$0xff]
      %v357 = vld [vmem:[%s328 + $0xa0] sm:$0xff]
      %v358 = vld [vmem:[%s328 + $0xa8] sm:$0xff]
      %v359 = vld [vmem:[%s328 + $0xb0] sm:$0xff]
      %v360 = vld [vmem:[%s328 + $0xb8] sm:$0xff]
      %v361 = vld [vmem:[%s328 + $0xc0] sm:$0xff]
      %v362 = vld [vmem:[%s328 + $0xc8] sm:$0xff]
      %v363 = vld [vmem:[%s328 + $0xd0] sm:$0xff]
      %v364 = vld [vmem:[%s328 + $0xd8] sm:$0xff]
      %v365 = vld [vmem:[%s328 + $0xe0] sm:$0xff]
      %v366 = vld [vmem:[%s328 + $0xe8] sm:$0xff]
      %v367 = vld [vmem:[%s328 + $0xf0] sm:$0xff]
      %v368 = vld [vmem:[%s328 + $0xf8] sm:$0xff]
      %v369 = vpack.c.bf16 %v338, %v337
      %v370 = vpack.c.bf16 %v340, %v339
      %v371 = vpack.c.bf16 %v342, %v341
      %v372 = vpack.c.bf16 %v344, %v343
      %v373 = vpack.c.bf16 %v346, %v345
      %v374 = vpack.c.bf16 %v348, %v347
      %v375 = vpack.c.bf16 %v350, %v349
      %v376 = vpack.c.bf16 %v352, %v351
      %v377 = vpack.c.bf16 %v354, %v353
      %v378 = vpack.c.bf16 %v356, %v355
      %v379 = vpack.c.bf16 %v358, %v357
      %v380 = vpack.c.bf16 %v360, %v359
      %v381 = vpack.c.bf16 %v362, %v361
      %v382 = vpack.c.bf16 %v364, %v363
      %v383 = vpack.c.bf16 %v366, %v365
      %v384 = vpack.c.bf16 %v368, %v367
      %v385 = vld [vmem:[%s1] sm:$0xff]
      %v386 = vld [vmem:[%s1 + $0x8] sm:$0xff]
      %v387 = vld [vmem:[%s1 + $0x10] sm:$0xff]
      %v388 = vld [vmem:[%s1 + $0x18] sm:$0xff]
      %v389 = vld [vmem:[%s1 + $0x20] sm:$0xff]
      %v390 = vld [vmem:[%s1 + $0x28] sm:$0xff]
      %v391 = vld [vmem:[%s1 + $0x30] sm:$0xff]
      %v392 = vld [vmem:[%s1 + $0x38] sm:$0xff]
      %v393 = vld [vmem:[%s1 + $0x40] sm:$0xff]
      %v394 = vld [vmem:[%s1 + $0x48] sm:$0xff]
      %v395 = vld [vmem:[%s1 + $0x50] sm:$0xff]
      %v396 = vld [vmem:[%s1 + $0x58] sm:$0xff]
      %v397 = vld [vmem:[%s1 + $0x60] sm:$0xff]
      %v398 = vld [vmem:[%s1 + $0x68] sm:$0xff]
      %v399 = vld [vmem:[%s1 + $0x70] sm:$0xff]
      %v400 = vld [vmem:[%s1 + $0x78] sm:$0xff]
      %v401 = vld [vmem:[%s2] sm:$0xff]
      %v403 = vlaneseq
      %v404 = vshrl.u32 %v403, 7
      %v405 = vsub.s32 0, %v404
      %v406 = vrot.slane %v401, %v405
      %v407 = vlaneseq
      %v408 = vshrl.u32 %v407, 7
      %v409 = vsub.s32 1, %v408
      %v410 = vrot.slane %v401, %v409
      %v411 = vlaneseq
      %v412 = vshrl.u32 %v411, 7
      %v413 = vsub.s32 2, %v412
      %v414 = vrot.slane %v401, %v413
      %v415 = vlaneseq
      %v416 = vshrl.u32 %v415, 7
      %v417 = vsub.s32 3, %v416
      %v418 = vrot.slane %v401, %v417
      %v419 = vlaneseq
      %v420 = vshrl.u32 %v419, 7
      %v421 = vsub.s32 4, %v420
      %v422 = vrot.slane %v401, %v421
      %v423 = vlaneseq
      %v424 = vshrl.u32 %v423, 7
      %v425 = vsub.s32 5, %v424
      %v426 = vrot.slane %v401, %v425
      %v427 = vlaneseq
      %v428 = vshrl.u32 %v427, 7
      %v429 = vsub.s32 6, %v428
      %v430 = vrot.slane %v401, %v429
      %v431 = vlaneseq
      %v432 = vshrl.u32 %v431, 7
      %v433 = vsub.s32 7, %v432
      %v434 = vrot.slane %v401, %v433
      %v459 = vunpack.c.l.b16 %v385
      %v460 = vunpack.c.h.b16 %v385
      %v461 = vunpack.c.l.b16 %v386
      %v462 = vunpack.c.h.b16 %v386
      %v463 = vunpack.c.l.b16 %v387
      %v464 = vunpack.c.h.b16 %v387
      %v465 = vunpack.c.l.b16 %v388
      %v466 = vunpack.c.h.b16 %v388
      %v467 = vunpack.c.l.b16 %v389
      %v468 = vunpack.c.h.b16 %v389
      %v469 = vunpack.c.l.b16 %v390
      %v470 = vunpack.c.h.b16 %v390
      %v471 = vunpack.c.l.b16 %v391
      %v472 = vunpack.c.h.b16 %v391
      %v473 = vunpack.c.l.b16 %v392
      %v474 = vunpack.c.h.b16 %v392
      %v475 = vunpack.c.l.b16 %v393
      %v476 = vunpack.c.h.b16 %v393
      %v477 = vunpack.c.l.b16 %v394
      %v478 = vunpack.c.h.b16 %v394
      %v479 = vunpack.c.l.b16 %v395
      %v480 = vunpack.c.h.b16 %v395
      %v481 = vunpack.c.l.b16 %v396
      %v482 = vunpack.c.h.b16 %v396
      %v483 = vunpack.c.l.b16 %v397
      %v484 = vunpack.c.h.b16 %v397
      %v485 = vunpack.c.l.b16 %v398
      %v486 = vunpack.c.h.b16 %v398
      %v487 = vunpack.c.l.b16 %v399
      %v488 = vunpack.c.h.b16 %v399
      %v489 = vunpack.c.l.b16 %v400
      %v490 = vunpack.c.h.b16 %v400
      %v491 = vpack.c.b16 %v467, %v459
      %v492 = vpack.c.b16 %v468, %v460
      %v493 = vpack.c.b16 %v469, %v461
      %v494 = vpack.c.b16 %v470, %v462
      %v495 = vpack.c.b16 %v471, %v463
      %v496 = vpack.c.b16 %v472, %v464
      %v497 = vpack.c.b16 %v473, %v465
      %v498 = vpack.c.b16 %v474, %v466
      %v499 = vpack.c.b16 %v483, %v475
      %v500 = vpack.c.b16 %v484, %v476
      %v501 = vpack.c.b16 %v485, %v477
      %v502 = vpack.c.b16 %v486, %v478
      %v503 = vpack.c.b16 %v487, %v479
      %v504 = vpack.c.b16 %v488, %v480
      %v505 = vpack.c.b16 %v489, %v481
      %v506 = vpack.c.b16 %v490, %v482
      %vm523 = vcmask 261120
      %v525 = vsel %vm523, %v369, 0
      %v528 = vsel %vm523, %v370, 0
      %v531 = vsel %vm523, %v371, 0
      %v534 = vsel %vm523, %v372, 0
      %v537 = vsel %vm523, %v373, 0
      %v540 = vsel %vm523, %v374, 0
      %v543 = vsel %vm523, %v375, 0
      %v546 = vsel %vm523, %v376, 0
      %v549 = vsel %vm523, %v377, 0
      %v552 = vsel %vm523, %v378, 0
      %v555 = vsel %vm523, %v379, 0
      %v558 = vsel %vm523, %v380, 0
      %v561 = vsel %vm523, %v381, 0
      %v564 = vsel %vm523, %v382, 0
      %v567 = vsel %vm523, %v383, 0
      %v570 = vsel %vm523, %v384, 0
      %572 = vmatprep.subr.bf16.mxu0 0
      %573 = vmatpush1.bf16.msra.mxu0 0
      %574 = vmatprep.subr.bf16.mxu0 0
      %575 = vmatpush1.bf16.msra.mxu0 0
      %576 = vmatprep.subr.bf16.mxu0 0
      %577 = vmatpush1.bf16.msra.mxu0 0
      %578 = vmatprep.subr.bf16.mxu0 0
      %579 = vmatpush1.bf16.msra.mxu0 0
      %580 = vmatprep.subr.bf16.mxu0 0
      %581 = vmatpush1.bf16.msra.mxu0 0
      %582 = vmatprep.subr.bf16.mxu0 0
      %583 = vmatpush1.bf16.msra.mxu0 0
      %584 = vmatprep.subr.bf16.mxu0 %v500
      %585 = vmatpush1.bf16.msra.mxu0 %v499
      %586 = vmatprep.subr.bf16.mxu0 %v492
      %587 = vmatpush1.bf16.msra.mxu0 %v491
      %588 = vmatprep.subr.bf16.mxu0 0
      %589 = vmatpush2.bf16.msra.mxu0 0
      %590 = vmatprep.subr.bf16.mxu0 0
      %591 = vmatpush2.bf16.msra.mxu0 0
      %592 = vmatprep.subr.bf16.mxu0 0
      %593 = vmatpush2.bf16.msra.mxu0 0
      %594 = vmatprep.subr.bf16.mxu0 0
      %595 = vmatpush2.bf16.msra.mxu0 0
      %596 = vmatprep.subr.bf16.mxu0 0
      %597 = vmatpush2.bf16.msra.mxu0 0
      %598 = vmatprep.subr.bf16.mxu0 0
      %599 = vmatpush2.bf16.msra.mxu0 0
      %600 = vmatprep.subr.bf16.mxu0 0
      %601 = vmatpush2.bf16.msra.mxu0 0
      %602 = vmatprep.subr.bf16.mxu0 0
      %603 = vmatpush2.bf16.msra.mxu0 0
      %604 = vmatprep.mubr.bf16.mxu0 0
      %605 = vmatmul.mubr.bf16.gmra.mxu0 %v525
      %v606 = vpop.f32.mrf.mxu0
      %v607 = vadd.f32 %v406, %v606
      %v608 = vpop.f32.mrf.mxu0
      %v609 = vadd.f32 %v410, %v608
      %v610 = vpop.f32.mrf.mxu0
      %v611 = vadd.f32 %v406, %v610
      %v612 = vpop.f32.mrf.mxu0
      %v613 = vadd.f32 %v410, %v612
      %614 = vmatprep.mubr.bf16.mxu0 0
      %615 = vmatmul.mubr.bf16.gmra.mxu0 %v528
      %v616 = vpop.f32.mrf.mxu0
      %v617 = vadd.f32 %v406, %v616
      %v618 = vpop.f32.mrf.mxu0
      %v619 = vadd.f32 %v410, %v618
      %v620 = vpop.f32.mrf.mxu0
      %v621 = vadd.f32 %v406, %v620
      %v622 = vpop.f32.mrf.mxu0
      %v623 = vadd.f32 %v410, %v622
      %624 = vmatprep.mubr.bf16.mxu0 0
      %625 = vmatmul.mubr.bf16.gmra.mxu0 %v531
      %v626 = vpop.f32.mrf.mxu0
      %v627 = vadd.f32 %v406, %v626
      %v628 = vpop.f32.mrf.mxu0
      %v629 = vadd.f32 %v410, %v628
      %v630 = vpop.f32.mrf.mxu0
      %v631 = vadd.f32 %v406, %v630
      %v632 = vpop.f32.mrf.mxu0
      %v633 = vadd.f32 %v410, %v632
      %634 = vmatprep.mubr.bf16.mxu0 0
      %635 = vmatmul.mubr.bf16.gmra.mxu0 %v534
      %v636 = vpop.f32.mrf.mxu0
      %v637 = vadd.f32 %v406, %v636
      %v638 = vpop.f32.mrf.mxu0
      %v639 = vadd.f32 %v410, %v638
      %v640 = vpop.f32.mrf.mxu0
      %v641 = vadd.f32 %v406, %v640
      %v642 = vpop.f32.mrf.mxu0
      %v643 = vadd.f32 %v410, %v642
      %644 = vmatprep.mubr.bf16.mxu0 0
      %645 = vmatmul.mubr.bf16.gmra.mxu0 %v537
      %v646 = vpop.f32.mrf.mxu0
      %v647 = vadd.f32 %v406, %v646
      %v648 = vpop.f32.mrf.mxu0
      %v649 = vadd.f32 %v410, %v648
      %v650 = vpop.f32.mrf.mxu0
      %v651 = vadd.f32 %v406, %v650
      %v652 = vpop.f32.mrf.mxu0
      %v653 = vadd.f32 %v410, %v652
      %654 = vmatprep.mubr.bf16.mxu0 0
      %655 = vmatmul.mubr.bf16.gmra.mxu0 %v540
      %v656 = vpop.f32.mrf.mxu0
      %v657 = vadd.f32 %v406, %v656
      %v658 = vpop.f32.mrf.mxu0
      %v659 = vadd.f32 %v410, %v658
      %v660 = vpop.f32.mrf.mxu0
      %v661 = vadd.f32 %v406, %v660
      %v662 = vpop.f32.mrf.mxu0
      %v663 = vadd.f32 %v410, %v662
      %664 = vmatprep.mubr.bf16.mxu0 0
      %665 = vmatmul.mubr.bf16.gmra.mxu0 %v543
      %v666 = vpop.f32.mrf.mxu0
      %v667 = vadd.f32 %v406, %v666
      %v668 = vpop.f32.mrf.mxu0
      %v669 = vadd.f32 %v410, %v668
      %v670 = vpop.f32.mrf.mxu0
      %v671 = vadd.f32 %v406, %v670
      %v672 = vpop.f32.mrf.mxu0
      %v673 = vadd.f32 %v410, %v672
      %674 = vmatprep.mubr.bf16.mxu0 0
      %675 = vmatmul.mubr.bf16.gmra.mxu0 %v546
      %v676 = vpop.f32.mrf.mxu0
      %v677 = vadd.f32 %v406, %v676
      %v678 = vpop.f32.mrf.mxu0
      %v679 = vadd.f32 %v410, %v678
      %v680 = vpop.f32.mrf.mxu0
      %v681 = vadd.f32 %v406, %v680
      %v682 = vpop.f32.mrf.mxu0
      %v683 = vadd.f32 %v410, %v682
      %684 = vmatprep.mubr.bf16.mxu0 0
      %685 = vmatmul.mubr.bf16.gmra.mxu0 %v549
      %v686 = vpop.f32.mrf.mxu0
      %v687 = vadd.f32 %v406, %v686
      %v688 = vpop.f32.mrf.mxu0
      %v689 = vadd.f32 %v410, %v688
      %v690 = vpop.f32.mrf.mxu0
      %v691 = vadd.f32 %v406, %v690
      %v692 = vpop.f32.mrf.mxu0
      %v693 = vadd.f32 %v410, %v692
      %694 = vmatprep.mubr.bf16.mxu0 0
      %695 = vmatmul.mubr.bf16.gmra.mxu0 %v552
      %v696 = vpop.f32.mrf.mxu0
      %v697 = vadd.f32 %v406, %v696
      %v698 = vpop.f32.mrf.mxu0
      %v699 = vadd.f32 %v410, %v698
      %v700 = vpop.f32.mrf.mxu0
      %v701 = vadd.f32 %v406, %v700
      %v702 = vpop.f32.mrf.mxu0
      %v703 = vadd.f32 %v410, %v702
      %704 = vmatprep.mubr.bf16.mxu0 0
      %705 = vmatmul.mubr.bf16.gmra.mxu0 %v555
      %v706 = vpop.f32.mrf.mxu0
      %v707 = vadd.f32 %v406, %v706
      %v708 = vpop.f32.mrf.mxu0
      %v709 = vadd.f32 %v410, %v708
      %v710 = vpop.f32.mrf.mxu0
      %v711 = vadd.f32 %v406, %v710
      %v712 = vpop.f32.mrf.mxu0
      %v713 = vadd.f32 %v410, %v712
      %714 = vmatprep.mubr.bf16.mxu0 0
      %715 = vmatmul.mubr.bf16.gmra.mxu0 %v558
      %v716 = vpop.f32.mrf.mxu0
      %v717 = vadd.f32 %v406, %v716
      %v718 = vpop.f32.mrf.mxu0
      %v719 = vadd.f32 %v410, %v718
      %v720 = vpop.f32.mrf.mxu0
      %v721 = vadd.f32 %v406, %v720
      %v722 = vpop.f32.mrf.mxu0
      %v723 = vadd.f32 %v410, %v722
      %724 = vmatprep.mubr.bf16.mxu0 0
      %725 = vmatmul.mubr.bf16.gmra.mxu0 %v561
      %v726 = vpop.f32.mrf.mxu0
      %v727 = vadd.f32 %v406, %v726
      %v728 = vpop.f32.mrf.mxu0
      %v729 = vadd.f32 %v410, %v728
      %v730 = vpop.f32.mrf.mxu0
      %v731 = vadd.f32 %v406, %v730
      %v732 = vpop.f32.mrf.mxu0
      %v733 = vadd.f32 %v410, %v732
      %734 = vmatprep.mubr.bf16.mxu0 0
      %735 = vmatmul.mubr.bf16.gmra.mxu0 %v564
      %v736 = vpop.f32.mrf.mxu0
      %v737 = vadd.f32 %v406, %v736
      %v738 = vpop.f32.mrf.mxu0
      %v739 = vadd.f32 %v410, %v738
      %v740 = vpop.f32.mrf.mxu0
      %v741 = vadd.f32 %v406, %v740
      %v742 = vpop.f32.mrf.mxu0
      %v743 = vadd.f32 %v410, %v742
      %744 = vmatprep.mubr.bf16.mxu0 0
      %745 = vmatmul.mubr.bf16.gmra.mxu0 %v567
      %v746 = vpop.f32.mrf.mxu0
      %v747 = vadd.f32 %v406, %v746
      %v748 = vpop.f32.mrf.mxu0
      %v749 = vadd.f32 %v410, %v748
      %v750 = vpop.f32.mrf.mxu0
      %v751 = vadd.f32 %v406, %v750
      %v752 = vpop.f32.mrf.mxu0
      %v753 = vadd.f32 %v410, %v752
      %754 = vmatprep.mubr.bf16.mxu0 0
      %755 = vmatmul.mubr.bf16.gmra.mxu0 %v570
      %v756 = vpop.f32.mrf.mxu0
      %v757 = vadd.f32 %v406, %v756
      %v758 = vpop.f32.mrf.mxu0
      %v759 = vadd.f32 %v410, %v758
      %v760 = vpop.f32.mrf.mxu0
      %v761 = vadd.f32 %v406, %v760
      %v762 = vpop.f32.mrf.mxu0
      %v763 = vadd.f32 %v410, %v762
      %764 = vdwg.mxu0
      %765 = vmatprep.subr.bf16.mxu0 0
      %766 = vmatpush1.bf16.msra.mxu0 0
      %767 = vmatprep.subr.bf16.mxu0 0
      %768 = vmatpush1.bf16.msra.mxu0 0
      %769 = vmatprep.subr.bf16.mxu0 0
      %770 = vmatpush1.bf16.msra.mxu0 0
      %771 = vmatprep.subr.bf16.mxu0 0
      %772 = vmatpush1.bf16.msra.mxu0 0
      %773 = vmatprep.subr.bf16.mxu0 0
      %774 = vmatpush1.bf16.msra.mxu0 0
      %775 = vmatprep.subr.bf16.mxu0 0
      %776 = vmatpush1.bf16.msra.mxu0 0
      %777 = vmatprep.subr.bf16.mxu0 %v502
      %778 = vmatpush1.bf16.msra.mxu0 %v501
      %779 = vmatprep.subr.bf16.mxu0 %v494
      %780 = vmatpush1.bf16.msra.mxu0 %v493
      %781 = vmatprep.subr.bf16.mxu0 0
      %782 = vmatpush2.bf16.msra.mxu0 0
      %783 = vmatprep.subr.bf16.mxu0 0
      %784 = vmatpush2.bf16.msra.mxu0 0
      %785 = vmatprep.subr.bf16.mxu0 0
      %786 = vmatpush2.bf16.msra.mxu0 0
      %787 = vmatprep.subr.bf16.mxu0 0
      %788 = vmatpush2.bf16.msra.mxu0 0
      %789 = vmatprep.subr.bf16.mxu0 0
      %790 = vmatpush2.bf16.msra.mxu0 0
      %791 = vmatprep.subr.bf16.mxu0 0
      %792 = vmatpush2.bf16.msra.mxu0 0
      %793 = vmatprep.subr.bf16.mxu0 0
      %794 = vmatpush2.bf16.msra.mxu0 0
      %795 = vmatprep.subr.bf16.mxu0 0
      %796 = vmatpush2.bf16.msra.mxu0 0
      %797 = vmatprep.mubr.bf16.mxu0 0
      %798 = vmatmul.mubr.bf16.gmra.mxu0 %v525
      %v799 = vpop.f32.mrf.mxu0
      %v800 = vadd.f32 %v414, %v799
      %v801 = vpop.f32.mrf.mxu0
      %v802 = vadd.f32 %v418, %v801
      %v803 = vpop.f32.mrf.mxu0
      %v804 = vadd.f32 %v414, %v803
      %v805 = vpop.f32.mrf.mxu0
      %v806 = vadd.f32 %v418, %v805
      %807 = vmatprep.mubr.bf16.mxu0 0
      %808 = vmatmul.mubr.bf16.gmra.mxu0 %v528
      %v809 = vpop.f32.mrf.mxu0
      %v810 = vadd.f32 %v414, %v809
      %v811 = vpop.f32.mrf.mxu0
      %v812 = vadd.f32 %v418, %v811
      %v813 = vpop.f32.mrf.mxu0
      %v814 = vadd.f32 %v414, %v813
      %v815 = vpop.f32.mrf.mxu0
      %v816 = vadd.f32 %v418, %v815
      %817 = vmatprep.mubr.bf16.mxu0 0
      %818 = vmatmul.mubr.bf16.gmra.mxu0 %v531
      %v819 = vpop.f32.mrf.mxu0
      %v820 = vadd.f32 %v414, %v819
      %v821 = vpop.f32.mrf.mxu0
      %v822 = vadd.f32 %v418, %v821
      %v823 = vpop.f32.mrf.mxu0
      %v824 = vadd.f32 %v414, %v823
      %v825 = vpop.f32.mrf.mxu0
      %v826 = vadd.f32 %v418, %v825
      %827 = vmatprep.mubr.bf16.mxu0 0
      %828 = vmatmul.mubr.bf16.gmra.mxu0 %v534
      %v829 = vpop.f32.mrf.mxu0
      %v830 = vadd.f32 %v414, %v829
      %v831 = vpop.f32.mrf.mxu0
      %v832 = vadd.f32 %v418, %v831
      %v833 = vpop.f32.mrf.mxu0
      %v834 = vadd.f32 %v414, %v833
      %v835 = vpop.f32.mrf.mxu0
      %v836 = vadd.f32 %v418, %v835
      %837 = vmatprep.mubr.bf16.mxu0 0
      %838 = vmatmul.mubr.bf16.gmra.mxu0 %v537
      %v839 = vpop.f32.mrf.mxu0
      %v840 = vadd.f32 %v414, %v839
      %v841 = vpop.f32.mrf.mxu0
      %v842 = vadd.f32 %v418, %v841
      %v843 = vpop.f32.mrf.mxu0
      %v844 = vadd.f32 %v414, %v843
      %v845 = vpop.f32.mrf.mxu0
      %v846 = vadd.f32 %v418, %v845
      %847 = vmatprep.mubr.bf16.mxu0 0
      %848 = vmatmul.mubr.bf16.gmra.mxu0 %v540
      %v849 = vpop.f32.mrf.mxu0
      %v850 = vadd.f32 %v414, %v849
      %v851 = vpop.f32.mrf.mxu0
      %v852 = vadd.f32 %v418, %v851
      %v853 = vpop.f32.mrf.mxu0
      %v854 = vadd.f32 %v414, %v853
      %v855 = vpop.f32.mrf.mxu0
      %v856 = vadd.f32 %v418, %v855
      %857 = vmatprep.mubr.bf16.mxu0 0
      %858 = vmatmul.mubr.bf16.gmra.mxu0 %v543
      %v859 = vpop.f32.mrf.mxu0
      %v860 = vadd.f32 %v414, %v859
      %v861 = vpop.f32.mrf.mxu0
      %v862 = vadd.f32 %v418, %v861
      %v863 = vpop.f32.mrf.mxu0
      %v864 = vadd.f32 %v414, %v863
      %v865 = vpop.f32.mrf.mxu0
      %v866 = vadd.f32 %v418, %v865
      %867 = vmatprep.mubr.bf16.mxu0 0
      %868 = vmatmul.mubr.bf16.gmra.mxu0 %v546
      %v869 = vpop.f32.mrf.mxu0
      %v870 = vadd.f32 %v414, %v869
      %v871 = vpop.f32.mrf.mxu0
      %v872 = vadd.f32 %v418, %v871
      %v873 = vpop.f32.mrf.mxu0
      %v874 = vadd.f32 %v414, %v873
      %v875 = vpop.f32.mrf.mxu0
      %v876 = vadd.f32 %v418, %v875
      %877 = vmatprep.mubr.bf16.mxu0 0
      %878 = vmatmul.mubr.bf16.gmra.mxu0 %v549
      %v879 = vpop.f32.mrf.mxu0
      %v880 = vadd.f32 %v414, %v879
      %v881 = vpop.f32.mrf.mxu0
      %v882 = vadd.f32 %v418, %v881
      %v883 = vpop.f32.mrf.mxu0
      %v884 = vadd.f32 %v414, %v883
      %v885 = vpop.f32.mrf.mxu0
      %v886 = vadd.f32 %v418, %v885
      %887 = vmatprep.mubr.bf16.mxu0 0
      %888 = vmatmul.mubr.bf16.gmra.mxu0 %v552
      %v889 = vpop.f32.mrf.mxu0
      %v890 = vadd.f32 %v414, %v889
      %v891 = vpop.f32.mrf.mxu0
      %v892 = vadd.f32 %v418, %v891
      %v893 = vpop.f32.mrf.mxu0
      %v894 = vadd.f32 %v414, %v893
      %v895 = vpop.f32.mrf.mxu0
      %v896 = vadd.f32 %v418, %v895
      %897 = vmatprep.mubr.bf16.mxu0 0
      %898 = vmatmul.mubr.bf16.gmra.mxu0 %v555
      %v899 = vpop.f32.mrf.mxu0
      %v900 = vadd.f32 %v414, %v899
      %v901 = vpop.f32.mrf.mxu0
      %v902 = vadd.f32 %v418, %v901
      %v903 = vpop.f32.mrf.mxu0
      %v904 = vadd.f32 %v414, %v903
      %v905 = vpop.f32.mrf.mxu0
      %v906 = vadd.f32 %v418, %v905
      %907 = vmatprep.mubr.bf16.mxu0 0
      %908 = vmatmul.mubr.bf16.gmra.mxu0 %v558
      %v909 = vpop.f32.mrf.mxu0
      %v910 = vadd.f32 %v414, %v909
      %v911 = vpop.f32.mrf.mxu0
      %v912 = vadd.f32 %v418, %v911
      %v913 = vpop.f32.mrf.mxu0
      %v914 = vadd.f32 %v414, %v913
      %v915 = vpop.f32.mrf.mxu0
      %v916 = vadd.f32 %v418, %v915
      %917 = vmatprep.mubr.bf16.mxu0 0
      %918 = vmatmul.mubr.bf16.gmra.mxu0 %v561
      %v919 = vpop.f32.mrf.mxu0
      %v920 = vadd.f32 %v414, %v919
      %v921 = vpop.f32.mrf.mxu0
      %v922 = vadd.f32 %v418, %v921
      %v923 = vpop.f32.mrf.mxu0
      %v924 = vadd.f32 %v414, %v923
      %v925 = vpop.f32.mrf.mxu0
      %v926 = vadd.f32 %v418, %v925
      %927 = vmatprep.mubr.bf16.mxu0 0
      %928 = vmatmul.mubr.bf16.gmra.mxu0 %v564
      %v929 = vpop.f32.mrf.mxu0
      %v930 = vadd.f32 %v414, %v929
      %v931 = vpop.f32.mrf.mxu0
      %v932 = vadd.f32 %v418, %v931
      %v933 = vpop.f32.mrf.mxu0
      %v934 = vadd.f32 %v414, %v933
      %v935 = vpop.f32.mrf.mxu0
      %v936 = vadd.f32 %v418, %v935
      %937 = vmatprep.mubr.bf16.mxu0 0
      %938 = vmatmul.mubr.bf16.gmra.mxu0 %v567
      %v939 = vpop.f32.mrf.mxu0
      %v940 = vadd.f32 %v414, %v939
      %v941 = vpop.f32.mrf.mxu0
      %v942 = vadd.f32 %v418, %v941
      %v943 = vpop.f32.mrf.mxu0
      %v944 = vadd.f32 %v414, %v943
      %v945 = vpop.f32.mrf.mxu0
      %v946 = vadd.f32 %v418, %v945
      %947 = vmatprep.mubr.bf16.mxu0 0
      %948 = vmatmul.mubr.bf16.gmra.mxu0 %v570
      %v949 = vpop.f32.mrf.mxu0
      %v950 = vadd.f32 %v414, %v949
      %v951 = vpop.f32.mrf.mxu0
      %v952 = vadd.f32 %v418, %v951
      %v953 = vpop.f32.mrf.mxu0
      %v954 = vadd.f32 %v414, %v953
      %v955 = vpop.f32.mrf.mxu0
      %v956 = vadd.f32 %v418, %v955
      %957 = vdwg.mxu0
      %958 = vmatprep.subr.bf16.mxu0 0
      %959 = vmatpush1.bf16.msra.mxu0 0
      %960 = vmatprep.subr.bf16.mxu0 0
      %961 = vmatpush1.bf16.msra.mxu0 0
      %962 = vmatprep.subr.bf16.mxu0 0
      %963 = vmatpush1.bf16.msra.mxu0 0
      %964 = vmatprep.subr.bf16.mxu0 0
      %965 = vmatpush1.bf16.msra.mxu0 0
      %966 = vmatprep.subr.bf16.mxu0 0
      %967 = vmatpush1.bf16.msra.mxu0 0
      %968 = vmatprep.subr.bf16.mxu0 0
      %969 = vmatpush1.bf16.msra.mxu0 0
      %970 = vmatprep.subr.bf16.mxu0 %v504
      %971 = vmatpush1.bf16.msra.mxu0 %v503
      %972 = vmatprep.subr.bf16.mxu0 %v496
      %973 = vmatpush1.bf16.msra.mxu0 %v495
      %974 = vmatprep.subr.bf16.mxu0 0
      %975 = vmatpush2.bf16.msra.mxu0 0
      %976 = vmatprep.subr.bf16.mxu0 0
      %977 = vmatpush2.bf16.msra.mxu0 0
      %978 = vmatprep.subr.bf16.mxu0 0
      %979 = vmatpush2.bf16.msra.mxu0 0
      %980 = vmatprep.subr.bf16.mxu0 0
      %981 = vmatpush2.bf16.msra.mxu0 0
      %982 = vmatprep.subr.bf16.mxu0 0
      %983 = vmatpush2.bf16.msra.mxu0 0
      %984 = vmatprep.subr.bf16.mxu0 0
      %985 = vmatpush2.bf16.msra.mxu0 0
      %986 = vmatprep.subr.bf16.mxu0 0
      %987 = vmatpush2.bf16.msra.mxu0 0
      %988 = vmatprep.subr.bf16.mxu0 0
      %989 = vmatpush2.bf16.msra.mxu0 0
      %990 = vmatprep.mubr.bf16.mxu0 0
      %991 = vmatmul.mubr.bf16.gmra.mxu0 %v525
      %v992 = vpop.f32.mrf.mxu0
      %v993 = vadd.f32 %v422, %v992
      %v994 = vpop.f32.mrf.mxu0
      %v995 = vadd.f32 %v426, %v994
      %v996 = vpop.f32.mrf.mxu0
      %v997 = vadd.f32 %v422, %v996
      %v998 = vpop.f32.mrf.mxu0
      %v999 = vadd.f32 %v426, %v998
      %1000 = vmatprep.mubr.bf16.mxu0 0
      %1001 = vmatmul.mubr.bf16.gmra.mxu0 %v528
      %v1002 = vpop.f32.mrf.mxu0
      %v1003 = vadd.f32 %v422, %v1002
      %v1004 = vpop.f32.mrf.mxu0
      %v1005 = vadd.f32 %v426, %v1004
      %v1006 = vpop.f32.mrf.mxu0
      %v1007 = vadd.f32 %v422, %v1006
      %v1008 = vpop.f32.mrf.mxu0
      %v1009 = vadd.f32 %v426, %v1008
      %1010 = vmatprep.mubr.bf16.mxu0 0
      %1011 = vmatmul.mubr.bf16.gmra.mxu0 %v531
      %v1012 = vpop.f32.mrf.mxu0
      %v1013 = vadd.f32 %v422, %v1012
      %v1014 = vpop.f32.mrf.mxu0
      %v1015 = vadd.f32 %v426, %v1014
      %v1016 = vpop.f32.mrf.mxu0
      %v1017 = vadd.f32 %v422, %v1016
      %v1018 = vpop.f32.mrf.mxu0
      %v1019 = vadd.f32 %v426, %v1018
      %1020 = vmatprep.mubr.bf16.mxu0 0
      %1021 = vmatmul.mubr.bf16.gmra.mxu0 %v534
      %v1022 = vpop.f32.mrf.mxu0
      %v1023 = vadd.f32 %v422, %v1022
      %v1024 = vpop.f32.mrf.mxu0
      %v1025 = vadd.f32 %v426, %v1024
      %v1026 = vpop.f32.mrf.mxu0
      %v1027 = vadd.f32 %v422, %v1026
      %v1028 = vpop.f32.mrf.mxu0
      %v1029 = vadd.f32 %v426, %v1028
      %1030 = vmatprep.mubr.bf16.mxu0 0
      %1031 = vmatmul.mubr.bf16.gmra.mxu0 %v537
      %v1032 = vpop.f32.mrf.mxu0
      %v1033 = vadd.f32 %v422, %v1032
      %v1034 = vpop.f32.mrf.mxu0
      %v1035 = vadd.f32 %v426, %v1034
      %v1036 = vpop.f32.mrf.mxu0
      %v1037 = vadd.f32 %v422, %v1036
      %v1038 = vpop.f32.mrf.mxu0
      %v1039 = vadd.f32 %v426, %v1038
      %1040 = vmatprep.mubr.bf16.mxu0 0
      %1041 = vmatmul.mubr.bf16.gmra.mxu0 %v540
      %v1042 = vpop.f32.mrf.mxu0
      %v1043 = vadd.f32 %v422, %v1042
      %v1044 = vpop.f32.mrf.mxu0
      %v1045 = vadd.f32 %v426, %v1044
      %v1046 = vpop.f32.mrf.mxu0
      %v1047 = vadd.f32 %v422, %v1046
      %v1048 = vpop.f32.mrf.mxu0
      %v1049 = vadd.f32 %v426, %v1048
      %1050 = vmatprep.mubr.bf16.mxu0 0
      %1051 = vmatmul.mubr.bf16.gmra.mxu0 %v543
      %v1052 = vpop.f32.mrf.mxu0
      %v1053 = vadd.f32 %v422, %v1052
      %v1054 = vpop.f32.mrf.mxu0
      %v1055 = vadd.f32 %v426, %v1054
      %v1056 = vpop.f32.mrf.mxu0
      %v1057 = vadd.f32 %v422, %v1056
      %v1058 = vpop.f32.mrf.mxu0
      %v1059 = vadd.f32 %v426, %v1058
      %1060 = vmatprep.mubr.bf16.mxu0 0
      %1061 = vmatmul.mubr.bf16.gmra.mxu0 %v546
      %v1062 = vpop.f32.mrf.mxu0
      %v1063 = vadd.f32 %v422, %v1062
      %v1064 = vpop.f32.mrf.mxu0
      %v1065 = vadd.f32 %v426, %v1064
      %v1066 = vpop.f32.mrf.mxu0
      %v1067 = vadd.f32 %v422, %v1066
      %v1068 = vpop.f32.mrf.mxu0
      %v1069 = vadd.f32 %v426, %v1068
      %1070 = vmatprep.mubr.bf16.mxu0 0
      %1071 = vmatmul.mubr.bf16.gmra.mxu0 %v549
      %v1072 = vpop.f32.mrf.mxu0
      %v1073 = vadd.f32 %v422, %v1072
      %v1074 = vpop.f32.mrf.mxu0
      %v1075 = vadd.f32 %v426, %v1074
      %v1076 = vpop.f32.mrf.mxu0
      %v1077 = vadd.f32 %v422, %v1076
      %v1078 = vpop.f32.mrf.mxu0
      %v1079 = vadd.f32 %v426, %v1078
      %1080 = vmatprep.mubr.bf16.mxu0 0
      %1081 = vmatmul.mubr.bf16.gmra.mxu0 %v552
      %v1082 = vpop.f32.mrf.mxu0
      %v1083 = vadd.f32 %v422, %v1082
      %v1084 = vpop.f32.mrf.mxu0
      %v1085 = vadd.f32 %v426, %v1084
      %v1086 = vpop.f32.mrf.mxu0
      %v1087 = vadd.f32 %v422, %v1086
      %v1088 = vpop.f32.mrf.mxu0
      %v1089 = vadd.f32 %v426, %v1088
      %1090 = vmatprep.mubr.bf16.mxu0 0
      %1091 = vmatmul.mubr.bf16.gmra.mxu0 %v555
      %v1092 = vpop.f32.mrf.mxu0
      %v1093 = vadd.f32 %v422, %v1092
      %v1094 = vpop.f32.mrf.mxu0
      %v1095 = vadd.f32 %v426, %v1094
      %v1096 = vpop.f32.mrf.mxu0
      %v1097 = vadd.f32 %v422, %v1096
      %v1098 = vpop.f32.mrf.mxu0
      %v1099 = vadd.f32 %v426, %v1098
      %1100 = vmatprep.mubr.bf16.mxu0 0
      %1101 = vmatmul.mubr.bf16.gmra.mxu0 %v558
      %v1102 = vpop.f32.mrf.mxu0
      %v1103 = vadd.f32 %v422, %v1102
      %v1104 = vpop.f32.mrf.mxu0
      %v1105 = vadd.f32 %v426, %v1104
      %v1106 = vpop.f32.mrf.mxu0
      %v1107 = vadd.f32 %v422, %v1106
      %v1108 = vpop.f32.mrf.mxu0
      %v1109 = vadd.f32 %v426, %v1108
      %1110 = vmatprep.mubr.bf16.mxu0 0
      %1111 = vmatmul.mubr.bf16.gmra.mxu0 %v561
      %v1112 = vpop.f32.mrf.mxu0
      %v1113 = vadd.f32 %v422, %v1112
      %v1114 = vpop.f32.mrf.mxu0
      %v1115 = vadd.f32 %v426, %v1114
      %v1116 = vpop.f32.mrf.mxu0
      %v1117 = vadd.f32 %v422, %v1116
      %v1118 = vpop.f32.mrf.mxu0
      %v1119 = vadd.f32 %v426, %v1118
      %1120 = vmatprep.mubr.bf16.mxu0 0
      %1121 = vmatmul.mubr.bf16.gmra.mxu0 %v564
      %v1122 = vpop.f32.mrf.mxu0
      %v1123 = vadd.f32 %v422, %v1122
      %v1124 = vpop.f32.mrf.mxu0
      %v1125 = vadd.f32 %v426, %v1124
      %v1126 = vpop.f32.mrf.mxu0
      %v1127 = vadd.f32 %v422, %v1126
      %v1128 = vpop.f32.mrf.mxu0
      %v1129 = vadd.f32 %v426, %v1128
      %1130 = vmatprep.mubr.bf16.mxu0 0
      %1131 = vmatmul.mubr.bf16.gmra.mxu0 %v567
      %v1132 = vpop.f32.mrf.mxu0
      %v1133 = vadd.f32 %v422, %v1132
      %v1134 = vpop.f32.mrf.mxu0
      %v1135 = vadd.f32 %v426, %v1134
      %v1136 = vpop.f32.mrf.mxu0
      %v1137 = vadd.f32 %v422, %v1136
      %v1138 = vpop.f32.mrf.mxu0
      %v1139 = vadd.f32 %v426, %v1138
      %1140 = vmatprep.mubr.bf16.mxu0 0
      %1141 = vmatmul.mubr.bf16.gmra.mxu0 %v570
      %v1142 = vpop.f32.mrf.mxu0
      %v1143 = vadd.f32 %v422, %v1142
      %v1144 = vpop.f32.mrf.mxu0
      %v1145 = vadd.f32 %v426, %v1144
      %v1146 = vpop.f32.mrf.mxu0
      %v1147 = vadd.f32 %v422, %v1146
      %v1148 = vpop.f32.mrf.mxu0
      %v1149 = vadd.f32 %v426, %v1148
      %1150 = vdwg.mxu0
      %1151 = vmatprep.subr.bf16.mxu0 0
      %1152 = vmatpush1.bf16.msra.mxu0 0
      %1153 = vmatprep.subr.bf16.mxu0 0
      %1154 = vmatpush1.bf16.msra.mxu0 0
      %1155 = vmatprep.subr.bf16.mxu0 0
      %1156 = vmatpush1.bf16.msra.mxu0 0
      %1157 = vmatprep.subr.bf16.mxu0 0
      %1158 = vmatpush1.bf16.msra.mxu0 0
      %1159 = vmatprep.subr.bf16.mxu0 0
      %1160 = vmatpush1.bf16.msra.mxu0 0
      %1161 = vmatprep.subr.bf16.mxu0 0
      %1162 = vmatpush1.bf16.msra.mxu0 0
      %1163 = vmatprep.subr.bf16.mxu0 %v506
      %1164 = vmatpush1.bf16.msra.mxu0 %v505
      %1165 = vmatprep.subr.bf16.mxu0 %v498
      %1166 = vmatpush1.bf16.msra.mxu0 %v497
      %1167 = vmatprep.subr.bf16.mxu0 0
      %1168 = vmatpush2.bf16.msra.mxu0 0
      %1169 = vmatprep.subr.bf16.mxu0 0
      %1170 = vmatpush2.bf16.msra.mxu0 0
      %1171 = vmatprep.subr.bf16.mxu0 0
      %1172 = vmatpush2.bf16.msra.mxu0 0
      %1173 = vmatprep.subr.bf16.mxu0 0
      %1174 = vmatpush2.bf16.msra.mxu0 0
      %1175 = vmatprep.subr.bf16.mxu0 0
      %1176 = vmatpush2.bf16.msra.mxu0 0
      %1177 = vmatprep.subr.bf16.mxu0 0
      %1178 = vmatpush2.bf16.msra.mxu0 0
      %1179 = vmatprep.subr.bf16.mxu0 0
      %1180 = vmatpush2.bf16.msra.mxu0 0
      %1181 = vmatprep.subr.bf16.mxu0 0
      %1182 = vmatpush2.bf16.msra.mxu0 0
      %1183 = vmatprep.mubr.bf16.mxu0 0
      %1184 = vmatmul.mubr.bf16.gmra.mxu0 %v525
      %v1185 = vpop.f32.mrf.mxu0
      %v1186 = vadd.f32 %v430, %v1185
      %v1187 = vpop.f32.mrf.mxu0
      %v1188 = vadd.f32 %v434, %v1187
      %v1189 = vpop.f32.mrf.mxu0
      %v1190 = vadd.f32 %v430, %v1189
      %v1191 = vpop.f32.mrf.mxu0
      %v1192 = vadd.f32 %v434, %v1191
      %1193 = vmatprep.mubr.bf16.mxu0 0
      %1194 = vmatmul.mubr.bf16.gmra.mxu0 %v528
      %v1195 = vpop.f32.mrf.mxu0
      %v1196 = vadd.f32 %v430, %v1195
      %v1197 = vpop.f32.mrf.mxu0
      %v1198 = vadd.f32 %v434, %v1197
      %v1199 = vpop.f32.mrf.mxu0
      %v1200 = vadd.f32 %v430, %v1199
      %v1201 = vpop.f32.mrf.mxu0
      %v1202 = vadd.f32 %v434, %v1201
      %1203 = vmatprep.mubr.bf16.mxu0 0
      %1204 = vmatmul.mubr.bf16.gmra.mxu0 %v531
      %v1205 = vpop.f32.mrf.mxu0
      %v1206 = vadd.f32 %v430, %v1205
      %v1207 = vpop.f32.mrf.mxu0
      %v1208 = vadd.f32 %v434, %v1207
      %v1209 = vpop.f32.mrf.mxu0
      %v1210 = vadd.f32 %v430, %v1209
      %v1211 = vpop.f32.mrf.mxu0
      %v1212 = vadd.f32 %v434, %v1211
      %1213 = vmatprep.mubr.bf16.mxu0 0
      %1214 = vmatmul.mubr.bf16.gmra.mxu0 %v534
      %v1215 = vpop.f32.mrf.mxu0
      %v1216 = vadd.f32 %v430, %v1215
      %v1217 = vpop.f32.mrf.mxu0
      %v1218 = vadd.f32 %v434, %v1217
      %v1219 = vpop.f32.mrf.mxu0
      %v1220 = vadd.f32 %v430, %v1219
      %v1221 = vpop.f32.mrf.mxu0
      %v1222 = vadd.f32 %v434, %v1221
      %1223 = vmatprep.mubr.bf16.mxu0 0
      %1224 = vmatmul.mubr.bf16.gmra.mxu0 %v537
      %v1225 = vpop.f32.mrf.mxu0
      %v1226 = vadd.f32 %v430, %v1225
      %v1227 = vpop.f32.mrf.mxu0
      %v1228 = vadd.f32 %v434, %v1227
      %v1229 = vpop.f32.mrf.mxu0
      %v1230 = vadd.f32 %v430, %v1229
      %v1231 = vpop.f32.mrf.mxu0
      %v1232 = vadd.f32 %v434, %v1231
      %1233 = vmatprep.mubr.bf16.mxu0 0
      %1234 = vmatmul.mubr.bf16.gmra.mxu0 %v540
      %v1235 = vpop.f32.mrf.mxu0
      %v1236 = vadd.f32 %v430, %v1235
      %v1237 = vpop.f32.mrf.mxu0
      %v1238 = vadd.f32 %v434, %v1237
      %v1239 = vpop.f32.mrf.mxu0
      %v1240 = vadd.f32 %v430, %v1239
      %v1241 = vpop.f32.mrf.mxu0
      %v1242 = vadd.f32 %v434, %v1241
      %1243 = vmatprep.mubr.bf16.mxu0 0
      %1244 = vmatmul.mubr.bf16.gmra.mxu0 %v543
      %v1245 = vpop.f32.mrf.mxu0
      %v1246 = vadd.f32 %v430, %v1245
      %v1247 = vpop.f32.mrf.mxu0
      %v1248 = vadd.f32 %v434, %v1247
      %v1249 = vpop.f32.mrf.mxu0
      %v1250 = vadd.f32 %v430, %v1249
      %v1251 = vpop.f32.mrf.mxu0
      %v1252 = vadd.f32 %v434, %v1251
      %1253 = vmatprep.mubr.bf16.mxu0 0
      %1254 = vmatmul.mubr.bf16.gmra.mxu0 %v546
      %v1255 = vpop.f32.mrf.mxu0
      %v1256 = vadd.f32 %v430, %v1255
      %v1257 = vpop.f32.mrf.mxu0
      %v1258 = vadd.f32 %v434, %v1257
      %v1259 = vpop.f32.mrf.mxu0
      %v1260 = vadd.f32 %v430, %v1259
      %v1261 = vpop.f32.mrf.mxu0
      %v1262 = vadd.f32 %v434, %v1261
      %1263 = vmatprep.mubr.bf16.mxu0 0
      %1264 = vmatmul.mubr.bf16.gmra.mxu0 %v549
      %v1265 = vpop.f32.mrf.mxu0
      %v1266 = vadd.f32 %v430, %v1265
      %v1267 = vpop.f32.mrf.mxu0
      %v1268 = vadd.f32 %v434, %v1267
      %v1269 = vpop.f32.mrf.mxu0
      %v1270 = vadd.f32 %v430, %v1269
      %v1271 = vpop.f32.mrf.mxu0
      %v1272 = vadd.f32 %v434, %v1271
      %1273 = vmatprep.mubr.bf16.mxu0 0
      %1274 = vmatmul.mubr.bf16.gmra.mxu0 %v552
      %v1275 = vpop.f32.mrf.mxu0
      %v1276 = vadd.f32 %v430, %v1275
      %v1277 = vpop.f32.mrf.mxu0
      %v1278 = vadd.f32 %v434, %v1277
      %v1279 = vpop.f32.mrf.mxu0
      %v1280 = vadd.f32 %v430, %v1279
      %v1281 = vpop.f32.mrf.mxu0
      %v1282 = vadd.f32 %v434, %v1281
      %1283 = vmatprep.mubr.bf16.mxu0 0
      %1284 = vmatmul.mubr.bf16.gmra.mxu0 %v555
      %v1285 = vpop.f32.mrf.mxu0
      %v1286 = vadd.f32 %v430, %v1285
      %v1287 = vpop.f32.mrf.mxu0
      %v1288 = vadd.f32 %v434, %v1287
      %v1289 = vpop.f32.mrf.mxu0
      %v1290 = vadd.f32 %v430, %v1289
      %v1291 = vpop.f32.mrf.mxu0
      %v1292 = vadd.f32 %v434, %v1291
      %1293 = vmatprep.mubr.bf16.mxu0 0
      %1294 = vmatmul.mubr.bf16.gmra.mxu0 %v558
      %v1295 = vpop.f32.mrf.mxu0
      %v1296 = vadd.f32 %v430, %v1295
      %v1297 = vpop.f32.mrf.mxu0
      %v1298 = vadd.f32 %v434, %v1297
      %v1299 = vpop.f32.mrf.mxu0
      %v1300 = vadd.f32 %v430, %v1299
      %v1301 = vpop.f32.mrf.mxu0
      %v1302 = vadd.f32 %v434, %v1301
      %1303 = vmatprep.mubr.bf16.mxu0 0
      %1304 = vmatmul.mubr.bf16.gmra.mxu0 %v561
      %v1305 = vpop.f32.mrf.mxu0
      %v1306 = vadd.f32 %v430, %v1305
      %v1307 = vpop.f32.mrf.mxu0
      %v1308 = vadd.f32 %v434, %v1307
      %v1309 = vpop.f32.mrf.mxu0
      %v1310 = vadd.f32 %v430, %v1309
      %v1311 = vpop.f32.mrf.mxu0
      %v1312 = vadd.f32 %v434, %v1311
      %1313 = vmatprep.mubr.bf16.mxu0 0
      %1314 = vmatmul.mubr.bf16.gmra.mxu0 %v564
      %v1315 = vpop.f32.mrf.mxu0
      %v1316 = vadd.f32 %v430, %v1315
      %v1317 = vpop.f32.mrf.mxu0
      %v1318 = vadd.f32 %v434, %v1317
      %v1319 = vpop.f32.mrf.mxu0
      %v1320 = vadd.f32 %v430, %v1319
      %v1321 = vpop.f32.mrf.mxu0
      %v1322 = vadd.f32 %v434, %v1321
      %1323 = vmatprep.mubr.bf16.mxu0 0
      %1324 = vmatmul.mubr.bf16.gmra.mxu0 %v567
      %v1325 = vpop.f32.mrf.mxu0
      %v1326 = vadd.f32 %v430, %v1325
      %v1327 = vpop.f32.mrf.mxu0
      %v1328 = vadd.f32 %v434, %v1327
      %v1329 = vpop.f32.mrf.mxu0
      %v1330 = vadd.f32 %v430, %v1329
      %v1331 = vpop.f32.mrf.mxu0
      %v1332 = vadd.f32 %v434, %v1331
      %1333 = vmatprep.mubr.bf16.mxu0 0
      %1334 = vmatmul.mubr.bf16.gmra.mxu0 %v570
      %v1335 = vpop.f32.mrf.mxu0
      %v1336 = vadd.f32 %v430, %v1335
      %v1337 = vpop.f32.mrf.mxu0
      %v1338 = vadd.f32 %v434, %v1337
      %v1339 = vpop.f32.mrf.mxu0
      %v1340 = vadd.f32 %v430, %v1339
      %v1341 = vpop.f32.mrf.mxu0
      %v1342 = vadd.f32 %v434, %v1341
      %1343 = vdwg.mxu0
      %v1344 = vmul.f32 %v607, 0.5
      %v1345 = vmul.f32 %v609, 0.5
      %v1346 = vmul.f32 %v800, 0.5
      %v1347 = vmul.f32 %v802, 0.5
      %v1348 = vmul.f32 %v993, 0.5
      %v1349 = vmul.f32 %v995, 0.5
      %v1350 = vmul.f32 %v1186, 0.5
      %v1351 = vmul.f32 %v1188, 0.5
      %v1352 = vmul.f32 %v611, 0.5
      %v1353 = vmul.f32 %v613, 0.5
      %v1354 = vmul.f32 %v804, 0.5
      %v1355 = vmul.f32 %v806, 0.5
      %v1356 = vmul.f32 %v997, 0.5
      %v1357 = vmul.f32 %v999, 0.5
      %v1358 = vmul.f32 %v1190, 0.5
      %v1359 = vmul.f32 %v1192, 0.5
      %v1360 = vmul.f32 %v617, 0.5
      %v1361 = vmul.f32 %v619, 0.5
      %v1362 = vmul.f32 %v810, 0.5
      %v1363 = vmul.f32 %v812, 0.5
      %v1364 = vmul.f32 %v1003, 0.5
      %v1365 = vmul.f32 %v1005, 0.5
      %v1366 = vmul.f32 %v1196, 0.5
      %v1367 = vmul.f32 %v1198, 0.5
      %v1368 = vmul.f32 %v621, 0.5
      %v1369 = vmul.f32 %v623, 0.5
      %v1370 = vmul.f32 %v814, 0.5
      %v1371 = vmul.f32 %v816, 0.5
      %v1372 = vmul.f32 %v1007, 0.5
      %v1373 = vmul.f32 %v1009, 0.5
      %v1374 = vmul.f32 %v1200, 0.5
      %v1375 = vmul.f32 %v1202, 0.5
      %v1376 = vmul.f32 %v627, 0.5
      %v1377 = vmul.f32 %v629, 0.5
      %v1378 = vmul.f32 %v820, 0.5
      %v1379 = vmul.f32 %v822, 0.5
      %v1380 = vmul.f32 %v1013, 0.5
      %v1381 = vmul.f32 %v1015, 0.5
      %v1382 = vmul.f32 %v1206, 0.5
      %v1383 = vmul.f32 %v1208, 0.5
      %v1384 = vmul.f32 %v631, 0.5
      %v1385 = vmul.f32 %v633, 0.5
      %v1386 = vmul.f32 %v824, 0.5
      %v1387 = vmul.f32 %v826, 0.5
      %v1388 = vmul.f32 %v1017, 0.5
      %v1389 = vmul.f32 %v1019, 0.5
      %v1390 = vmul.f32 %v1210, 0.5
      %v1391 = vmul.f32 %v1212, 0.5
      %v1392 = vmul.f32 %v637, 0.5
      %v1393 = vmul.f32 %v639, 0.5
      %v1394 = vmul.f32 %v830, 0.5
      %v1395 = vmul.f32 %v832, 0.5
      %v1396 = vmul.f32 %v1023, 0.5
      %v1397 = vmul.f32 %v1025, 0.5
      %v1398 = vmul.f32 %v1216, 0.5
      %v1399 = vmul.f32 %v1218, 0.5
      %v1400 = vmul.f32 %v641, 0.5
      %v1401 = vmul.f32 %v643, 0.5
      %v1402 = vmul.f32 %v834, 0.5
      %v1403 = vmul.f32 %v836, 0.5
      %v1404 = vmul.f32 %v1027, 0.5
      %v1405 = vmul.f32 %v1029, 0.5
      %v1406 = vmul.f32 %v1220, 0.5
      %v1407 = vmul.f32 %v1222, 0.5
      %v1408 = vmul.f32 %v647, 0.5
      %v1409 = vmul.f32 %v649, 0.5
      %v1410 = vmul.f32 %v840, 0.5
      %v1411 = vmul.f32 %v842, 0.5
      %v1412 = vmul.f32 %v1033, 0.5
      %v1413 = vmul.f32 %v1035, 0.5
      %v1414 = vmul.f32 %v1226, 0.5
      %v1415 = vmul.f32 %v1228, 0.5
      %v1416 = vmul.f32 %v651, 0.5
      %v1417 = vmul.f32 %v653, 0.5
      %v1418 = vmul.f32 %v844, 0.5
      %v1419 = vmul.f32 %v846, 0.5
      %v1420 = vmul.f32 %v1037, 0.5
      %v1421 = vmul.f32 %v1039, 0.5
      %v1422 = vmul.f32 %v1230, 0.5
      %v1423 = vmul.f32 %v1232, 0.5
      %v1424 = vmul.f32 %v657, 0.5
      %v1425 = vmul.f32 %v659, 0.5
      %v1426 = vmul.f32 %v850, 0.5
      %v1427 = vmul.f32 %v852, 0.5
      %v1428 = vmul.f32 %v1043, 0.5
      %v1429 = vmul.f32 %v1045, 0.5
      %v1430 = vmul.f32 %v1236, 0.5
      %v1431 = vmul.f32 %v1238, 0.5
      %v1432 = vmul.f32 %v661, 0.5
      %v1433 = vmul.f32 %v663, 0.5
      %v1434 = vmul.f32 %v854, 0.5
      %v1435 = vmul.f32 %v856, 0.5
      %v1436 = vmul.f32 %v1047, 0.5
      %v1437 = vmul.f32 %v1049, 0.5
      %v1438 = vmul.f32 %v1240, 0.5
      %v1439 = vmul.f32 %v1242, 0.5
      %v1440 = vmul.f32 %v667, 0.5
      %v1441 = vmul.f32 %v669, 0.5
      %v1442 = vmul.f32 %v860, 0.5
      %v1443 = vmul.f32 %v862, 0.5
      %v1444 = vmul.f32 %v1053, 0.5
      %v1445 = vmul.f32 %v1055, 0.5
      %v1446 = vmul.f32 %v1246, 0.5
      %v1447 = vmul.f32 %v1248, 0.5
      %v1448 = vmul.f32 %v671, 0.5
      %v1449 = vmul.f32 %v673, 0.5
      %v1450 = vmul.f32 %v864, 0.5
      %v1451 = vmul.f32 %v866, 0.5
      %v1452 = vmul.f32 %v1057, 0.5
      %v1453 = vmul.f32 %v1059, 0.5
      %v1454 = vmul.f32 %v1250, 0.5
      %v1455 = vmul.f32 %v1252, 0.5
      %v1456 = vmul.f32 %v677, 0.5
      %v1457 = vmul.f32 %v679, 0.5
      %v1458 = vmul.f32 %v870, 0.5
      %v1459 = vmul.f32 %v872, 0.5
      %v1460 = vmul.f32 %v1063, 0.5
      %v1461 = vmul.f32 %v1065, 0.5
      %v1462 = vmul.f32 %v1256, 0.5
      %v1463 = vmul.f32 %v1258, 0.5
      %v1464 = vmul.f32 %v681, 0.5
      %v1465 = vmul.f32 %v683, 0.5
      %v1466 = vmul.f32 %v874, 0.5
      %v1467 = vmul.f32 %v876, 0.5
      %v1468 = vmul.f32 %v1067, 0.5
      %v1469 = vmul.f32 %v1069, 0.5
      %v1470 = vmul.f32 %v1260, 0.5
      %v1471 = vmul.f32 %v1262, 0.5
      %v1472 = vmul.f32 %v687, 0.5
      %v1473 = vmul.f32 %v689, 0.5
      %v1474 = vmul.f32 %v880, 0.5
      %v1475 = vmul.f32 %v882, 0.5
      %v1476 = vmul.f32 %v1073, 0.5
      %v1477 = vmul.f32 %v1075, 0.5
      %v1478 = vmul.f32 %v1266, 0.5
      %v1479 = vmul.f32 %v1268, 0.5
      %v1480 = vmul.f32 %v691, 0.5
      %v1481 = vmul.f32 %v693, 0.5
      %v1482 = vmul.f32 %v884, 0.5
      %v1483 = vmul.f32 %v886, 0.5
      %v1484 = vmul.f32 %v1077, 0.5
      %v1485 = vmul.f32 %v1079, 0.5
      %v1486 = vmul.f32 %v1270, 0.5
      %v1487 = vmul.f32 %v1272, 0.5
      %v1488 = vmul.f32 %v697, 0.5
      %v1489 = vmul.f32 %v699, 0.5
      %v1490 = vmul.f32 %v890, 0.5
      %v1491 = vmul.f32 %v892, 0.5
      %v1492 = vmul.f32 %v1083, 0.5
      %v1493 = vmul.f32 %v1085, 0.5
      %v1494 = vmul.f32 %v1276, 0.5
      %v1495 = vmul.f32 %v1278, 0.5
      %v1496 = vmul.f32 %v701, 0.5
      %v1497 = vmul.f32 %v703, 0.5
      %v1498 = vmul.f32 %v894, 0.5
      %v1499 = vmul.f32 %v896, 0.5
      %v1500 = vmul.f32 %v1087, 0.5
      %v1501 = vmul.f32 %v1089, 0.5
      %v1502 = vmul.f32 %v1280, 0.5
      %v1503 = vmul.f32 %v1282, 0.5
      %v1504 = vmul.f32 %v707, 0.5
      %v1505 = vmul.f32 %v709, 0.5
      %v1506 = vmul.f32 %v900, 0.5
      %v1507 = vmul.f32 %v902, 0.5
      %v1508 = vmul.f32 %v1093, 0.5
      %v1509 = vmul.f32 %v1095, 0.5
      %v1510 = vmul.f32 %v1286, 0.5
      %v1511 = vmul.f32 %v1288, 0.5
      %v1512 = vmul.f32 %v711, 0.5
      %v1513 = vmul.f32 %v713, 0.5
      %v1514 = vmul.f32 %v904, 0.5
      %v1515 = vmul.f32 %v906, 0.5
      %v1516 = vmul.f32 %v1097, 0.5
      %v1517 = vmul.f32 %v1099, 0.5
      %v1518 = vmul.f32 %v1290, 0.5
      %v1519 = vmul.f32 %v1292, 0.5
      %v1520 = vmul.f32 %v717, 0.5
      %v1521 = vmul.f32 %v719, 0.5
      %v1522 = vmul.f32 %v910, 0.5
      %v1523 = vmul.f32 %v912, 0.5
      %v1524 = vmul.f32 %v1103, 0.5
      %v1525 = vmul.f32 %v1105, 0.5
      %v1526 = vmul.f32 %v1296, 0.5
      %v1527 = vmul.f32 %v1298, 0.5
      %v1528 = vmul.f32 %v721, 0.5
      %v1529 = vmul.f32 %v723, 0.5
      %v1530 = vmul.f32 %v914, 0.5
      %v1531 = vmul.f32 %v916, 0.5
      %v1532 = vmul.f32 %v1107, 0.5
      %v1533 = vmul.f32 %v1109, 0.5
      %v1534 = vmul.f32 %v1300, 0.5
      %v1535 = vmul.f32 %v1302, 0.5
      %v1536 = vmul.f32 %v727, 0.5
      %v1537 = vmul.f32 %v729, 0.5
      %v1538 = vmul.f32 %v920, 0.5
      %v1539 = vmul.f32 %v922, 0.5
      %v1540 = vmul.f32 %v1113, 0.5
      %v1541 = vmul.f32 %v1115, 0.5
      %v1542 = vmul.f32 %v1306, 0.5
      %v1543 = vmul.f32 %v1308, 0.5
      %v1544 = vmul.f32 %v731, 0.5
      %v1545 = vmul.f32 %v733, 0.5
      %v1546 = vmul.f32 %v924, 0.5
      %v1547 = vmul.f32 %v926, 0.5
      %v1548 = vmul.f32 %v1117, 0.5
      %v1549 = vmul.f32 %v1119, 0.5
      %v1550 = vmul.f32 %v1310, 0.5
      %v1551 = vmul.f32 %v1312, 0.5
      %v1552 = vmul.f32 %v737, 0.5
      %v1553 = vmul.f32 %v739, 0.5
      %v1554 = vmul.f32 %v930, 0.5
      %v1555 = vmul.f32 %v932, 0.5
      %v1556 = vmul.f32 %v1123, 0.5
      %v1557 = vmul.f32 %v1125, 0.5
      %v1558 = vmul.f32 %v1316, 0.5
      %v1559 = vmul.f32 %v1318, 0.5
      %v1560 = vmul.f32 %v741, 0.5
      %v1561 = vmul.f32 %v743, 0.5
      %v1562 = vmul.f32 %v934, 0.5
      %v1563 = vmul.f32 %v936, 0.5
      %v1564 = vmul.f32 %v1127, 0.5
      %v1565 = vmul.f32 %v1129, 0.5
      %v1566 = vmul.f32 %v1320, 0.5
      %v1567 = vmul.f32 %v1322, 0.5
      %v1568 = vmul.f32 %v747, 0.5
      %v1569 = vmul.f32 %v749, 0.5
      %v1570 = vmul.f32 %v940, 0.5
      %v1571 = vmul.f32 %v942, 0.5
      %v1572 = vmul.f32 %v1133, 0.5
      %v1573 = vmul.f32 %v1135, 0.5
      %v1574 = vmul.f32 %v1326, 0.5
      %v1575 = vmul.f32 %v1328, 0.5
      %v1576 = vmul.f32 %v751, 0.5
      %v1577 = vmul.f32 %v753, 0.5
      %v1578 = vmul.f32 %v944, 0.5
      %v1579 = vmul.f32 %v946, 0.5
      %v1580 = vmul.f32 %v1137, 0.5
      %v1581 = vmul.f32 %v1139, 0.5
      %v1582 = vmul.f32 %v1330, 0.5
      %v1583 = vmul.f32 %v1332, 0.5
      %v1584 = vmul.f32 %v757, 0.5
      %v1585 = vmul.f32 %v759, 0.5
      %v1586 = vmul.f32 %v950, 0.5
      %v1587 = vmul.f32 %v952, 0.5
      %v1588 = vmul.f32 %v1143, 0.5
      %v1589 = vmul.f32 %v1145, 0.5
      %v1590 = vmul.f32 %v1336, 0.5
      %v1591 = vmul.f32 %v1338, 0.5
      %v1592 = vmul.f32 %v761, 0.5
      %v1593 = vmul.f32 %v763, 0.5
      %v1594 = vmul.f32 %v954, 0.5
      %v1595 = vmul.f32 %v956, 0.5
      %v1596 = vmul.f32 %v1147, 0.5
      %v1597 = vmul.f32 %v1149, 0.5
      %v1598 = vmul.f32 %v1340, 0.5
      %v1599 = vmul.f32 %v1342, 0.5
      %v1600 = vmul.f32 %v607, 0.70710677
      %v1601 = vmul.f32 %v609, 0.70710677
      %v1602 = vmul.f32 %v800, 0.70710677
      %v1603 = vmul.f32 %v802, 0.70710677
      %v1604 = vmul.f32 %v993, 0.70710677
      %v1605 = vmul.f32 %v995, 0.70710677
      %v1606 = vmul.f32 %v1186, 0.70710677
      %v1607 = vmul.f32 %v1188, 0.70710677
      %v1608 = vmul.f32 %v611, 0.70710677
      %v1609 = vmul.f32 %v613, 0.70710677
      %v1610 = vmul.f32 %v804, 0.70710677
      %v1611 = vmul.f32 %v806, 0.70710677
      %v1612 = vmul.f32 %v997, 0.70710677
      %v1613 = vmul.f32 %v999, 0.70710677
      %v1614 = vmul.f32 %v1190, 0.70710677
      %v1615 = vmul.f32 %v1192, 0.70710677
      %v1616 = vmul.f32 %v617, 0.70710677
      %v1617 = vmul.f32 %v619, 0.70710677
      %v1618 = vmul.f32 %v810, 0.70710677
      %v1619 = vmul.f32 %v812, 0.70710677
      %v1620 = vmul.f32 %v1003, 0.70710677
      %v1621 = vmul.f32 %v1005, 0.70710677
      %v1622 = vmul.f32 %v1196, 0.70710677
      %v1623 = vmul.f32 %v1198, 0.70710677
      %v1624 = vmul.f32 %v621, 0.70710677
      %v1625 = vmul.f32 %v623, 0.70710677
      %v1626 = vmul.f32 %v814, 0.70710677
      %v1627 = vmul.f32 %v816, 0.70710677
      %v1628 = vmul.f32 %v1007, 0.70710677
      %v1629 = vmul.f32 %v1009, 0.70710677
      %v1630 = vmul.f32 %v1200, 0.70710677
      %v1631 = vmul.f32 %v1202, 0.70710677
      %v1632 = vmul.f32 %v627, 0.70710677
      %v1633 = vmul.f32 %v629, 0.70710677
      %v1634 = vmul.f32 %v820, 0.70710677
      %v1635 = vmul.f32 %v822, 0.70710677
      %v1636 = vmul.f32 %v1013, 0.70710677
      %v1637 = vmul.f32 %v1015, 0.70710677
      %v1638 = vmul.f32 %v1206, 0.70710677
      %v1639 = vmul.f32 %v1208, 0.70710677
      %v1640 = vmul.f32 %v631, 0.70710677
      %v1641 = vmul.f32 %v633, 0.70710677
      %v1642 = vmul.f32 %v824, 0.70710677
      %v1643 = vmul.f32 %v826, 0.70710677
      %v1644 = vmul.f32 %v1017, 0.70710677
      %v1645 = vmul.f32 %v1019, 0.70710677
      %v1646 = vmul.f32 %v1210, 0.70710677
      %v1647 = vmul.f32 %v1212, 0.70710677
      %v1648 = vmul.f32 %v637, 0.70710677
      %v1649 = vmul.f32 %v639, 0.70710677
      %v1650 = vmul.f32 %v830, 0.70710677
      %v1651 = vmul.f32 %v832, 0.70710677
      %v1652 = vmul.f32 %v1023, 0.70710677
      %v1653 = vmul.f32 %v1025, 0.70710677
      %v1654 = vmul.f32 %v1216, 0.70710677
      %v1655 = vmul.f32 %v1218, 0.70710677
      %v1656 = vmul.f32 %v641, 0.70710677
      %v1657 = vmul.f32 %v643, 0.70710677
      %v1658 = vmul.f32 %v834, 0.70710677
      %v1659 = vmul.f32 %v836, 0.70710677
      %v1660 = vmul.f32 %v1027, 0.70710677
      %v1661 = vmul.f32 %v1029, 0.70710677
      %v1662 = vmul.f32 %v1220, 0.70710677
      %v1663 = vmul.f32 %v1222, 0.70710677
      %v1664 = vmul.f32 %v647, 0.70710677
      %v1665 = vmul.f32 %v649, 0.70710677
      %v1666 = vmul.f32 %v840, 0.70710677
      %v1667 = vmul.f32 %v842, 0.70710677
      %v1668 = vmul.f32 %v1033, 0.70710677
      %v1669 = vmul.f32 %v1035, 0.70710677
      %v1670 = vmul.f32 %v1226, 0.70710677
      %v1671 = vmul.f32 %v1228, 0.70710677
      %v1672 = vmul.f32 %v651, 0.70710677
      %v1673 = vmul.f32 %v653, 0.70710677
      %v1674 = vmul.f32 %v844, 0.70710677
      %v1675 = vmul.f32 %v846, 0.70710677
      %v1676 = vmul.f32 %v1037, 0.70710677
      %v1677 = vmul.f32 %v1039, 0.70710677
      %v1678 = vmul.f32 %v1230, 0.70710677
      %v1679 = vmul.f32 %v1232, 0.70710677
      %v1680 = vmul.f32 %v657, 0.70710677
      %v1681 = vmul.f32 %v659, 0.70710677
      %v1682 = vmul.f32 %v850, 0.70710677
      %v1683 = vmul.f32 %v852, 0.70710677
      %v1684 = vmul.f32 %v1043, 0.70710677
      %v1685 = vmul.f32 %v1045, 0.70710677
      %v1686 = vmul.f32 %v1236, 0.70710677
      %v1687 = vmul.f32 %v1238, 0.70710677
      %v1688 = vmul.f32 %v661, 0.70710677
      %v1689 = vmul.f32 %v663, 0.70710677
      %v1690 = vmul.f32 %v854, 0.70710677
      %v1691 = vmul.f32 %v856, 0.70710677
      %v1692 = vmul.f32 %v1047, 0.70710677
      %v1693 = vmul.f32 %v1049, 0.70710677
      %v1694 = vmul.f32 %v1240, 0.70710677
      %v1695 = vmul.f32 %v1242, 0.70710677
      %v1696 = vmul.f32 %v667, 0.70710677
      %v1697 = vmul.f32 %v669, 0.70710677
      %v1698 = vmul.f32 %v860, 0.70710677
      %v1699 = vmul.f32 %v862, 0.70710677
      %v1700 = vmul.f32 %v1053, 0.70710677
      %v1701 = vmul.f32 %v1055, 0.70710677
      %v1702 = vmul.f32 %v1246, 0.70710677
      %v1703 = vmul.f32 %v1248, 0.70710677
      %v1704 = vmul.f32 %v671, 0.70710677
      %v1705 = vmul.f32 %v673, 0.70710677
      %v1706 = vmul.f32 %v864, 0.70710677
      %v1707 = vmul.f32 %v866, 0.70710677
      %v1708 = vmul.f32 %v1057, 0.70710677
      %v1709 = vmul.f32 %v1059, 0.70710677
      %v1710 = vmul.f32 %v1250, 0.70710677
      %v1711 = vmul.f32 %v1252, 0.70710677
      %v1712 = vmul.f32 %v677, 0.70710677
      %v1713 = vmul.f32 %v679, 0.70710677
      %v1714 = vmul.f32 %v870, 0.70710677
      %v1715 = vmul.f32 %v872, 0.70710677
      %v1716 = vmul.f32 %v1063, 0.70710677
      %v1717 = vmul.f32 %v1065, 0.70710677
      %v1718 = vmul.f32 %v1256, 0.70710677
      %v1719 = vmul.f32 %v1258, 0.70710677
      %v1720 = vmul.f32 %v681, 0.70710677
      %v1721 = vmul.f32 %v683, 0.70710677
      %v1722 = vmul.f32 %v874, 0.70710677
      %v1723 = vmul.f32 %v876, 0.70710677
      %v1724 = vmul.f32 %v1067, 0.70710677
      %v1725 = vmul.f32 %v1069, 0.70710677
      %v1726 = vmul.f32 %v1260, 0.70710677
      %v1727 = vmul.f32 %v1262, 0.70710677
      %v1728 = vmul.f32 %v687, 0.70710677
      %v1729 = vmul.f32 %v689, 0.70710677
      %v1730 = vmul.f32 %v880, 0.70710677
      %v1731 = vmul.f32 %v882, 0.70710677
      %v1732 = vmul.f32 %v1073, 0.70710677
      %v1733 = vmul.f32 %v1075, 0.70710677
      %v1734 = vmul.f32 %v1266, 0.70710677
      %v1735 = vmul.f32 %v1268, 0.70710677
      %v1736 = vmul.f32 %v691, 0.70710677
      %v1737 = vmul.f32 %v693, 0.70710677
      %v1738 = vmul.f32 %v884, 0.70710677
      %v1739 = vmul.f32 %v886, 0.70710677
      %v1740 = vmul.f32 %v1077, 0.70710677
      %v1741 = vmul.f32 %v1079, 0.70710677
      %v1742 = vmul.f32 %v1270, 0.70710677
      %v1743 = vmul.f32 %v1272, 0.70710677
      %v1744 = vmul.f32 %v697, 0.70710677
      %v1745 = vmul.f32 %v699, 0.70710677
      %v1746 = vmul.f32 %v890, 0.70710677
      %v1747 = vmul.f32 %v892, 0.70710677
      %v1748 = vmul.f32 %v1083, 0.70710677
      %v1749 = vmul.f32 %v1085, 0.70710677
      %v1750 = vmul.f32 %v1276, 0.70710677
      %v1751 = vmul.f32 %v1278, 0.70710677
      %v1752 = vmul.f32 %v701, 0.70710677
      %v1753 = vmul.f32 %v703, 0.70710677
      %v1754 = vmul.f32 %v894, 0.70710677
      %v1755 = vmul.f32 %v896, 0.70710677
      %v1756 = vmul.f32 %v1087, 0.70710677
      %v1757 = vmul.f32 %v1089, 0.70710677
      %v1758 = vmul.f32 %v1280, 0.70710677
      %v1759 = vmul.f32 %v1282, 0.70710677
      %v1760 = vmul.f32 %v707, 0.70710677
      %v1761 = vmul.f32 %v709, 0.70710677
      %v1762 = vmul.f32 %v900, 0.70710677
      %v1763 = vmul.f32 %v902, 0.70710677
      %v1764 = vmul.f32 %v1093, 0.70710677
      %v1765 = vmul.f32 %v1095, 0.70710677
      %v1766 = vmul.f32 %v1286, 0.70710677
      %v1767 = vmul.f32 %v1288, 0.70710677
      %v1768 = vmul.f32 %v711, 0.70710677
      %v1769 = vmul.f32 %v713, 0.70710677
      %v1770 = vmul.f32 %v904, 0.70710677
      %v1771 = vmul.f32 %v906, 0.70710677
      %v1772 = vmul.f32 %v1097, 0.70710677
      %v1773 = vmul.f32 %v1099, 0.70710677
      %v1774 = vmul.f32 %v1290, 0.70710677
      %v1775 = vmul.f32 %v1292, 0.70710677
      %v1776 = vmul.f32 %v717, 0.70710677
      %v1777 = vmul.f32 %v719, 0.70710677
      %v1778 = vmul.f32 %v910, 0.70710677
      %v1779 = vmul.f32 %v912, 0.70710677
      %v1780 = vmul.f32 %v1103, 0.70710677
      %v1781 = vmul.f32 %v1105, 0.70710677
      %v1782 = vmul.f32 %v1296, 0.70710677
      %v1783 = vmul.f32 %v1298, 0.70710677
      %v1784 = vmul.f32 %v721, 0.70710677
      %v1785 = vmul.f32 %v723, 0.70710677
      %v1786 = vmul.f32 %v914, 0.70710677
      %v1787 = vmul.f32 %v916, 0.70710677
      %v1788 = vmul.f32 %v1107, 0.70710677
      %v1789 = vmul.f32 %v1109, 0.70710677
      %v1790 = vmul.f32 %v1300, 0.70710677
      %v1791 = vmul.f32 %v1302, 0.70710677
      %v1792 = vmul.f32 %v727, 0.70710677
      %v1793 = vmul.f32 %v729, 0.70710677
      %v1794 = vmul.f32 %v920, 0.70710677
      %v1795 = vmul.f32 %v922, 0.70710677
      %v1796 = vmul.f32 %v1113, 0.70710677
      %v1797 = vmul.f32 %v1115, 0.70710677
      %v1798 = vmul.f32 %v1306, 0.70710677
      %v1799 = vmul.f32 %v1308, 0.70710677
      %v1800 = vmul.f32 %v731, 0.70710677
      %v1801 = vmul.f32 %v733, 0.70710677
      %v1802 = vmul.f32 %v924, 0.70710677
      %v1803 = vmul.f32 %v926, 0.70710677
      %v1804 = vmul.f32 %v1117, 0.70710677
      %v1805 = vmul.f32 %v1119, 0.70710677
      %v1806 = vmul.f32 %v1310, 0.70710677
      %v1807 = vmul.f32 %v1312, 0.70710677
      %v1808 = vmul.f32 %v737, 0.70710677
      %v1809 = vmul.f32 %v739, 0.70710677
      %v1810 = vmul.f32 %v930, 0.70710677
      %v1811 = vmul.f32 %v932, 0.70710677
      %v1812 = vmul.f32 %v1123, 0.70710677
      %v1813 = vmul.f32 %v1125, 0.70710677
      %v1814 = vmul.f32 %v1316, 0.70710677
      %v1815 = vmul.f32 %v1318, 0.70710677
      %v1816 = vmul.f32 %v741, 0.70710677
      %v1817 = vmul.f32 %v743, 0.70710677
      %v1818 = vmul.f32 %v934, 0.70710677
      %v1819 = vmul.f32 %v936, 0.70710677
      %v1820 = vmul.f32 %v1127, 0.70710677
      %v1821 = vmul.f32 %v1129, 0.70710677
      %v1822 = vmul.f32 %v1320, 0.70710677
      %v1823 = vmul.f32 %v1322, 0.70710677
      %v1824 = vmul.f32 %v747, 0.70710677
      %v1825 = vmul.f32 %v749, 0.70710677
      %v1826 = vmul.f32 %v940, 0.70710677
      %v1827 = vmul.f32 %v942, 0.70710677
      %v1828 = vmul.f32 %v1133, 0.70710677
      %v1829 = vmul.f32 %v1135, 0.70710677
      %v1830 = vmul.f32 %v1326, 0.70710677
      %v1831 = vmul.f32 %v1328, 0.70710677
      %v1832 = vmul.f32 %v751, 0.70710677
      %v1833 = vmul.f32 %v753, 0.70710677
      %v1834 = vmul.f32 %v944, 0.70710677
      %v1835 = vmul.f32 %v946, 0.70710677
      %v1836 = vmul.f32 %v1137, 0.70710677
      %v1837 = vmul.f32 %v1139, 0.70710677
      %v1838 = vmul.f32 %v1330, 0.70710677
      %v1839 = vmul.f32 %v1332, 0.70710677
      %v1840 = vmul.f32 %v757, 0.70710677
      %v1841 = vmul.f32 %v759, 0.70710677
      %v1842 = vmul.f32 %v950, 0.70710677
      %v1843 = vmul.f32 %v952, 0.70710677
      %v1844 = vmul.f32 %v1143, 0.70710677
      %v1845 = vmul.f32 %v1145, 0.70710677
      %v1846 = vmul.f32 %v1336, 0.70710677
      %v1847 = vmul.f32 %v1338, 0.70710677
      %v1848 = vmul.f32 %v761, 0.70710677
      %v1849 = vmul.f32 %v763, 0.70710677
      %v1850 = vmul.f32 %v954, 0.70710677
      %v1851 = vmul.f32 %v956, 0.70710677
      %v1852 = vmul.f32 %v1147, 0.70710677
      %v1853 = vmul.f32 %v1149, 0.70710677
      %v1854 = vmul.f32 %v1340, 0.70710677
      %v1855 = vmul.f32 %v1342, 0.70710677
      %v1856 = verf.f32.pop %v1600
      %v1857 = verf.f32.pop %v1601
      %v1858 = verf.f32.pop %v1602
      %v1859 = verf.f32.pop %v1603
      %v1860 = verf.f32.pop %v1604
      %v1861 = verf.f32.pop %v1605
      %v1862 = verf.f32.pop %v1606
      %v1863 = verf.f32.pop %v1607
      %v1864 = verf.f32.pop %v1608
      %v1865 = verf.f32.pop %v1609
      %v1866 = verf.f32.pop %v1610
      %v1867 = verf.f32.pop %v1611
      %v1868 = verf.f32.pop %v1612
      %v1869 = verf.f32.pop %v1613
      %v1870 = verf.f32.pop %v1614
      %v1871 = verf.f32.pop %v1615
      %v1872 = verf.f32.pop %v1616
      %v1873 = verf.f32.pop %v1617
      %v1874 = verf.f32.pop %v1618
      %v1875 = verf.f32.pop %v1619
      %v1876 = verf.f32.pop %v1620
      %v1877 = verf.f32.pop %v1621
      %v1878 = verf.f32.pop %v1622
      %v1879 = verf.f32.pop %v1623
      %v1880 = verf.f32.pop %v1624
      %v1881 = verf.f32.pop %v1625
      %v1882 = verf.f32.pop %v1626
      %v1883 = verf.f32.pop %v1627
      %v1884 = verf.f32.pop %v1628
      %v1885 = verf.f32.pop %v1629
      %v1886 = verf.f32.pop %v1630
      %v1887 = verf.f32.pop %v1631
      %v1888 = verf.f32.pop %v1632
      %v1889 = verf.f32.pop %v1633
      %v1890 = verf.f32.pop %v1634
      %v1891 = verf.f32.pop %v1635
      %v1892 = verf.f32.pop %v1636
      %v1893 = verf.f32.pop %v1637
      %v1894 = verf.f32.pop %v1638
      %v1895 = verf.f32.pop %v1639
      %v1896 = verf.f32.pop %v1640
      %v1897 = verf.f32.pop %v1641
      %v1898 = verf.f32.pop %v1642
      %v1899 = verf.f32.pop %v1643
      %v1900 = verf.f32.pop %v1644
      %v1901 = verf.f32.pop %v1645
      %v1902 = verf.f32.pop %v1646
      %v1903 = verf.f32.pop %v1647
      %v1904 = verf.f32.pop %v1648
      %v1905 = verf.f32.pop %v1649
      %v1906 = verf.f32.pop %v1650
      %v1907 = verf.f32.pop %v1651
      %v1908 = verf.f32.pop %v1652
      %v1909 = verf.f32.pop %v1653
      %v1910 = verf.f32.pop %v1654
      %v1911 = verf.f32.pop %v1655
      %v1912 = verf.f32.pop %v1656
      %v1913 = verf.f32.pop %v1657
      %v1914 = verf.f32.pop %v1658
      %v1915 = verf.f32.pop %v1659
      %v1916 = verf.f32.pop %v1660
      %v1917 = verf.f32.pop %v1661
      %v1918 = verf.f32.pop %v1662
      %v1919 = verf.f32.pop %v1663
      %v1920 = verf.f32.pop %v1664
      %v1921 = verf.f32.pop %v1665
      %v1922 = verf.f32.pop %v1666
      %v1923 = verf.f32.pop %v1667
      %v1924 = verf.f32.pop %v1668
      %v1925 = verf.f32.pop %v1669
      %v1926 = verf.f32.pop %v1670
      %v1927 = verf.f32.pop %v1671
      %v1928 = verf.f32.pop %v1672
      %v1929 = verf.f32.pop %v1673
      %v1930 = verf.f32.pop %v1674
      %v1931 = verf.f32.pop %v1675
      %v1932 = verf.f32.pop %v1676
      %v1933 = verf.f32.pop %v1677
      %v1934 = verf.f32.pop %v1678
      %v1935 = verf.f32.pop %v1679
      %v1936 = verf.f32.pop %v1680
      %v1937 = verf.f32.pop %v1681
      %v1938 = verf.f32.pop %v1682
      %v1939 = verf.f32.pop %v1683
      %v1940 = verf.f32.pop %v1684
      %v1941 = verf.f32.pop %v1685
      %v1942 = verf.f32.pop %v1686
      %v1943 = verf.f32.pop %v1687
      %v1944 = verf.f32.pop %v1688
      %v1945 = verf.f32.pop %v1689
      %v1946 = verf.f32.pop %v1690
      %v1947 = verf.f32.pop %v1691
      %v1948 = verf.f32.pop %v1692
      %v1949 = verf.f32.pop %v1693
      %v1950 = verf.f32.pop %v1694
      %v1951 = verf.f32.pop %v1695
      %v1952 = verf.f32.pop %v1696
      %v1953 = verf.f32.pop %v1697
      %v1954 = verf.f32.pop %v1698
      %v1955 = verf.f32.pop %v1699
      %v1956 = verf.f32.pop %v1700
      %v1957 = verf.f32.pop %v1701
      %v1958 = verf.f32.pop %v1702
      %v1959 = verf.f32.pop %v1703
      %v1960 = verf.f32.pop %v1704
      %v1961 = verf.f32.pop %v1705
      %v1962 = verf.f32.pop %v1706
      %v1963 = verf.f32.pop %v1707
      %v1964 = verf.f32.pop %v1708
      %v1965 = verf.f32.pop %v1709
      %v1966 = verf.f32.pop %v1710
      %v1967 = verf.f32.pop %v1711
      %v1968 = verf.f32.pop %v1712
      %v1969 = verf.f32.pop %v1713
      %v1970 = verf.f32.pop %v1714
      %v1971 = verf.f32.pop %v1715
      %v1972 = verf.f32.pop %v1716
      %v1973 = verf.f32.pop %v1717
      %v1974 = verf.f32.pop %v1718
      %v1975 = verf.f32.pop %v1719
      %v1976 = verf.f32.pop %v1720
      %v1977 = verf.f32.pop %v1721
      %v1978 = verf.f32.pop %v1722
      %v1979 = verf.f32.pop %v1723
      %v1980 = verf.f32.pop %v1724
      %v1981 = verf.f32.pop %v1725
      %v1982 = verf.f32.pop %v1726
      %v1983 = verf.f32.pop %v1727
      %v1984 = verf.f32.pop %v1728
      %v1985 = verf.f32.pop %v1729
      %v1986 = verf.f32.pop %v1730
      %v1987 = verf.f32.pop %v1731
      %v1988 = verf.f32.pop %v1732
      %v1989 = verf.f32.pop %v1733
      %v1990 = verf.f32.pop %v1734
      %v1991 = verf.f32.pop %v1735
      %v1992 = verf.f32.pop %v1736
      %v1993 = verf.f32.pop %v1737
      %v1994 = verf.f32.pop %v1738
      %v1995 = verf.f32.pop %v1739
      %v1996 = verf.f32.pop %v1740
      %v1997 = verf.f32.pop %v1741
      %v1998 = verf.f32.pop %v1742
      %v1999 = verf.f32.pop %v1743
      %v2000 = verf.f32.pop %v1744
      %v2001 = verf.f32.pop %v1745
      %v2002 = verf.f32.pop %v1746
      %v2003 = verf.f32.pop %v1747
      %v2004 = verf.f32.pop %v1748
      %v2005 = verf.f32.pop %v1749
      %v2006 = verf.f32.pop %v1750
      %v2007 = verf.f32.pop %v1751
      %v2008 = verf.f32.pop %v1752
      %v2009 = verf.f32.pop %v1753
      %v2010 = verf.f32.pop %v1754
      %v2011 = verf.f32.pop %v1755
      %v2012 = verf.f32.pop %v1756
      %v2013 = verf.f32.pop %v1757
      %v2014 = verf.f32.pop %v1758
      %v2015 = verf.f32.pop %v1759
      %v2016 = verf.f32.pop %v1760
      %v2017 = verf.f32.pop %v1761
      %v2018 = verf.f32.pop %v1762
      %v2019 = verf.f32.pop %v1763
      %v2020 = verf.f32.pop %v1764
      %v2021 = verf.f32.pop %v1765
      %v2022 = verf.f32.pop %v1766
      %v2023 = verf.f32.pop %v1767
      %v2024 = verf.f32.pop %v1768
      %v2025 = verf.f32.pop %v1769
      %v2026 = verf.f32.pop %v1770
      %v2027 = verf.f32.pop %v1771
      %v2028 = verf.f32.pop %v1772
      %v2029 = verf.f32.pop %v1773
      %v2030 = verf.f32.pop %v1774
      %v2031 = verf.f32.pop %v1775
      %v2032 = verf.f32.pop %v1776
      %v2033 = verf.f32.pop %v1777
      %v2034 = verf.f32.pop %v1778
      %v2035 = verf.f32.pop %v1779
      %v2036 = verf.f32.pop %v1780
      %v2037 = verf.f32.pop %v1781
      %v2038 = verf.f32.pop %v1782
      %v2039 = verf.f32.pop %v1783
      %v2040 = verf.f32.pop %v1784
      %v2041 = verf.f32.pop %v1785
      %v2042 = verf.f32.pop %v1786
      %v2043 = verf.f32.pop %v1787
      %v2044 = verf.f32.pop %v1788
      %v2045 = verf.f32.pop %v1789
      %v2046 = verf.f32.pop %v1790
      %v2047 = verf.f32.pop %v1791
      %v2048 = verf.f32.pop %v1792
      %v2049 = verf.f32.pop %v1793
      %v2050 = verf.f32.pop %v1794
      %v2051 = verf.f32.pop %v1795
      %v2052 = verf.f32.pop %v1796
      %v2053 = verf.f32.pop %v1797
      %v2054 = verf.f32.pop %v1798
      %v2055 = verf.f32.pop %v1799
      %v2056 = verf.f32.pop %v1800
      %v2057 = verf.f32.pop %v1801
      %v2058 = verf.f32.pop %v1802
      %v2059 = verf.f32.pop %v1803
      %v2060 = verf.f32.pop %v1804
      %v2061 = verf.f32.pop %v1805
      %v2062 = verf.f32.pop %v1806
      %v2063 = verf.f32.pop %v1807
      %v2064 = verf.f32.pop %v1808
      %v2065 = verf.f32.pop %v1809
      %v2066 = verf.f32.pop %v1810
      %v2067 = verf.f32.pop %v1811
      %v2068 = verf.f32.pop %v1812
      %v2069 = verf.f32.pop %v1813
      %v2070 = verf.f32.pop %v1814
      %v2071 = verf.f32.pop %v1815
      %v2072 = verf.f32.pop %v1816
      %v2073 = verf.f32.pop %v1817
      %v2074 = verf.f32.pop %v1818
      %v2075 = verf.f32.pop %v1819
      %v2076 = verf.f32.pop %v1820
      %v2077 = verf.f32.pop %v1821
      %v2078 = verf.f32.pop %v1822
      %v2079 = verf.f32.pop %v1823
      %v2080 = verf.f32.pop %v1824
      %v2081 = verf.f32.pop %v1825
      %v2082 = verf.f32.pop %v1826
      %v2083 = verf.f32.pop %v1827
      %v2084 = verf.f32.pop %v1828
      %v2085 = verf.f32.pop %v1829
      %v2086 = verf.f32.pop %v1830
      %v2087 = verf.f32.pop %v1831
      %v2088 = verf.f32.pop %v1832
      %v2089 = verf.f32.pop %v1833
      %v2090 = verf.f32.pop %v1834
      %v2091 = verf.f32.pop %v1835
      %v2092 = verf.f32.pop %v1836
      %v2093 = verf.f32.pop %v1837
      %v2094 = verf.f32.pop %v1838
      %v2095 = verf.f32.pop %v1839
      %v2096 = verf.f32.pop %v1840
      %v2097 = verf.f32.pop %v1841
      %v2098 = verf.f32.pop %v1842
      %v2099 = verf.f32.pop %v1843
      %v2100 = verf.f32.pop %v1844
      %v2101 = verf.f32.pop %v1845
      %v2102 = verf.f32.pop %v1846
      %v2103 = verf.f32.pop %v1847
      %v2104 = verf.f32.pop %v1848
      %v2105 = verf.f32.pop %v1849
      %v2106 = verf.f32.pop %v1850
      %v2107 = verf.f32.pop %v1851
      %v2108 = verf.f32.pop %v1852
      %v2109 = verf.f32.pop %v1853
      %v2110 = verf.f32.pop %v1854
      %v2111 = verf.f32.pop %v1855
      %v2112 = vadd.f32 %v1856, 1.0
      %v2113 = vadd.f32 %v1857, 1.0
      %v2114 = vadd.f32 %v1858, 1.0
      %v2115 = vadd.f32 %v1859, 1.0
      %v2116 = vadd.f32 %v1860, 1.0
      %v2117 = vadd.f32 %v1861, 1.0
      %v2118 = vadd.f32 %v1862, 1.0
      %v2119 = vadd.f32 %v1863, 1.0
      %v2120 = vadd.f32 %v1864, 1.0
      %v2121 = vadd.f32 %v1865, 1.0
      %v2122 = vadd.f32 %v1866, 1.0
      %v2123 = vadd.f32 %v1867, 1.0
      %v2124 = vadd.f32 %v1868, 1.0
      %v2125 = vadd.f32 %v1869, 1.0
      %v2126 = vadd.f32 %v1870, 1.0
      %v2127 = vadd.f32 %v1871, 1.0
      %v2128 = vadd.f32 %v1872, 1.0
      %v2129 = vadd.f32 %v1873, 1.0
      %v2130 = vadd.f32 %v1874, 1.0
      %v2131 = vadd.f32 %v1875, 1.0
      %v2132 = vadd.f32 %v1876, 1.0
      %v2133 = vadd.f32 %v1877, 1.0
      %v2134 = vadd.f32 %v1878, 1.0
      %v2135 = vadd.f32 %v1879, 1.0
      %v2136 = vadd.f32 %v1880, 1.0
      %v2137 = vadd.f32 %v1881, 1.0
      %v2138 = vadd.f32 %v1882, 1.0
      %v2139 = vadd.f32 %v1883, 1.0
      %v2140 = vadd.f32 %v1884, 1.0
      %v2141 = vadd.f32 %v1885, 1.0
      %v2142 = vadd.f32 %v1886, 1.0
      %v2143 = vadd.f32 %v1887, 1.0
      %v2144 = vadd.f32 %v1888, 1.0
      %v2145 = vadd.f32 %v1889, 1.0
      %v2146 = vadd.f32 %v1890, 1.0
      %v2147 = vadd.f32 %v1891, 1.0
      %v2148 = vadd.f32 %v1892, 1.0
      %v2149 = vadd.f32 %v1893, 1.0
      %v2150 = vadd.f32 %v1894, 1.0
      %v2151 = vadd.f32 %v1895, 1.0
      %v2152 = vadd.f32 %v1896, 1.0
      %v2153 = vadd.f32 %v1897, 1.0
      %v2154 = vadd.f32 %v1898, 1.0
      %v2155 = vadd.f32 %v1899, 1.0
      %v2156 = vadd.f32 %v1900, 1.0
      %v2157 = vadd.f32 %v1901, 1.0
      %v2158 = vadd.f32 %v1902, 1.0
      %v2159 = vadd.f32 %v1903, 1.0
      %v2160 = vadd.f32 %v1904, 1.0
      %v2161 = vadd.f32 %v1905, 1.0
      %v2162 = vadd.f32 %v1906, 1.0
      %v2163 = vadd.f32 %v1907, 1.0
      %v2164 = vadd.f32 %v1908, 1.0
      %v2165 = vadd.f32 %v1909, 1.0
      %v2166 = vadd.f32 %v1910, 1.0
      %v2167 = vadd.f32 %v1911, 1.0
      %v2168 = vadd.f32 %v1912, 1.0
      %v2169 = vadd.f32 %v1913, 1.0
      %v2170 = vadd.f32 %v1914, 1.0
      %v2171 = vadd.f32 %v1915, 1.0
      %v2172 = vadd.f32 %v1916, 1.0
      %v2173 = vadd.f32 %v1917, 1.0
      %v2174 = vadd.f32 %v1918, 1.0
      %v2175 = vadd.f32 %v1919, 1.0
      %v2176 = vadd.f32 %v1920, 1.0
      %v2177 = vadd.f32 %v1921, 1.0
      %v2178 = vadd.f32 %v1922, 1.0
      %v2179 = vadd.f32 %v1923, 1.0
      %v2180 = vadd.f32 %v1924, 1.0
      %v2181 = vadd.f32 %v1925, 1.0
      %v2182 = vadd.f32 %v1926, 1.0
      %v2183 = vadd.f32 %v1927, 1.0
      %v2184 = vadd.f32 %v1928, 1.0
      %v2185 = vadd.f32 %v1929, 1.0
      %v2186 = vadd.f32 %v1930, 1.0
      %v2187 = vadd.f32 %v1931, 1.0
      %v2188 = vadd.f32 %v1932, 1.0
      %v2189 = vadd.f32 %v1933, 1.0
      %v2190 = vadd.f32 %v1934, 1.0
      %v2191 = vadd.f32 %v1935, 1.0
      %v2192 = vadd.f32 %v1936, 1.0
      %v2193 = vadd.f32 %v1937, 1.0
      %v2194 = vadd.f32 %v1938, 1.0
      %v2195 = vadd.f32 %v1939, 1.0
      %v2196 = vadd.f32 %v1940, 1.0
      %v2197 = vadd.f32 %v1941, 1.0
      %v2198 = vadd.f32 %v1942, 1.0
      %v2199 = vadd.f32 %v1943, 1.0
      %v2200 = vadd.f32 %v1944, 1.0
      %v2201 = vadd.f32 %v1945, 1.0
      %v2202 = vadd.f32 %v1946, 1.0
      %v2203 = vadd.f32 %v1947, 1.0
      %v2204 = vadd.f32 %v1948, 1.0
      %v2205 = vadd.f32 %v1949, 1.0
      %v2206 = vadd.f32 %v1950, 1.0
      %v2207 = vadd.f32 %v1951, 1.0
      %v2208 = vadd.f32 %v1952, 1.0
      %v2209 = vadd.f32 %v1953, 1.0
      %v2210 = vadd.f32 %v1954, 1.0
      %v2211 = vadd.f32 %v1955, 1.0
      %v2212 = vadd.f32 %v1956, 1.0
      %v2213 = vadd.f32 %v1957, 1.0
      %v2214 = vadd.f32 %v1958, 1.0
      %v2215 = vadd.f32 %v1959, 1.0
      %v2216 = vadd.f32 %v1960, 1.0
      %v2217 = vadd.f32 %v1961, 1.0
      %v2218 = vadd.f32 %v1962, 1.0
      %v2219 = vadd.f32 %v1963, 1.0
      %v2220 = vadd.f32 %v1964, 1.0
      %v2221 = vadd.f32 %v1965, 1.0
      %v2222 = vadd.f32 %v1966, 1.0
      %v2223 = vadd.f32 %v1967, 1.0
      %v2224 = vadd.f32 %v1968, 1.0
      %v2225 = vadd.f32 %v1969, 1.0
      %v2226 = vadd.f32 %v1970, 1.0
      %v2227 = vadd.f32 %v1971, 1.0
      %v2228 = vadd.f32 %v1972, 1.0
      %v2229 = vadd.f32 %v1973, 1.0
      %v2230 = vadd.f32 %v1974, 1.0
      %v2231 = vadd.f32 %v1975, 1.0
      %v2232 = vadd.f32 %v1976, 1.0
      %v2233 = vadd.f32 %v1977, 1.0
      %v2234 = vadd.f32 %v1978, 1.0
      %v2235 = vadd.f32 %v1979, 1.0
      %v2236 = vadd.f32 %v1980, 1.0
      %v2237 = vadd.f32 %v1981, 1.0
      %v2238 = vadd.f32 %v1982, 1.0
      %v2239 = vadd.f32 %v1983, 1.0
      %v2240 = vadd.f32 %v1984, 1.0
      %v2241 = vadd.f32 %v1985, 1.0
      %v2242 = vadd.f32 %v1986, 1.0
      %v2243 = vadd.f32 %v1987, 1.0
      %v2244 = vadd.f32 %v1988, 1.0
      %v2245 = vadd.f32 %v1989, 1.0
      %v2246 = vadd.f32 %v1990, 1.0
      %v2247 = vadd.f32 %v1991, 1.0
      %v2248 = vadd.f32 %v1992, 1.0
      %v2249 = vadd.f32 %v1993, 1.0
      %v2250 = vadd.f32 %v1994, 1.0
      %v2251 = vadd.f32 %v1995, 1.0
      %v2252 = vadd.f32 %v1996, 1.0
      %v2253 = vadd.f32 %v1997, 1.0
      %v2254 = vadd.f32 %v1998, 1.0
      %v2255 = vadd.f32 %v1999, 1.0
      %v2256 = vadd.f32 %v2000, 1.0
      %v2257 = vadd.f32 %v2001, 1.0
      %v2258 = vadd.f32 %v2002, 1.0
      %v2259 = vadd.f32 %v2003, 1.0
      %v2260 = vadd.f32 %v2004, 1.0
      %v2261 = vadd.f32 %v2005, 1.0
      %v2262 = vadd.f32 %v2006, 1.0
      %v2263 = vadd.f32 %v2007, 1.0
      %v2264 = vadd.f32 %v2008, 1.0
      %v2265 = vadd.f32 %v2009, 1.0
      %v2266 = vadd.f32 %v2010, 1.0
      %v2267 = vadd.f32 %v2011, 1.0
      %v2268 = vadd.f32 %v2012, 1.0
      %v2269 = vadd.f32 %v2013, 1.0
      %v2270 = vadd.f32 %v2014, 1.0
      %v2271 = vadd.f32 %v2015, 1.0
      %v2272 = vadd.f32 %v2016, 1.0
      %v2273 = vadd.f32 %v2017, 1.0
      %v2274 = vadd.f32 %v2018, 1.0
      %v2275 = vadd.f32 %v2019, 1.0
      %v2276 = vadd.f32 %v2020, 1.0
      %v2277 = vadd.f32 %v2021, 1.0
      %v2278 = vadd.f32 %v2022, 1.0
      %v2279 = vadd.f32 %v2023, 1.0
      %v2280 = vadd.f32 %v2024, 1.0
      %v2281 = vadd.f32 %v2025, 1.0
      %v2282 = vadd.f32 %v2026, 1.0
      %v2283 = vadd.f32 %v2027, 1.0
      %v2284 = vadd.f32 %v2028, 1.0
      %v2285 = vadd.f32 %v2029, 1.0
      %v2286 = vadd.f32 %v2030, 1.0
      %v2287 = vadd.f32 %v2031, 1.0
      %v2288 = vadd.f32 %v2032, 1.0
      %v2289 = vadd.f32 %v2033, 1.0
      %v2290 = vadd.f32 %v2034, 1.0
      %v2291 = vadd.f32 %v2035, 1.0
      %v2292 = vadd.f32 %v2036, 1.0
      %v2293 = vadd.f32 %v2037, 1.0
      %v2294 = vadd.f32 %v2038, 1.0
      %v2295 = vadd.f32 %v2039, 1.0
      %v2296 = vadd.f32 %v2040, 1.0
      %v2297 = vadd.f32 %v2041, 1.0
      %v2298 = vadd.f32 %v2042, 1.0
      %v2299 = vadd.f32 %v2043, 1.0
      %v2300 = vadd.f32 %v2044, 1.0
      %v2301 = vadd.f32 %v2045, 1.0
      %v2302 = vadd.f32 %v2046, 1.0
      %v2303 = vadd.f32 %v2047, 1.0
      %v2304 = vadd.f32 %v2048, 1.0
      %v2305 = vadd.f32 %v2049, 1.0
      %v2306 = vadd.f32 %v2050, 1.0
      %v2307 = vadd.f32 %v2051, 1.0
      %v2308 = vadd.f32 %v2052, 1.0
      %v2309 = vadd.f32 %v2053, 1.0
      %v2310 = vadd.f32 %v2054, 1.0
      %v2311 = vadd.f32 %v2055, 1.0
      %v2312 = vadd.f32 %v2056, 1.0
      %v2313 = vadd.f32 %v2057, 1.0
      %v2314 = vadd.f32 %v2058, 1.0
      %v2315 = vadd.f32 %v2059, 1.0
      %v2316 = vadd.f32 %v2060, 1.0
      %v2317 = vadd.f32 %v2061, 1.0
      %v2318 = vadd.f32 %v2062, 1.0
      %v2319 = vadd.f32 %v2063, 1.0
      %v2320 = vadd.f32 %v2064, 1.0
      %v2321 = vadd.f32 %v2065, 1.0
      %v2322 = vadd.f32 %v2066, 1.0
      %v2323 = vadd.f32 %v2067, 1.0
      %v2324 = vadd.f32 %v2068, 1.0
      %v2325 = vadd.f32 %v2069, 1.0
      %v2326 = vadd.f32 %v2070, 1.0
      %v2327 = vadd.f32 %v2071, 1.0
      %v2328 = vadd.f32 %v2072, 1.0
      %v2329 = vadd.f32 %v2073, 1.0
      %v2330 = vadd.f32 %v2074, 1.0
      %v2331 = vadd.f32 %v2075, 1.0
      %v2332 = vadd.f32 %v2076, 1.0
      %v2333 = vadd.f32 %v2077, 1.0
      %v2334 = vadd.f32 %v2078, 1.0
      %v2335 = vadd.f32 %v2079, 1.0
      %v2336 = vadd.f32 %v2080, 1.0
      %v2337 = vadd.f32 %v2081, 1.0
      %v2338 = vadd.f32 %v2082, 1.0
      %v2339 = vadd.f32 %v2083, 1.0
      %v2340 = vadd.f32 %v2084, 1.0
      %v2341 = vadd.f32 %v2085, 1.0
      %v2342 = vadd.f32 %v2086, 1.0
      %v2343 = vadd.f32 %v2087, 1.0
      %v2344 = vadd.f32 %v2088, 1.0
      %v2345 = vadd.f32 %v2089, 1.0
      %v2346 = vadd.f32 %v2090, 1.0
      %v2347 = vadd.f32 %v2091, 1.0
      %v2348 = vadd.f32 %v2092, 1.0
      %v2349 = vadd.f32 %v2093, 1.0
      %v2350 = vadd.f32 %v2094, 1.0
      %v2351 = vadd.f32 %v2095, 1.0
      %v2352 = vadd.f32 %v2096, 1.0
      %v2353 = vadd.f32 %v2097, 1.0
      %v2354 = vadd.f32 %v2098, 1.0
      %v2355 = vadd.f32 %v2099, 1.0
      %v2356 = vadd.f32 %v2100, 1.0
      %v2357 = vadd.f32 %v2101, 1.0
      %v2358 = vadd.f32 %v2102, 1.0
      %v2359 = vadd.f32 %v2103, 1.0
      %v2360 = vadd.f32 %v2104, 1.0
      %v2361 = vadd.f32 %v2105, 1.0
      %v2362 = vadd.f32 %v2106, 1.0
      %v2363 = vadd.f32 %v2107, 1.0
      %v2364 = vadd.f32 %v2108, 1.0
      %v2365 = vadd.f32 %v2109, 1.0
      %v2366 = vadd.f32 %v2110, 1.0
      %v2367 = vadd.f32 %v2111, 1.0
      %v2368 = vmul.f32 %v1344, %v2112
      %v2369 = vmul.f32 %v1345, %v2113
      %v2370 = vmul.f32 %v1346, %v2114
      %v2371 = vmul.f32 %v1347, %v2115
      %v2372 = vmul.f32 %v1348, %v2116
      %v2373 = vmul.f32 %v1349, %v2117
      %v2374 = vmul.f32 %v1350, %v2118
      %v2375 = vmul.f32 %v1351, %v2119
      %v2376 = vmul.f32 %v1352, %v2120
      %v2377 = vmul.f32 %v1353, %v2121
      %v2378 = vmul.f32 %v1354, %v2122
      %v2379 = vmul.f32 %v1355, %v2123
      %v2380 = vmul.f32 %v1356, %v2124
      %v2381 = vmul.f32 %v1357, %v2125
      %v2382 = vmul.f32 %v1358, %v2126
      %v2383 = vmul.f32 %v1359, %v2127
      %v2384 = vmul.f32 %v1360, %v2128
      %v2385 = vmul.f32 %v1361, %v2129
      %v2386 = vmul.f32 %v1362, %v2130
      %v2387 = vmul.f32 %v1363, %v2131
      %v2388 = vmul.f32 %v1364, %v2132
      %v2389 = vmul.f32 %v1365, %v2133
      %v2390 = vmul.f32 %v1366, %v2134
      %v2391 = vmul.f32 %v1367, %v2135
      %v2392 = vmul.f32 %v1368, %v2136
      %v2393 = vmul.f32 %v1369, %v2137
      %v2394 = vmul.f32 %v1370, %v2138
      %v2395 = vmul.f32 %v1371, %v2139
      %v2396 = vmul.f32 %v1372, %v2140
      %v2397 = vmul.f32 %v1373, %v2141
      %v2398 = vmul.f32 %v1374, %v2142
      %v2399 = vmul.f32 %v1375, %v2143
      %v2400 = vmul.f32 %v1376, %v2144
      %v2401 = vmul.f32 %v1377, %v2145
      %v2402 = vmul.f32 %v1378, %v2146
      %v2403 = vmul.f32 %v1379, %v2147
      %v2404 = vmul.f32 %v1380, %v2148
      %v2405 = vmul.f32 %v1381, %v2149
      %v2406 = vmul.f32 %v1382, %v2150
      %v2407 = vmul.f32 %v1383, %v2151
      %v2408 = vmul.f32 %v1384, %v2152
      %v2409 = vmul.f32 %v1385, %v2153
      %v2410 = vmul.f32 %v1386, %v2154
      %v2411 = vmul.f32 %v1387, %v2155
      %v2412 = vmul.f32 %v1388, %v2156
      %v2413 = vmul.f32 %v1389, %v2157
      %v2414 = vmul.f32 %v1390, %v2158
      %v2415 = vmul.f32 %v1391, %v2159
      %v2416 = vmul.f32 %v1392, %v2160
      %v2417 = vmul.f32 %v1393, %v2161
      %v2418 = vmul.f32 %v1394, %v2162
      %v2419 = vmul.f32 %v1395, %v2163
      %v2420 = vmul.f32 %v1396, %v2164
      %v2421 = vmul.f32 %v1397, %v2165
      %v2422 = vmul.f32 %v1398, %v2166
      %v2423 = vmul.f32 %v1399, %v2167
      %v2424 = vmul.f32 %v1400, %v2168
      %v2425 = vmul.f32 %v1401, %v2169
      %v2426 = vmul.f32 %v1402, %v2170
      %v2427 = vmul.f32 %v1403, %v2171
      %v2428 = vmul.f32 %v1404, %v2172
      %v2429 = vmul.f32 %v1405, %v2173
      %v2430 = vmul.f32 %v1406, %v2174
      %v2431 = vmul.f32 %v1407, %v2175
      %v2432 = vmul.f32 %v1408, %v2176
      %v2433 = vmul.f32 %v1409, %v2177
      %v2434 = vmul.f32 %v1410, %v2178
      %v2435 = vmul.f32 %v1411, %v2179
      %v2436 = vmul.f32 %v1412, %v2180
      %v2437 = vmul.f32 %v1413, %v2181
      %v2438 = vmul.f32 %v1414, %v2182
      %v2439 = vmul.f32 %v1415, %v2183
      %v2440 = vmul.f32 %v1416, %v2184
      %v2441 = vmul.f32 %v1417, %v2185
      %v2442 = vmul.f32 %v1418, %v2186
      %v2443 = vmul.f32 %v1419, %v2187
      %v2444 = vmul.f32 %v1420, %v2188
      %v2445 = vmul.f32 %v1421, %v2189
      %v2446 = vmul.f32 %v1422, %v2190
      %v2447 = vmul.f32 %v1423, %v2191
      %v2448 = vmul.f32 %v1424, %v2192
      %v2449 = vmul.f32 %v1425, %v2193
      %v2450 = vmul.f32 %v1426, %v2194
      %v2451 = vmul.f32 %v1427, %v2195
      %v2452 = vmul.f32 %v1428, %v2196
      %v2453 = vmul.f32 %v1429, %v2197
      %v2454 = vmul.f32 %v1430, %v2198
      %v2455 = vmul.f32 %v1431, %v2199
      %v2456 = vmul.f32 %v1432, %v2200
      %v2457 = vmul.f32 %v1433, %v2201
      %v2458 = vmul.f32 %v1434, %v2202
      %v2459 = vmul.f32 %v1435, %v2203
      %v2460 = vmul.f32 %v1436, %v2204
      %v2461 = vmul.f32 %v1437, %v2205
      %v2462 = vmul.f32 %v1438, %v2206
      %v2463 = vmul.f32 %v1439, %v2207
      %v2464 = vmul.f32 %v1440, %v2208
      %v2465 = vmul.f32 %v1441, %v2209
      %v2466 = vmul.f32 %v1442, %v2210
      %v2467 = vmul.f32 %v1443, %v2211
      %v2468 = vmul.f32 %v1444, %v2212
      %v2469 = vmul.f32 %v1445, %v2213
      %v2470 = vmul.f32 %v1446, %v2214
      %v2471 = vmul.f32 %v1447, %v2215
      %v2472 = vmul.f32 %v1448, %v2216
      %v2473 = vmul.f32 %v1449, %v2217
      %v2474 = vmul.f32 %v1450, %v2218
      %v2475 = vmul.f32 %v1451, %v2219
      %v2476 = vmul.f32 %v1452, %v2220
      %v2477 = vmul.f32 %v1453, %v2221
      %v2478 = vmul.f32 %v1454, %v2222
      %v2479 = vmul.f32 %v1455, %v2223
      %v2480 = vmul.f32 %v1456, %v2224
      %v2481 = vmul.f32 %v1457, %v2225
      %v2482 = vmul.f32 %v1458, %v2226
      %v2483 = vmul.f32 %v1459, %v2227
      %v2484 = vmul.f32 %v1460, %v2228
      %v2485 = vmul.f32 %v1461, %v2229
      %v2486 = vmul.f32 %v1462, %v2230
      %v2487 = vmul.f32 %v1463, %v2231
      %v2488 = vmul.f32 %v1464, %v2232
      %v2489 = vmul.f32 %v1465, %v2233
      %v2490 = vmul.f32 %v1466, %v2234
      %v2491 = vmul.f32 %v1467, %v2235
      %v2492 = vmul.f32 %v1468, %v2236
      %v2493 = vmul.f32 %v1469, %v2237
      %v2494 = vmul.f32 %v1470, %v2238
      %v2495 = vmul.f32 %v1471, %v2239
      %v2496 = vmul.f32 %v1472, %v2240
      %v2497 = vmul.f32 %v1473, %v2241
      %v2498 = vmul.f32 %v1474, %v2242
      %v2499 = vmul.f32 %v1475, %v2243
      %v2500 = vmul.f32 %v1476, %v2244
      %v2501 = vmul.f32 %v1477, %v2245
      %v2502 = vmul.f32 %v1478, %v2246
      %v2503 = vmul.f32 %v1479, %v2247
      %v2504 = vmul.f32 %v1480, %v2248
      %v2505 = vmul.f32 %v1481, %v2249
      %v2506 = vmul.f32 %v1482, %v2250
      %v2507 = vmul.f32 %v1483, %v2251
      %v2508 = vmul.f32 %v1484, %v2252
      %v2509 = vmul.f32 %v1485, %v2253
      %v2510 = vmul.f32 %v1486, %v2254
      %v2511 = vmul.f32 %v1487, %v2255
      %v2512 = vmul.f32 %v1488, %v2256
      %v2513 = vmul.f32 %v1489, %v2257
      %v2514 = vmul.f32 %v1490, %v2258
      %v2515 = vmul.f32 %v1491, %v2259
      %v2516 = vmul.f32 %v1492, %v2260
      %v2517 = vmul.f32 %v1493, %v2261
      %v2518 = vmul.f32 %v1494, %v2262
      %v2519 = vmul.f32 %v1495, %v2263
      %v2520 = vmul.f32 %v1496, %v2264
      %v2521 = vmul.f32 %v1497, %v2265
      %v2522 = vmul.f32 %v1498, %v2266
      %v2523 = vmul.f32 %v1499, %v2267
      %v2524 = vmul.f32 %v1500, %v2268
      %v2525 = vmul.f32 %v1501, %v2269
      %v2526 = vmul.f32 %v1502, %v2270
      %v2527 = vmul.f32 %v1503, %v2271
      %v2528 = vmul.f32 %v1504, %v2272
      %v2529 = vmul.f32 %v1505, %v2273
      %v2530 = vmul.f32 %v1506, %v2274
      %v2531 = vmul.f32 %v1507, %v2275
      %v2532 = vmul.f32 %v1508, %v2276
      %v2533 = vmul.f32 %v1509, %v2277
      %v2534 = vmul.f32 %v1510, %v2278
      %v2535 = vmul.f32 %v1511, %v2279
      %v2536 = vmul.f32 %v1512, %v2280
      %v2537 = vmul.f32 %v1513, %v2281
      %v2538 = vmul.f32 %v1514, %v2282
      %v2539 = vmul.f32 %v1515, %v2283
      %v2540 = vmul.f32 %v1516, %v2284
      %v2541 = vmul.f32 %v1517, %v2285
      %v2542 = vmul.f32 %v1518, %v2286
      %v2543 = vmul.f32 %v1519, %v2287
      %v2544 = vmul.f32 %v1520, %v2288
      %v2545 = vmul.f32 %v1521, %v2289
      %v2546 = vmul.f32 %v1522, %v2290
      %v2547 = vmul.f32 %v1523, %v2291
      %v2548 = vmul.f32 %v1524, %v2292
      %v2549 = vmul.f32 %v1525, %v2293
      %v2550 = vmul.f32 %v1526, %v2294
      %v2551 = vmul.f32 %v1527, %v2295
      %v2552 = vmul.f32 %v1528, %v2296
      %v2553 = vmul.f32 %v1529, %v2297
      %v2554 = vmul.f32 %v1530, %v2298
      %v2555 = vmul.f32 %v1531, %v2299
      %v2556 = vmul.f32 %v1532, %v2300
      %v2557 = vmul.f32 %v1533, %v2301
      %v2558 = vmul.f32 %v1534, %v2302
      %v2559 = vmul.f32 %v1535, %v2303
      %v2560 = vmul.f32 %v1536, %v2304
      %v2561 = vmul.f32 %v1537, %v2305
      %v2562 = vmul.f32 %v1538, %v2306
      %v2563 = vmul.f32 %v1539, %v2307
      %v2564 = vmul.f32 %v1540, %v2308
      %v2565 = vmul.f32 %v1541, %v2309
      %v2566 = vmul.f32 %v1542, %v2310
      %v2567 = vmul.f32 %v1543, %v2311
      %v2568 = vmul.f32 %v1544, %v2312
      %v2569 = vmul.f32 %v1545, %v2313
      %v2570 = vmul.f32 %v1546, %v2314
      %v2571 = vmul.f32 %v1547, %v2315
      %v2572 = vmul.f32 %v1548, %v2316
      %v2573 = vmul.f32 %v1549, %v2317
      %v2574 = vmul.f32 %v1550, %v2318
      %v2575 = vmul.f32 %v1551, %v2319
      %v2576 = vmul.f32 %v1552, %v2320
      %v2577 = vmul.f32 %v1553, %v2321
      %v2578 = vmul.f32 %v1554, %v2322
      %v2579 = vmul.f32 %v1555, %v2323
      %v2580 = vmul.f32 %v1556, %v2324
      %v2581 = vmul.f32 %v1557, %v2325
      %v2582 = vmul.f32 %v1558, %v2326
      %v2583 = vmul.f32 %v1559, %v2327
      %v2584 = vmul.f32 %v1560, %v2328
      %v2585 = vmul.f32 %v1561, %v2329
      %v2586 = vmul.f32 %v1562, %v2330
      %v2587 = vmul.f32 %v1563, %v2331
      %v2588 = vmul.f32 %v1564, %v2332
      %v2589 = vmul.f32 %v1565, %v2333
      %v2590 = vmul.f32 %v1566, %v2334
      %v2591 = vmul.f32 %v1567, %v2335
      %v2592 = vmul.f32 %v1568, %v2336
      %v2593 = vmul.f32 %v1569, %v2337
      %v2594 = vmul.f32 %v1570, %v2338
      %v2595 = vmul.f32 %v1571, %v2339
      %v2596 = vmul.f32 %v1572, %v2340
      %v2597 = vmul.f32 %v1573, %v2341
      %v2598 = vmul.f32 %v1574, %v2342
      %v2599 = vmul.f32 %v1575, %v2343
      %v2600 = vmul.f32 %v1576, %v2344
      %v2601 = vmul.f32 %v1577, %v2345
      %v2602 = vmul.f32 %v1578, %v2346
      %v2603 = vmul.f32 %v1579, %v2347
      %v2604 = vmul.f32 %v1580, %v2348
      %v2605 = vmul.f32 %v1581, %v2349
      %v2606 = vmul.f32 %v1582, %v2350
      %v2607 = vmul.f32 %v1583, %v2351
      %v2608 = vmul.f32 %v1584, %v2352
      %v2609 = vmul.f32 %v1585, %v2353
      %v2610 = vmul.f32 %v1586, %v2354
      %v2611 = vmul.f32 %v1587, %v2355
      %v2612 = vmul.f32 %v1588, %v2356
      %v2613 = vmul.f32 %v1589, %v2357
      %v2614 = vmul.f32 %v1590, %v2358
      %v2615 = vmul.f32 %v1591, %v2359
      %v2616 = vmul.f32 %v1592, %v2360
      %v2617 = vmul.f32 %v1593, %v2361
      %v2618 = vmul.f32 %v1594, %v2362
      %v2619 = vmul.f32 %v1595, %v2363
      %v2620 = vmul.f32 %v1596, %v2364
      %v2621 = vmul.f32 %v1597, %v2365
      %v2622 = vmul.f32 %v1598, %v2366
      %v2623 = vmul.f32 %v1599, %v2367
      %v2624 = vadd.f32 %v2368, %v2369
      %v2625 = vadd.f32 %v2624, %v2370
      %v2626 = vadd.f32 %v2625, %v2371
      %v2627 = vadd.f32 %v2626, %v2372
      %v2628 = vadd.f32 %v2627, %v2373
      %v2629 = vadd.f32 %v2628, %v2374
      %v2630 = vadd.f32 %v2629, %v2375
      %2631 = vadd.xlane.f32.xlu0 %v2630
      %v2632 = vpop.xlane.xlu0 %2631
      %v2633 = vadd.f32 %v2376, %v2377
      %v2634 = vadd.f32 %v2633, %v2378
      %v2635 = vadd.f32 %v2634, %v2379
      %v2636 = vadd.f32 %v2635, %v2380
      %v2637 = vadd.f32 %v2636, %v2381
      %v2638 = vadd.f32 %v2637, %v2382
      %v2639 = vadd.f32 %v2638, %v2383
      %2640 = vadd.xlane.f32.xlu0 %v2639
      %v2641 = vpop.xlane.xlu0 %2640
      %v2642 = vadd.f32 %v2384, %v2385
      %v2643 = vadd.f32 %v2642, %v2386
      %v2644 = vadd.f32 %v2643, %v2387
      %v2645 = vadd.f32 %v2644, %v2388
      %v2646 = vadd.f32 %v2645, %v2389
      %v2647 = vadd.f32 %v2646, %v2390
      %v2648 = vadd.f32 %v2647, %v2391
      %2649 = vadd.xlane.f32.xlu0 %v2648
      %v2650 = vpop.xlane.xlu0 %2649
      %v2651 = vadd.f32 %v2392, %v2393
      %v2652 = vadd.f32 %v2651, %v2394
      %v2653 = vadd.f32 %v2652, %v2395
      %v2654 = vadd.f32 %v2653, %v2396
      %v2655 = vadd.f32 %v2654, %v2397
      %v2656 = vadd.f32 %v2655, %v2398
      %v2657 = vadd.f32 %v2656, %v2399
      %2658 = vadd.xlane.f32.xlu0 %v2657
      %v2659 = vpop.xlane.xlu0 %2658
      %v2660 = vadd.f32 %v2400, %v2401
      %v2661 = vadd.f32 %v2660, %v2402
      %v2662 = vadd.f32 %v2661, %v2403
      %v2663 = vadd.f32 %v2662, %v2404
      %v2664 = vadd.f32 %v2663, %v2405
      %v2665 = vadd.f32 %v2664, %v2406
      %v2666 = vadd.f32 %v2665, %v2407
      %2667 = vadd.xlane.f32.xlu0 %v2666
      %v2668 = vpop.xlane.xlu0 %2667
      %v2669 = vadd.f32 %v2408, %v2409
      %v2670 = vadd.f32 %v2669, %v2410
      %v2671 = vadd.f32 %v2670, %v2411
      %v2672 = vadd.f32 %v2671, %v2412
      %v2673 = vadd.f32 %v2672, %v2413
      %v2674 = vadd.f32 %v2673, %v2414
      %v2675 = vadd.f32 %v2674, %v2415
      %2676 = vadd.xlane.f32.xlu0 %v2675
      %v2677 = vpop.xlane.xlu0 %2676
      %v2678 = vadd.f32 %v2416, %v2417
      %v2679 = vadd.f32 %v2678, %v2418
      %v2680 = vadd.f32 %v2679, %v2419
      %v2681 = vadd.f32 %v2680, %v2420
      %v2682 = vadd.f32 %v2681, %v2421
      %v2683 = vadd.f32 %v2682, %v2422
      %v2684 = vadd.f32 %v2683, %v2423
      %2685 = vadd.xlane.f32.xlu0 %v2684
      %v2686 = vpop.xlane.xlu0 %2685
      %v2687 = vadd.f32 %v2424, %v2425
      %v2688 = vadd.f32 %v2687, %v2426
      %v2689 = vadd.f32 %v2688, %v2427
      %v2690 = vadd.f32 %v2689, %v2428
      %v2691 = vadd.f32 %v2690, %v2429
      %v2692 = vadd.f32 %v2691, %v2430
      %v2693 = vadd.f32 %v2692, %v2431
      %2694 = vadd.xlane.f32.xlu0 %v2693
      %v2695 = vpop.xlane.xlu0 %2694
      %v2696 = vadd.f32 %v2432, %v2433
      %v2697 = vadd.f32 %v2696, %v2434
      %v2698 = vadd.f32 %v2697, %v2435
      %v2699 = vadd.f32 %v2698, %v2436
      %v2700 = vadd.f32 %v2699, %v2437
      %v2701 = vadd.f32 %v2700, %v2438
      %v2702 = vadd.f32 %v2701, %v2439
      %2703 = vadd.xlane.f32.xlu0 %v2702
      %v2704 = vpop.xlane.xlu0 %2703
      %v2705 = vadd.f32 %v2440, %v2441
      %v2706 = vadd.f32 %v2705, %v2442
      %v2707 = vadd.f32 %v2706, %v2443
      %v2708 = vadd.f32 %v2707, %v2444
      %v2709 = vadd.f32 %v2708, %v2445
      %v2710 = vadd.f32 %v2709, %v2446
      %v2711 = vadd.f32 %v2710, %v2447
      %2712 = vadd.xlane.f32.xlu0 %v2711
      %v2713 = vpop.xlane.xlu0 %2712
      %v2714 = vadd.f32 %v2448, %v2449
      %v2715 = vadd.f32 %v2714, %v2450
      %v2716 = vadd.f32 %v2715, %v2451
      %v2717 = vadd.f32 %v2716, %v2452
      %v2718 = vadd.f32 %v2717, %v2453
      %v2719 = vadd.f32 %v2718, %v2454
      %v2720 = vadd.f32 %v2719, %v2455
      %2721 = vadd.xlane.f32.xlu0 %v2720
      %v2722 = vpop.xlane.xlu0 %2721
      %v2723 = vadd.f32 %v2456, %v2457
      %v2724 = vadd.f32 %v2723, %v2458
      %v2725 = vadd.f32 %v2724, %v2459
      %v2726 = vadd.f32 %v2725, %v2460
      %v2727 = vadd.f32 %v2726, %v2461
      %v2728 = vadd.f32 %v2727, %v2462
      %v2729 = vadd.f32 %v2728, %v2463
      %2730 = vadd.xlane.f32.xlu0 %v2729
      %v2731 = vpop.xlane.xlu0 %2730
      %v2732 = vadd.f32 %v2464, %v2465
      %v2733 = vadd.f32 %v2732, %v2466
      %v2734 = vadd.f32 %v2733, %v2467
      %v2735 = vadd.f32 %v2734, %v2468
      %v2736 = vadd.f32 %v2735, %v2469
      %v2737 = vadd.f32 %v2736, %v2470
      %v2738 = vadd.f32 %v2737, %v2471
      %2739 = vadd.xlane.f32.xlu0 %v2738
      %v2740 = vpop.xlane.xlu0 %2739
      %v2741 = vadd.f32 %v2472, %v2473
      %v2742 = vadd.f32 %v2741, %v2474
      %v2743 = vadd.f32 %v2742, %v2475
      %v2744 = vadd.f32 %v2743, %v2476
      %v2745 = vadd.f32 %v2744, %v2477
      %v2746 = vadd.f32 %v2745, %v2478
      %v2747 = vadd.f32 %v2746, %v2479
      %2748 = vadd.xlane.f32.xlu0 %v2747
      %v2749 = vpop.xlane.xlu0 %2748
      %v2750 = vadd.f32 %v2480, %v2481
      %v2751 = vadd.f32 %v2750, %v2482
      %v2752 = vadd.f32 %v2751, %v2483
      %v2753 = vadd.f32 %v2752, %v2484
      %v2754 = vadd.f32 %v2753, %v2485
      %v2755 = vadd.f32 %v2754, %v2486
      %v2756 = vadd.f32 %v2755, %v2487
      %2757 = vadd.xlane.f32.xlu0 %v2756
      %v2758 = vpop.xlane.xlu0 %2757
      %v2759 = vadd.f32 %v2488, %v2489
      %v2760 = vadd.f32 %v2759, %v2490
      %v2761 = vadd.f32 %v2760, %v2491
      %v2762 = vadd.f32 %v2761, %v2492
      %v2763 = vadd.f32 %v2762, %v2493
      %v2764 = vadd.f32 %v2763, %v2494
      %v2765 = vadd.f32 %v2764, %v2495
      %2766 = vadd.xlane.f32.xlu0 %v2765
      %v2767 = vpop.xlane.xlu0 %2766
      %v2768 = vadd.f32 %v2496, %v2497
      %v2769 = vadd.f32 %v2768, %v2498
      %v2770 = vadd.f32 %v2769, %v2499
      %v2771 = vadd.f32 %v2770, %v2500
      %v2772 = vadd.f32 %v2771, %v2501
      %v2773 = vadd.f32 %v2772, %v2502
      %v2774 = vadd.f32 %v2773, %v2503
      %2775 = vadd.xlane.f32.xlu0 %v2774
      %v2776 = vpop.xlane.xlu0 %2775
      %v2777 = vadd.f32 %v2504, %v2505
      %v2778 = vadd.f32 %v2777, %v2506
      %v2779 = vadd.f32 %v2778, %v2507
      %v2780 = vadd.f32 %v2779, %v2508
      %v2781 = vadd.f32 %v2780, %v2509
      %v2782 = vadd.f32 %v2781, %v2510
      %v2783 = vadd.f32 %v2782, %v2511
      %2784 = vadd.xlane.f32.xlu0 %v2783
      %v2785 = vpop.xlane.xlu0 %2784
      %v2786 = vadd.f32 %v2512, %v2513
      %v2787 = vadd.f32 %v2786, %v2514
      %v2788 = vadd.f32 %v2787, %v2515
      %v2789 = vadd.f32 %v2788, %v2516
      %v2790 = vadd.f32 %v2789, %v2517
      %v2791 = vadd.f32 %v2790, %v2518
      %v2792 = vadd.f32 %v2791, %v2519
      %2793 = vadd.xlane.f32.xlu0 %v2792
      %v2794 = vpop.xlane.xlu0 %2793
      %v2795 = vadd.f32 %v2520, %v2521
      %v2796 = vadd.f32 %v2795, %v2522
      %v2797 = vadd.f32 %v2796, %v2523
      %v2798 = vadd.f32 %v2797, %v2524
      %v2799 = vadd.f32 %v2798, %v2525
      %v2800 = vadd.f32 %v2799, %v2526
      %v2801 = vadd.f32 %v2800, %v2527
      %2802 = vadd.xlane.f32.xlu0 %v2801
      %v2803 = vpop.xlane.xlu0 %2802
      %v2804 = vadd.f32 %v2528, %v2529
      %v2805 = vadd.f32 %v2804, %v2530
      %v2806 = vadd.f32 %v2805, %v2531
      %v2807 = vadd.f32 %v2806, %v2532
      %v2808 = vadd.f32 %v2807, %v2533
      %v2809 = vadd.f32 %v2808, %v2534
      %v2810 = vadd.f32 %v2809, %v2535
      %2811 = vadd.xlane.f32.xlu0 %v2810
      %v2812 = vpop.xlane.xlu0 %2811
      %v2813 = vadd.f32 %v2536, %v2537
      %v2814 = vadd.f32 %v2813, %v2538
      %v2815 = vadd.f32 %v2814, %v2539
      %v2816 = vadd.f32 %v2815, %v2540
      %v2817 = vadd.f32 %v2816, %v2541
      %v2818 = vadd.f32 %v2817, %v2542
      %v2819 = vadd.f32 %v2818, %v2543
      %2820 = vadd.xlane.f32.xlu0 %v2819
      %v2821 = vpop.xlane.xlu0 %2820
      %v2822 = vadd.f32 %v2544, %v2545
      %v2823 = vadd.f32 %v2822, %v2546
      %v2824 = vadd.f32 %v2823, %v2547
      %v2825 = vadd.f32 %v2824, %v2548
      %v2826 = vadd.f32 %v2825, %v2549
      %v2827 = vadd.f32 %v2826, %v2550
      %v2828 = vadd.f32 %v2827, %v2551
      %2829 = vadd.xlane.f32.xlu0 %v2828
      %v2830 = vpop.xlane.xlu0 %2829
      %v2831 = vadd.f32 %v2552, %v2553
      %v2832 = vadd.f32 %v2831, %v2554
      %v2833 = vadd.f32 %v2832, %v2555
      %v2834 = vadd.f32 %v2833, %v2556
      %v2835 = vadd.f32 %v2834, %v2557
      %v2836 = vadd.f32 %v2835, %v2558
      %v2837 = vadd.f32 %v2836, %v2559
      %2838 = vadd.xlane.f32.xlu0 %v2837
      %v2839 = vpop.xlane.xlu0 %2838
      %v2840 = vadd.f32 %v2560, %v2561
      %v2841 = vadd.f32 %v2840, %v2562
      %v2842 = vadd.f32 %v2841, %v2563
      %v2843 = vadd.f32 %v2842, %v2564
      %v2844 = vadd.f32 %v2843, %v2565
      %v2845 = vadd.f32 %v2844, %v2566
      %v2846 = vadd.f32 %v2845, %v2567
      %2847 = vadd.xlane.f32.xlu0 %v2846
      %v2848 = vpop.xlane.xlu0 %2847
      %v2849 = vadd.f32 %v2568, %v2569
      %v2850 = vadd.f32 %v2849, %v2570
      %v2851 = vadd.f32 %v2850, %v2571
      %v2852 = vadd.f32 %v2851, %v2572
      %v2853 = vadd.f32 %v2852, %v2573
      %v2854 = vadd.f32 %v2853, %v2574
      %v2855 = vadd.f32 %v2854, %v2575
      %2856 = vadd.xlane.f32.xlu0 %v2855
      %v2857 = vpop.xlane.xlu0 %2856
      %v2858 = vadd.f32 %v2576, %v2577
      %v2859 = vadd.f32 %v2858, %v2578
      %v2860 = vadd.f32 %v2859, %v2579
      %v2861 = vadd.f32 %v2860, %v2580
      %v2862 = vadd.f32 %v2861, %v2581
      %v2863 = vadd.f32 %v2862, %v2582
      %v2864 = vadd.f32 %v2863, %v2583
      %2865 = vadd.xlane.f32.xlu0 %v2864
      %v2866 = vpop.xlane.xlu0 %2865
      %v2867 = vadd.f32 %v2584, %v2585
      %v2868 = vadd.f32 %v2867, %v2586
      %v2869 = vadd.f32 %v2868, %v2587
      %v2870 = vadd.f32 %v2869, %v2588
      %v2871 = vadd.f32 %v2870, %v2589
      %v2872 = vadd.f32 %v2871, %v2590
      %v2873 = vadd.f32 %v2872, %v2591
      %2874 = vadd.xlane.f32.xlu0 %v2873
      %v2875 = vpop.xlane.xlu0 %2874
      %v2876 = vadd.f32 %v2592, %v2593
      %v2877 = vadd.f32 %v2876, %v2594
      %v2878 = vadd.f32 %v2877, %v2595
      %v2879 = vadd.f32 %v2878, %v2596
      %v2880 = vadd.f32 %v2879, %v2597
      %v2881 = vadd.f32 %v2880, %v2598
      %v2882 = vadd.f32 %v2881, %v2599
      %2883 = vadd.xlane.f32.xlu0 %v2882
      %v2884 = vpop.xlane.xlu0 %2883
      %v2885 = vadd.f32 %v2600, %v2601
      %v2886 = vadd.f32 %v2885, %v2602
      %v2887 = vadd.f32 %v2886, %v2603
      %v2888 = vadd.f32 %v2887, %v2604
      %v2889 = vadd.f32 %v2888, %v2605
      %v2890 = vadd.f32 %v2889, %v2606
      %v2891 = vadd.f32 %v2890, %v2607
      %2892 = vadd.xlane.f32.xlu0 %v2891
      %v2893 = vpop.xlane.xlu0 %2892
      %v2894 = vadd.f32 %v2608, %v2609
      %v2895 = vadd.f32 %v2894, %v2610
      %v2896 = vadd.f32 %v2895, %v2611
      %v2897 = vadd.f32 %v2896, %v2612
      %v2898 = vadd.f32 %v2897, %v2613
      %v2899 = vadd.f32 %v2898, %v2614
      %v2900 = vadd.f32 %v2899, %v2615
      %2901 = vadd.xlane.f32.xlu0 %v2900
      %v2902 = vpop.xlane.xlu0 %2901
      %v2903 = vadd.f32 %v2616, %v2617
      %v2904 = vadd.f32 %v2903, %v2618
      %v2905 = vadd.f32 %v2904, %v2619
      %v2906 = vadd.f32 %v2905, %v2620
      %v2907 = vadd.f32 %v2906, %v2621
      %v2908 = vadd.f32 %v2907, %v2622
      %v2909 = vadd.f32 %v2908, %v2623
      %2910 = vadd.xlane.f32.xlu0 %v2909
      %v2911 = vpop.xlane.xlu0 %2910
      %v2912 = vrcp.pop 1024.0
      %v2913 = vmul.f32 %v2632, %v2912
      %v2914 = vmul.f32 %v2641, %v2912
      %v2915 = vmul.f32 %v2650, %v2912
      %v2916 = vmul.f32 %v2659, %v2912
      %v2917 = vmul.f32 %v2668, %v2912
      %v2918 = vmul.f32 %v2677, %v2912
      %v2919 = vmul.f32 %v2686, %v2912
      %v2920 = vmul.f32 %v2695, %v2912
      %v2921 = vmul.f32 %v2704, %v2912
      %v2922 = vmul.f32 %v2713, %v2912
      %v2923 = vmul.f32 %v2722, %v2912
      %v2924 = vmul.f32 %v2731, %v2912
      %v2925 = vmul.f32 %v2740, %v2912
      %v2926 = vmul.f32 %v2749, %v2912
      %v2927 = vmul.f32 %v2758, %v2912
      %v2928 = vmul.f32 %v2767, %v2912
      %v2929 = vmul.f32 %v2776, %v2912
      %v2930 = vmul.f32 %v2785, %v2912
      %v2931 = vmul.f32 %v2794, %v2912
      %v2932 = vmul.f32 %v2803, %v2912
      %v2933 = vmul.f32 %v2812, %v2912
      %v2934 = vmul.f32 %v2821, %v2912
      %v2935 = vmul.f32 %v2830, %v2912
      %v2936 = vmul.f32 %v2839, %v2912
      %v2937 = vmul.f32 %v2848, %v2912
      %v2938 = vmul.f32 %v2857, %v2912
      %v2939 = vmul.f32 %v2866, %v2912
      %v2940 = vmul.f32 %v2875, %v2912
      %v2941 = vmul.f32 %v2884, %v2912
      %v2942 = vmul.f32 %v2893, %v2912
      %v2943 = vmul.f32 %v2902, %v2912
      %v2944 = vmul.f32 %v2911, %v2912
      %v2945 = vsub.f32 %v2368, %v2913
      %v2946 = vsub.f32 %v2369, %v2913
      %v2947 = vsub.f32 %v2370, %v2913
      %v2948 = vsub.f32 %v2371, %v2913
      %v2949 = vsub.f32 %v2372, %v2913
      %v2950 = vsub.f32 %v2373, %v2913
      %v2951 = vsub.f32 %v2374, %v2913
      %v2952 = vsub.f32 %v2375, %v2913
      %v2953 = vsub.f32 %v2376, %v2914
      %v2954 = vsub.f32 %v2377, %v2914
      %v2955 = vsub.f32 %v2378, %v2914
      %v2956 = vsub.f32 %v2379, %v2914
      %v2957 = vsub.f32 %v2380, %v2914
      %v2958 = vsub.f32 %v2381, %v2914
      %v2959 = vsub.f32 %v2382, %v2914
      %v2960 = vsub.f32 %v2383, %v2914
      %v2961 = vsub.f32 %v2384, %v2915
      %v2962 = vsub.f32 %v2385, %v2915
      %v2963 = vsub.f32 %v2386, %v2915
      %v2964 = vsub.f32 %v2387, %v2915
      %v2965 = vsub.f32 %v2388, %v2915
      %v2966 = vsub.f32 %v2389, %v2915
      %v2967 = vsub.f32 %v2390, %v2915
      %v2968 = vsub.f32 %v2391, %v2915
      %v2969 = vsub.f32 %v2392, %v2916
      %v2970 = vsub.f32 %v2393, %v2916
      %v2971 = vsub.f32 %v2394, %v2916
      %v2972 = vsub.f32 %v2395, %v2916
      %v2973 = vsub.f32 %v2396, %v2916
      %v2974 = vsub.f32 %v2397, %v2916
      %v2975 = vsub.f32 %v2398, %v2916
      %v2976 = vsub.f32 %v2399, %v2916
      %v2977 = vsub.f32 %v2400, %v2917
      %v2978 = vsub.f32 %v2401, %v2917
      %v2979 = vsub.f32 %v2402, %v2917
      %v2980 = vsub.f32 %v2403, %v2917
      %v2981 = vsub.f32 %v2404, %v2917
      %v2982 = vsub.f32 %v2405, %v2917
      %v2983 = vsub.f32 %v2406, %v2917
      %v2984 = vsub.f32 %v2407, %v2917
      %v2985 = vsub.f32 %v2408, %v2918
      %v2986 = vsub.f32 %v2409, %v2918
      %v2987 = vsub.f32 %v2410, %v2918
      %v2988 = vsub.f32 %v2411, %v2918
      %v2989 = vsub.f32 %v2412, %v2918
      %v2990 = vsub.f32 %v2413, %v2918
      %v2991 = vsub.f32 %v2414, %v2918
      %v2992 = vsub.f32 %v2415, %v2918
      %v2993 = vsub.f32 %v2416, %v2919
      %v2994 = vsub.f32 %v2417, %v2919
      %v2995 = vsub.f32 %v2418, %v2919
      %v2996 = vsub.f32 %v2419, %v2919
      %v2997 = vsub.f32 %v2420, %v2919
      %v2998 = vsub.f32 %v2421, %v2919
      %v2999 = vsub.f32 %v2422, %v2919
      %v3000 = vsub.f32 %v2423, %v2919
      %v3001 = vsub.f32 %v2424, %v2920
      %v3002 = vsub.f32 %v2425, %v2920
      %v3003 = vsub.f32 %v2426, %v2920
      %v3004 = vsub.f32 %v2427, %v2920
      %v3005 = vsub.f32 %v2428, %v2920
      %v3006 = vsub.f32 %v2429, %v2920
      %v3007 = vsub.f32 %v2430, %v2920
      %v3008 = vsub.f32 %v2431, %v2920
      %v3009 = vsub.f32 %v2432, %v2921
      %v3010 = vsub.f32 %v2433, %v2921
      %v3011 = vsub.f32 %v2434, %v2921
      %v3012 = vsub.f32 %v2435, %v2921
      %v3013 = vsub.f32 %v2436, %v2921
      %v3014 = vsub.f32 %v2437, %v2921
      %v3015 = vsub.f32 %v2438, %v2921
      %v3016 = vsub.f32 %v2439, %v2921
      %v3017 = vsub.f32 %v2440, %v2922
      %v3018 = vsub.f32 %v2441, %v2922
      %v3019 = vsub.f32 %v2442, %v2922
      %v3020 = vsub.f32 %v2443, %v2922
      %v3021 = vsub.f32 %v2444, %v2922
      %v3022 = vsub.f32 %v2445, %v2922
      %v3023 = vsub.f32 %v2446, %v2922
      %v3024 = vsub.f32 %v2447, %v2922
      %v3025 = vsub.f32 %v2448, %v2923
      %v3026 = vsub.f32 %v2449, %v2923
      %v3027 = vsub.f32 %v2450, %v2923
      %v3028 = vsub.f32 %v2451, %v2923
      %v3029 = vsub.f32 %v2452, %v2923
      %v3030 = vsub.f32 %v2453, %v2923
      %v3031 = vsub.f32 %v2454, %v2923
      %v3032 = vsub.f32 %v2455, %v2923
      %v3033 = vsub.f32 %v2456, %v2924
      %v3034 = vsub.f32 %v2457, %v2924
      %v3035 = vsub.f32 %v2458, %v2924
      %v3036 = vsub.f32 %v2459, %v2924
      %v3037 = vsub.f32 %v2460, %v2924
      %v3038 = vsub.f32 %v2461, %v2924
      %v3039 = vsub.f32 %v2462, %v2924
      %v3040 = vsub.f32 %v2463, %v2924
      %v3041 = vsub.f32 %v2464, %v2925
      %v3042 = vsub.f32 %v2465, %v2925
      %v3043 = vsub.f32 %v2466, %v2925
      %v3044 = vsub.f32 %v2467, %v2925
      %v3045 = vsub.f32 %v2468, %v2925
      %v3046 = vsub.f32 %v2469, %v2925
      %v3047 = vsub.f32 %v2470, %v2925
      %v3048 = vsub.f32 %v2471, %v2925
      %v3049 = vsub.f32 %v2472, %v2926
      %v3050 = vsub.f32 %v2473, %v2926
      %v3051 = vsub.f32 %v2474, %v2926
      %v3052 = vsub.f32 %v2475, %v2926
      %v3053 = vsub.f32 %v2476, %v2926
      %v3054 = vsub.f32 %v2477, %v2926
      %v3055 = vsub.f32 %v2478, %v2926
      %v3056 = vsub.f32 %v2479, %v2926
      %v3057 = vsub.f32 %v2480, %v2927
      %v3058 = vsub.f32 %v2481, %v2927
      %v3059 = vsub.f32 %v2482, %v2927
      %v3060 = vsub.f32 %v2483, %v2927
      %v3061 = vsub.f32 %v2484, %v2927
      %v3062 = vsub.f32 %v2485, %v2927
      %v3063 = vsub.f32 %v2486, %v2927
      %v3064 = vsub.f32 %v2487, %v2927
      %v3065 = vsub.f32 %v2488, %v2928
      %v3066 = vsub.f32 %v2489, %v2928
      %v3067 = vsub.f32 %v2490, %v2928
      %v3068 = vsub.f32 %v2491, %v2928
      %v3069 = vsub.f32 %v2492, %v2928
      %v3070 = vsub.f32 %v2493, %v2928
      %v3071 = vsub.f32 %v2494, %v2928
      %v3072 = vsub.f32 %v2495, %v2928
      %v3073 = vsub.f32 %v2496, %v2929
      %v3074 = vsub.f32 %v2497, %v2929
      %v3075 = vsub.f32 %v2498, %v2929
      %v3076 = vsub.f32 %v2499, %v2929
      %v3077 = vsub.f32 %v2500, %v2929
      %v3078 = vsub.f32 %v2501, %v2929
      %v3079 = vsub.f32 %v2502, %v2929
      %v3080 = vsub.f32 %v2503, %v2929
      %v3081 = vsub.f32 %v2504, %v2930
      %v3082 = vsub.f32 %v2505, %v2930
      %v3083 = vsub.f32 %v2506, %v2930
      %v3084 = vsub.f32 %v2507, %v2930
      %v3085 = vsub.f32 %v2508, %v2930
      %v3086 = vsub.f32 %v2509, %v2930
      %v3087 = vsub.f32 %v2510, %v2930
      %v3088 = vsub.f32 %v2511, %v2930
      %v3089 = vsub.f32 %v2512, %v2931
      %v3090 = vsub.f32 %v2513, %v2931
      %v3091 = vsub.f32 %v2514, %v2931
      %v3092 = vsub.f32 %v2515, %v2931
      %v3093 = vsub.f32 %v2516, %v2931
      %v3094 = vsub.f32 %v2517, %v2931
      %v3095 = vsub.f32 %v2518, %v2931
      %v3096 = vsub.f32 %v2519, %v2931
      %v3097 = vsub.f32 %v2520, %v2932
      %v3098 = vsub.f32 %v2521, %v2932
      %v3099 = vsub.f32 %v2522, %v2932
      %v3100 = vsub.f32 %v2523, %v2932
      %v3101 = vsub.f32 %v2524, %v2932
      %v3102 = vsub.f32 %v2525, %v2932
      %v3103 = vsub.f32 %v2526, %v2932
      %v3104 = vsub.f32 %v2527, %v2932
      %v3105 = vsub.f32 %v2528, %v2933
      %v3106 = vsub.f32 %v2529, %v2933
      %v3107 = vsub.f32 %v2530, %v2933
      %v3108 = vsub.f32 %v2531, %v2933
      %v3109 = vsub.f32 %v2532, %v2933
      %v3110 = vsub.f32 %v2533, %v2933
      %v3111 = vsub.f32 %v2534, %v2933
      %v3112 = vsub.f32 %v2535, %v2933
      %v3113 = vsub.f32 %v2536, %v2934
      %v3114 = vsub.f32 %v2537, %v2934
      %v3115 = vsub.f32 %v2538, %v2934
      %v3116 = vsub.f32 %v2539, %v2934
      %v3117 = vsub.f32 %v2540, %v2934
      %v3118 = vsub.f32 %v2541, %v2934
      %v3119 = vsub.f32 %v2542, %v2934
      %v3120 = vsub.f32 %v2543, %v2934
      %v3121 = vsub.f32 %v2544, %v2935
      %v3122 = vsub.f32 %v2545, %v2935
      %v3123 = vsub.f32 %v2546, %v2935
      %v3124 = vsub.f32 %v2547, %v2935
      %v3125 = vsub.f32 %v2548, %v2935
      %v3126 = vsub.f32 %v2549, %v2935
      %v3127 = vsub.f32 %v2550, %v2935
      %v3128 = vsub.f32 %v2551, %v2935
      %v3129 = vsub.f32 %v2552, %v2936
      %v3130 = vsub.f32 %v2553, %v2936
      %v3131 = vsub.f32 %v2554, %v2936
      %v3132 = vsub.f32 %v2555, %v2936
      %v3133 = vsub.f32 %v2556, %v2936
      %v3134 = vsub.f32 %v2557, %v2936
      %v3135 = vsub.f32 %v2558, %v2936
      %v3136 = vsub.f32 %v2559, %v2936
      %v3137 = vsub.f32 %v2560, %v2937
      %v3138 = vsub.f32 %v2561, %v2937
      %v3139 = vsub.f32 %v2562, %v2937
      %v3140 = vsub.f32 %v2563, %v2937
      %v3141 = vsub.f32 %v2564, %v2937
      %v3142 = vsub.f32 %v2565, %v2937
      %v3143 = vsub.f32 %v2566, %v2937
      %v3144 = vsub.f32 %v2567, %v2937
      %v3145 = vsub.f32 %v2568, %v2938
      %v3146 = vsub.f32 %v2569, %v2938
      %v3147 = vsub.f32 %v2570, %v2938
      %v3148 = vsub.f32 %v2571, %v2938
      %v3149 = vsub.f32 %v2572, %v2938
      %v3150 = vsub.f32 %v2573, %v2938
      %v3151 = vsub.f32 %v2574, %v2938
      %v3152 = vsub.f32 %v2575, %v2938
      %v3153 = vsub.f32 %v2576, %v2939
      %v3154 = vsub.f32 %v2577, %v2939
      %v3155 = vsub.f32 %v2578, %v2939
      %v3156 = vsub.f32 %v2579, %v2939
      %v3157 = vsub.f32 %v2580, %v2939
      %v3158 = vsub.f32 %v2581, %v2939
      %v3159 = vsub.f32 %v2582, %v2939
      %v3160 = vsub.f32 %v2583, %v2939
      %v3161 = vsub.f32 %v2584, %v2940
      %v3162 = vsub.f32 %v2585, %v2940
      %v3163 = vsub.f32 %v2586, %v2940
      %v3164 = vsub.f32 %v2587, %v2940
      %v3165 = vsub.f32 %v2588, %v2940
      %v3166 = vsub.f32 %v2589, %v2940
      %v3167 = vsub.f32 %v2590, %v2940
      %v3168 = vsub.f32 %v2591, %v2940
      %v3169 = vsub.f32 %v2592, %v2941
      %v3170 = vsub.f32 %v2593, %v2941
      %v3171 = vsub.f32 %v2594, %v2941
      %v3172 = vsub.f32 %v2595, %v2941
      %v3173 = vsub.f32 %v2596, %v2941
      %v3174 = vsub.f32 %v2597, %v2941
      %v3175 = vsub.f32 %v2598, %v2941
      %v3176 = vsub.f32 %v2599, %v2941
      %v3177 = vsub.f32 %v2600, %v2942
      %v3178 = vsub.f32 %v2601, %v2942
      %v3179 = vsub.f32 %v2602, %v2942
      %v3180 = vsub.f32 %v2603, %v2942
      %v3181 = vsub.f32 %v2604, %v2942
      %v3182 = vsub.f32 %v2605, %v2942
      %v3183 = vsub.f32 %v2606, %v2942
      %v3184 = vsub.f32 %v2607, %v2942
      %v3185 = vsub.f32 %v2608, %v2943
      %v3186 = vsub.f32 %v2609, %v2943
      %v3187 = vsub.f32 %v2610, %v2943
      %v3188 = vsub.f32 %v2611, %v2943
      %v3189 = vsub.f32 %v2612, %v2943
      %v3190 = vsub.f32 %v2613, %v2943
      %v3191 = vsub.f32 %v2614, %v2943
      %v3192 = vsub.f32 %v2615, %v2943
      %v3193 = vsub.f32 %v2616, %v2944
      %v3194 = vsub.f32 %v2617, %v2944
      %v3195 = vsub.f32 %v2618, %v2944
      %v3196 = vsub.f32 %v2619, %v2944
      %v3197 = vsub.f32 %v2620, %v2944
      %v3198 = vsub.f32 %v2621, %v2944
      %v3199 = vsub.f32 %v2622, %v2944
      %v3200 = vsub.f32 %v2623, %v2944
      %v3201 = vmul.f32 %v2945, %v2945
      %v3202 = vmul.f32 %v2946, %v2946
      %v3203 = vmul.f32 %v2947, %v2947
      %v3204 = vmul.f32 %v2948, %v2948
      %v3205 = vmul.f32 %v2949, %v2949
      %v3206 = vmul.f32 %v2950, %v2950
      %v3207 = vmul.f32 %v2951, %v2951
      %v3208 = vmul.f32 %v2952, %v2952
      %v3209 = vmul.f32 %v2953, %v2953
      %v3210 = vmul.f32 %v2954, %v2954
      %v3211 = vmul.f32 %v2955, %v2955
      %v3212 = vmul.f32 %v2956, %v2956
      %v3213 = vmul.f32 %v2957, %v2957
      %v3214 = vmul.f32 %v2958, %v2958
      %v3215 = vmul.f32 %v2959, %v2959
      %v3216 = vmul.f32 %v2960, %v2960
      %v3217 = vmul.f32 %v2961, %v2961
      %v3218 = vmul.f32 %v2962, %v2962
      %v3219 = vmul.f32 %v2963, %v2963
      %v3220 = vmul.f32 %v2964, %v2964
      %v3221 = vmul.f32 %v2965, %v2965
      %v3222 = vmul.f32 %v2966, %v2966
      %v3223 = vmul.f32 %v2967, %v2967
      %v3224 = vmul.f32 %v2968, %v2968
      %v3225 = vmul.f32 %v2969, %v2969
      %v3226 = vmul.f32 %v2970, %v2970
      %v3227 = vmul.f32 %v2971, %v2971
      %v3228 = vmul.f32 %v2972, %v2972
      %v3229 = vmul.f32 %v2973, %v2973
      %v3230 = vmul.f32 %v2974, %v2974
      %v3231 = vmul.f32 %v2975, %v2975
      %v3232 = vmul.f32 %v2976, %v2976
      %v3233 = vmul.f32 %v2977, %v2977
      %v3234 = vmul.f32 %v2978, %v2978
      %v3235 = vmul.f32 %v2979, %v2979
      %v3236 = vmul.f32 %v2980, %v2980
      %v3237 = vmul.f32 %v2981, %v2981
      %v3238 = vmul.f32 %v2982, %v2982
      %v3239 = vmul.f32 %v2983, %v2983
      %v3240 = vmul.f32 %v2984, %v2984
      %v3241 = vmul.f32 %v2985, %v2985
      %v3242 = vmul.f32 %v2986, %v2986
      %v3243 = vmul.f32 %v2987, %v2987
      %v3244 = vmul.f32 %v2988, %v2988
      %v3245 = vmul.f32 %v2989, %v2989
      %v3246 = vmul.f32 %v2990, %v2990
      %v3247 = vmul.f32 %v2991, %v2991
      %v3248 = vmul.f32 %v2992, %v2992
      %v3249 = vmul.f32 %v2993, %v2993
      %v3250 = vmul.f32 %v2994, %v2994
      %v3251 = vmul.f32 %v2995, %v2995
      %v3252 = vmul.f32 %v2996, %v2996
      %v3253 = vmul.f32 %v2997, %v2997
      %v3254 = vmul.f32 %v2998, %v2998
      %v3255 = vmul.f32 %v2999, %v2999
      %v3256 = vmul.f32 %v3000, %v3000
      %v3257 = vmul.f32 %v3001, %v3001
      %v3258 = vmul.f32 %v3002, %v3002
      %v3259 = vmul.f32 %v3003, %v3003
      %v3260 = vmul.f32 %v3004, %v3004
      %v3261 = vmul.f32 %v3005, %v3005
      %v3262 = vmul.f32 %v3006, %v3006
      %v3263 = vmul.f32 %v3007, %v3007
      %v3264 = vmul.f32 %v3008, %v3008
      %v3265 = vmul.f32 %v3009, %v3009
      %v3266 = vmul.f32 %v3010, %v3010
      %v3267 = vmul.f32 %v3011, %v3011
      %v3268 = vmul.f32 %v3012, %v3012
      %v3269 = vmul.f32 %v3013, %v3013
      %v3270 = vmul.f32 %v3014, %v3014
      %v3271 = vmul.f32 %v3015, %v3015
      %v3272 = vmul.f32 %v3016, %v3016
      %v3273 = vmul.f32 %v3017, %v3017
      %v3274 = vmul.f32 %v3018, %v3018
      %v3275 = vmul.f32 %v3019, %v3019
      %v3276 = vmul.f32 %v3020, %v3020
      %v3277 = vmul.f32 %v3021, %v3021
      %v3278 = vmul.f32 %v3022, %v3022
      %v3279 = vmul.f32 %v3023, %v3023
      %v3280 = vmul.f32 %v3024, %v3024
      %v3281 = vmul.f32 %v3025, %v3025
      %v3282 = vmul.f32 %v3026, %v3026
      %v3283 = vmul.f32 %v3027, %v3027
      %v3284 = vmul.f32 %v3028, %v3028
      %v3285 = vmul.f32 %v3029, %v3029
      %v3286 = vmul.f32 %v3030, %v3030
      %v3287 = vmul.f32 %v3031, %v3031
      %v3288 = vmul.f32 %v3032, %v3032
      %v3289 = vmul.f32 %v3033, %v3033
      %v3290 = vmul.f32 %v3034, %v3034
      %v3291 = vmul.f32 %v3035, %v3035
      %v3292 = vmul.f32 %v3036, %v3036
      %v3293 = vmul.f32 %v3037, %v3037
      %v3294 = vmul.f32 %v3038, %v3038
      %v3295 = vmul.f32 %v3039, %v3039
      %v3296 = vmul.f32 %v3040, %v3040
      %v3297 = vmul.f32 %v3041, %v3041
      %v3298 = vmul.f32 %v3042, %v3042
      %v3299 = vmul.f32 %v3043, %v3043
      %v3300 = vmul.f32 %v3044, %v3044
      %v3301 = vmul.f32 %v3045, %v3045
      %v3302 = vmul.f32 %v3046, %v3046
      %v3303 = vmul.f32 %v3047, %v3047
      %v3304 = vmul.f32 %v3048, %v3048
      %v3305 = vmul.f32 %v3049, %v3049
      %v3306 = vmul.f32 %v3050, %v3050
      %v3307 = vmul.f32 %v3051, %v3051
      %v3308 = vmul.f32 %v3052, %v3052
      %v3309 = vmul.f32 %v3053, %v3053
      %v3310 = vmul.f32 %v3054, %v3054
      %v3311 = vmul.f32 %v3055, %v3055
      %v3312 = vmul.f32 %v3056, %v3056
      %v3313 = vmul.f32 %v3057, %v3057
      %v3314 = vmul.f32 %v3058, %v3058
      %v3315 = vmul.f32 %v3059, %v3059
      %v3316 = vmul.f32 %v3060, %v3060
      %v3317 = vmul.f32 %v3061, %v3061
      %v3318 = vmul.f32 %v3062, %v3062
      %v3319 = vmul.f32 %v3063, %v3063
      %v3320 = vmul.f32 %v3064, %v3064
      %v3321 = vmul.f32 %v3065, %v3065
      %v3322 = vmul.f32 %v3066, %v3066
      %v3323 = vmul.f32 %v3067, %v3067
      %v3324 = vmul.f32 %v3068, %v3068
      %v3325 = vmul.f32 %v3069, %v3069
      %v3326 = vmul.f32 %v3070, %v3070
      %v3327 = vmul.f32 %v3071, %v3071
      %v3328 = vmul.f32 %v3072, %v3072
      %v3329 = vmul.f32 %v3073, %v3073
      %v3330 = vmul.f32 %v3074, %v3074
      %v3331 = vmul.f32 %v3075, %v3075
      %v3332 = vmul.f32 %v3076, %v3076
      %v3333 = vmul.f32 %v3077, %v3077
      %v3334 = vmul.f32 %v3078, %v3078
      %v3335 = vmul.f32 %v3079, %v3079
      %v3336 = vmul.f32 %v3080, %v3080
      %v3337 = vmul.f32 %v3081, %v3081
      %v3338 = vmul.f32 %v3082, %v3082
      %v3339 = vmul.f32 %v3083, %v3083
      %v3340 = vmul.f32 %v3084, %v3084
      %v3341 = vmul.f32 %v3085, %v3085
      %v3342 = vmul.f32 %v3086, %v3086
      %v3343 = vmul.f32 %v3087, %v3087
      %v3344 = vmul.f32 %v3088, %v3088
      %v3345 = vmul.f32 %v3089, %v3089
      %v3346 = vmul.f32 %v3090, %v3090
      %v3347 = vmul.f32 %v3091, %v3091
      %v3348 = vmul.f32 %v3092, %v3092
      %v3349 = vmul.f32 %v3093, %v3093
      %v3350 = vmul.f32 %v3094, %v3094
      %v3351 = vmul.f32 %v3095, %v3095
      %v3352 = vmul.f32 %v3096, %v3096
      %v3353 = vmul.f32 %v3097, %v3097
      %v3354 = vmul.f32 %v3098, %v3098
      %v3355 = vmul.f32 %v3099, %v3099
      %v3356 = vmul.f32 %v3100, %v3100
      %v3357 = vmul.f32 %v3101, %v3101
      %v3358 = vmul.f32 %v3102, %v3102
      %v3359 = vmul.f32 %v3103, %v3103
      %v3360 = vmul.f32 %v3104, %v3104
      %v3361 = vmul.f32 %v3105, %v3105
      %v3362 = vmul.f32 %v3106, %v3106
      %v3363 = vmul.f32 %v3107, %v3107
      %v3364 = vmul.f32 %v3108, %v3108
      %v3365 = vmul.f32 %v3109, %v3109
      %v3366 = vmul.f32 %v3110, %v3110
      %v3367 = vmul.f32 %v3111, %v3111
      %v3368 = vmul.f32 %v3112, %v3112
      %v3369 = vmul.f32 %v3113, %v3113
      %v3370 = vmul.f32 %v3114, %v3114
      %v3371 = vmul.f32 %v3115, %v3115
      %v3372 = vmul.f32 %v3116, %v3116
      %v3373 = vmul.f32 %v3117, %v3117
      %v3374 = vmul.f32 %v3118, %v3118
      %v3375 = vmul.f32 %v3119, %v3119
      %v3376 = vmul.f32 %v3120, %v3120
      %v3377 = vmul.f32 %v3121, %v3121
      %v3378 = vmul.f32 %v3122, %v3122
      %v3379 = vmul.f32 %v3123, %v3123
      %v3380 = vmul.f32 %v3124, %v3124
      %v3381 = vmul.f32 %v3125, %v3125
      %v3382 = vmul.f32 %v3126, %v3126
      %v3383 = vmul.f32 %v3127, %v3127
      %v3384 = vmul.f32 %v3128, %v3128
      %v3385 = vmul.f32 %v3129, %v3129
      %v3386 = vmul.f32 %v3130, %v3130
      %v3387 = vmul.f32 %v3131, %v3131
      %v3388 = vmul.f32 %v3132, %v3132
      %v3389 = vmul.f32 %v3133, %v3133
      %v3390 = vmul.f32 %v3134, %v3134
      %v3391 = vmul.f32 %v3135, %v3135
      %v3392 = vmul.f32 %v3136, %v3136
      %v3393 = vmul.f32 %v3137, %v3137
      %v3394 = vmul.f32 %v3138, %v3138
      %v3395 = vmul.f32 %v3139, %v3139
      %v3396 = vmul.f32 %v3140, %v3140
      %v3397 = vmul.f32 %v3141, %v3141
      %v3398 = vmul.f32 %v3142, %v3142
      %v3399 = vmul.f32 %v3143, %v3143
      %v3400 = vmul.f32 %v3144, %v3144
      %v3401 = vmul.f32 %v3145, %v3145
      %v3402 = vmul.f32 %v3146, %v3146
      %v3403 = vmul.f32 %v3147, %v3147
      %v3404 = vmul.f32 %v3148, %v3148
      %v3405 = vmul.f32 %v3149, %v3149
      %v3406 = vmul.f32 %v3150, %v3150
      %v3407 = vmul.f32 %v3151, %v3151
      %v3408 = vmul.f32 %v3152, %v3152
      %v3409 = vmul.f32 %v3153, %v3153
      %v3410 = vmul.f32 %v3154, %v3154
      %v3411 = vmul.f32 %v3155, %v3155
      %v3412 = vmul.f32 %v3156, %v3156
      %v3413 = vmul.f32 %v3157, %v3157
      %v3414 = vmul.f32 %v3158, %v3158
      %v3415 = vmul.f32 %v3159, %v3159
      %v3416 = vmul.f32 %v3160, %v3160
      %v3417 = vmul.f32 %v3161, %v3161
      %v3418 = vmul.f32 %v3162, %v3162
      %v3419 = vmul.f32 %v3163, %v3163
      %v3420 = vmul.f32 %v3164, %v3164
      %v3421 = vmul.f32 %v3165, %v3165
      %v3422 = vmul.f32 %v3166, %v3166
      %v3423 = vmul.f32 %v3167, %v3167
      %v3424 = vmul.f32 %v3168, %v3168
      %v3425 = vmul.f32 %v3169, %v3169
      %v3426 = vmul.f32 %v3170, %v3170
      %v3427 = vmul.f32 %v3171, %v3171
      %v3428 = vmul.f32 %v3172, %v3172
      %v3429 = vmul.f32 %v3173, %v3173
      %v3430 = vmul.f32 %v3174, %v3174
      %v3431 = vmul.f32 %v3175, %v3175
      %v3432 = vmul.f32 %v3176, %v3176
      %v3433 = vmul.f32 %v3177, %v3177
      %v3434 = vmul.f32 %v3178, %v3178
      %v3435 = vmul.f32 %v3179, %v3179
      %v3436 = vmul.f32 %v3180, %v3180
      %v3437 = vmul.f32 %v3181, %v3181
      %v3438 = vmul.f32 %v3182, %v3182
      %v3439 = vmul.f32 %v3183, %v3183
      %v3440 = vmul.f32 %v3184, %v3184
      %v3441 = vmul.f32 %v3185, %v3185
      %v3442 = vmul.f32 %v3186, %v3186
      %v3443 = vmul.f32 %v3187, %v3187
      %v3444 = vmul.f32 %v3188, %v3188
      %v3445 = vmul.f32 %v3189, %v3189
      %v3446 = vmul.f32 %v3190, %v3190
      %v3447 = vmul.f32 %v3191, %v3191
      %v3448 = vmul.f32 %v3192, %v3192
      %v3449 = vmul.f32 %v3193, %v3193
      %v3450 = vmul.f32 %v3194, %v3194
      %v3451 = vmul.f32 %v3195, %v3195
      %v3452 = vmul.f32 %v3196, %v3196
      %v3453 = vmul.f32 %v3197, %v3197
      %v3454 = vmul.f32 %v3198, %v3198
      %v3455 = vmul.f32 %v3199, %v3199
      %v3456 = vmul.f32 %v3200, %v3200
      %v3457 = vadd.f32 %v3201, %v3202
      %v3458 = vadd.f32 %v3457, %v3203
      %v3459 = vadd.f32 %v3458, %v3204
      %v3460 = vadd.f32 %v3459, %v3205
      %v3461 = vadd.f32 %v3460, %v3206
      %v3462 = vadd.f32 %v3461, %v3207
      %v3463 = vadd.f32 %v3462, %v3208
      %3464 = vadd.xlane.f32.xlu0 %v3463
      %v3465 = vpop.xlane.xlu0 %3464
      %v3466 = vadd.f32 %v3209, %v3210
      %v3467 = vadd.f32 %v3466, %v3211
      %v3468 = vadd.f32 %v3467, %v3212
      %v3469 = vadd.f32 %v3468, %v3213
      %v3470 = vadd.f32 %v3469, %v3214
      %v3471 = vadd.f32 %v3470, %v3215
      %v3472 = vadd.f32 %v3471, %v3216
      %3473 = vadd.xlane.f32.xlu0 %v3472
      %v3474 = vpop.xlane.xlu0 %3473
      %v3475 = vadd.f32 %v3217, %v3218
      %v3476 = vadd.f32 %v3475, %v3219
      %v3477 = vadd.f32 %v3476, %v3220
      %v3478 = vadd.f32 %v3477, %v3221
      %v3479 = vadd.f32 %v3478, %v3222
      %v3480 = vadd.f32 %v3479, %v3223
      %v3481 = vadd.f32 %v3480, %v3224
      %3482 = vadd.xlane.f32.xlu0 %v3481
      %v3483 = vpop.xlane.xlu0 %3482
      %v3484 = vadd.f32 %v3225, %v3226
      %v3485 = vadd.f32 %v3484, %v3227
      %v3486 = vadd.f32 %v3485, %v3228
      %v3487 = vadd.f32 %v3486, %v3229
      %v3488 = vadd.f32 %v3487, %v3230
      %v3489 = vadd.f32 %v3488, %v3231
      %v3490 = vadd.f32 %v3489, %v3232
      %3491 = vadd.xlane.f32.xlu0 %v3490
      %v3492 = vpop.xlane.xlu0 %3491
      %v3493 = vadd.f32 %v3233, %v3234
      %v3494 = vadd.f32 %v3493, %v3235
      %v3495 = vadd.f32 %v3494, %v3236
      %v3496 = vadd.f32 %v3495, %v3237
      %v3497 = vadd.f32 %v3496, %v3238
      %v3498 = vadd.f32 %v3497, %v3239
      %v3499 = vadd.f32 %v3498, %v3240
      %3500 = vadd.xlane.f32.xlu0 %v3499
      %v3501 = vpop.xlane.xlu0 %3500
      %v3502 = vadd.f32 %v3241, %v3242
      %v3503 = vadd.f32 %v3502, %v3243
      %v3504 = vadd.f32 %v3503, %v3244
      %v3505 = vadd.f32 %v3504, %v3245
      %v3506 = vadd.f32 %v3505, %v3246
      %v3507 = vadd.f32 %v3506, %v3247
      %v3508 = vadd.f32 %v3507, %v3248
      %3509 = vadd.xlane.f32.xlu0 %v3508
      %v3510 = vpop.xlane.xlu0 %3509
      %v3511 = vadd.f32 %v3249, %v3250
      %v3512 = vadd.f32 %v3511, %v3251
      %v3513 = vadd.f32 %v3512, %v3252
      %v3514 = vadd.f32 %v3513, %v3253
      %v3515 = vadd.f32 %v3514, %v3254
      %v3516 = vadd.f32 %v3515, %v3255
      %v3517 = vadd.f32 %v3516, %v3256
      %3518 = vadd.xlane.f32.xlu0 %v3517
      %v3519 = vpop.xlane.xlu0 %3518
      %v3520 = vadd.f32 %v3257, %v3258
      %v3521 = vadd.f32 %v3520, %v3259
      %v3522 = vadd.f32 %v3521, %v3260
      %v3523 = vadd.f32 %v3522, %v3261
      %v3524 = vadd.f32 %v3523, %v3262
      %v3525 = vadd.f32 %v3524, %v3263
      %v3526 = vadd.f32 %v3525, %v3264
      %3527 = vadd.xlane.f32.xlu0 %v3526
      %v3528 = vpop.xlane.xlu0 %3527
      %v3529 = vadd.f32 %v3265, %v3266
      %v3530 = vadd.f32 %v3529, %v3267
      %v3531 = vadd.f32 %v3530, %v3268
      %v3532 = vadd.f32 %v3531, %v3269
      %v3533 = vadd.f32 %v3532, %v3270
      %v3534 = vadd.f32 %v3533, %v3271
      %v3535 = vadd.f32 %v3534, %v3272
      %3536 = vadd.xlane.f32.xlu0 %v3535
      %v3537 = vpop.xlane.xlu0 %3536
      %v3538 = vadd.f32 %v3273, %v3274
      %v3539 = vadd.f32 %v3538, %v3275
      %v3540 = vadd.f32 %v3539, %v3276
      %v3541 = vadd.f32 %v3540, %v3277
      %v3542 = vadd.f32 %v3541, %v3278
      %v3543 = vadd.f32 %v3542, %v3279
      %v3544 = vadd.f32 %v3543, %v3280
      %3545 = vadd.xlane.f32.xlu0 %v3544
      %v3546 = vpop.xlane.xlu0 %3545
      %v3547 = vadd.f32 %v3281, %v3282
      %v3548 = vadd.f32 %v3547, %v3283
      %v3549 = vadd.f32 %v3548, %v3284
      %v3550 = vadd.f32 %v3549, %v3285
      %v3551 = vadd.f32 %v3550, %v3286
      %v3552 = vadd.f32 %v3551, %v3287
      %v3553 = vadd.f32 %v3552, %v3288
      %3554 = vadd.xlane.f32.xlu0 %v3553
      %v3555 = vpop.xlane.xlu0 %3554
      %v3556 = vadd.f32 %v3289, %v3290
      %v3557 = vadd.f32 %v3556, %v3291
      %v3558 = vadd.f32 %v3557, %v3292
      %v3559 = vadd.f32 %v3558, %v3293
      %v3560 = vadd.f32 %v3559, %v3294
      %v3561 = vadd.f32 %v3560, %v3295
      %v3562 = vadd.f32 %v3561, %v3296
      %3563 = vadd.xlane.f32.xlu0 %v3562
      %v3564 = vpop.xlane.xlu0 %3563
      %v3565 = vadd.f32 %v3297, %v3298
      %v3566 = vadd.f32 %v3565, %v3299
      %v3567 = vadd.f32 %v3566, %v3300
      %v3568 = vadd.f32 %v3567, %v3301
      %v3569 = vadd.f32 %v3568, %v3302
      %v3570 = vadd.f32 %v3569, %v3303
      %v3571 = vadd.f32 %v3570, %v3304
      %3572 = vadd.xlane.f32.xlu0 %v3571
      %v3573 = vpop.xlane.xlu0 %3572
      %v3574 = vadd.f32 %v3305, %v3306
      %v3575 = vadd.f32 %v3574, %v3307
      %v3576 = vadd.f32 %v3575, %v3308
      %v3577 = vadd.f32 %v3576, %v3309
      %v3578 = vadd.f32 %v3577, %v3310
      %v3579 = vadd.f32 %v3578, %v3311
      %v3580 = vadd.f32 %v3579, %v3312
      %3581 = vadd.xlane.f32.xlu0 %v3580
      %v3582 = vpop.xlane.xlu0 %3581
      %v3583 = vadd.f32 %v3313, %v3314
      %v3584 = vadd.f32 %v3583, %v3315
      %v3585 = vadd.f32 %v3584, %v3316
      %v3586 = vadd.f32 %v3585, %v3317
      %v3587 = vadd.f32 %v3586, %v3318
      %v3588 = vadd.f32 %v3587, %v3319
      %v3589 = vadd.f32 %v3588, %v3320
      %3590 = vadd.xlane.f32.xlu0 %v3589
      %v3591 = vpop.xlane.xlu0 %3590
      %v3592 = vadd.f32 %v3321, %v3322
      %v3593 = vadd.f32 %v3592, %v3323
      %v3594 = vadd.f32 %v3593, %v3324
      %v3595 = vadd.f32 %v3594, %v3325
      %v3596 = vadd.f32 %v3595, %v3326
      %v3597 = vadd.f32 %v3596, %v3327
      %v3598 = vadd.f32 %v3597, %v3328
      %3599 = vadd.xlane.f32.xlu0 %v3598
      %v3600 = vpop.xlane.xlu0 %3599
      %v3601 = vadd.f32 %v3329, %v3330
      %v3602 = vadd.f32 %v3601, %v3331
      %v3603 = vadd.f32 %v3602, %v3332
      %v3604 = vadd.f32 %v3603, %v3333
      %v3605 = vadd.f32 %v3604, %v3334
      %v3606 = vadd.f32 %v3605, %v3335
      %v3607 = vadd.f32 %v3606, %v3336
      %3608 = vadd.xlane.f32.xlu0 %v3607
      %v3609 = vpop.xlane.xlu0 %3608
      %v3610 = vadd.f32 %v3337, %v3338
      %v3611 = vadd.f32 %v3610, %v3339
      %v3612 = vadd.f32 %v3611, %v3340
      %v3613 = vadd.f32 %v3612, %v3341
      %v3614 = vadd.f32 %v3613, %v3342
      %v3615 = vadd.f32 %v3614, %v3343
      %v3616 = vadd.f32 %v3615, %v3344
      %3617 = vadd.xlane.f32.xlu0 %v3616
      %v3618 = vpop.xlane.xlu0 %3617
      %v3619 = vadd.f32 %v3345, %v3346
      %v3620 = vadd.f32 %v3619, %v3347
      %v3621 = vadd.f32 %v3620, %v3348
      %v3622 = vadd.f32 %v3621, %v3349
      %v3623 = vadd.f32 %v3622, %v3350
      %v3624 = vadd.f32 %v3623, %v3351
      %v3625 = vadd.f32 %v3624, %v3352
      %3626 = vadd.xlane.f32.xlu0 %v3625
      %v3627 = vpop.xlane.xlu0 %3626
      %v3628 = vadd.f32 %v3353, %v3354
      %v3629 = vadd.f32 %v3628, %v3355
      %v3630 = vadd.f32 %v3629, %v3356
      %v3631 = vadd.f32 %v3630, %v3357
      %v3632 = vadd.f32 %v3631, %v3358
      %v3633 = vadd.f32 %v3632, %v3359
      %v3634 = vadd.f32 %v3633, %v3360
      %3635 = vadd.xlane.f32.xlu0 %v3634
      %v3636 = vpop.xlane.xlu0 %3635
      %v3637 = vadd.f32 %v3361, %v3362
      %v3638 = vadd.f32 %v3637, %v3363
      %v3639 = vadd.f32 %v3638, %v3364
      %v3640 = vadd.f32 %v3639, %v3365
      %v3641 = vadd.f32 %v3640, %v3366
      %v3642 = vadd.f32 %v3641, %v3367
      %v3643 = vadd.f32 %v3642, %v3368
      %3644 = vadd.xlane.f32.xlu0 %v3643
      %v3645 = vpop.xlane.xlu0 %3644
      %v3646 = vadd.f32 %v3369, %v3370
      %v3647 = vadd.f32 %v3646, %v3371
      %v3648 = vadd.f32 %v3647, %v3372
      %v3649 = vadd.f32 %v3648, %v3373
      %v3650 = vadd.f32 %v3649, %v3374
      %v3651 = vadd.f32 %v3650, %v3375
      %v3652 = vadd.f32 %v3651, %v3376
      %3653 = vadd.xlane.f32.xlu0 %v3652
      %v3654 = vpop.xlane.xlu0 %3653
      %v3655 = vadd.f32 %v3377, %v3378
      %v3656 = vadd.f32 %v3655, %v3379
      %v3657 = vadd.f32 %v3656, %v3380
      %v3658 = vadd.f32 %v3657, %v3381
      %v3659 = vadd.f32 %v3658, %v3382
      %v3660 = vadd.f32 %v3659, %v3383
      %v3661 = vadd.f32 %v3660, %v3384
      %3662 = vadd.xlane.f32.xlu0 %v3661
      %v3663 = vpop.xlane.xlu0 %3662
      %v3664 = vadd.f32 %v3385, %v3386
      %v3665 = vadd.f32 %v3664, %v3387
      %v3666 = vadd.f32 %v3665, %v3388
      %v3667 = vadd.f32 %v3666, %v3389
      %v3668 = vadd.f32 %v3667, %v3390
      %v3669 = vadd.f32 %v3668, %v3391
      %v3670 = vadd.f32 %v3669, %v3392
      %3671 = vadd.xlane.f32.xlu0 %v3670
      %v3672 = vpop.xlane.xlu0 %3671
      %v3673 = vadd.f32 %v3393, %v3394
      %v3674 = vadd.f32 %v3673, %v3395
      %v3675 = vadd.f32 %v3674, %v3396
      %v3676 = vadd.f32 %v3675, %v3397
      %v3677 = vadd.f32 %v3676, %v3398
      %v3678 = vadd.f32 %v3677, %v3399
      %v3679 = vadd.f32 %v3678, %v3400
      %3680 = vadd.xlane.f32.xlu0 %v3679
      %v3681 = vpop.xlane.xlu0 %3680
      %v3682 = vadd.f32 %v3401, %v3402
      %v3683 = vadd.f32 %v3682, %v3403
      %v3684 = vadd.f32 %v3683, %v3404
      %v3685 = vadd.f32 %v3684, %v3405
      %v3686 = vadd.f32 %v3685, %v3406
      %v3687 = vadd.f32 %v3686, %v3407
      %v3688 = vadd.f32 %v3687, %v3408
      %3689 = vadd.xlane.f32.xlu0 %v3688
      %v3690 = vpop.xlane.xlu0 %3689
      %v3691 = vadd.f32 %v3409, %v3410
      %v3692 = vadd.f32 %v3691, %v3411
      %v3693 = vadd.f32 %v3692, %v3412
      %v3694 = vadd.f32 %v3693, %v3413
      %v3695 = vadd.f32 %v3694, %v3414
      %v3696 = vadd.f32 %v3695, %v3415
      %v3697 = vadd.f32 %v3696, %v3416
      %3698 = vadd.xlane.f32.xlu0 %v3697
      %v3699 = vpop.xlane.xlu0 %3698
      %v3700 = vadd.f32 %v3417, %v3418
      %v3701 = vadd.f32 %v3700, %v3419
      %v3702 = vadd.f32 %v3701, %v3420
      %v3703 = vadd.f32 %v3702, %v3421
      %v3704 = vadd.f32 %v3703, %v3422
      %v3705 = vadd.f32 %v3704, %v3423
      %v3706 = vadd.f32 %v3705, %v3424
      %3707 = vadd.xlane.f32.xlu0 %v3706
      %v3708 = vpop.xlane.xlu0 %3707
      %v3709 = vadd.f32 %v3425, %v3426
      %v3710 = vadd.f32 %v3709, %v3427
      %v3711 = vadd.f32 %v3710, %v3428
      %v3712 = vadd.f32 %v3711, %v3429
      %v3713 = vadd.f32 %v3712, %v3430
      %v3714 = vadd.f32 %v3713, %v3431
      %v3715 = vadd.f32 %v3714, %v3432
      %3716 = vadd.xlane.f32.xlu0 %v3715
      %v3717 = vpop.xlane.xlu0 %3716
      %v3718 = vadd.f32 %v3433, %v3434
      %v3719 = vadd.f32 %v3718, %v3435
      %v3720 = vadd.f32 %v3719, %v3436
      %v3721 = vadd.f32 %v3720, %v3437
      %v3722 = vadd.f32 %v3721, %v3438
      %v3723 = vadd.f32 %v3722, %v3439
      %v3724 = vadd.f32 %v3723, %v3440
      %3725 = vadd.xlane.f32.xlu0 %v3724
      %v3726 = vpop.xlane.xlu0 %3725
      %v3727 = vadd.f32 %v3441, %v3442
      %v3728 = vadd.f32 %v3727, %v3443
      %v3729 = vadd.f32 %v3728, %v3444
      %v3730 = vadd.f32 %v3729, %v3445
      %v3731 = vadd.f32 %v3730, %v3446
      %v3732 = vadd.f32 %v3731, %v3447
      %v3733 = vadd.f32 %v3732, %v3448
      %3734 = vadd.xlane.f32.xlu0 %v3733
      %v3735 = vpop.xlane.xlu0 %3734
      %v3736 = vadd.f32 %v3449, %v3450
      %v3737 = vadd.f32 %v3736, %v3451
      %v3738 = vadd.f32 %v3737, %v3452
      %v3739 = vadd.f32 %v3738, %v3453
      %v3740 = vadd.f32 %v3739, %v3454
      %v3741 = vadd.f32 %v3740, %v3455
      %v3742 = vadd.f32 %v3741, %v3456
      %3743 = vadd.xlane.f32.xlu0 %v3742
      %v3744 = vpop.xlane.xlu0 %3743
      %v3745 = vmul.f32 %v3465, %v2912
      %v3746 = vmul.f32 %v3474, %v2912
      %v3747 = vmul.f32 %v3483, %v2912
      %v3748 = vmul.f32 %v3492, %v2912
      %v3749 = vmul.f32 %v3501, %v2912
      %v3750 = vmul.f32 %v3510, %v2912
      %v3751 = vmul.f32 %v3519, %v2912
      %v3752 = vmul.f32 %v3528, %v2912
      %v3753 = vmul.f32 %v3537, %v2912
      %v3754 = vmul.f32 %v3546, %v2912
      %v3755 = vmul.f32 %v3555, %v2912
      %v3756 = vmul.f32 %v3564, %v2912
      %v3757 = vmul.f32 %v3573, %v2912
      %v3758 = vmul.f32 %v3582, %v2912
      %v3759 = vmul.f32 %v3591, %v2912
      %v3760 = vmul.f32 %v3600, %v2912
      %v3761 = vmul.f32 %v3609, %v2912
      %v3762 = vmul.f32 %v3618, %v2912
      %v3763 = vmul.f32 %v3627, %v2912
      %v3764 = vmul.f32 %v3636, %v2912
      %v3765 = vmul.f32 %v3645, %v2912
      %v3766 = vmul.f32 %v3654, %v2912
      %v3767 = vmul.f32 %v3663, %v2912
      %v3768 = vmul.f32 %v3672, %v2912
      %v3769 = vmul.f32 %v3681, %v2912
      %v3770 = vmul.f32 %v3690, %v2912
      %v3771 = vmul.f32 %v3699, %v2912
      %v3772 = vmul.f32 %v3708, %v2912
      %v3773 = vmul.f32 %v3717, %v2912
      %v3774 = vmul.f32 %v3726, %v2912
      %v3775 = vmul.f32 %v3735, %v2912
      %v3776 = vmul.f32 %v3744, %v2912
      %v3777 = vadd.f32 %v3745, 1e-05
      %v3778 = vadd.f32 %v3746, 1e-05
      %v3779 = vadd.f32 %v3747, 1e-05
      %v3780 = vadd.f32 %v3748, 1e-05
      %v3781 = vadd.f32 %v3749, 1e-05
      %v3782 = vadd.f32 %v3750, 1e-05
      %v3783 = vadd.f32 %v3751, 1e-05
      %v3784 = vadd.f32 %v3752, 1e-05
      %v3785 = vadd.f32 %v3753, 1e-05
      %v3786 = vadd.f32 %v3754, 1e-05
      %v3787 = vadd.f32 %v3755, 1e-05
      %v3788 = vadd.f32 %v3756, 1e-05
      %v3789 = vadd.f32 %v3757, 1e-05
      %v3790 = vadd.f32 %v3758, 1e-05
      %v3791 = vadd.f32 %v3759, 1e-05
      %v3792 = vadd.f32 %v3760, 1e-05
      %v3793 = vadd.f32 %v3761, 1e-05
      %v3794 = vadd.f32 %v3762, 1e-05
      %v3795 = vadd.f32 %v3763, 1e-05
      %v3796 = vadd.f32 %v3764, 1e-05
      %v3797 = vadd.f32 %v3765, 1e-05
      %v3798 = vadd.f32 %v3766, 1e-05
      %v3799 = vadd.f32 %v3767, 1e-05
      %v3800 = vadd.f32 %v3768, 1e-05
      %v3801 = vadd.f32 %v3769, 1e-05
      %v3802 = vadd.f32 %v3770, 1e-05
      %v3803 = vadd.f32 %v3771, 1e-05
      %v3804 = vadd.f32 %v3772, 1e-05
      %v3805 = vadd.f32 %v3773, 1e-05
      %v3806 = vadd.f32 %v3774, 1e-05
      %v3807 = vadd.f32 %v3775, 1e-05
      %v3808 = vadd.f32 %v3776, 1e-05
      %v3809 = vrsqrt.pop %v3777
      %v3810 = vrsqrt.pop %v3778
      %v3811 = vrsqrt.pop %v3779
      %v3812 = vrsqrt.pop %v3780
      %v3813 = vrsqrt.pop %v3781
      %v3814 = vrsqrt.pop %v3782
      %v3815 = vrsqrt.pop %v3783
      %v3816 = vrsqrt.pop %v3784
      %v3817 = vrsqrt.pop %v3785
      %v3818 = vrsqrt.pop %v3786
      %v3819 = vrsqrt.pop %v3787
      %v3820 = vrsqrt.pop %v3788
      %v3821 = vrsqrt.pop %v3789
      %v3822 = vrsqrt.pop %v3790
      %v3823 = vrsqrt.pop %v3791
      %v3824 = vrsqrt.pop %v3792
      %v3825 = vrsqrt.pop %v3793
      %v3826 = vrsqrt.pop %v3794
      %v3827 = vrsqrt.pop %v3795
      %v3828 = vrsqrt.pop %v3796
      %v3829 = vrsqrt.pop %v3797
      %v3830 = vrsqrt.pop %v3798
      %v3831 = vrsqrt.pop %v3799
      %v3832 = vrsqrt.pop %v3800
      %v3833 = vrsqrt.pop %v3801
      %v3834 = vrsqrt.pop %v3802
      %v3835 = vrsqrt.pop %v3803
      %v3836 = vrsqrt.pop %v3804
      %v3837 = vrsqrt.pop %v3805
      %v3838 = vrsqrt.pop %v3806
      %v3839 = vrsqrt.pop %v3807
      %v3840 = vrsqrt.pop %v3808
      %v3841 = vmul.f32 %v2945, %v3809
      %v3842 = vmul.f32 %v2946, %v3809
      %v3843 = vmul.f32 %v2947, %v3809
      %v3844 = vmul.f32 %v2948, %v3809
      %v3845 = vmul.f32 %v2949, %v3809
      %v3846 = vmul.f32 %v2950, %v3809
      %v3847 = vmul.f32 %v2951, %v3809
      %v3848 = vmul.f32 %v2952, %v3809
      %v3849 = vmul.f32 %v2953, %v3810
      %v3850 = vmul.f32 %v2954, %v3810
      %v3851 = vmul.f32 %v2955, %v3810
      %v3852 = vmul.f32 %v2956, %v3810
      %v3853 = vmul.f32 %v2957, %v3810
      %v3854 = vmul.f32 %v2958, %v3810
      %v3855 = vmul.f32 %v2959, %v3810
      %v3856 = vmul.f32 %v2960, %v3810
      %v3857 = vmul.f32 %v2961, %v3811
      %v3858 = vmul.f32 %v2962, %v3811
      %v3859 = vmul.f32 %v2963, %v3811
      %v3860 = vmul.f32 %v2964, %v3811
      %v3861 = vmul.f32 %v2965, %v3811
      %v3862 = vmul.f32 %v2966, %v3811
      %v3863 = vmul.f32 %v2967, %v3811
      %v3864 = vmul.f32 %v2968, %v3811
      %v3865 = vmul.f32 %v2969, %v3812
      %v3866 = vmul.f32 %v2970, %v3812
      %v3867 = vmul.f32 %v2971, %v3812
      %v3868 = vmul.f32 %v2972, %v3812
      %v3869 = vmul.f32 %v2973, %v3812
      %v3870 = vmul.f32 %v2974, %v3812
      %v3871 = vmul.f32 %v2975, %v3812
      %v3872 = vmul.f32 %v2976, %v3812
      %v3873 = vmul.f32 %v2977, %v3813
      %v3874 = vmul.f32 %v2978, %v3813
      %v3875 = vmul.f32 %v2979, %v3813
      %v3876 = vmul.f32 %v2980, %v3813
      %v3877 = vmul.f32 %v2981, %v3813
      %v3878 = vmul.f32 %v2982, %v3813
      %v3879 = vmul.f32 %v2983, %v3813
      %v3880 = vmul.f32 %v2984, %v3813
      %v3881 = vmul.f32 %v2985, %v3814
      %v3882 = vmul.f32 %v2986, %v3814
      %v3883 = vmul.f32 %v2987, %v3814
      %v3884 = vmul.f32 %v2988, %v3814
      %v3885 = vmul.f32 %v2989, %v3814
      %v3886 = vmul.f32 %v2990, %v3814
      %v3887 = vmul.f32 %v2991, %v3814
      %v3888 = vmul.f32 %v2992, %v3814
      %v3889 = vmul.f32 %v2993, %v3815
      %v3890 = vmul.f32 %v2994, %v3815
      %v3891 = vmul.f32 %v2995, %v3815
      %v3892 = vmul.f32 %v2996, %v3815
      %v3893 = vmul.f32 %v2997, %v3815
      %v3894 = vmul.f32 %v2998, %v3815
      %v3895 = vmul.f32 %v2999, %v3815
      %v3896 = vmul.f32 %v3000, %v3815
      %v3897 = vmul.f32 %v3001, %v3816
      %v3898 = vmul.f32 %v3002, %v3816
      %v3899 = vmul.f32 %v3003, %v3816
      %v3900 = vmul.f32 %v3004, %v3816
      %v3901 = vmul.f32 %v3005, %v3816
      %v3902 = vmul.f32 %v3006, %v3816
      %v3903 = vmul.f32 %v3007, %v3816
      %v3904 = vmul.f32 %v3008, %v3816
      %v3905 = vmul.f32 %v3009, %v3817
      %v3906 = vmul.f32 %v3010, %v3817
      %v3907 = vmul.f32 %v3011, %v3817
      %v3908 = vmul.f32 %v3012, %v3817
      %v3909 = vmul.f32 %v3013, %v3817
      %v3910 = vmul.f32 %v3014, %v3817
      %v3911 = vmul.f32 %v3015, %v3817
      %v3912 = vmul.f32 %v3016, %v3817
      %v3913 = vmul.f32 %v3017, %v3818
      %v3914 = vmul.f32 %v3018, %v3818
      %v3915 = vmul.f32 %v3019, %v3818
      %v3916 = vmul.f32 %v3020, %v3818
      %v3917 = vmul.f32 %v3021, %v3818
      %v3918 = vmul.f32 %v3022, %v3818
      %v3919 = vmul.f32 %v3023, %v3818
      %v3920 = vmul.f32 %v3024, %v3818
      %v3921 = vmul.f32 %v3025, %v3819
      %v3922 = vmul.f32 %v3026, %v3819
      %v3923 = vmul.f32 %v3027, %v3819
      %v3924 = vmul.f32 %v3028, %v3819
      %v3925 = vmul.f32 %v3029, %v3819
      %v3926 = vmul.f32 %v3030, %v3819
      %v3927 = vmul.f32 %v3031, %v3819
      %v3928 = vmul.f32 %v3032, %v3819
      %v3929 = vmul.f32 %v3033, %v3820
      %v3930 = vmul.f32 %v3034, %v3820
      %v3931 = vmul.f32 %v3035, %v3820
      %v3932 = vmul.f32 %v3036, %v3820
      %v3933 = vmul.f32 %v3037, %v3820
      %v3934 = vmul.f32 %v3038, %v3820
      %v3935 = vmul.f32 %v3039, %v3820
      %v3936 = vmul.f32 %v3040, %v3820
      %v3937 = vmul.f32 %v3041, %v3821
      %v3938 = vmul.f32 %v3042, %v3821
      %v3939 = vmul.f32 %v3043, %v3821
      %v3940 = vmul.f32 %v3044, %v3821
      %v3941 = vmul.f32 %v3045, %v3821
      %v3942 = vmul.f32 %v3046, %v3821
      %v3943 = vmul.f32 %v3047, %v3821
      %v3944 = vmul.f32 %v3048, %v3821
      %v3945 = vmul.f32 %v3049, %v3822
      %v3946 = vmul.f32 %v3050, %v3822
      %v3947 = vmul.f32 %v3051, %v3822
      %v3948 = vmul.f32 %v3052, %v3822
      %v3949 = vmul.f32 %v3053, %v3822
      %v3950 = vmul.f32 %v3054, %v3822
      %v3951 = vmul.f32 %v3055, %v3822
      %v3952 = vmul.f32 %v3056, %v3822
      %v3953 = vmul.f32 %v3057, %v3823
      %v3954 = vmul.f32 %v3058, %v3823
      %v3955 = vmul.f32 %v3059, %v3823
      %v3956 = vmul.f32 %v3060, %v3823
      %v3957 = vmul.f32 %v3061, %v3823
      %v3958 = vmul.f32 %v3062, %v3823
      %v3959 = vmul.f32 %v3063, %v3823
      %v3960 = vmul.f32 %v3064, %v3823
      %v3961 = vmul.f32 %v3065, %v3824
      %v3962 = vmul.f32 %v3066, %v3824
      %v3963 = vmul.f32 %v3067, %v3824
      %v3964 = vmul.f32 %v3068, %v3824
      %v3965 = vmul.f32 %v3069, %v3824
      %v3966 = vmul.f32 %v3070, %v3824
      %v3967 = vmul.f32 %v3071, %v3824
      %v3968 = vmul.f32 %v3072, %v3824
      %v3969 = vmul.f32 %v3073, %v3825
      %v3970 = vmul.f32 %v3074, %v3825
      %v3971 = vmul.f32 %v3075, %v3825
      %v3972 = vmul.f32 %v3076, %v3825
      %v3973 = vmul.f32 %v3077, %v3825
      %v3974 = vmul.f32 %v3078, %v3825
      %v3975 = vmul.f32 %v3079, %v3825
      %v3976 = vmul.f32 %v3080, %v3825
      %v3977 = vmul.f32 %v3081, %v3826
      %v3978 = vmul.f32 %v3082, %v3826
      %v3979 = vmul.f32 %v3083, %v3826
      %v3980 = vmul.f32 %v3084, %v3826
      %v3981 = vmul.f32 %v3085, %v3826
      %v3982 = vmul.f32 %v3086, %v3826
      %v3983 = vmul.f32 %v3087, %v3826
      %v3984 = vmul.f32 %v3088, %v3826
      %v3985 = vmul.f32 %v3089, %v3827
      %v3986 = vmul.f32 %v3090, %v3827
      %v3987 = vmul.f32 %v3091, %v3827
      %v3988 = vmul.f32 %v3092, %v3827
      %v3989 = vmul.f32 %v3093, %v3827
      %v3990 = vmul.f32 %v3094, %v3827
      %v3991 = vmul.f32 %v3095, %v3827
      %v3992 = vmul.f32 %v3096, %v3827
      %v3993 = vmul.f32 %v3097, %v3828
      %v3994 = vmul.f32 %v3098, %v3828
      %v3995 = vmul.f32 %v3099, %v3828
      %v3996 = vmul.f32 %v3100, %v3828
      %v3997 = vmul.f32 %v3101, %v3828
      %v3998 = vmul.f32 %v3102, %v3828
      %v3999 = vmul.f32 %v3103, %v3828
      %v4000 = vmul.f32 %v3104, %v3828
      %v4001 = vmul.f32 %v3105, %v3829
      %v4002 = vmul.f32 %v3106, %v3829
      %v4003 = vmul.f32 %v3107, %v3829
      %v4004 = vmul.f32 %v3108, %v3829
      %v4005 = vmul.f32 %v3109, %v3829
      %v4006 = vmul.f32 %v3110, %v3829
      %v4007 = vmul.f32 %v3111, %v3829
      %v4008 = vmul.f32 %v3112, %v3829
      %v4009 = vmul.f32 %v3113, %v3830
      %v4010 = vmul.f32 %v3114, %v3830
      %v4011 = vmul.f32 %v3115, %v3830
      %v4012 = vmul.f32 %v3116, %v3830
      %v4013 = vmul.f32 %v3117, %v3830
      %v4014 = vmul.f32 %v3118, %v3830
      %v4015 = vmul.f32 %v3119, %v3830
      %v4016 = vmul.f32 %v3120, %v3830
      %v4017 = vmul.f32 %v3121, %v3831
      %v4018 = vmul.f32 %v3122, %v3831
      %v4019 = vmul.f32 %v3123, %v3831
      %v4020 = vmul.f32 %v3124, %v3831
      %v4021 = vmul.f32 %v3125, %v3831
      %v4022 = vmul.f32 %v3126, %v3831
      %v4023 = vmul.f32 %v3127, %v3831
      %v4024 = vmul.f32 %v3128, %v3831
      %v4025 = vmul.f32 %v3129, %v3832
      %v4026 = vmul.f32 %v3130, %v3832
      %v4027 = vmul.f32 %v3131, %v3832
      %v4028 = vmul.f32 %v3132, %v3832
      %v4029 = vmul.f32 %v3133, %v3832
      %v4030 = vmul.f32 %v3134, %v3832
      %v4031 = vmul.f32 %v3135, %v3832
      %v4032 = vmul.f32 %v3136, %v3832
      %v4033 = vmul.f32 %v3137, %v3833
      %v4034 = vmul.f32 %v3138, %v3833
      %v4035 = vmul.f32 %v3139, %v3833
      %v4036 = vmul.f32 %v3140, %v3833
      %v4037 = vmul.f32 %v3141, %v3833
      %v4038 = vmul.f32 %v3142, %v3833
      %v4039 = vmul.f32 %v3143, %v3833
      %v4040 = vmul.f32 %v3144, %v3833
      %v4041 = vmul.f32 %v3145, %v3834
      %v4042 = vmul.f32 %v3146, %v3834
      %v4043 = vmul.f32 %v3147, %v3834
      %v4044 = vmul.f32 %v3148, %v3834
      %v4045 = vmul.f32 %v3149, %v3834
      %v4046 = vmul.f32 %v3150, %v3834
      %v4047 = vmul.f32 %v3151, %v3834
      %v4048 = vmul.f32 %v3152, %v3834
      %v4049 = vmul.f32 %v3153, %v3835
      %v4050 = vmul.f32 %v3154, %v3835
      %v4051 = vmul.f32 %v3155, %v3835
      %v4052 = vmul.f32 %v3156, %v3835
      %v4053 = vmul.f32 %v3157, %v3835
      %v4054 = vmul.f32 %v3158, %v3835
      %v4055 = vmul.f32 %v3159, %v3835
      %v4056 = vmul.f32 %v3160, %v3835
      %v4057 = vmul.f32 %v3161, %v3836
      %v4058 = vmul.f32 %v3162, %v3836
      %v4059 = vmul.f32 %v3163, %v3836
      %v4060 = vmul.f32 %v3164, %v3836
      %v4061 = vmul.f32 %v3165, %v3836
      %v4062 = vmul.f32 %v3166, %v3836
      %v4063 = vmul.f32 %v3167, %v3836
      %v4064 = vmul.f32 %v3168, %v3836
      %v4065 = vmul.f32 %v3169, %v3837
      %v4066 = vmul.f32 %v3170, %v3837
      %v4067 = vmul.f32 %v3171, %v3837
      %v4068 = vmul.f32 %v3172, %v3837
      %v4069 = vmul.f32 %v3173, %v3837
      %v4070 = vmul.f32 %v3174, %v3837
      %v4071 = vmul.f32 %v3175, %v3837
      %v4072 = vmul.f32 %v3176, %v3837
      %v4073 = vmul.f32 %v3177, %v3838
      %v4074 = vmul.f32 %v3178, %v3838
      %v4075 = vmul.f32 %v3179, %v3838
      %v4076 = vmul.f32 %v3180, %v3838
      %v4077 = vmul.f32 %v3181, %v3838
      %v4078 = vmul.f32 %v3182, %v3838
      %v4079 = vmul.f32 %v3183, %v3838
      %v4080 = vmul.f32 %v3184, %v3838
      %v4081 = vmul.f32 %v3185, %v3839
      %v4082 = vmul.f32 %v3186, %v3839
      %v4083 = vmul.f32 %v3187, %v3839
      %v4084 = vmul.f32 %v3188, %v3839
      %v4085 = vmul.f32 %v3189, %v3839
      %v4086 = vmul.f32 %v3190, %v3839
      %v4087 = vmul.f32 %v3191, %v3839
      %v4088 = vmul.f32 %v3192, %v3839
      %v4089 = vmul.f32 %v3193, %v3840
      %v4090 = vmul.f32 %v3194, %v3840
      %v4091 = vmul.f32 %v3195, %v3840
      %v4092 = vmul.f32 %v3196, %v3840
      %v4093 = vmul.f32 %v3197, %v3840
      %v4094 = vmul.f32 %v3198, %v3840
      %v4095 = vmul.f32 %v3199, %v3840
      %v4096 = vmul.f32 %v3200, %v3840
      %v4097 = vpack.c.bf16 %v3849, %v3841
      %v4098 = vpack.c.bf16 %v3850, %v3842
      %v4099 = vpack.c.bf16 %v3851, %v3843
      %v4100 = vpack.c.bf16 %v3852, %v3844
      %v4101 = vpack.c.bf16 %v3853, %v3845
      %v4102 = vpack.c.bf16 %v3854, %v3846
      %v4103 = vpack.c.bf16 %v3855, %v3847
      %v4104 = vpack.c.bf16 %v3856, %v3848
      %v4105 = vpack.c.bf16 %v3865, %v3857
      %v4106 = vpack.c.bf16 %v3866, %v3858
      %v4107 = vpack.c.bf16 %v3867, %v3859
      %v4108 = vpack.c.bf16 %v3868, %v3860
      %v4109 = vpack.c.bf16 %v3869, %v3861
      %v4110 = vpack.c.bf16 %v3870, %v3862
      %v4111 = vpack.c.bf16 %v3871, %v3863
      %v4112 = vpack.c.bf16 %v3872, %v3864
      %v4113 = vpack.c.bf16 %v3881, %v3873
      %v4114 = vpack.c.bf16 %v3882, %v3874
      %v4115 = vpack.c.bf16 %v3883, %v3875
      %v4116 = vpack.c.bf16 %v3884, %v3876
      %v4117 = vpack.c.bf16 %v3885, %v3877
      %v4118 = vpack.c.bf16 %v3886, %v3878
      %v4119 = vpack.c.bf16 %v3887, %v3879
      %v4120 = vpack.c.bf16 %v3888, %v3880
      %v4121 = vpack.c.bf16 %v3897, %v3889
      %v4122 = vpack.c.bf16 %v3898, %v3890
      %v4123 = vpack.c.bf16 %v3899, %v3891
      %v4124 = vpack.c.bf16 %v3900, %v3892
      %v4125 = vpack.c.bf16 %v3901, %v3893
      %v4126 = vpack.c.bf16 %v3902, %v3894
      %v4127 = vpack.c.bf16 %v3903, %v3895
      %v4128 = vpack.c.bf16 %v3904, %v3896
      %v4129 = vpack.c.bf16 %v3913, %v3905
      %v4130 = vpack.c.bf16 %v3914, %v3906
      %v4131 = vpack.c.bf16 %v3915, %v3907
      %v4132 = vpack.c.bf16 %v3916, %v3908
      %v4133 = vpack.c.bf16 %v3917, %v3909
      %v4134 = vpack.c.bf16 %v3918, %v3910
      %v4135 = vpack.c.bf16 %v3919, %v3911
      %v4136 = vpack.c.bf16 %v3920, %v3912
      %v4137 = vpack.c.bf16 %v3929, %v3921
      %v4138 = vpack.c.bf16 %v3930, %v3922
      %v4139 = vpack.c.bf16 %v3931, %v3923
      %v4140 = vpack.c.bf16 %v3932, %v3924
      %v4141 = vpack.c.bf16 %v3933, %v3925
      %v4142 = vpack.c.bf16 %v3934, %v3926
      %v4143 = vpack.c.bf16 %v3935, %v3927
      %v4144 = vpack.c.bf16 %v3936, %v3928
      %v4145 = vpack.c.bf16 %v3945, %v3937
      %v4146 = vpack.c.bf16 %v3946, %v3938
      %v4147 = vpack.c.bf16 %v3947, %v3939
      %v4148 = vpack.c.bf16 %v3948, %v3940
      %v4149 = vpack.c.bf16 %v3949, %v3941
      %v4150 = vpack.c.bf16 %v3950, %v3942
      %v4151 = vpack.c.bf16 %v3951, %v3943
      %v4152 = vpack.c.bf16 %v3952, %v3944
      %v4153 = vpack.c.bf16 %v3961, %v3953
      %v4154 = vpack.c.bf16 %v3962, %v3954
      %v4155 = vpack.c.bf16 %v3963, %v3955
      %v4156 = vpack.c.bf16 %v3964, %v3956
      %v4157 = vpack.c.bf16 %v3965, %v3957
      %v4158 = vpack.c.bf16 %v3966, %v3958
      %v4159 = vpack.c.bf16 %v3967, %v3959
      %v4160 = vpack.c.bf16 %v3968, %v3960
      %v4161 = vpack.c.bf16 %v3977, %v3969
      %v4162 = vpack.c.bf16 %v3978, %v3970
      %v4163 = vpack.c.bf16 %v3979, %v3971
      %v4164 = vpack.c.bf16 %v3980, %v3972
      %v4165 = vpack.c.bf16 %v3981, %v3973
      %v4166 = vpack.c.bf16 %v3982, %v3974
      %v4167 = vpack.c.bf16 %v3983, %v3975
      %v4168 = vpack.c.bf16 %v3984, %v3976
      %v4169 = vpack.c.bf16 %v3993, %v3985
      %v4170 = vpack.c.bf16 %v3994, %v3986
      %v4171 = vpack.c.bf16 %v3995, %v3987
      %v4172 = vpack.c.bf16 %v3996, %v3988
      %v4173 = vpack.c.bf16 %v3997, %v3989
      %v4174 = vpack.c.bf16 %v3998, %v3990
      %v4175 = vpack.c.bf16 %v3999, %v3991
      %v4176 = vpack.c.bf16 %v4000, %v3992
      %v4177 = vpack.c.bf16 %v4009, %v4001
      %v4178 = vpack.c.bf16 %v4010, %v4002
      %v4179 = vpack.c.bf16 %v4011, %v4003
      %v4180 = vpack.c.bf16 %v4012, %v4004
      %v4181 = vpack.c.bf16 %v4013, %v4005
      %v4182 = vpack.c.bf16 %v4014, %v4006
      %v4183 = vpack.c.bf16 %v4015, %v4007
      %v4184 = vpack.c.bf16 %v4016, %v4008
      %v4185 = vpack.c.bf16 %v4025, %v4017
      %v4186 = vpack.c.bf16 %v4026, %v4018
      %v4187 = vpack.c.bf16 %v4027, %v4019
      %v4188 = vpack.c.bf16 %v4028, %v4020
      %v4189 = vpack.c.bf16 %v4029, %v4021
      %v4190 = vpack.c.bf16 %v4030, %v4022
      %v4191 = vpack.c.bf16 %v4031, %v4023
      %v4192 = vpack.c.bf16 %v4032, %v4024
      %v4193 = vpack.c.bf16 %v4041, %v4033
      %v4194 = vpack.c.bf16 %v4042, %v4034
      %v4195 = vpack.c.bf16 %v4043, %v4035
      %v4196 = vpack.c.bf16 %v4044, %v4036
      %v4197 = vpack.c.bf16 %v4045, %v4037
      %v4198 = vpack.c.bf16 %v4046, %v4038
      %v4199 = vpack.c.bf16 %v4047, %v4039
      %v4200 = vpack.c.bf16 %v4048, %v4040
      %v4201 = vpack.c.bf16 %v4057, %v4049
      %v4202 = vpack.c.bf16 %v4058, %v4050
      %v4203 = vpack.c.bf16 %v4059, %v4051
      %v4204 = vpack.c.bf16 %v4060, %v4052
      %v4205 = vpack.c.bf16 %v4061, %v4053
      %v4206 = vpack.c.bf16 %v4062, %v4054
      %v4207 = vpack.c.bf16 %v4063, %v4055
      %v4208 = vpack.c.bf16 %v4064, %v4056
      %v4209 = vpack.c.bf16 %v4073, %v4065
      %v4210 = vpack.c.bf16 %v4074, %v4066
      %v4211 = vpack.c.bf16 %v4075, %v4067
      %v4212 = vpack.c.bf16 %v4076, %v4068
      %v4213 = vpack.c.bf16 %v4077, %v4069
      %v4214 = vpack.c.bf16 %v4078, %v4070
      %v4215 = vpack.c.bf16 %v4079, %v4071
      %v4216 = vpack.c.bf16 %v4080, %v4072
      %v4217 = vpack.c.bf16 %v4089, %v4081
      %v4218 = vpack.c.bf16 %v4090, %v4082
      %v4219 = vpack.c.bf16 %v4091, %v4083
      %v4220 = vpack.c.bf16 %v4092, %v4084
      %v4221 = vpack.c.bf16 %v4093, %v4085
      %v4222 = vpack.c.bf16 %v4094, %v4086
      %v4223 = vpack.c.bf16 %v4095, %v4087
      %v4224 = vpack.c.bf16 %v4096, %v4088
      %v4225 = vld [vmem:[%s3] sm:$0xff]
      %v4226 = vld [vmem:[%s3 + $0x8] sm:$0xff]
      %v4227 = vld [vmem:[%s3 + $0x10] sm:$0xff]
      %v4228 = vld [vmem:[%s3 + $0x18] sm:$0xff]
      %v4229 = vld [vmem:[%s3 + $0x20] sm:$0xff]
      %v4230 = vld [vmem:[%s3 + $0x28] sm:$0xff]
      %v4231 = vld [vmem:[%s3 + $0x30] sm:$0xff]
      %v4232 = vld [vmem:[%s3 + $0x38] sm:$0xff]
      %v4233 = vld [vmem:[%s3 + $0x40] sm:$0xff]
      %v4234 = vld [vmem:[%s3 + $0x48] sm:$0xff]
      %v4235 = vld [vmem:[%s3 + $0x50] sm:$0xff]
      %v4236 = vld [vmem:[%s3 + $0x58] sm:$0xff]
      %v4237 = vld [vmem:[%s3 + $0x60] sm:$0xff]
      %v4238 = vld [vmem:[%s3 + $0x68] sm:$0xff]
      %v4239 = vld [vmem:[%s3 + $0x70] sm:$0xff]
      %v4240 = vld [vmem:[%s3 + $0x78] sm:$0xff]
      %v4241 = vld [vmem:[%s3 + $0x80] sm:$0xff]
      %v4242 = vld [vmem:[%s3 + $0x88] sm:$0xff]
      %v4243 = vld [vmem:[%s3 + $0x90] sm:$0xff]
      %v4244 = vld [vmem:[%s3 + $0x98] sm:$0xff]
      %v4245 = vld [vmem:[%s3 + $0xa0] sm:$0xff]
      %v4246 = vld [vmem:[%s3 + $0xa8] sm:$0xff]
      %v4247 = vld [vmem:[%s3 + $0xb0] sm:$0xff]
      %v4248 = vld [vmem:[%s3 + $0xb8] sm:$0xff]
      %v4249 = vld [vmem:[%s3 + $0xc0] sm:$0xff]
      %v4250 = vld [vmem:[%s3 + $0xc8] sm:$0xff]
      %v4251 = vld [vmem:[%s3 + $0xd0] sm:$0xff]
      %v4252 = vld [vmem:[%s3 + $0xd8] sm:$0xff]
      %v4253 = vld [vmem:[%s3 + $0xe0] sm:$0xff]
      %v4254 = vld [vmem:[%s3 + $0xe8] sm:$0xff]
      %v4255 = vld [vmem:[%s3 + $0xf0] sm:$0xff]
      %v4256 = vld [vmem:[%s3 + $0xf8] sm:$0xff]
      %v4257 = vld [vmem:[%s3 + $0x100] sm:$0xff]
      %v4258 = vld [vmem:[%s3 + $0x108] sm:$0xff]
      %v4259 = vld [vmem:[%s3 + $0x110] sm:$0xff]
      %v4260 = vld [vmem:[%s3 + $0x118] sm:$0xff]
      %v4261 = vld [vmem:[%s3 + $0x120] sm:$0xff]
      %v4262 = vld [vmem:[%s3 + $0x128] sm:$0xff]
      %v4263 = vld [vmem:[%s3 + $0x130] sm:$0xff]
      %v4264 = vld [vmem:[%s3 + $0x138] sm:$0xff]
      %v4265 = vld [vmem:[%s3 + $0x140] sm:$0xff]
      %v4266 = vld [vmem:[%s3 + $0x148] sm:$0xff]
      %v4267 = vld [vmem:[%s3 + $0x150] sm:$0xff]
      %v4268 = vld [vmem:[%s3 + $0x158] sm:$0xff]
      %v4269 = vld [vmem:[%s3 + $0x160] sm:$0xff]
      %v4270 = vld [vmem:[%s3 + $0x168] sm:$0xff]
      %v4271 = vld [vmem:[%s3 + $0x170] sm:$0xff]
      %v4272 = vld [vmem:[%s3 + $0x178] sm:$0xff]
      %v4273 = vld [vmem:[%s3 + $0x180] sm:$0xff]
      %v4274 = vld [vmem:[%s3 + $0x188] sm:$0xff]
      %v4275 = vld [vmem:[%s3 + $0x190] sm:$0xff]
      %v4276 = vld [vmem:[%s3 + $0x198] sm:$0xff]
      %v4277 = vld [vmem:[%s3 + $0x1a0] sm:$0xff]
      %v4278 = vld [vmem:[%s3 + $0x1a8] sm:$0xff]
      %v4279 = vld [vmem:[%s3 + $0x1b0] sm:$0xff]
      %v4280 = vld [vmem:[%s3 + $0x1b8] sm:$0xff]
      %v4281 = vld [vmem:[%s3 + $0x1c0] sm:$0xff]
      %v4282 = vld [vmem:[%s3 + $0x1c8] sm:$0xff]
      %v4283 = vld [vmem:[%s3 + $0x1d0] sm:$0xff]
      %v4284 = vld [vmem:[%s3 + $0x1d8] sm:$0xff]
      %v4285 = vld [vmem:[%s3 + $0x1e0] sm:$0xff]
      %v4286 = vld [vmem:[%s3 + $0x1e8] sm:$0xff]
      %v4287 = vld [vmem:[%s3 + $0x1f0] sm:$0xff]
      %v4288 = vld [vmem:[%s3 + $0x1f8] sm:$0xff]
      %v4289 = vld [vmem:[%s3 + $0x200] sm:$0xff]
      %v4290 = vld [vmem:[%s3 + $0x208] sm:$0xff]
      %v4291 = vld [vmem:[%s3 + $0x210] sm:$0xff]
      %v4292 = vld [vmem:[%s3 + $0x218] sm:$0xff]
      %v4293 = vld [vmem:[%s3 + $0x220] sm:$0xff]
      %v4294 = vld [vmem:[%s3 + $0x228] sm:$0xff]
      %v4295 = vld [vmem:[%s3 + $0x230] sm:$0xff]
      %v4296 = vld [vmem:[%s3 + $0x238] sm:$0xff]
      %v4297 = vld [vmem:[%s3 + $0x240] sm:$0xff]
      %v4298 = vld [vmem:[%s3 + $0x248] sm:$0xff]
      %v4299 = vld [vmem:[%s3 + $0x250] sm:$0xff]
      %v4300 = vld [vmem:[%s3 + $0x258] sm:$0xff]
      %v4301 = vld [vmem:[%s3 + $0x260] sm:$0xff]
      %v4302 = vld [vmem:[%s3 + $0x268] sm:$0xff]
      %v4303 = vld [vmem:[%s3 + $0x270] sm:$0xff]
      %v4304 = vld [vmem:[%s3 + $0x278] sm:$0xff]
      %v4305 = vld [vmem:[%s3 + $0x280] sm:$0xff]
      %v4306 = vld [vmem:[%s3 + $0x288] sm:$0xff]
      %v4307 = vld [vmem:[%s3 + $0x290] sm:$0xff]
      %v4308 = vld [vmem:[%s3 + $0x298] sm:$0xff]
      %v4309 = vld [vmem:[%s3 + $0x2a0] sm:$0xff]
      %v4310 = vld [vmem:[%s3 + $0x2a8] sm:$0xff]
      %v4311 = vld [vmem:[%s3 + $0x2b0] sm:$0xff]
      %v4312 = vld [vmem:[%s3 + $0x2b8] sm:$0xff]
      %v4313 = vld [vmem:[%s3 + $0x2c0] sm:$0xff]
      %v4314 = vld [vmem:[%s3 + $0x2c8] sm:$0xff]
      %v4315 = vld [vmem:[%s3 + $0x2d0] sm:$0xff]
      %v4316 = vld [vmem:[%s3 + $0x2d8] sm:$0xff]
      %v4317 = vld [vmem:[%s3 + $0x2e0] sm:$0xff]
      %v4318 = vld [vmem:[%s3 + $0x2e8] sm:$0xff]
      %v4319 = vld [vmem:[%s3 + $0x2f0] sm:$0xff]
      %v4320 = vld [vmem:[%s3 + $0x2f8] sm:$0xff]
      %v4321 = vld [vmem:[%s3 + $0x300] sm:$0xff]
      %v4322 = vld [vmem:[%s3 + $0x308] sm:$0xff]
      %v4323 = vld [vmem:[%s3 + $0x310] sm:$0xff]
      %v4324 = vld [vmem:[%s3 + $0x318] sm:$0xff]
      %v4325 = vld [vmem:[%s3 + $0x320] sm:$0xff]
      %v4326 = vld [vmem:[%s3 + $0x328] sm:$0xff]
      %v4327 = vld [vmem:[%s3 + $0x330] sm:$0xff]
      %v4328 = vld [vmem:[%s3 + $0x338] sm:$0xff]
      %v4329 = vld [vmem:[%s3 + $0x340] sm:$0xff]
      %v4330 = vld [vmem:[%s3 + $0x348] sm:$0xff]
      %v4331 = vld [vmem:[%s3 + $0x350] sm:$0xff]
      %v4332 = vld [vmem:[%s3 + $0x358] sm:$0xff]
      %v4333 = vld [vmem:[%s3 + $0x360] sm:$0xff]
      %v4334 = vld [vmem:[%s3 + $0x368] sm:$0xff]
      %v4335 = vld [vmem:[%s3 + $0x370] sm:$0xff]
      %v4336 = vld [vmem:[%s3 + $0x378] sm:$0xff]
      %v4337 = vld [vmem:[%s3 + $0x380] sm:$0xff]
      %v4338 = vld [vmem:[%s3 + $0x388] sm:$0xff]
      %v4339 = vld [vmem:[%s3 + $0x390] sm:$0xff]
      %v4340 = vld [vmem:[%s3 + $0x398] sm:$0xff]
      %v4341 = vld [vmem:[%s3 + $0x3a0] sm:$0xff]
      %v4342 = vld [vmem:[%s3 + $0x3a8] sm:$0xff]
      %v4343 = vld [vmem:[%s3 + $0x3b0] sm:$0xff]
      %v4344 = vld [vmem:[%s3 + $0x3b8] sm:$0xff]
      %v4345 = vld [vmem:[%s3 + $0x3c0] sm:$0xff]
      %v4346 = vld [vmem:[%s3 + $0x3c8] sm:$0xff]
      %v4347 = vld [vmem:[%s3 + $0x3d0] sm:$0xff]
      %v4348 = vld [vmem:[%s3 + $0x3d8] sm:$0xff]
      %v4349 = vld [vmem:[%s3 + $0x3e0] sm:$0xff]
      %v4350 = vld [vmem:[%s3 + $0x3e8] sm:$0xff]
      %v4351 = vld [vmem:[%s3 + $0x3f0] sm:$0xff]
      %v4352 = vld [vmem:[%s3 + $0x3f8] sm:$0xff]
      %v4353 = vld [vmem:[%s3 + $0x400] sm:$0xff]
      %v4354 = vld [vmem:[%s3 + $0x408] sm:$0xff]
      %v4355 = vld [vmem:[%s3 + $0x410] sm:$0xff]
      %v4356 = vld [vmem:[%s3 + $0x418] sm:$0xff]
      %v4357 = vld [vmem:[%s3 + $0x420] sm:$0xff]
      %v4358 = vld [vmem:[%s3 + $0x428] sm:$0xff]
      %v4359 = vld [vmem:[%s3 + $0x430] sm:$0xff]
      %v4360 = vld [vmem:[%s3 + $0x438] sm:$0xff]
      %v4361 = vld [vmem:[%s3 + $0x440] sm:$0xff]
      %v4362 = vld [vmem:[%s3 + $0x448] sm:$0xff]
      %v4363 = vld [vmem:[%s3 + $0x450] sm:$0xff]
      %v4364 = vld [vmem:[%s3 + $0x458] sm:$0xff]
      %v4365 = vld [vmem:[%s3 + $0x460] sm:$0xff]
      %v4366 = vld [vmem:[%s3 + $0x468] sm:$0xff]
      %v4367 = vld [vmem:[%s3 + $0x470] sm:$0xff]
      %v4368 = vld [vmem:[%s3 + $0x478] sm:$0xff]
      %v4369 = vld [vmem:[%s3 + $0x480] sm:$0xff]
      %v4370 = vld [vmem:[%s3 + $0x488] sm:$0xff]
      %v4371 = vld [vmem:[%s3 + $0x490] sm:$0xff]
      %v4372 = vld [vmem:[%s3 + $0x498] sm:$0xff]
      %v4373 = vld [vmem:[%s3 + $0x4a0] sm:$0xff]
      %v4374 = vld [vmem:[%s3 + $0x4a8] sm:$0xff]
      %v4375 = vld [vmem:[%s3 + $0x4b0] sm:$0xff]
      %v4376 = vld [vmem:[%s3 + $0x4b8] sm:$0xff]
      %v4377 = vld [vmem:[%s3 + $0x4c0] sm:$0xff]
      %v4378 = vld [vmem:[%s3 + $0x4c8] sm:$0xff]
      %v4379 = vld [vmem:[%s3 + $0x4d0] sm:$0xff]
      %v4380 = vld [vmem:[%s3 + $0x4d8] sm:$0xff]
      %v4381 = vld [vmem:[%s3 + $0x4e0] sm:$0xff]
      %v4382 = vld [vmem:[%s3 + $0x4e8] sm:$0xff]
      %v4383 = vld [vmem:[%s3 + $0x4f0] sm:$0xff]
      %v4384 = vld [vmem:[%s3 + $0x4f8] sm:$0xff]
      %v4385 = vld [vmem:[%s3 + $0x500] sm:$0xff]
      %v4386 = vld [vmem:[%s3 + $0x508] sm:$0xff]
      %v4387 = vld [vmem:[%s3 + $0x510] sm:$0xff]
      %v4388 = vld [vmem:[%s3 + $0x518] sm:$0xff]
      %v4389 = vld [vmem:[%s3 + $0x520] sm:$0xff]
      %v4390 = vld [vmem:[%s3 + $0x528] sm:$0xff]
      %v4391 = vld [vmem:[%s3 + $0x530] sm:$0xff]
      %v4392 = vld [vmem:[%s3 + $0x538] sm:$0xff]
      %v4393 = vld [vmem:[%s3 + $0x540] sm:$0xff]
      %v4394 = vld [vmem:[%s3 + $0x548] sm:$0xff]
      %v4395 = vld [vmem:[%s3 + $0x550] sm:$0xff]
      %v4396 = vld [vmem:[%s3 + $0x558] sm:$0xff]
      %v4397 = vld [vmem:[%s3 + $0x560] sm:$0xff]
      %v4398 = vld [vmem:[%s3 + $0x568] sm:$0xff]
      %v4399 = vld [vmem:[%s3 + $0x570] sm:$0xff]
      %v4400 = vld [vmem:[%s3 + $0x578] sm:$0xff]
      %v4401 = vld [vmem:[%s3 + $0x580] sm:$0xff]
      %v4402 = vld [vmem:[%s3 + $0x588] sm:$0xff]
      %v4403 = vld [vmem:[%s3 + $0x590] sm:$0xff]
      %v4404 = vld [vmem:[%s3 + $0x598] sm:$0xff]
      %v4405 = vld [vmem:[%s3 + $0x5a0] sm:$0xff]
      %v4406 = vld [vmem:[%s3 + $0x5a8] sm:$0xff]
      %v4407 = vld [vmem:[%s3 + $0x5b0] sm:$0xff]
      %v4408 = vld [vmem:[%s3 + $0x5b8] sm:$0xff]
      %v4409 = vld [vmem:[%s3 + $0x5c0] sm:$0xff]
      %v4410 = vld [vmem:[%s3 + $0x5c8] sm:$0xff]
      %v4411 = vld [vmem:[%s3 + $0x5d0] sm:$0xff]
      %v4412 = vld [vmem:[%s3 + $0x5d8] sm:$0xff]
      %v4413 = vld [vmem:[%s3 + $0x5e0] sm:$0xff]
      %v4414 = vld [vmem:[%s3 + $0x5e8] sm:$0xff]
      %v4415 = vld [vmem:[%s3 + $0x5f0] sm:$0xff]
      %v4416 = vld [vmem:[%s3 + $0x5f8] sm:$0xff]
      %v4417 = vld [vmem:[%s3 + $0x600] sm:$0xff]
      %v4418 = vld [vmem:[%s3 + $0x608] sm:$0xff]
      %v4419 = vld [vmem:[%s3 + $0x610] sm:$0xff]
      %v4420 = vld [vmem:[%s3 + $0x618] sm:$0xff]
      %v4421 = vld [vmem:[%s3 + $0x620] sm:$0xff]
      %v4422 = vld [vmem:[%s3 + $0x628] sm:$0xff]
      %v4423 = vld [vmem:[%s3 + $0x630] sm:$0xff]
      %v4424 = vld [vmem:[%s3 + $0x638] sm:$0xff]
      %v4425 = vld [vmem:[%s3 + $0x640] sm:$0xff]
      %v4426 = vld [vmem:[%s3 + $0x648] sm:$0xff]
      %v4427 = vld [vmem:[%s3 + $0x650] sm:$0xff]
      %v4428 = vld [vmem:[%s3 + $0x658] sm:$0xff]
      %v4429 = vld [vmem:[%s3 + $0x660] sm:$0xff]
      %v4430 = vld [vmem:[%s3 + $0x668] sm:$0xff]
      %v4431 = vld [vmem:[%s3 + $0x670] sm:$0xff]
      %v4432 = vld [vmem:[%s3 + $0x678] sm:$0xff]
      %v4433 = vld [vmem:[%s3 + $0x680] sm:$0xff]
      %v4434 = vld [vmem:[%s3 + $0x688] sm:$0xff]
      %v4435 = vld [vmem:[%s3 + $0x690] sm:$0xff]
      %v4436 = vld [vmem:[%s3 + $0x698] sm:$0xff]
      %v4437 = vld [vmem:[%s3 + $0x6a0] sm:$0xff]
      %v4438 = vld [vmem:[%s3 + $0x6a8] sm:$0xff]
      %v4439 = vld [vmem:[%s3 + $0x6b0] sm:$0xff]
      %v4440 = vld [vmem:[%s3 + $0x6b8] sm:$0xff]
      %v4441 = vld [vmem:[%s3 + $0x6c0] sm:$0xff]
      %v4442 = vld [vmem:[%s3 + $0x6c8] sm:$0xff]
      %v4443 = vld [vmem:[%s3 + $0x6d0] sm:$0xff]
      %v4444 = vld [vmem:[%s3 + $0x6d8] sm:$0xff]
      %v4445 = vld [vmem:[%s3 + $0x6e0] sm:$0xff]
      %v4446 = vld [vmem:[%s3 + $0x6e8] sm:$0xff]
      %v4447 = vld [vmem:[%s3 + $0x6f0] sm:$0xff]
      %v4448 = vld [vmem:[%s3 + $0x6f8] sm:$0xff]
      %v4449 = vld [vmem:[%s3 + $0x700] sm:$0xff]
      %v4450 = vld [vmem:[%s3 + $0x708] sm:$0xff]
      %v4451 = vld [vmem:[%s3 + $0x710] sm:$0xff]
      %v4452 = vld [vmem:[%s3 + $0x718] sm:$0xff]
      %v4453 = vld [vmem:[%s3 + $0x720] sm:$0xff]
      %v4454 = vld [vmem:[%s3 + $0x728] sm:$0xff]
      %v4455 = vld [vmem:[%s3 + $0x730] sm:$0xff]
      %v4456 = vld [vmem:[%s3 + $0x738] sm:$0xff]
      %v4457 = vld [vmem:[%s3 + $0x740] sm:$0xff]
      %v4458 = vld [vmem:[%s3 + $0x748] sm:$0xff]
      %v4459 = vld [vmem:[%s3 + $0x750] sm:$0xff]
      %v4460 = vld [vmem:[%s3 + $0x758] sm:$0xff]
      %v4461 = vld [vmem:[%s3 + $0x760] sm:$0xff]
      %v4462 = vld [vmem:[%s3 + $0x768] sm:$0xff]
      %v4463 = vld [vmem:[%s3 + $0x770] sm:$0xff]
      %v4464 = vld [vmem:[%s3 + $0x778] sm:$0xff]
      %v4465 = vld [vmem:[%s3 + $0x780] sm:$0xff]
      %v4466 = vld [vmem:[%s3 + $0x788] sm:$0xff]
      %v4467 = vld [vmem:[%s3 + $0x790] sm:$0xff]
      %v4468 = vld [vmem:[%s3 + $0x798] sm:$0xff]
      %v4469 = vld [vmem:[%s3 + $0x7a0] sm:$0xff]
      %v4470 = vld [vmem:[%s3 + $0x7a8] sm:$0xff]
      %v4471 = vld [vmem:[%s3 + $0x7b0] sm:$0xff]
      %v4472 = vld [vmem:[%s3 + $0x7b8] sm:$0xff]
      %v4473 = vld [vmem:[%s3 + $0x7c0] sm:$0xff]
      %v4474 = vld [vmem:[%s3 + $0x7c8] sm:$0xff]
      %v4475 = vld [vmem:[%s3 + $0x7d0] sm:$0xff]
      %v4476 = vld [vmem:[%s3 + $0x7d8] sm:$0xff]
      %v4477 = vld [vmem:[%s3 + $0x7e0] sm:$0xff]
      %v4478 = vld [vmem:[%s3 + $0x7e8] sm:$0xff]
      %v4479 = vld [vmem:[%s3 + $0x7f0] sm:$0xff]
      %v4480 = vld [vmem:[%s3 + $0x7f8] sm:$0xff]
      %v4481 = vld [vmem:[%s4] sm:$0xf]
      %v4483 = vlaneseq
      %v4484 = vshrl.u32 %v4483, 7
      %v4485 = vsub.s32 0, %v4484
      %v4486 = vrot.slane %v4481, %v4485
      %v4487 = vlaneseq
      %v4488 = vshrl.u32 %v4487, 7
      %v4489 = vsub.s32 1, %v4488
      %v4490 = vrot.slane %v4481, %v4489
      %v4491 = vlaneseq
      %v4492 = vshrl.u32 %v4491, 7
      %v4493 = vsub.s32 2, %v4492
      %v4494 = vrot.slane %v4481, %v4493
      %v4495 = vlaneseq
      %v4496 = vshrl.u32 %v4495, 7
      %v4497 = vsub.s32 3, %v4496
      %v4498 = vrot.slane %v4481, %v4497
      %v4759 = vunpack.c.l.b16 %v4225
      %v4760 = vunpack.c.h.b16 %v4225
      %v4761 = vunpack.c.l.b16 %v4226
      %v4762 = vunpack.c.h.b16 %v4226
      %v4763 = vunpack.c.l.b16 %v4227
      %v4764 = vunpack.c.h.b16 %v4227
      %v4765 = vunpack.c.l.b16 %v4228
      %v4766 = vunpack.c.h.b16 %v4228
      %v4767 = vunpack.c.l.b16 %v4229
      %v4768 = vunpack.c.h.b16 %v4229
      %v4769 = vunpack.c.l.b16 %v4230
      %v4770 = vunpack.c.h.b16 %v4230
      %v4771 = vunpack.c.l.b16 %v4231
      %v4772 = vunpack.c.h.b16 %v4231
      %v4773 = vunpack.c.l.b16 %v4232
      %v4774 = vunpack.c.h.b16 %v4232
      %v4775 = vunpack.c.l.b16 %v4233
      %v4776 = vunpack.c.h.b16 %v4233
      %v4777 = vunpack.c.l.b16 %v4234
      %v4778 = vunpack.c.h.b16 %v4234
      %v4779 = vunpack.c.l.b16 %v4235
      %v4780 = vunpack.c.h.b16 %v4235
      %v4781 = vunpack.c.l.b16 %v4236
      %v4782 = vunpack.c.h.b16 %v4236
      %v4783 = vunpack.c.l.b16 %v4237
      %v4784 = vunpack.c.h.b16 %v4237
      %v4785 = vunpack.c.l.b16 %v4238
      %v4786 = vunpack.c.h.b16 %v4238
      %v4787 = vunpack.c.l.b16 %v4239
      %v4788 = vunpack.c.h.b16 %v4239
      %v4789 = vunpack.c.l.b16 %v4240
      %v4790 = vunpack.c.h.b16 %v4240
      %v4791 = vunpack.c.l.b16 %v4241
      %v4792 = vunpack.c.h.b16 %v4241
      %v4793 = vunpack.c.l.b16 %v4242
      %v4794 = vunpack.c.h.b16 %v4242
      %v4795 = vunpack.c.l.b16 %v4243
      %v4796 = vunpack.c.h.b16 %v4243
      %v4797 = vunpack.c.l.b16 %v4244
      %v4798 = vunpack.c.h.b16 %v4244
      %v4799 = vunpack.c.l.b16 %v4245
      %v4800 = vunpack.c.h.b16 %v4245
      %v4801 = vunpack.c.l.b16 %v4246
      %v4802 = vunpack.c.h.b16 %v4246
      %v4803 = vunpack.c.l.b16 %v4247
      %v4804 = vunpack.c.h.b16 %v4247
      %v4805 = vunpack.c.l.b16 %v4248
      %v4806 = vunpack.c.h.b16 %v4248
      %v4807 = vunpack.c.l.b16 %v4249
      %v4808 = vunpack.c.h.b16 %v4249
      %v4809 = vunpack.c.l.b16 %v4250
      %v4810 = vunpack.c.h.b16 %v4250
      %v4811 = vunpack.c.l.b16 %v4251
      %v4812 = vunpack.c.h.b16 %v4251
      %v4813 = vunpack.c.l.b16 %v4252
      %v4814 = vunpack.c.h.b16 %v4252
      %v4815 = vunpack.c.l.b16 %v4253
      %v4816 = vunpack.c.h.b16 %v4253
      %v4817 = vunpack.c.l.b16 %v4254
      %v4818 = vunpack.c.h.b16 %v4254
      %v4819 = vunpack.c.l.b16 %v4255
      %v4820 = vunpack.c.h.b16 %v4255
      %v4821 = vunpack.c.l.b16 %v4256
      %v4822 = vunpack.c.h.b16 %v4256
      %v4823 = vunpack.c.l.b16 %v4257
      %v4824 = vunpack.c.h.b16 %v4257
      %v4825 = vunpack.c.l.b16 %v4258
      %v4826 = vunpack.c.h.b16 %v4258
      %v4827 = vunpack.c.l.b16 %v4259
      %v4828 = vunpack.c.h.b16 %v4259
      %v4829 = vunpack.c.l.b16 %v4260
      %v4830 = vunpack.c.h.b16 %v4260
      %v4831 = vunpack.c.l.b16 %v4261
      %v4832 = vunpack.c.h.b16 %v4261
      %v4833 = vunpack.c.l.b16 %v4262
      %v4834 = vunpack.c.h.b16 %v4262
      %v4835 = vunpack.c.l.b16 %v4263
      %v4836 = vunpack.c.h.b16 %v4263
      %v4837 = vunpack.c.l.b16 %v4264
      %v4838 = vunpack.c.h.b16 %v4264
      %v4839 = vunpack.c.l.b16 %v4265
      %v4840 = vunpack.c.h.b16 %v4265
      %v4841 = vunpack.c.l.b16 %v4266
      %v4842 = vunpack.c.h.b16 %v4266
      %v4843 = vunpack.c.l.b16 %v4267
      %v4844 = vunpack.c.h.b16 %v4267
      %v4845 = vunpack.c.l.b16 %v4268
      %v4846 = vunpack.c.h.b16 %v4268
      %v4847 = vunpack.c.l.b16 %v4269
      %v4848 = vunpack.c.h.b16 %v4269
      %v4849 = vunpack.c.l.b16 %v4270
      %v4850 = vunpack.c.h.b16 %v4270
      %v4851 = vunpack.c.l.b16 %v4271
      %v4852 = vunpack.c.h.b16 %v4271
      %v4853 = vunpack.c.l.b16 %v4272
      %v4854 = vunpack.c.h.b16 %v4272
      %v4855 = vunpack.c.l.b16 %v4273
      %v4856 = vunpack.c.h.b16 %v4273
      %v4857 = vunpack.c.l.b16 %v4274
      %v4858 = vunpack.c.h.b16 %v4274
      %v4859 = vunpack.c.l.b16 %v4275
      %v4860 = vunpack.c.h.b16 %v4275
      %v4861 = vunpack.c.l.b16 %v4276
      %v4862 = vunpack.c.h.b16 %v4276
      %v4863 = vunpack.c.l.b16 %v4277
      %v4864 = vunpack.c.h.b16 %v4277
      %v4865 = vunpack.c.l.b16 %v4278
      %v4866 = vunpack.c.h.b16 %v4278
      %v4867 = vunpack.c.l.b16 %v4279
      %v4868 = vunpack.c.h.b16 %v4279
      %v4869 = vunpack.c.l.b16 %v4280
      %v4870 = vunpack.c.h.b16 %v4280
      %v4871 = vunpack.c.l.b16 %v4281
      %v4872 = vunpack.c.h.b16 %v4281
      %v4873 = vunpack.c.l.b16 %v4282
      %v4874 = vunpack.c.h.b16 %v4282
      %v4875 = vunpack.c.l.b16 %v4283
      %v4876 = vunpack.c.h.b16 %v4283
      %v4877 = vunpack.c.l.b16 %v4284
      %v4878 = vunpack.c.h.b16 %v4284
      %v4879 = vunpack.c.l.b16 %v4285
      %v4880 = vunpack.c.h.b16 %v4285
      %v4881 = vunpack.c.l.b16 %v4286
      %v4882 = vunpack.c.h.b16 %v4286
      %v4883 = vunpack.c.l.b16 %v4287
      %v4884 = vunpack.c.h.b16 %v4287
      %v4885 = vunpack.c.l.b16 %v4288
      %v4886 = vunpack.c.h.b16 %v4288
      %v4887 = vunpack.c.l.b16 %v4289
      %v4888 = vunpack.c.h.b16 %v4289
      %v4889 = vunpack.c.l.b16 %v4290
      %v4890 = vunpack.c.h.b16 %v4290
      %v4891 = vunpack.c.l.b16 %v4291
      %v4892 = vunpack.c.h.b16 %v4291
      %v4893 = vunpack.c.l.b16 %v4292
      %v4894 = vunpack.c.h.b16 %v4292
      %v4895 = vunpack.c.l.b16 %v4293
      %v4896 = vunpack.c.h.b16 %v4293
      %v4897 = vunpack.c.l.b16 %v4294
      %v4898 = vunpack.c.h.b16 %v4294
      %v4899 = vunpack.c.l.b16 %v4295
      %v4900 = vunpack.c.h.b16 %v4295
      %v4901 = vunpack.c.l.b16 %v4296
      %v4902 = vunpack.c.h.b16 %v4296
      %v4903 = vunpack.c.l.b16 %v4297
      %v4904 = vunpack.c.h.b16 %v4297
      %v4905 = vunpack.c.l.b16 %v4298
      %v4906 = vunpack.c.h.b16 %v4298
      %v4907 = vunpack.c.l.b16 %v4299
      %v4908 = vunpack.c.h.b16 %v4299
      %v4909 = vunpack.c.l.b16 %v4300
      %v4910 = vunpack.c.h.b16 %v4300
      %v4911 = vunpack.c.l.b16 %v4301
      %v4912 = vunpack.c.h.b16 %v4301
      %v4913 = vunpack.c.l.b16 %v4302
      %v4914 = vunpack.c.h.b16 %v4302
      %v4915 = vunpack.c.l.b16 %v4303
      %v4916 = vunpack.c.h.b16 %v4303
      %v4917 = vunpack.c.l.b16 %v4304
      %v4918 = vunpack.c.h.b16 %v4304
      %v4919 = vunpack.c.l.b16 %v4305
      %v4920 = vunpack.c.h.b16 %v4305
      %v4921 = vunpack.c.l.b16 %v4306
      %v4922 = vunpack.c.h.b16 %v4306
      %v4923 = vunpack.c.l.b16 %v4307
      %v4924 = vunpack.c.h.b16 %v4307
      %v4925 = vunpack.c.l.b16 %v4308
      %v4926 = vunpack.c.h.b16 %v4308
      %v4927 = vunpack.c.l.b16 %v4309
      %v4928 = vunpack.c.h.b16 %v4309
      %v4929 = vunpack.c.l.b16 %v4310
      %v4930 = vunpack.c.h.b16 %v4310
      %v4931 = vunpack.c.l.b16 %v4311
      %v4932 = vunpack.c.h.b16 %v4311
      %v4933 = vunpack.c.l.b16 %v4312
      %v4934 = vunpack.c.h.b16 %v4312
      %v4935 = vunpack.c.l.b16 %v4313
      %v4936 = vunpack.c.h.b16 %v4313
      %v4937 = vunpack.c.l.b16 %v4314
      %v4938 = vunpack.c.h.b16 %v4314
      %v4939 = vunpack.c.l.b16 %v4315
      %v4940 = vunpack.c.h.b16 %v4315
      %v4941 = vunpack.c.l.b16 %v4316
      %v4942 = vunpack.c.h.b16 %v4316
      %v4943 = vunpack.c.l.b16 %v4317
      %v4944 = vunpack.c.h.b16 %v4317
      %v4945 = vunpack.c.l.b16 %v4318
      %v4946 = vunpack.c.h.b16 %v4318
      %v4947 = vunpack.c.l.b16 %v4319
      %v4948 = vunpack.c.h.b16 %v4319
      %v4949 = vunpack.c.l.b16 %v4320
      %v4950 = vunpack.c.h.b16 %v4320
      %v4951 = vunpack.c.l.b16 %v4321
      %v4952 = vunpack.c.h.b16 %v4321
      %v4953 = vunpack.c.l.b16 %v4322
      %v4954 = vunpack.c.h.b16 %v4322
      %v4955 = vunpack.c.l.b16 %v4323
      %v4956 = vunpack.c.h.b16 %v4323
      %v4957 = vunpack.c.l.b16 %v4324
      %v4958 = vunpack.c.h.b16 %v4324
      %v4959 = vunpack.c.l.b16 %v4325
      %v4960 = vunpack.c.h.b16 %v4325
      %v4961 = vunpack.c.l.b16 %v4326
      %v4962 = vunpack.c.h.b16 %v4326
      %v4963 = vunpack.c.l.b16 %v4327
      %v4964 = vunpack.c.h.b16 %v4327
      %v4965 = vunpack.c.l.b16 %v4328
      %v4966 = vunpack.c.h.b16 %v4328
      %v4967 = vunpack.c.l.b16 %v4329
      %v4968 = vunpack.c.h.b16 %v4329
      %v4969 = vunpack.c.l.b16 %v4330
      %v4970 = vunpack.c.h.b16 %v4330
      %v4971 = vunpack.c.l.b16 %v4331
      %v4972 = vunpack.c.h.b16 %v4331
      %v4973 = vunpack.c.l.b16 %v4332
      %v4974 = vunpack.c.h.b16 %v4332
      %v4975 = vunpack.c.l.b16 %v4333
      %v4976 = vunpack.c.h.b16 %v4333
      %v4977 = vunpack.c.l.b16 %v4334
      %v4978 = vunpack.c.h.b16 %v4334
      %v4979 = vunpack.c.l.b16 %v4335
      %v4980 = vunpack.c.h.b16 %v4335
      %v4981 = vunpack.c.l.b16 %v4336
      %v4982 = vunpack.c.h.b16 %v4336
      %v4983 = vunpack.c.l.b16 %v4337
      %v4984 = vunpack.c.h.b16 %v4337
      %v4985 = vunpack.c.l.b16 %v4338
      %v4986 = vunpack.c.h.b16 %v4338
      %v4987 = vunpack.c.l.b16 %v4339
      %v4988 = vunpack.c.h.b16 %v4339
      %v4989 = vunpack.c.l.b16 %v4340
      %v4990 = vunpack.c.h.b16 %v4340
      %v4991 = vunpack.c.l.b16 %v4341
      %v4992 = vunpack.c.h.b16 %v4341
      %v4993 = vunpack.c.l.b16 %v4342
      %v4994 = vunpack.c.h.b16 %v4342
      %v4995 = vunpack.c.l.b16 %v4343
      %v4996 = vunpack.c.h.b16 %v4343
      %v4997 = vunpack.c.l.b16 %v4344
      %v4998 = vunpack.c.h.b16 %v4344
      %v4999 = vunpack.c.l.b16 %v4345
      %v5000 = vunpack.c.h.b16 %v4345
      %v5001 = vunpack.c.l.b16 %v4346
      %v5002 = vunpack.c.h.b16 %v4346
      %v5003 = vunpack.c.l.b16 %v4347
      %v5004 = vunpack.c.h.b16 %v4347
      %v5005 = vunpack.c.l.b16 %v4348
      %v5006 = vunpack.c.h.b16 %v4348
      %v5007 = vunpack.c.l.b16 %v4349
      %v5008 = vunpack.c.h.b16 %v4349
      %v5009 = vunpack.c.l.b16 %v4350
      %v5010 = vunpack.c.h.b16 %v4350
      %v5011 = vunpack.c.l.b16 %v4351
      %v5012 = vunpack.c.h.b16 %v4351
      %v5013 = vunpack.c.l.b16 %v4352
      %v5014 = vunpack.c.h.b16 %v4352
      %v5015 = vunpack.c.l.b16 %v4353
      %v5016 = vunpack.c.h.b16 %v4353
      %v5017 = vunpack.c.l.b16 %v4354
      %v5018 = vunpack.c.h.b16 %v4354
      %v5019 = vunpack.c.l.b16 %v4355
      %v5020 = vunpack.c.h.b16 %v4355
      %v5021 = vunpack.c.l.b16 %v4356
      %v5022 = vunpack.c.h.b16 %v4356
      %v5023 = vunpack.c.l.b16 %v4357
      %v5024 = vunpack.c.h.b16 %v4357
      %v5025 = vunpack.c.l.b16 %v4358
      %v5026 = vunpack.c.h.b16 %v4358
      %v5027 = vunpack.c.l.b16 %v4359
      %v5028 = vunpack.c.h.b16 %v4359
      %v5029 = vunpack.c.l.b16 %v4360
      %v5030 = vunpack.c.h.b16 %v4360
      %v5031 = vunpack.c.l.b16 %v4361
      %v5032 = vunpack.c.h.b16 %v4361
      %v5033 = vunpack.c.l.b16 %v4362
      %v5034 = vunpack.c.h.b16 %v4362
      %v5035 = vunpack.c.l.b16 %v4363
      %v5036 = vunpack.c.h.b16 %v4363
      %v5037 = vunpack.c.l.b16 %v4364
      %v5038 = vunpack.c.h.b16 %v4364
      %v5039 = vunpack.c.l.b16 %v4365
      %v5040 = vunpack.c.h.b16 %v4365
      %v5041 = vunpack.c.l.b16 %v4366
      %v5042 = vunpack.c.h.b16 %v4366
      %v5043 = vunpack.c.l.b16 %v4367
      %v5044 = vunpack.c.h.b16 %v4367
      %v5045 = vunpack.c.l.b16 %v4368
      %v5046 = vunpack.c.h.b16 %v4368
      %v5047 = vunpack.c.l.b16 %v4369
      %v5048 = vunpack.c.h.b16 %v4369
      %v5049 = vunpack.c.l.b16 %v4370
      %v5050 = vunpack.c.h.b16 %v4370
      %v5051 = vunpack.c.l.b16 %v4371
      %v5052 = vunpack.c.h.b16 %v4371
      %v5053 = vunpack.c.l.b16 %v4372
      %v5054 = vunpack.c.h.b16 %v4372
      %v5055 = vunpack.c.l.b16 %v4373
      %v5056 = vunpack.c.h.b16 %v4373
      %v5057 = vunpack.c.l.b16 %v4374
      %v5058 = vunpack.c.h.b16 %v4374
      %v5059 = vunpack.c.l.b16 %v4375
      %v5060 = vunpack.c.h.b16 %v4375
      %v5061 = vunpack.c.l.b16 %v4376
      %v5062 = vunpack.c.h.b16 %v4376
      %v5063 = vunpack.c.l.b16 %v4377
      %v5064 = vunpack.c.h.b16 %v4377
      %v5065 = vunpack.c.l.b16 %v4378
      %v5066 = vunpack.c.h.b16 %v4378
      %v5067 = vunpack.c.l.b16 %v4379
      %v5068 = vunpack.c.h.b16 %v4379
      %v5069 = vunpack.c.l.b16 %v4380
      %v5070 = vunpack.c.h.b16 %v4380
      %v5071 = vunpack.c.l.b16 %v4381
      %v5072 = vunpack.c.h.b16 %v4381
      %v5073 = vunpack.c.l.b16 %v4382
      %v5074 = vunpack.c.h.b16 %v4382
      %v5075 = vunpack.c.l.b16 %v4383
      %v5076 = vunpack.c.h.b16 %v4383
      %v5077 = vunpack.c.l.b16 %v4384
      %v5078 = vunpack.c.h.b16 %v4384
      %v5079 = vunpack.c.l.b16 %v4385
      %v5080 = vunpack.c.h.b16 %v4385
      %v5081 = vunpack.c.l.b16 %v4386
      %v5082 = vunpack.c.h.b16 %v4386
      %v5083 = vunpack.c.l.b16 %v4387
      %v5084 = vunpack.c.h.b16 %v4387
      %v5085 = vunpack.c.l.b16 %v4388
      %v5086 = vunpack.c.h.b16 %v4388
      %v5087 = vunpack.c.l.b16 %v4389
      %v5088 = vunpack.c.h.b16 %v4389
      %v5089 = vunpack.c.l.b16 %v4390
      %v5090 = vunpack.c.h.b16 %v4390
      %v5091 = vunpack.c.l.b16 %v4391
      %v5092 = vunpack.c.h.b16 %v4391
      %v5093 = vunpack.c.l.b16 %v4392
      %v5094 = vunpack.c.h.b16 %v4392
      %v5095 = vunpack.c.l.b16 %v4393
      %v5096 = vunpack.c.h.b16 %v4393
      %v5097 = vunpack.c.l.b16 %v4394
      %v5098 = vunpack.c.h.b16 %v4394
      %v5099 = vunpack.c.l.b16 %v4395
      %v5100 = vunpack.c.h.b16 %v4395
      %v5101 = vunpack.c.l.b16 %v4396
      %v5102 = vunpack.c.h.b16 %v4396
      %v5103 = vunpack.c.l.b16 %v4397
      %v5104 = vunpack.c.h.b16 %v4397
      %v5105 = vunpack.c.l.b16 %v4398
      %v5106 = vunpack.c.h.b16 %v4398
      %v5107 = vunpack.c.l.b16 %v4399
      %v5108 = vunpack.c.h.b16 %v4399
      %v5109 = vunpack.c.l.b16 %v4400
      %v5110 = vunpack.c.h.b16 %v4400
      %v5111 = vunpack.c.l.b16 %v4401
      %v5112 = vunpack.c.h.b16 %v4401
      %v5113 = vunpack.c.l.b16 %v4402
      %v5114 = vunpack.c.h.b16 %v4402
      %v5115 = vunpack.c.l.b16 %v4403
      %v5116 = vunpack.c.h.b16 %v4403
      %v5117 = vunpack.c.l.b16 %v4404
      %v5118 = vunpack.c.h.b16 %v4404
      %v5119 = vunpack.c.l.b16 %v4405
      %v5120 = vunpack.c.h.b16 %v4405
      %v5121 = vunpack.c.l.b16 %v4406
      %v5122 = vunpack.c.h.b16 %v4406
      %v5123 = vunpack.c.l.b16 %v4407
      %v5124 = vunpack.c.h.b16 %v4407
      %v5125 = vunpack.c.l.b16 %v4408
      %v5126 = vunpack.c.h.b16 %v4408
      %v5127 = vunpack.c.l.b16 %v4409
      %v5128 = vunpack.c.h.b16 %v4409
      %v5129 = vunpack.c.l.b16 %v4410
      %v5130 = vunpack.c.h.b16 %v4410
      %v5131 = vunpack.c.l.b16 %v4411
      %v5132 = vunpack.c.h.b16 %v4411
      %v5133 = vunpack.c.l.b16 %v4412
      %v5134 = vunpack.c.h.b16 %v4412
      %v5135 = vunpack.c.l.b16 %v4413
      %v5136 = vunpack.c.h.b16 %v4413
      %v5137 = vunpack.c.l.b16 %v4414
      %v5138 = vunpack.c.h.b16 %v4414
      %v5139 = vunpack.c.l.b16 %v4415
      %v5140 = vunpack.c.h.b16 %v4415
      %v5141 = vunpack.c.l.b16 %v4416
      %v5142 = vunpack.c.h.b16 %v4416
      %v5143 = vunpack.c.l.b16 %v4417
      %v5144 = vunpack.c.h.b16 %v4417
      %v5145 = vunpack.c.l.b16 %v4418
      %v5146 = vunpack.c.h.b16 %v4418
      %v5147 = vunpack.c.l.b16 %v4419
      %v5148 = vunpack.c.h.b16 %v4419
      %v5149 = vunpack.c.l.b16 %v4420
      %v5150 = vunpack.c.h.b16 %v4420
      %v5151 = vunpack.c.l.b16 %v4421
      %v5152 = vunpack.c.h.b16 %v4421
      %v5153 = vunpack.c.l.b16 %v4422
      %v5154 = vunpack.c.h.b16 %v4422
      %v5155 = vunpack.c.l.b16 %v4423
      %v5156 = vunpack.c.h.b16 %v4423
      %v5157 = vunpack.c.l.b16 %v4424
      %v5158 = vunpack.c.h.b16 %v4424
      %v5159 = vunpack.c.l.b16 %v4425
      %v5160 = vunpack.c.h.b16 %v4425
      %v5161 = vunpack.c.l.b16 %v4426
      %v5162 = vunpack.c.h.b16 %v4426
      %v5163 = vunpack.c.l.b16 %v4427
      %v5164 = vunpack.c.h.b16 %v4427
      %v5165 = vunpack.c.l.b16 %v4428
      %v5166 = vunpack.c.h.b16 %v4428
      %v5167 = vunpack.c.l.b16 %v4429
      %v5168 = vunpack.c.h.b16 %v4429
      %v5169 = vunpack.c.l.b16 %v4430
      %v5170 = vunpack.c.h.b16 %v4430
      %v5171 = vunpack.c.l.b16 %v4431
      %v5172 = vunpack.c.h.b16 %v4431
      %v5173 = vunpack.c.l.b16 %v4432
      %v5174 = vunpack.c.h.b16 %v4432
      %v5175 = vunpack.c.l.b16 %v4433
      %v5176 = vunpack.c.h.b16 %v4433
      %v5177 = vunpack.c.l.b16 %v4434
      %v5178 = vunpack.c.h.b16 %v4434
      %v5179 = vunpack.c.l.b16 %v4435
      %v5180 = vunpack.c.h.b16 %v4435
      %v5181 = vunpack.c.l.b16 %v4436
      %v5182 = vunpack.c.h.b16 %v4436
      %v5183 = vunpack.c.l.b16 %v4437
      %v5184 = vunpack.c.h.b16 %v4437
      %v5185 = vunpack.c.l.b16 %v4438
      %v5186 = vunpack.c.h.b16 %v4438
      %v5187 = vunpack.c.l.b16 %v4439
      %v5188 = vunpack.c.h.b16 %v4439
      %v5189 = vunpack.c.l.b16 %v4440
      %v5190 = vunpack.c.h.b16 %v4440
      %v5191 = vunpack.c.l.b16 %v4441
      %v5192 = vunpack.c.h.b16 %v4441
      %v5193 = vunpack.c.l.b16 %v4442
      %v5194 = vunpack.c.h.b16 %v4442
      %v5195 = vunpack.c.l.b16 %v4443
      %v5196 = vunpack.c.h.b16 %v4443
      %v5197 = vunpack.c.l.b16 %v4444
      %v5198 = vunpack.c.h.b16 %v4444
      %v5199 = vunpack.c.l.b16 %v4445
      %v5200 = vunpack.c.h.b16 %v4445
      %v5201 = vunpack.c.l.b16 %v4446
      %v5202 = vunpack.c.h.b16 %v4446
      %v5203 = vunpack.c.l.b16 %v4447
      %v5204 = vunpack.c.h.b16 %v4447
      %v5205 = vunpack.c.l.b16 %v4448
      %v5206 = vunpack.c.h.b16 %v4448
      %v5207 = vunpack.c.l.b16 %v4449
      %v5208 = vunpack.c.h.b16 %v4449
      %v5209 = vunpack.c.l.b16 %v4450
      %v5210 = vunpack.c.h.b16 %v4450
      %v5211 = vunpack.c.l.b16 %v4451
      %v5212 = vunpack.c.h.b16 %v4451
      %v5213 = vunpack.c.l.b16 %v4452
      %v5214 = vunpack.c.h.b16 %v4452
      %v5215 = vunpack.c.l.b16 %v4453
      %v5216 = vunpack.c.h.b16 %v4453
      %v5217 = vunpack.c.l.b16 %v4454
      %v5218 = vunpack.c.h.b16 %v4454
      %v5219 = vunpack.c.l.b16 %v4455
      %v5220 = vunpack.c.h.b16 %v4455
      %v5221 = vunpack.c.l.b16 %v4456
      %v5222 = vunpack.c.h.b16 %v4456
      %v5223 = vunpack.c.l.b16 %v4457
      %v5224 = vunpack.c.h.b16 %v4457
      %v5225 = vunpack.c.l.b16 %v4458
      %v5226 = vunpack.c.h.b16 %v4458
      %v5227 = vunpack.c.l.b16 %v4459
      %v5228 = vunpack.c.h.b16 %v4459
      %v5229 = vunpack.c.l.b16 %v4460
      %v5230 = vunpack.c.h.b16 %v4460
      %v5231 = vunpack.c.l.b16 %v4461
      %v5232 = vunpack.c.h.b16 %v4461
      %v5233 = vunpack.c.l.b16 %v4462
      %v5234 = vunpack.c.h.b16 %v4462
      %v5235 = vunpack.c.l.b16 %v4463
      %v5236 = vunpack.c.h.b16 %v4463
      %v5237 = vunpack.c.l.b16 %v4464
      %v5238 = vunpack.c.h.b16 %v4464
      %v5239 = vunpack.c.l.b16 %v4465
      %v5240 = vunpack.c.h.b16 %v4465
      %v5241 = vunpack.c.l.b16 %v4466
      %v5242 = vunpack.c.h.b16 %v4466
      %v5243 = vunpack.c.l.b16 %v4467
      %v5244 = vunpack.c.h.b16 %v4467
      %v5245 = vunpack.c.l.b16 %v4468
      %v5246 = vunpack.c.h.b16 %v4468
      %v5247 = vunpack.c.l.b16 %v4469
      %v5248 = vunpack.c.h.b16 %v4469
      %v5249 = vunpack.c.l.b16 %v4470
      %v5250 = vunpack.c.h.b16 %v4470
      %v5251 = vunpack.c.l.b16 %v4471
      %v5252 = vunpack.c.h.b16 %v4471
      %v5253 = vunpack.c.l.b16 %v4472
      %v5254 = vunpack.c.h.b16 %v4472
      %v5255 = vunpack.c.l.b16 %v4473
      %v5256 = vunpack.c.h.b16 %v4473
      %v5257 = vunpack.c.l.b16 %v4474
      %v5258 = vunpack.c.h.b16 %v4474
      %v5259 = vunpack.c.l.b16 %v4475
      %v5260 = vunpack.c.h.b16 %v4475
      %v5261 = vunpack.c.l.b16 %v4476
      %v5262 = vunpack.c.h.b16 %v4476
      %v5263 = vunpack.c.l.b16 %v4477
      %v5264 = vunpack.c.h.b16 %v4477
      %v5265 = vunpack.c.l.b16 %v4478
      %v5266 = vunpack.c.h.b16 %v4478
      %v5267 = vunpack.c.l.b16 %v4479
      %v5268 = vunpack.c.h.b16 %v4479
      %v5269 = vunpack.c.l.b16 %v4480
      %v5270 = vunpack.c.h.b16 %v4480
      %v5271 = vpack.c.b16 %v4763, %v4759
      %v5272 = vpack.c.b16 %v4764, %v4760
      %v5273 = vpack.c.b16 %v4765, %v4761
      %v5274 = vpack.c.b16 %v4766, %v4762
      %v5275 = vpack.c.b16 %v4771, %v4767
      %v5276 = vpack.c.b16 %v4772, %v4768
      %v5277 = vpack.c.b16 %v4773, %v4769
      %v5278 = vpack.c.b16 %v4774, %v4770
      %v5279 = vpack.c.b16 %v4779, %v4775
      %v5280 = vpack.c.b16 %v4780, %v4776
      %v5281 = vpack.c.b16 %v4781, %v4777
      %v5282 = vpack.c.b16 %v4782, %v4778
      %v5283 = vpack.c.b16 %v4787, %v4783
      %v5284 = vpack.c.b16 %v4788, %v4784
      %v5285 = vpack.c.b16 %v4789, %v4785
      %v5286 = vpack.c.b16 %v4790, %v4786
      %v5287 = vpack.c.b16 %v4795, %v4791
      %v5288 = vpack.c.b16 %v4796, %v4792
      %v5289 = vpack.c.b16 %v4797, %v4793
      %v5290 = vpack.c.b16 %v4798, %v4794
      %v5291 = vpack.c.b16 %v4803, %v4799
      %v5292 = vpack.c.b16 %v4804, %v4800
      %v5293 = vpack.c.b16 %v4805, %v4801
      %v5294 = vpack.c.b16 %v4806, %v4802
      %v5295 = vpack.c.b16 %v4811, %v4807
      %v5296 = vpack.c.b16 %v4812, %v4808
      %v5297 = vpack.c.b16 %v4813, %v4809
      %v5298 = vpack.c.b16 %v4814, %v4810
      %v5299 = vpack.c.b16 %v4819, %v4815
      %v5300 = vpack.c.b16 %v4820, %v4816
      %v5301 = vpack.c.b16 %v4821, %v4817
      %v5302 = vpack.c.b16 %v4822, %v4818
      %v5303 = vpack.c.b16 %v4827, %v4823
      %v5304 = vpack.c.b16 %v4828, %v4824
      %v5305 = vpack.c.b16 %v4829, %v4825
      %v5306 = vpack.c.b16 %v4830, %v4826
      %v5307 = vpack.c.b16 %v4835, %v4831
      %v5308 = vpack.c.b16 %v4836, %v4832
      %v5309 = vpack.c.b16 %v4837, %v4833
      %v5310 = vpack.c.b16 %v4838, %v4834
      %v5311 = vpack.c.b16 %v4843, %v4839
      %v5312 = vpack.c.b16 %v4844, %v4840
      %v5313 = vpack.c.b16 %v4845, %v4841
      %v5314 = vpack.c.b16 %v4846, %v4842
      %v5315 = vpack.c.b16 %v4851, %v4847
      %v5316 = vpack.c.b16 %v4852, %v4848
      %v5317 = vpack.c.b16 %v4853, %v4849
      %v5318 = vpack.c.b16 %v4854, %v4850
      %v5319 = vpack.c.b16 %v4859, %v4855
      %v5320 = vpack.c.b16 %v4860, %v4856
      %v5321 = vpack.c.b16 %v4861, %v4857
      %v5322 = vpack.c.b16 %v4862, %v4858
      %v5323 = vpack.c.b16 %v4867, %v4863
      %v5324 = vpack.c.b16 %v4868, %v4864
      %v5325 = vpack.c.b16 %v4869, %v4865
      %v5326 = vpack.c.b16 %v4870, %v4866
      %v5327 = vpack.c.b16 %v4875, %v4871
      %v5328 = vpack.c.b16 %v4876, %v4872
      %v5329 = vpack.c.b16 %v4877, %v4873
      %v5330 = vpack.c.b16 %v4878, %v4874
      %v5331 = vpack.c.b16 %v4883, %v4879
      %v5332 = vpack.c.b16 %v4884, %v4880
      %v5333 = vpack.c.b16 %v4885, %v4881
      %v5334 = vpack.c.b16 %v4886, %v4882
      %v5335 = vpack.c.b16 %v4891, %v4887
      %v5336 = vpack.c.b16 %v4892, %v4888
      %v5337 = vpack.c.b16 %v4893, %v4889
      %v5338 = vpack.c.b16 %v4894, %v4890
      %v5339 = vpack.c.b16 %v4899, %v4895
      %v5340 = vpack.c.b16 %v4900, %v4896
      %v5341 = vpack.c.b16 %v4901, %v4897
      %v5342 = vpack.c.b16 %v4902, %v4898
      %v5343 = vpack.c.b16 %v4907, %v4903
      %v5344 = vpack.c.b16 %v4908, %v4904
      %v5345 = vpack.c.b16 %v4909, %v4905
      %v5346 = vpack.c.b16 %v4910, %v4906
      %v5347 = vpack.c.b16 %v4915, %v4911
      %v5348 = vpack.c.b16 %v4916, %v4912
      %v5349 = vpack.c.b16 %v4917, %v4913
      %v5350 = vpack.c.b16 %v4918, %v4914
      %v5351 = vpack.c.b16 %v4923, %v4919
      %v5352 = vpack.c.b16 %v4924, %v4920
      %v5353 = vpack.c.b16 %v4925, %v4921
      %v5354 = vpack.c.b16 %v4926, %v4922
      %v5355 = vpack.c.b16 %v4931, %v4927
      %v5356 = vpack.c.b16 %v4932, %v4928
      %v5357 = vpack.c.b16 %v4933, %v4929
      %v5358 = vpack.c.b16 %v4934, %v4930
      %v5359 = vpack.c.b16 %v4939, %v4935
      %v5360 = vpack.c.b16 %v4940, %v4936
      %v5361 = vpack.c.b16 %v4941, %v4937
      %v5362 = vpack.c.b16 %v4942, %v4938
      %v5363 = vpack.c.b16 %v4947, %v4943
      %v5364 = vpack.c.b16 %v4948, %v4944
      %v5365 = vpack.c.b16 %v4949, %v4945
      %v5366 = vpack.c.b16 %v4950, %v4946
      %v5367 = vpack.c.b16 %v4955, %v4951
      %v5368 = vpack.c.b16 %v4956, %v4952
      %v5369 = vpack.c.b16 %v4957, %v4953
      %v5370 = vpack.c.b16 %v4958, %v4954
      %v5371 = vpack.c.b16 %v4963, %v4959
      %v5372 = vpack.c.b16 %v4964, %v4960
      %v5373 = vpack.c.b16 %v4965, %v4961
      %v5374 = vpack.c.b16 %v4966, %v4962
      %v5375 = vpack.c.b16 %v4971, %v4967
      %v5376 = vpack.c.b16 %v4972, %v4968
      %v5377 = vpack.c.b16 %v4973, %v4969
      %v5378 = vpack.c.b16 %v4974, %v4970
      %v5379 = vpack.c.b16 %v4979, %v4975
      %v5380 = vpack.c.b16 %v4980, %v4976
      %v5381 = vpack.c.b16 %v4981, %v4977
      %v5382 = vpack.c.b16 %v4982, %v4978
      %v5383 = vpack.c.b16 %v4987, %v4983
      %v5384 = vpack.c.b16 %v4988, %v4984
      %v5385 = vpack.c.b16 %v4989, %v4985
      %v5386 = vpack.c.b16 %v4990, %v4986
      %v5387 = vpack.c.b16 %v4995, %v4991
      %v5388 = vpack.c.b16 %v4996, %v4992
      %v5389 = vpack.c.b16 %v4997, %v4993
      %v5390 = vpack.c.b16 %v4998, %v4994
      %v5391 = vpack.c.b16 %v5003, %v4999
      %v5392 = vpack.c.b16 %v5004, %v5000
      %v5393 = vpack.c.b16 %v5005, %v5001
      %v5394 = vpack.c.b16 %v5006, %v5002
      %v5395 = vpack.c.b16 %v5011, %v5007
      %v5396 = vpack.c.b16 %v5012, %v5008
      %v5397 = vpack.c.b16 %v5013, %v5009
      %v5398 = vpack.c.b16 %v5014, %v5010
      %v5399 = vpack.c.b16 %v5019, %v5015
      %v5400 = vpack.c.b16 %v5020, %v5016
      %v5401 = vpack.c.b16 %v5021, %v5017
      %v5402 = vpack.c.b16 %v5022, %v5018
      %v5403 = vpack.c.b16 %v5027, %v5023
      %v5404 = vpack.c.b16 %v5028, %v5024
      %v5405 = vpack.c.b16 %v5029, %v5025
      %v5406 = vpack.c.b16 %v5030, %v5026
      %v5407 = vpack.c.b16 %v5035, %v5031
      %v5408 = vpack.c.b16 %v5036, %v5032
      %v5409 = vpack.c.b16 %v5037, %v5033
      %v5410 = vpack.c.b16 %v5038, %v5034
      %v5411 = vpack.c.b16 %v5043, %v5039
      %v5412 = vpack.c.b16 %v5044, %v5040
      %v5413 = vpack.c.b16 %v5045, %v5041
      %v5414 = vpack.c.b16 %v5046, %v5042
      %v5415 = vpack.c.b16 %v5051, %v5047
      %v5416 = vpack.c.b16 %v5052, %v5048
      %v5417 = vpack.c.b16 %v5053, %v5049
      %v5418 = vpack.c.b16 %v5054, %v5050
      %v5419 = vpack.c.b16 %v5059, %v5055
      %v5420 = vpack.c.b16 %v5060, %v5056
      %v5421 = vpack.c.b16 %v5061, %v5057
      %v5422 = vpack.c.b16 %v5062, %v5058
      %v5423 = vpack.c.b16 %v5067, %v5063
      %v5424 = vpack.c.b16 %v5068, %v5064
      %v5425 = vpack.c.b16 %v5069, %v5065
      %v5426 = vpack.c.b16 %v5070, %v5066
      %v5427 = vpack.c.b16 %v5075, %v5071
      %v5428 = vpack.c.b16 %v5076, %v5072
      %v5429 = vpack.c.b16 %v5077, %v5073
      %v5430 = vpack.c.b16 %v5078, %v5074
      %v5431 = vpack.c.b16 %v5083, %v5079
      %v5432 = vpack.c.b16 %v5084, %v5080
      %v5433 = vpack.c.b16 %v5085, %v5081
      %v5434 = vpack.c.b16 %v5086, %v5082
      %v5435 = vpack.c.b16 %v5091, %v5087
      %v5436 = vpack.c.b16 %v5092, %v5088
      %v5437 = vpack.c.b16 %v5093, %v5089
      %v5438 = vpack.c.b16 %v5094, %v5090
      %v5439 = vpack.c.b16 %v5099, %v5095
      %v5440 = vpack.c.b16 %v5100, %v5096
      %v5441 = vpack.c.b16 %v5101, %v5097
      %v5442 = vpack.c.b16 %v5102, %v5098
      %v5443 = vpack.c.b16 %v5107, %v5103
      %v5444 = vpack.c.b16 %v5108, %v5104
      %v5445 = vpack.c.b16 %v5109, %v5105
      %v5446 = vpack.c.b16 %v5110, %v5106
      %v5447 = vpack.c.b16 %v5115, %v5111
      %v5448 = vpack.c.b16 %v5116, %v5112
      %v5449 = vpack.c.b16 %v5117, %v5113
      %v5450 = vpack.c.b16 %v5118, %v5114
      %v5451 = vpack.c.b16 %v5123, %v5119
      %v5452 = vpack.c.b16 %v5124, %v5120
      %v5453 = vpack.c.b16 %v5125, %v5121
      %v5454 = vpack.c.b16 %v5126, %v5122
      %v5455 = vpack.c.b16 %v5131, %v5127
      %v5456 = vpack.c.b16 %v5132, %v5128
      %v5457 = vpack.c.b16 %v5133, %v5129
      %v5458 = vpack.c.b16 %v5134, %v5130
      %v5459 = vpack.c.b16 %v5139, %v5135
      %v5460 = vpack.c.b16 %v5140, %v5136
      %v5461 = vpack.c.b16 %v5141, %v5137
      %v5462 = vpack.c.b16 %v5142, %v5138
      %v5463 = vpack.c.b16 %v5147, %v5143
      %v5464 = vpack.c.b16 %v5148, %v5144
      %v5465 = vpack.c.b16 %v5149, %v5145
      %v5466 = vpack.c.b16 %v5150, %v5146
      %v5467 = vpack.c.b16 %v5155, %v5151
      %v5468 = vpack.c.b16 %v5156, %v5152
      %v5469 = vpack.c.b16 %v5157, %v5153
      %v5470 = vpack.c.b16 %v5158, %v5154
      %v5471 = vpack.c.b16 %v5163, %v5159
      %v5472 = vpack.c.b16 %v5164, %v5160
      %v5473 = vpack.c.b16 %v5165, %v5161
      %v5474 = vpack.c.b16 %v5166, %v5162
      %v5475 = vpack.c.b16 %v5171, %v5167
      %v5476 = vpack.c.b16 %v5172, %v5168
      %v5477 = vpack.c.b16 %v5173, %v5169
      %v5478 = vpack.c.b16 %v5174, %v5170
      %v5479 = vpack.c.b16 %v5179, %v5175
      %v5480 = vpack.c.b16 %v5180, %v5176
      %v5481 = vpack.c.b16 %v5181, %v5177
      %v5482 = vpack.c.b16 %v5182, %v5178
      %v5483 = vpack.c.b16 %v5187, %v5183
      %v5484 = vpack.c.b16 %v5188, %v5184
      %v5485 = vpack.c.b16 %v5189, %v5185
      %v5486 = vpack.c.b16 %v5190, %v5186
      %v5487 = vpack.c.b16 %v5195, %v5191
      %v5488 = vpack.c.b16 %v5196, %v5192
      %v5489 = vpack.c.b16 %v5197, %v5193
      %v5490 = vpack.c.b16 %v5198, %v5194
      %v5491 = vpack.c.b16 %v5203, %v5199
      %v5492 = vpack.c.b16 %v5204, %v5200
      %v5493 = vpack.c.b16 %v5205, %v5201
      %v5494 = vpack.c.b16 %v5206, %v5202
      %v5495 = vpack.c.b16 %v5211, %v5207
      %v5496 = vpack.c.b16 %v5212, %v5208
      %v5497 = vpack.c.b16 %v5213, %v5209
      %v5498 = vpack.c.b16 %v5214, %v5210
      %v5499 = vpack.c.b16 %v5219, %v5215
      %v5500 = vpack.c.b16 %v5220, %v5216
      %v5501 = vpack.c.b16 %v5221, %v5217
      %v5502 = vpack.c.b16 %v5222, %v5218
      %v5503 = vpack.c.b16 %v5227, %v5223
      %v5504 = vpack.c.b16 %v5228, %v5224
      %v5505 = vpack.c.b16 %v5229, %v5225
      %v5506 = vpack.c.b16 %v5230, %v5226
      %v5507 = vpack.c.b16 %v5235, %v5231
      %v5508 = vpack.c.b16 %v5236, %v5232
      %v5509 = vpack.c.b16 %v5237, %v5233
      %v5510 = vpack.c.b16 %v5238, %v5234
      %v5511 = vpack.c.b16 %v5243, %v5239
      %v5512 = vpack.c.b16 %v5244, %v5240
      %v5513 = vpack.c.b16 %v5245, %v5241
      %v5514 = vpack.c.b16 %v5246, %v5242
      %v5515 = vpack.c.b16 %v5251, %v5247
      %v5516 = vpack.c.b16 %v5252, %v5248
      %v5517 = vpack.c.b16 %v5253, %v5249
      %v5518 = vpack.c.b16 %v5254, %v5250
      %v5519 = vpack.c.b16 %v5259, %v5255
      %v5520 = vpack.c.b16 %v5260, %v5256
      %v5521 = vpack.c.b16 %v5261, %v5257
      %v5522 = vpack.c.b16 %v5262, %v5258
      %v5523 = vpack.c.b16 %v5267, %v5263
      %v5524 = vpack.c.b16 %v5268, %v5264
      %v5525 = vpack.c.b16 %v5269, %v5265
      %v5526 = vpack.c.b16 %v5270, %v5266
      %5783 = vmatprep.subr.bf16.mxu0 %v5300
      %5784 = vmatpush1.bf16.msra.mxu0 %v5299
      %5785 = vmatprep.subr.bf16.mxu0 %v5296
      %5786 = vmatpush1.bf16.msra.mxu0 %v5295
      %5787 = vmatprep.subr.bf16.mxu0 %v5292
      %5788 = vmatpush1.bf16.msra.mxu0 %v5291
      %5789 = vmatprep.subr.bf16.mxu0 %v5288
      %5790 = vmatpush1.bf16.msra.mxu0 %v5287
      %5791 = vmatprep.subr.bf16.mxu0 %v5284
      %5792 = vmatpush1.bf16.msra.mxu0 %v5283
      %5793 = vmatprep.subr.bf16.mxu0 %v5280
      %5794 = vmatpush1.bf16.msra.mxu0 %v5279
      %5795 = vmatprep.subr.bf16.mxu0 %v5276
      %5796 = vmatpush1.bf16.msra.mxu0 %v5275
      %5797 = vmatprep.subr.bf16.mxu0 %v5272
      %5798 = vmatpush1.bf16.msra.mxu0 %v5271
      %5799 = vmatprep.subr.bf16.mxu0 %v5332
      %5800 = vmatpush2.bf16.msra.mxu0 %v5331
      %5801 = vmatprep.subr.bf16.mxu0 %v5328
      %5802 = vmatpush2.bf16.msra.mxu0 %v5327
      %5803 = vmatprep.subr.bf16.mxu0 %v5324
      %5804 = vmatpush2.bf16.msra.mxu0 %v5323
      %5805 = vmatprep.subr.bf16.mxu0 %v5320
      %5806 = vmatpush2.bf16.msra.mxu0 %v5319
      %5807 = vmatprep.subr.bf16.mxu0 %v5316
      %5808 = vmatpush2.bf16.msra.mxu0 %v5315
      %5809 = vmatprep.subr.bf16.mxu0 %v5312
      %5810 = vmatpush2.bf16.msra.mxu0 %v5311
      %5811 = vmatprep.subr.bf16.mxu0 %v5308
      %5812 = vmatpush2.bf16.msra.mxu0 %v5307
      %5813 = vmatprep.subr.bf16.mxu0 %v5304
      %5814 = vmatpush2.bf16.msra.mxu0 %v5303
      %5815 = vmatprep.mubr.bf16.mxu0 %v4098
      %5816 = vmatmul.mubr.bf16.gmra.mxu0 %v4097
      %v5817 = vpop.f32.mrf.mxu0
      %v5818 = vadd.f32 %v4486, %v5817
      %v5819 = vpop.f32.mrf.mxu0
      %v5820 = vadd.f32 %v4490, %v5819
      %v5821 = vpop.f32.mrf.mxu0
      %v5822 = vadd.f32 %v4486, %v5821
      %v5823 = vpop.f32.mrf.mxu0
      %v5824 = vadd.f32 %v4490, %v5823
      %5825 = vmatprep.mubr.bf16.mxu0 %v4106
      %5826 = vmatmul.mubr.bf16.gmra.mxu0 %v4105
      %v5827 = vpop.f32.mrf.mxu0
      %v5828 = vadd.f32 %v4486, %v5827
      %v5829 = vpop.f32.mrf.mxu0
      %v5830 = vadd.f32 %v4490, %v5829
      %v5831 = vpop.f32.mrf.mxu0
      %v5832 = vadd.f32 %v4486, %v5831
      %v5833 = vpop.f32.mrf.mxu0
      %v5834 = vadd.f32 %v4490, %v5833
      %5835 = vmatprep.mubr.bf16.mxu0 %v4114
      %5836 = vmatmul.mubr.bf16.gmra.mxu0 %v4113
      %v5837 = vpop.f32.mrf.mxu0
      %v5838 = vadd.f32 %v4486, %v5837
      %v5839 = vpop.f32.mrf.mxu0
      %v5840 = vadd.f32 %v4490, %v5839
      %v5841 = vpop.f32.mrf.mxu0
      %v5842 = vadd.f32 %v4486, %v5841
      %v5843 = vpop.f32.mrf.mxu0
      %v5844 = vadd.f32 %v4490, %v5843
      %5845 = vmatprep.mubr.bf16.mxu0 %v4122
      %5846 = vmatmul.mubr.bf16.gmra.mxu0 %v4121
      %v5847 = vpop.f32.mrf.mxu0
      %v5848 = vadd.f32 %v4486, %v5847
      %v5849 = vpop.f32.mrf.mxu0
      %v5850 = vadd.f32 %v4490, %v5849
      %v5851 = vpop.f32.mrf.mxu0
      %v5852 = vadd.f32 %v4486, %v5851
      %v5853 = vpop.f32.mrf.mxu0
      %v5854 = vadd.f32 %v4490, %v5853
      %5855 = vmatprep.mubr.bf16.mxu0 %v4130
      %5856 = vmatmul.mubr.bf16.gmra.mxu0 %v4129
      %v5857 = vpop.f32.mrf.mxu0
      %v5858 = vadd.f32 %v4486, %v5857
      %v5859 = vpop.f32.mrf.mxu0
      %v5860 = vadd.f32 %v4490, %v5859
      %v5861 = vpop.f32.mrf.mxu0
      %v5862 = vadd.f32 %v4486, %v5861
      %v5863 = vpop.f32.mrf.mxu0
      %v5864 = vadd.f32 %v4490, %v5863
      %5865 = vmatprep.mubr.bf16.mxu0 %v4138
      %5866 = vmatmul.mubr.bf16.gmra.mxu0 %v4137
      %v5867 = vpop.f32.mrf.mxu0
      %v5868 = vadd.f32 %v4486, %v5867
      %v5869 = vpop.f32.mrf.mxu0
      %v5870 = vadd.f32 %v4490, %v5869
      %v5871 = vpop.f32.mrf.mxu0
      %v5872 = vadd.f32 %v4486, %v5871
      %v5873 = vpop.f32.mrf.mxu0
      %v5874 = vadd.f32 %v4490, %v5873
      %5875 = vmatprep.mubr.bf16.mxu0 %v4146
      %5876 = vmatmul.mubr.bf16.gmra.mxu0 %v4145
      %v5877 = vpop.f32.mrf.mxu0
      %v5878 = vadd.f32 %v4486, %v5877
      %v5879 = vpop.f32.mrf.mxu0
      %v5880 = vadd.f32 %v4490, %v5879
      %v5881 = vpop.f32.mrf.mxu0
      %v5882 = vadd.f32 %v4486, %v5881
      %v5883 = vpop.f32.mrf.mxu0
      %v5884 = vadd.f32 %v4490, %v5883
      %5885 = vmatprep.mubr.bf16.mxu0 %v4154
      %5886 = vmatmul.mubr.bf16.gmra.mxu0 %v4153
      %v5887 = vpop.f32.mrf.mxu0
      %v5888 = vadd.f32 %v4486, %v5887
      %v5889 = vpop.f32.mrf.mxu0
      %v5890 = vadd.f32 %v4490, %v5889
      %v5891 = vpop.f32.mrf.mxu0
      %v5892 = vadd.f32 %v4486, %v5891
      %v5893 = vpop.f32.mrf.mxu0
      %v5894 = vadd.f32 %v4490, %v5893
      %5895 = vmatprep.mubr.bf16.mxu0 %v4162
      %5896 = vmatmul.mubr.bf16.gmra.mxu0 %v4161
      %v5897 = vpop.f32.mrf.mxu0
      %v5898 = vadd.f32 %v4486, %v5897
      %v5899 = vpop.f32.mrf.mxu0
      %v5900 = vadd.f32 %v4490, %v5899
      %v5901 = vpop.f32.mrf.mxu0
      %v5902 = vadd.f32 %v4486, %v5901
      %v5903 = vpop.f32.mrf.mxu0
      %v5904 = vadd.f32 %v4490, %v5903
      %5905 = vmatprep.mubr.bf16.mxu0 %v4170
      %5906 = vmatmul.mubr.bf16.gmra.mxu0 %v4169
      %v5907 = vpop.f32.mrf.mxu0
      %v5908 = vadd.f32 %v4486, %v5907
      %v5909 = vpop.f32.mrf.mxu0
      %v5910 = vadd.f32 %v4490, %v5909
      %v5911 = vpop.f32.mrf.mxu0
      %v5912 = vadd.f32 %v4486, %v5911
      %v5913 = vpop.f32.mrf.mxu0
      %v5914 = vadd.f32 %v4490, %v5913
      %5915 = vmatprep.mubr.bf16.mxu0 %v4178
      %5916 = vmatmul.mubr.bf16.gmra.mxu0 %v4177
      %v5917 = vpop.f32.mrf.mxu0
      %v5918 = vadd.f32 %v4486, %v5917
      %v5919 = vpop.f32.mrf.mxu0
      %v5920 = vadd.f32 %v4490, %v5919
      %v5921 = vpop.f32.mrf.mxu0
      %v5922 = vadd.f32 %v4486, %v5921
      %v5923 = vpop.f32.mrf.mxu0
      %v5924 = vadd.f32 %v4490, %v5923
      %5925 = vmatprep.mubr.bf16.mxu0 %v4186
      %5926 = vmatmul.mubr.bf16.gmra.mxu0 %v4185
      %v5927 = vpop.f32.mrf.mxu0
      %v5928 = vadd.f32 %v4486, %v5927
      %v5929 = vpop.f32.mrf.mxu0
      %v5930 = vadd.f32 %v4490, %v5929
      %v5931 = vpop.f32.mrf.mxu0
      %v5932 = vadd.f32 %v4486, %v5931
      %v5933 = vpop.f32.mrf.mxu0
      %v5934 = vadd.f32 %v4490, %v5933
      %5935 = vmatprep.mubr.bf16.mxu0 %v4194
      %5936 = vmatmul.mubr.bf16.gmra.mxu0 %v4193
      %v5937 = vpop.f32.mrf.mxu0
      %v5938 = vadd.f32 %v4486, %v5937
      %v5939 = vpop.f32.mrf.mxu0
      %v5940 = vadd.f32 %v4490, %v5939
      %v5941 = vpop.f32.mrf.mxu0
      %v5942 = vadd.f32 %v4486, %v5941
      %v5943 = vpop.f32.mrf.mxu0
      %v5944 = vadd.f32 %v4490, %v5943
      %5945 = vmatprep.mubr.bf16.mxu0 %v4202
      %5946 = vmatmul.mubr.bf16.gmra.mxu0 %v4201
      %v5947 = vpop.f32.mrf.mxu0
      %v5948 = vadd.f32 %v4486, %v5947
      %v5949 = vpop.f32.mrf.mxu0
      %v5950 = vadd.f32 %v4490, %v5949
      %v5951 = vpop.f32.mrf.mxu0
      %v5952 = vadd.f32 %v4486, %v5951
      %v5953 = vpop.f32.mrf.mxu0
      %v5954 = vadd.f32 %v4490, %v5953
      %5955 = vmatprep.mubr.bf16.mxu0 %v4210
      %5956 = vmatmul.mubr.bf16.gmra.mxu0 %v4209
      %v5957 = vpop.f32.mrf.mxu0
      %v5958 = vadd.f32 %v4486, %v5957
      %v5959 = vpop.f32.mrf.mxu0
      %v5960 = vadd.f32 %v4490, %v5959
      %v5961 = vpop.f32.mrf.mxu0
      %v5962 = vadd.f32 %v4486, %v5961
      %v5963 = vpop.f32.mrf.mxu0
      %v5964 = vadd.f32 %v4490, %v5963
      %5965 = vmatprep.mubr.bf16.mxu0 %v4218
      %5966 = vmatmul.mubr.bf16.gmra.mxu0 %v4217
      %v5967 = vpop.f32.mrf.mxu0
      %v5968 = vadd.f32 %v4486, %v5967
      %v5969 = vpop.f32.mrf.mxu0
      %v5970 = vadd.f32 %v4490, %v5969
      %v5971 = vpop.f32.mrf.mxu0
      %v5972 = vadd.f32 %v4486, %v5971
      %v5973 = vpop.f32.mrf.mxu0
      %v5974 = vadd.f32 %v4490, %v5973
      %5975 = vdwg.mxu0
      %5976 = vmatprep.subr.bf16.mxu0 %v5364
      %5977 = vmatpush1.bf16.msra.mxu0 %v5363
      %5978 = vmatprep.subr.bf16.mxu0 %v5360
      %5979 = vmatpush1.bf16.msra.mxu0 %v5359
      %5980 = vmatprep.subr.bf16.mxu0 %v5356
      %5981 = vmatpush1.bf16.msra.mxu0 %v5355
      %5982 = vmatprep.subr.bf16.mxu0 %v5352
      %5983 = vmatpush1.bf16.msra.mxu0 %v5351
      %5984 = vmatprep.subr.bf16.mxu0 %v5348
      %5985 = vmatpush1.bf16.msra.mxu0 %v5347
      %5986 = vmatprep.subr.bf16.mxu0 %v5344
      %5987 = vmatpush1.bf16.msra.mxu0 %v5343
      %5988 = vmatprep.subr.bf16.mxu0 %v5340
      %5989 = vmatpush1.bf16.msra.mxu0 %v5339
      %5990 = vmatprep.subr.bf16.mxu0 %v5336
      %5991 = vmatpush1.bf16.msra.mxu0 %v5335
      %5992 = vmatprep.subr.bf16.mxu0 %v5396
      %5993 = vmatpush2.bf16.msra.mxu0 %v5395
      %5994 = vmatprep.subr.bf16.mxu0 %v5392
      %5995 = vmatpush2.bf16.msra.mxu0 %v5391
      %5996 = vmatprep.subr.bf16.mxu0 %v5388
      %5997 = vmatpush2.bf16.msra.mxu0 %v5387
      %5998 = vmatprep.subr.bf16.mxu0 %v5384
      %5999 = vmatpush2.bf16.msra.mxu0 %v5383
      %6000 = vmatprep.subr.bf16.mxu0 %v5380
      %6001 = vmatpush2.bf16.msra.mxu0 %v5379
      %6002 = vmatprep.subr.bf16.mxu0 %v5376
      %6003 = vmatpush2.bf16.msra.mxu0 %v5375
      %6004 = vmatprep.subr.bf16.mxu0 %v5372
      %6005 = vmatpush2.bf16.msra.mxu0 %v5371
      %6006 = vmatprep.subr.bf16.mxu0 %v5368
      %6007 = vmatpush2.bf16.msra.mxu0 %v5367
      %6008 = vmatprep.mubr.bf16.mxu0 %v4100
      %6009 = vmatmul.mubr.bf16.gmra.mxu0 %v4099
      %v6010 = vpop.f32.mrf.mxu0
      %v6011 = vadd.f32 %v5818, %v6010
      %v6012 = vpop.f32.mrf.mxu0
      %v6013 = vadd.f32 %v5820, %v6012
      %v6014 = vpop.f32.mrf.mxu0
      %v6015 = vadd.f32 %v5822, %v6014
      %v6016 = vpop.f32.mrf.mxu0
      %v6017 = vadd.f32 %v5824, %v6016
      %6018 = vmatprep.mubr.bf16.mxu0 %v4108
      %6019 = vmatmul.mubr.bf16.gmra.mxu0 %v4107
      %v6020 = vpop.f32.mrf.mxu0
      %v6021 = vadd.f32 %v5828, %v6020
      %v6022 = vpop.f32.mrf.mxu0
      %v6023 = vadd.f32 %v5830, %v6022
      %v6024 = vpop.f32.mrf.mxu0
      %v6025 = vadd.f32 %v5832, %v6024
      %v6026 = vpop.f32.mrf.mxu0
      %v6027 = vadd.f32 %v5834, %v6026
      %6028 = vmatprep.mubr.bf16.mxu0 %v4116
      %6029 = vmatmul.mubr.bf16.gmra.mxu0 %v4115
      %v6030 = vpop.f32.mrf.mxu0
      %v6031 = vadd.f32 %v5838, %v6030
      %v6032 = vpop.f32.mrf.mxu0
      %v6033 = vadd.f32 %v5840, %v6032
      %v6034 = vpop.f32.mrf.mxu0
      %v6035 = vadd.f32 %v5842, %v6034
      %v6036 = vpop.f32.mrf.mxu0
      %v6037 = vadd.f32 %v5844, %v6036
      %6038 = vmatprep.mubr.bf16.mxu0 %v4124
      %6039 = vmatmul.mubr.bf16.gmra.mxu0 %v4123
      %v6040 = vpop.f32.mrf.mxu0
      %v6041 = vadd.f32 %v5848, %v6040
      %v6042 = vpop.f32.mrf.mxu0
      %v6043 = vadd.f32 %v5850, %v6042
      %v6044 = vpop.f32.mrf.mxu0
      %v6045 = vadd.f32 %v5852, %v6044
      %v6046 = vpop.f32.mrf.mxu0
      %v6047 = vadd.f32 %v5854, %v6046
      %6048 = vmatprep.mubr.bf16.mxu0 %v4132
      %6049 = vmatmul.mubr.bf16.gmra.mxu0 %v4131
      %v6050 = vpop.f32.mrf.mxu0
      %v6051 = vadd.f32 %v5858, %v6050
      %v6052 = vpop.f32.mrf.mxu0
      %v6053 = vadd.f32 %v5860, %v6052
      %v6054 = vpop.f32.mrf.mxu0
      %v6055 = vadd.f32 %v5862, %v6054
      %v6056 = vpop.f32.mrf.mxu0
      %v6057 = vadd.f32 %v5864, %v6056
      %6058 = vmatprep.mubr.bf16.mxu0 %v4140
      %6059 = vmatmul.mubr.bf16.gmra.mxu0 %v4139
      %v6060 = vpop.f32.mrf.mxu0
      %v6061 = vadd.f32 %v5868, %v6060
      %v6062 = vpop.f32.mrf.mxu0
      %v6063 = vadd.f32 %v5870, %v6062
      %v6064 = vpop.f32.mrf.mxu0
      %v6065 = vadd.f32 %v5872, %v6064
      %v6066 = vpop.f32.mrf.mxu0
      %v6067 = vadd.f32 %v5874, %v6066
      %6068 = vmatprep.mubr.bf16.mxu0 %v4148
      %6069 = vmatmul.mubr.bf16.gmra.mxu0 %v4147
      %v6070 = vpop.f32.mrf.mxu0
      %v6071 = vadd.f32 %v5878, %v6070
      %v6072 = vpop.f32.mrf.mxu0
      %v6073 = vadd.f32 %v5880, %v6072
      %v6074 = vpop.f32.mrf.mxu0
      %v6075 = vadd.f32 %v5882, %v6074
      %v6076 = vpop.f32.mrf.mxu0
      %v6077 = vadd.f32 %v5884, %v6076
      %6078 = vmatprep.mubr.bf16.mxu0 %v4156
      %6079 = vmatmul.mubr.bf16.gmra.mxu0 %v4155
      %v6080 = vpop.f32.mrf.mxu0
      %v6081 = vadd.f32 %v5888, %v6080
      %v6082 = vpop.f32.mrf.mxu0
      %v6083 = vadd.f32 %v5890, %v6082
      %v6084 = vpop.f32.mrf.mxu0
      %v6085 = vadd.f32 %v5892, %v6084
      %v6086 = vpop.f32.mrf.mxu0
      %v6087 = vadd.f32 %v5894, %v6086
      %6088 = vmatprep.mubr.bf16.mxu0 %v4164
      %6089 = vmatmul.mubr.bf16.gmra.mxu0 %v4163
      %v6090 = vpop.f32.mrf.mxu0
      %v6091 = vadd.f32 %v5898, %v6090
      %v6092 = vpop.f32.mrf.mxu0
      %v6093 = vadd.f32 %v5900, %v6092
      %v6094 = vpop.f32.mrf.mxu0
      %v6095 = vadd.f32 %v5902, %v6094
      %v6096 = vpop.f32.mrf.mxu0
      %v6097 = vadd.f32 %v5904, %v6096
      %6098 = vmatprep.mubr.bf16.mxu0 %v4172
      %6099 = vmatmul.mubr.bf16.gmra.mxu0 %v4171
      %v6100 = vpop.f32.mrf.mxu0
      %v6101 = vadd.f32 %v5908, %v6100
      %v6102 = vpop.f32.mrf.mxu0
      %v6103 = vadd.f32 %v5910, %v6102
      %v6104 = vpop.f32.mrf.mxu0
      %v6105 = vadd.f32 %v5912, %v6104
      %v6106 = vpop.f32.mrf.mxu0
      %v6107 = vadd.f32 %v5914, %v6106
      %6108 = vmatprep.mubr.bf16.mxu0 %v4180
      %6109 = vmatmul.mubr.bf16.gmra.mxu0 %v4179
      %v6110 = vpop.f32.mrf.mxu0
      %v6111 = vadd.f32 %v5918, %v6110
      %v6112 = vpop.f32.mrf.mxu0
      %v6113 = vadd.f32 %v5920, %v6112
      %v6114 = vpop.f32.mrf.mxu0
      %v6115 = vadd.f32 %v5922, %v6114
      %v6116 = vpop.f32.mrf.mxu0
      %v6117 = vadd.f32 %v5924, %v6116
      %6118 = vmatprep.mubr.bf16.mxu0 %v4188
      %6119 = vmatmul.mubr.bf16.gmra.mxu0 %v4187
      %v6120 = vpop.f32.mrf.mxu0
      %v6121 = vadd.f32 %v5928, %v6120
      %v6122 = vpop.f32.mrf.mxu0
      %v6123 = vadd.f32 %v5930, %v6122
      %v6124 = vpop.f32.mrf.mxu0
      %v6125 = vadd.f32 %v5932, %v6124
      %v6126 = vpop.f32.mrf.mxu0
      %v6127 = vadd.f32 %v5934, %v6126
      %6128 = vmatprep.mubr.bf16.mxu0 %v4196
      %6129 = vmatmul.mubr.bf16.gmra.mxu0 %v4195
      %v6130 = vpop.f32.mrf.mxu0
      %v6131 = vadd.f32 %v5938, %v6130
      %v6132 = vpop.f32.mrf.mxu0
      %v6133 = vadd.f32 %v5940, %v6132
      %v6134 = vpop.f32.mrf.mxu0
      %v6135 = vadd.f32 %v5942, %v6134
      %v6136 = vpop.f32.mrf.mxu0
      %v6137 = vadd.f32 %v5944, %v6136
      %6138 = vmatprep.mubr.bf16.mxu0 %v4204
      %6139 = vmatmul.mubr.bf16.gmra.mxu0 %v4203
      %v6140 = vpop.f32.mrf.mxu0
      %v6141 = vadd.f32 %v5948, %v6140
      %v6142 = vpop.f32.mrf.mxu0
      %v6143 = vadd.f32 %v5950, %v6142
      %v6144 = vpop.f32.mrf.mxu0
      %v6145 = vadd.f32 %v5952, %v6144
      %v6146 = vpop.f32.mrf.mxu0
      %v6147 = vadd.f32 %v5954, %v6146
      %6148 = vmatprep.mubr.bf16.mxu0 %v4212
      %6149 = vmatmul.mubr.bf16.gmra.mxu0 %v4211
      %v6150 = vpop.f32.mrf.mxu0
      %v6151 = vadd.f32 %v5958, %v6150
      %v6152 = vpop.f32.mrf.mxu0
      %v6153 = vadd.f32 %v5960, %v6152
      %v6154 = vpop.f32.mrf.mxu0
      %v6155 = vadd.f32 %v5962, %v6154
      %v6156 = vpop.f32.mrf.mxu0
      %v6157 = vadd.f32 %v5964, %v6156
      %6158 = vmatprep.mubr.bf16.mxu0 %v4220
      %6159 = vmatmul.mubr.bf16.gmra.mxu0 %v4219
      %v6160 = vpop.f32.mrf.mxu0
      %v6161 = vadd.f32 %v5968, %v6160
      %v6162 = vpop.f32.mrf.mxu0
      %v6163 = vadd.f32 %v5970, %v6162
      %v6164 = vpop.f32.mrf.mxu0
      %v6165 = vadd.f32 %v5972, %v6164
      %v6166 = vpop.f32.mrf.mxu0
      %v6167 = vadd.f32 %v5974, %v6166
      %6168 = vdwg.mxu0
      %6169 = vmatprep.subr.bf16.mxu0 %v5428
      %6170 = vmatpush1.bf16.msra.mxu0 %v5427
      %6171 = vmatprep.subr.bf16.mxu0 %v5424
      %6172 = vmatpush1.bf16.msra.mxu0 %v5423
      %6173 = vmatprep.subr.bf16.mxu0 %v5420
      %6174 = vmatpush1.bf16.msra.mxu0 %v5419
      %6175 = vmatprep.subr.bf16.mxu0 %v5416
      %6176 = vmatpush1.bf16.msra.mxu0 %v5415
      %6177 = vmatprep.subr.bf16.mxu0 %v5412
      %6178 = vmatpush1.bf16.msra.mxu0 %v5411
      %6179 = vmatprep.subr.bf16.mxu0 %v5408
      %6180 = vmatpush1.bf16.msra.mxu0 %v5407
      %6181 = vmatprep.subr.bf16.mxu0 %v5404
      %6182 = vmatpush1.bf16.msra.mxu0 %v5403
      %6183 = vmatprep.subr.bf16.mxu0 %v5400
      %6184 = vmatpush1.bf16.msra.mxu0 %v5399
      %6185 = vmatprep.subr.bf16.mxu0 %v5460
      %6186 = vmatpush2.bf16.msra.mxu0 %v5459
      %6187 = vmatprep.subr.bf16.mxu0 %v5456
      %6188 = vmatpush2.bf16.msra.mxu0 %v5455
      %6189 = vmatprep.subr.bf16.mxu0 %v5452
      %6190 = vmatpush2.bf16.msra.mxu0 %v5451
      %6191 = vmatprep.subr.bf16.mxu0 %v5448
      %6192 = vmatpush2.bf16.msra.mxu0 %v5447
      %6193 = vmatprep.subr.bf16.mxu0 %v5444
      %6194 = vmatpush2.bf16.msra.mxu0 %v5443
      %6195 = vmatprep.subr.bf16.mxu0 %v5440
      %6196 = vmatpush2.bf16.msra.mxu0 %v5439
      %6197 = vmatprep.subr.bf16.mxu0 %v5436
      %6198 = vmatpush2.bf16.msra.mxu0 %v5435
      %6199 = vmatprep.subr.bf16.mxu0 %v5432
      %6200 = vmatpush2.bf16.msra.mxu0 %v5431
      %6201 = vmatprep.mubr.bf16.mxu0 %v4102
      %6202 = vmatmul.mubr.bf16.gmra.mxu0 %v4101
      %v6203 = vpop.f32.mrf.mxu0
      %v6204 = vadd.f32 %v6011, %v6203
      %v6205 = vpop.f32.mrf.mxu0
      %v6206 = vadd.f32 %v6013, %v6205
      %v6207 = vpop.f32.mrf.mxu0
      %v6208 = vadd.f32 %v6015, %v6207
      %v6209 = vpop.f32.mrf.mxu0
      %v6210 = vadd.f32 %v6017, %v6209
      %6211 = vmatprep.mubr.bf16.mxu0 %v4110
      %6212 = vmatmul.mubr.bf16.gmra.mxu0 %v4109
      %v6213 = vpop.f32.mrf.mxu0
      %v6214 = vadd.f32 %v6021, %v6213
      %v6215 = vpop.f32.mrf.mxu0
      %v6216 = vadd.f32 %v6023, %v6215
      %v6217 = vpop.f32.mrf.mxu0
      %v6218 = vadd.f32 %v6025, %v6217
      %v6219 = vpop.f32.mrf.mxu0
      %v6220 = vadd.f32 %v6027, %v6219
      %6221 = vmatprep.mubr.bf16.mxu0 %v4118
      %6222 = vmatmul.mubr.bf16.gmra.mxu0 %v4117
      %v6223 = vpop.f32.mrf.mxu0
      %v6224 = vadd.f32 %v6031, %v6223
      %v6225 = vpop.f32.mrf.mxu0
      %v6226 = vadd.f32 %v6033, %v6225
      %v6227 = vpop.f32.mrf.mxu0
      %v6228 = vadd.f32 %v6035, %v6227
      %v6229 = vpop.f32.mrf.mxu0
      %v6230 = vadd.f32 %v6037, %v6229
      %6231 = vmatprep.mubr.bf16.mxu0 %v4126
      %6232 = vmatmul.mubr.bf16.gmra.mxu0 %v4125
      %v6233 = vpop.f32.mrf.mxu0
      %v6234 = vadd.f32 %v6041, %v6233
      %v6235 = vpop.f32.mrf.mxu0
      %v6236 = vadd.f32 %v6043, %v6235
      %v6237 = vpop.f32.mrf.mxu0
      %v6238 = vadd.f32 %v6045, %v6237
      %v6239 = vpop.f32.mrf.mxu0
      %v6240 = vadd.f32 %v6047, %v6239
      %6241 = vmatprep.mubr.bf16.mxu0 %v4134
      %6242 = vmatmul.mubr.bf16.gmra.mxu0 %v4133
      %v6243 = vpop.f32.mrf.mxu0
      %v6244 = vadd.f32 %v6051, %v6243
      %v6245 = vpop.f32.mrf.mxu0
      %v6246 = vadd.f32 %v6053, %v6245
      %v6247 = vpop.f32.mrf.mxu0
      %v6248 = vadd.f32 %v6055, %v6247
      %v6249 = vpop.f32.mrf.mxu0
      %v6250 = vadd.f32 %v6057, %v6249
      %6251 = vmatprep.mubr.bf16.mxu0 %v4142
      %6252 = vmatmul.mubr.bf16.gmra.mxu0 %v4141
      %v6253 = vpop.f32.mrf.mxu0
      %v6254 = vadd.f32 %v6061, %v6253
      %v6255 = vpop.f32.mrf.mxu0
      %v6256 = vadd.f32 %v6063, %v6255
      %v6257 = vpop.f32.mrf.mxu0
      %v6258 = vadd.f32 %v6065, %v6257
      %v6259 = vpop.f32.mrf.mxu0
      %v6260 = vadd.f32 %v6067, %v6259
      %6261 = vmatprep.mubr.bf16.mxu0 %v4150
      %6262 = vmatmul.mubr.bf16.gmra.mxu0 %v4149
      %v6263 = vpop.f32.mrf.mxu0
      %v6264 = vadd.f32 %v6071, %v6263
      %v6265 = vpop.f32.mrf.mxu0
      %v6266 = vadd.f32 %v6073, %v6265
      %v6267 = vpop.f32.mrf.mxu0
      %v6268 = vadd.f32 %v6075, %v6267
      %v6269 = vpop.f32.mrf.mxu0
      %v6270 = vadd.f32 %v6077, %v6269
      %6271 = vmatprep.mubr.bf16.mxu0 %v4158
      %6272 = vmatmul.mubr.bf16.gmra.mxu0 %v4157
      %v6273 = vpop.f32.mrf.mxu0
      %v6274 = vadd.f32 %v6081, %v6273
      %v6275 = vpop.f32.mrf.mxu0
      %v6276 = vadd.f32 %v6083, %v6275
      %v6277 = vpop.f32.mrf.mxu0
      %v6278 = vadd.f32 %v6085, %v6277
      %v6279 = vpop.f32.mrf.mxu0
      %v6280 = vadd.f32 %v6087, %v6279
      %6281 = vmatprep.mubr.bf16.mxu0 %v4166
      %6282 = vmatmul.mubr.bf16.gmra.mxu0 %v4165
      %v6283 = vpop.f32.mrf.mxu0
      %v6284 = vadd.f32 %v6091, %v6283
      %v6285 = vpop.f32.mrf.mxu0
      %v6286 = vadd.f32 %v6093, %v6285
      %v6287 = vpop.f32.mrf.mxu0
      %v6288 = vadd.f32 %v6095, %v6287
      %v6289 = vpop.f32.mrf.mxu0
      %v6290 = vadd.f32 %v6097, %v6289
      %6291 = vmatprep.mubr.bf16.mxu0 %v4174
      %6292 = vmatmul.mubr.bf16.gmra.mxu0 %v4173
      %v6293 = vpop.f32.mrf.mxu0
      %v6294 = vadd.f32 %v6101, %v6293
      %v6295 = vpop.f32.mrf.mxu0
      %v6296 = vadd.f32 %v6103, %v6295
      %v6297 = vpop.f32.mrf.mxu0
      %v6298 = vadd.f32 %v6105, %v6297
      %v6299 = vpop.f32.mrf.mxu0
      %v6300 = vadd.f32 %v6107, %v6299
      %6301 = vmatprep.mubr.bf16.mxu0 %v4182
      %6302 = vmatmul.mubr.bf16.gmra.mxu0 %v4181
      %v6303 = vpop.f32.mrf.mxu0
      %v6304 = vadd.f32 %v6111, %v6303
      %v6305 = vpop.f32.mrf.mxu0
      %v6306 = vadd.f32 %v6113, %v6305
      %v6307 = vpop.f32.mrf.mxu0
      %v6308 = vadd.f32 %v6115, %v6307
      %v6309 = vpop.f32.mrf.mxu0
      %v6310 = vadd.f32 %v6117, %v6309
      %6311 = vmatprep.mubr.bf16.mxu0 %v4190
      %6312 = vmatmul.mubr.bf16.gmra.mxu0 %v4189
      %v6313 = vpop.f32.mrf.mxu0
      %v6314 = vadd.f32 %v6121, %v6313
      %v6315 = vpop.f32.mrf.mxu0
      %v6316 = vadd.f32 %v6123, %v6315
      %v6317 = vpop.f32.mrf.mxu0
      %v6318 = vadd.f32 %v6125, %v6317
      %v6319 = vpop.f32.mrf.mxu0
      %v6320 = vadd.f32 %v6127, %v6319
      %6321 = vmatprep.mubr.bf16.mxu0 %v4198
      %6322 = vmatmul.mubr.bf16.gmra.mxu0 %v4197
      %v6323 = vpop.f32.mrf.mxu0
      %v6324 = vadd.f32 %v6131, %v6323
      %v6325 = vpop.f32.mrf.mxu0
      %v6326 = vadd.f32 %v6133, %v6325
      %v6327 = vpop.f32.mrf.mxu0
      %v6328 = vadd.f32 %v6135, %v6327
      %v6329 = vpop.f32.mrf.mxu0
      %v6330 = vadd.f32 %v6137, %v6329
      %6331 = vmatprep.mubr.bf16.mxu0 %v4206
      %6332 = vmatmul.mubr.bf16.gmra.mxu0 %v4205
      %v6333 = vpop.f32.mrf.mxu0
      %v6334 = vadd.f32 %v6141, %v6333
      %v6335 = vpop.f32.mrf.mxu0
      %v6336 = vadd.f32 %v6143, %v6335
      %v6337 = vpop.f32.mrf.mxu0
      %v6338 = vadd.f32 %v6145, %v6337
      %v6339 = vpop.f32.mrf.mxu0
      %v6340 = vadd.f32 %v6147, %v6339
      %6341 = vmatprep.mubr.bf16.mxu0 %v4214
      %6342 = vmatmul.mubr.bf16.gmra.mxu0 %v4213
      %v6343 = vpop.f32.mrf.mxu0
      %v6344 = vadd.f32 %v6151, %v6343
      %v6345 = vpop.f32.mrf.mxu0
      %v6346 = vadd.f32 %v6153, %v6345
      %v6347 = vpop.f32.mrf.mxu0
      %v6348 = vadd.f32 %v6155, %v6347
      %v6349 = vpop.f32.mrf.mxu0
      %v6350 = vadd.f32 %v6157, %v6349
      %6351 = vmatprep.mubr.bf16.mxu0 %v4222
      %6352 = vmatmul.mubr.bf16.gmra.mxu0 %v4221
      %v6353 = vpop.f32.mrf.mxu0
      %v6354 = vadd.f32 %v6161, %v6353
      %v6355 = vpop.f32.mrf.mxu0
      %v6356 = vadd.f32 %v6163, %v6355
      %v6357 = vpop.f32.mrf.mxu0
      %v6358 = vadd.f32 %v6165, %v6357
      %v6359 = vpop.f32.mrf.mxu0
      %v6360 = vadd.f32 %v6167, %v6359
      %6361 = vdwg.mxu0
      %6362 = vmatprep.subr.bf16.mxu0 %v5492
      %6363 = vmatpush1.bf16.msra.mxu0 %v5491
      %6364 = vmatprep.subr.bf16.mxu0 %v5488
      %6365 = vmatpush1.bf16.msra.mxu0 %v5487
      %6366 = vmatprep.subr.bf16.mxu0 %v5484
      %6367 = vmatpush1.bf16.msra.mxu0 %v5483
      %6368 = vmatprep.subr.bf16.mxu0 %v5480
      %6369 = vmatpush1.bf16.msra.mxu0 %v5479
      %6370 = vmatprep.subr.bf16.mxu0 %v5476
      %6371 = vmatpush1.bf16.msra.mxu0 %v5475
      %6372 = vmatprep.subr.bf16.mxu0 %v5472
      %6373 = vmatpush1.bf16.msra.mxu0 %v5471
      %6374 = vmatprep.subr.bf16.mxu0 %v5468
      %6375 = vmatpush1.bf16.msra.mxu0 %v5467
      %6376 = vmatprep.subr.bf16.mxu0 %v5464
      %6377 = vmatpush1.bf16.msra.mxu0 %v5463
      %6378 = vmatprep.subr.bf16.mxu0 %v5524
      %6379 = vmatpush2.bf16.msra.mxu0 %v5523
      %6380 = vmatprep.subr.bf16.mxu0 %v5520
      %6381 = vmatpush2.bf16.msra.mxu0 %v5519
      %6382 = vmatprep.subr.bf16.mxu0 %v5516
      %6383 = vmatpush2.bf16.msra.mxu0 %v5515
      %6384 = vmatprep.subr.bf16.mxu0 %v5512
      %6385 = vmatpush2.bf16.msra.mxu0 %v5511
      %6386 = vmatprep.subr.bf16.mxu0 %v5508
      %6387 = vmatpush2.bf16.msra.mxu0 %v5507
      %6388 = vmatprep.subr.bf16.mxu0 %v5504
      %6389 = vmatpush2.bf16.msra.mxu0 %v5503
      %6390 = vmatprep.subr.bf16.mxu0 %v5500
      %6391 = vmatpush2.bf16.msra.mxu0 %v5499
      %6392 = vmatprep.subr.bf16.mxu0 %v5496
      %6393 = vmatpush2.bf16.msra.mxu0 %v5495
      %6394 = vmatprep.mubr.bf16.mxu0 %v4104
      %6395 = vmatmul.mubr.bf16.gmra.mxu0 %v4103
      %v6396 = vpop.f32.mrf.mxu0
      %v6397 = vadd.f32 %v6204, %v6396
      %v6398 = vpop.f32.mrf.mxu0
      %v6399 = vadd.f32 %v6206, %v6398
      %v6400 = vpop.f32.mrf.mxu0
      %v6401 = vadd.f32 %v6208, %v6400
      %v6402 = vpop.f32.mrf.mxu0
      %v6403 = vadd.f32 %v6210, %v6402
      %6404 = vmatprep.mubr.bf16.mxu0 %v4112
      %6405 = vmatmul.mubr.bf16.gmra.mxu0 %v4111
      %v6406 = vpop.f32.mrf.mxu0
      %v6407 = vadd.f32 %v6214, %v6406
      %v6408 = vpop.f32.mrf.mxu0
      %v6409 = vadd.f32 %v6216, %v6408
      %v6410 = vpop.f32.mrf.mxu0
      %v6411 = vadd.f32 %v6218, %v6410
      %v6412 = vpop.f32.mrf.mxu0
      %v6413 = vadd.f32 %v6220, %v6412
      %6414 = vmatprep.mubr.bf16.mxu0 %v4120
      %6415 = vmatmul.mubr.bf16.gmra.mxu0 %v4119
      %v6416 = vpop.f32.mrf.mxu0
      %v6417 = vadd.f32 %v6224, %v6416
      %v6418 = vpop.f32.mrf.mxu0
      %v6419 = vadd.f32 %v6226, %v6418
      %v6420 = vpop.f32.mrf.mxu0
      %v6421 = vadd.f32 %v6228, %v6420
      %v6422 = vpop.f32.mrf.mxu0
      %v6423 = vadd.f32 %v6230, %v6422
      %6424 = vmatprep.mubr.bf16.mxu0 %v4128
      %6425 = vmatmul.mubr.bf16.gmra.mxu0 %v4127
      %v6426 = vpop.f32.mrf.mxu0
      %v6427 = vadd.f32 %v6234, %v6426
      %v6428 = vpop.f32.mrf.mxu0
      %v6429 = vadd.f32 %v6236, %v6428
      %v6430 = vpop.f32.mrf.mxu0
      %v6431 = vadd.f32 %v6238, %v6430
      %v6432 = vpop.f32.mrf.mxu0
      %v6433 = vadd.f32 %v6240, %v6432
      %6434 = vmatprep.mubr.bf16.mxu0 %v4136
      %6435 = vmatmul.mubr.bf16.gmra.mxu0 %v4135
      %v6436 = vpop.f32.mrf.mxu0
      %v6437 = vadd.f32 %v6244, %v6436
      %v6438 = vpop.f32.mrf.mxu0
      %v6439 = vadd.f32 %v6246, %v6438
      %v6440 = vpop.f32.mrf.mxu0
      %v6441 = vadd.f32 %v6248, %v6440
      %v6442 = vpop.f32.mrf.mxu0
      %v6443 = vadd.f32 %v6250, %v6442
      %6444 = vmatprep.mubr.bf16.mxu0 %v4144
      %6445 = vmatmul.mubr.bf16.gmra.mxu0 %v4143
      %v6446 = vpop.f32.mrf.mxu0
      %v6447 = vadd.f32 %v6254, %v6446
      %v6448 = vpop.f32.mrf.mxu0
      %v6449 = vadd.f32 %v6256, %v6448
      %v6450 = vpop.f32.mrf.mxu0
      %v6451 = vadd.f32 %v6258, %v6450
      %v6452 = vpop.f32.mrf.mxu0
      %v6453 = vadd.f32 %v6260, %v6452
      %6454 = vmatprep.mubr.bf16.mxu0 %v4152
      %6455 = vmatmul.mubr.bf16.gmra.mxu0 %v4151
      %v6456 = vpop.f32.mrf.mxu0
      %v6457 = vadd.f32 %v6264, %v6456
      %v6458 = vpop.f32.mrf.mxu0
      %v6459 = vadd.f32 %v6266, %v6458
      %v6460 = vpop.f32.mrf.mxu0
      %v6461 = vadd.f32 %v6268, %v6460
      %v6462 = vpop.f32.mrf.mxu0
      %v6463 = vadd.f32 %v6270, %v6462
      %6464 = vmatprep.mubr.bf16.mxu0 %v4160
      %6465 = vmatmul.mubr.bf16.gmra.mxu0 %v4159
      %v6466 = vpop.f32.mrf.mxu0
      %v6467 = vadd.f32 %v6274, %v6466
      %v6468 = vpop.f32.mrf.mxu0
      %v6469 = vadd.f32 %v6276, %v6468
      %v6470 = vpop.f32.mrf.mxu0
      %v6471 = vadd.f32 %v6278, %v6470
      %v6472 = vpop.f32.mrf.mxu0
      %v6473 = vadd.f32 %v6280, %v6472
      %6474 = vmatprep.mubr.bf16.mxu0 %v4168
      %6475 = vmatmul.mubr.bf16.gmra.mxu0 %v4167
      %v6476 = vpop.f32.mrf.mxu0
      %v6477 = vadd.f32 %v6284, %v6476
      %v6478 = vpop.f32.mrf.mxu0
      %v6479 = vadd.f32 %v6286, %v6478
      %v6480 = vpop.f32.mrf.mxu0
      %v6481 = vadd.f32 %v6288, %v6480
      %v6482 = vpop.f32.mrf.mxu0
      %v6483 = vadd.f32 %v6290, %v6482
      %6484 = vmatprep.mubr.bf16.mxu0 %v4176
      %6485 = vmatmul.mubr.bf16.gmra.mxu0 %v4175
      %v6486 = vpop.f32.mrf.mxu0
      %v6487 = vadd.f32 %v6294, %v6486
      %v6488 = vpop.f32.mrf.mxu0
      %v6489 = vadd.f32 %v6296, %v6488
      %v6490 = vpop.f32.mrf.mxu0
      %v6491 = vadd.f32 %v6298, %v6490
      %v6492 = vpop.f32.mrf.mxu0
      %v6493 = vadd.f32 %v6300, %v6492
      %6494 = vmatprep.mubr.bf16.mxu0 %v4184
      %6495 = vmatmul.mubr.bf16.gmra.mxu0 %v4183
      %v6496 = vpop.f32.mrf.mxu0
      %v6497 = vadd.f32 %v6304, %v6496
      %v6498 = vpop.f32.mrf.mxu0
      %v6499 = vadd.f32 %v6306, %v6498
      %v6500 = vpop.f32.mrf.mxu0
      %v6501 = vadd.f32 %v6308, %v6500
      %v6502 = vpop.f32.mrf.mxu0
      %v6503 = vadd.f32 %v6310, %v6502
      %6504 = vmatprep.mubr.bf16.mxu0 %v4192
      %6505 = vmatmul.mubr.bf16.gmra.mxu0 %v4191
      %v6506 = vpop.f32.mrf.mxu0
      %v6507 = vadd.f32 %v6314, %v6506
      %v6508 = vpop.f32.mrf.mxu0
      %v6509 = vadd.f32 %v6316, %v6508
      %v6510 = vpop.f32.mrf.mxu0
      %v6511 = vadd.f32 %v6318, %v6510
      %v6512 = vpop.f32.mrf.mxu0
      %v6513 = vadd.f32 %v6320, %v6512
      %6514 = vmatprep.mubr.bf16.mxu0 %v4200
      %6515 = vmatmul.mubr.bf16.gmra.mxu0 %v4199
      %v6516 = vpop.f32.mrf.mxu0
      %v6517 = vadd.f32 %v6324, %v6516
      %v6518 = vpop.f32.mrf.mxu0
      %v6519 = vadd.f32 %v6326, %v6518
      %v6520 = vpop.f32.mrf.mxu0
      %v6521 = vadd.f32 %v6328, %v6520
      %v6522 = vpop.f32.mrf.mxu0
      %v6523 = vadd.f32 %v6330, %v6522
      %6524 = vmatprep.mubr.bf16.mxu0 %v4208
      %6525 = vmatmul.mubr.bf16.gmra.mxu0 %v4207
      %v6526 = vpop.f32.mrf.mxu0
      %v6527 = vadd.f32 %v6334, %v6526
      %v6528 = vpop.f32.mrf.mxu0
      %v6529 = vadd.f32 %v6336, %v6528
      %v6530 = vpop.f32.mrf.mxu0
      %v6531 = vadd.f32 %v6338, %v6530
      %v6532 = vpop.f32.mrf.mxu0
      %v6533 = vadd.f32 %v6340, %v6532
      %6534 = vmatprep.mubr.bf16.mxu0 %v4216
      %6535 = vmatmul.mubr.bf16.gmra.mxu0 %v4215
      %v6536 = vpop.f32.mrf.mxu0
      %v6537 = vadd.f32 %v6344, %v6536
      %v6538 = vpop.f32.mrf.mxu0
      %v6539 = vadd.f32 %v6346, %v6538
      %v6540 = vpop.f32.mrf.mxu0
      %v6541 = vadd.f32 %v6348, %v6540
      %v6542 = vpop.f32.mrf.mxu0
      %v6543 = vadd.f32 %v6350, %v6542
      %6544 = vmatprep.mubr.bf16.mxu0 %v4224
      %6545 = vmatmul.mubr.bf16.gmra.mxu0 %v4223
      %v6546 = vpop.f32.mrf.mxu0
      %v6547 = vadd.f32 %v6354, %v6546
      %v6548 = vpop.f32.mrf.mxu0
      %v6549 = vadd.f32 %v6356, %v6548
      %v6550 = vpop.f32.mrf.mxu0
      %v6551 = vadd.f32 %v6358, %v6550
      %v6552 = vpop.f32.mrf.mxu0
      %v6553 = vadd.f32 %v6360, %v6552
      %6554 = vdwg.mxu0
      %6555 = vmatprep.subr.bf16.mxu0 %v5302
      %6556 = vmatpush1.bf16.msra.mxu0 %v5301
      %6557 = vmatprep.subr.bf16.mxu0 %v5298
      %6558 = vmatpush1.bf16.msra.mxu0 %v5297
      %6559 = vmatprep.subr.bf16.mxu0 %v5294
      %6560 = vmatpush1.bf16.msra.mxu0 %v5293
      %6561 = vmatprep.subr.bf16.mxu0 %v5290
      %6562 = vmatpush1.bf16.msra.mxu0 %v5289
      %6563 = vmatprep.subr.bf16.mxu0 %v5286
      %6564 = vmatpush1.bf16.msra.mxu0 %v5285
      %6565 = vmatprep.subr.bf16.mxu0 %v5282
      %6566 = vmatpush1.bf16.msra.mxu0 %v5281
      %6567 = vmatprep.subr.bf16.mxu0 %v5278
      %6568 = vmatpush1.bf16.msra.mxu0 %v5277
      %6569 = vmatprep.subr.bf16.mxu0 %v5274
      %6570 = vmatpush1.bf16.msra.mxu0 %v5273
      %6571 = vmatprep.subr.bf16.mxu0 %v5334
      %6572 = vmatpush2.bf16.msra.mxu0 %v5333
      %6573 = vmatprep.subr.bf16.mxu0 %v5330
      %6574 = vmatpush2.bf16.msra.mxu0 %v5329
      %6575 = vmatprep.subr.bf16.mxu0 %v5326
      %6576 = vmatpush2.bf16.msra.mxu0 %v5325
      %6577 = vmatprep.subr.bf16.mxu0 %v5322
      %6578 = vmatpush2.bf16.msra.mxu0 %v5321
      %6579 = vmatprep.subr.bf16.mxu0 %v5318
      %6580 = vmatpush2.bf16.msra.mxu0 %v5317
      %6581 = vmatprep.subr.bf16.mxu0 %v5314
      %6582 = vmatpush2.bf16.msra.mxu0 %v5313
      %6583 = vmatprep.subr.bf16.mxu0 %v5310
      %6584 = vmatpush2.bf16.msra.mxu0 %v5309
      %6585 = vmatprep.subr.bf16.mxu0 %v5306
      %6586 = vmatpush2.bf16.msra.mxu0 %v5305
      %6587 = vmatprep.mubr.bf16.mxu0 %v4098
      %6588 = vmatmul.mubr.bf16.gmra.mxu0 %v4097
      %v6589 = vpop.f32.mrf.mxu0
      %v6590 = vadd.f32 %v4494, %v6589
      %v6591 = vpop.f32.mrf.mxu0
      %v6592 = vadd.f32 %v4498, %v6591
      %v6593 = vpop.f32.mrf.mxu0
      %v6594 = vadd.f32 %v4494, %v6593
      %v6595 = vpop.f32.mrf.mxu0
      %v6596 = vadd.f32 %v4498, %v6595
      %6597 = vmatprep.mubr.bf16.mxu0 %v4106
      %6598 = vmatmul.mubr.bf16.gmra.mxu0 %v4105
      %v6599 = vpop.f32.mrf.mxu0
      %v6600 = vadd.f32 %v4494, %v6599
      %v6601 = vpop.f32.mrf.mxu0
      %v6602 = vadd.f32 %v4498, %v6601
      %v6603 = vpop.f32.mrf.mxu0
      %v6604 = vadd.f32 %v4494, %v6603
      %v6605 = vpop.f32.mrf.mxu0
      %v6606 = vadd.f32 %v4498, %v6605
      %6607 = vmatprep.mubr.bf16.mxu0 %v4114
      %6608 = vmatmul.mubr.bf16.gmra.mxu0 %v4113
      %v6609 = vpop.f32.mrf.mxu0
      %v6610 = vadd.f32 %v4494, %v6609
      %v6611 = vpop.f32.mrf.mxu0
      %v6612 = vadd.f32 %v4498, %v6611
      %v6613 = vpop.f32.mrf.mxu0
      %v6614 = vadd.f32 %v4494, %v6613
      %v6615 = vpop.f32.mrf.mxu0
      %v6616 = vadd.f32 %v4498, %v6615
      %6617 = vmatprep.mubr.bf16.mxu0 %v4122
      %6618 = vmatmul.mubr.bf16.gmra.mxu0 %v4121
      %v6619 = vpop.f32.mrf.mxu0
      %v6620 = vadd.f32 %v4494, %v6619
      %v6621 = vpop.f32.mrf.mxu0
      %v6622 = vadd.f32 %v4498, %v6621
      %v6623 = vpop.f32.mrf.mxu0
      %v6624 = vadd.f32 %v4494, %v6623
      %v6625 = vpop.f32.mrf.mxu0
      %v6626 = vadd.f32 %v4498, %v6625
      %6627 = vmatprep.mubr.bf16.mxu0 %v4130
      %6628 = vmatmul.mubr.bf16.gmra.mxu0 %v4129
      %v6629 = vpop.f32.mrf.mxu0
      %v6630 = vadd.f32 %v4494, %v6629
      %v6631 = vpop.f32.mrf.mxu0
      %v6632 = vadd.f32 %v4498, %v6631
      %v6633 = vpop.f32.mrf.mxu0
      %v6634 = vadd.f32 %v4494, %v6633
      %v6635 = vpop.f32.mrf.mxu0
      %v6636 = vadd.f32 %v4498, %v6635
      %6637 = vmatprep.mubr.bf16.mxu0 %v4138
      %6638 = vmatmul.mubr.bf16.gmra.mxu0 %v4137
      %v6639 = vpop.f32.mrf.mxu0
      %v6640 = vadd.f32 %v4494, %v6639
      %v6641 = vpop.f32.mrf.mxu0
      %v6642 = vadd.f32 %v4498, %v6641
      %v6643 = vpop.f32.mrf.mxu0
      %v6644 = vadd.f32 %v4494, %v6643
      %v6645 = vpop.f32.mrf.mxu0
      %v6646 = vadd.f32 %v4498, %v6645
      %6647 = vmatprep.mubr.bf16.mxu0 %v4146
      %6648 = vmatmul.mubr.bf16.gmra.mxu0 %v4145
      %v6649 = vpop.f32.mrf.mxu0
      %v6650 = vadd.f32 %v4494, %v6649
      %v6651 = vpop.f32.mrf.mxu0
      %v6652 = vadd.f32 %v4498, %v6651
      %v6653 = vpop.f32.mrf.mxu0
      %v6654 = vadd.f32 %v4494, %v6653
      %v6655 = vpop.f32.mrf.mxu0
      %v6656 = vadd.f32 %v4498, %v6655
      %6657 = vmatprep.mubr.bf16.mxu0 %v4154
      %6658 = vmatmul.mubr.bf16.gmra.mxu0 %v4153
      %v6659 = vpop.f32.mrf.mxu0
      %v6660 = vadd.f32 %v4494, %v6659
      %v6661 = vpop.f32.mrf.mxu0
      %v6662 = vadd.f32 %v4498, %v6661
      %v6663 = vpop.f32.mrf.mxu0
      %v6664 = vadd.f32 %v4494, %v6663
      %v6665 = vpop.f32.mrf.mxu0
      %v6666 = vadd.f32 %v4498, %v6665
      %6667 = vmatprep.mubr.bf16.mxu0 %v4162
      %6668 = vmatmul.mubr.bf16.gmra.mxu0 %v4161
      %v6669 = vpop.f32.mrf.mxu0
      %v6670 = vadd.f32 %v4494, %v6669
      %v6671 = vpop.f32.mrf.mxu0
      %v6672 = vadd.f32 %v4498, %v6671
      %v6673 = vpop.f32.mrf.mxu0
      %v6674 = vadd.f32 %v4494, %v6673
      %v6675 = vpop.f32.mrf.mxu0
      %v6676 = vadd.f32 %v4498, %v6675
      %6677 = vmatprep.mubr.bf16.mxu0 %v4170
      %6678 = vmatmul.mubr.bf16.gmra.mxu0 %v4169
      %v6679 = vpop.f32.mrf.mxu0
      %v6680 = vadd.f32 %v4494, %v6679
      %v6681 = vpop.f32.mrf.mxu0
      %v6682 = vadd.f32 %v4498, %v6681
      %v6683 = vpop.f32.mrf.mxu0
      %v6684 = vadd.f32 %v4494, %v6683
      %v6685 = vpop.f32.mrf.mxu0
      %v6686 = vadd.f32 %v4498, %v6685
      %6687 = vmatprep.mubr.bf16.mxu0 %v4178
      %6688 = vmatmul.mubr.bf16.gmra.mxu0 %v4177
      %v6689 = vpop.f32.mrf.mxu0
      %v6690 = vadd.f32 %v4494, %v6689
      %v6691 = vpop.f32.mrf.mxu0
      %v6692 = vadd.f32 %v4498, %v6691
      %v6693 = vpop.f32.mrf.mxu0
      %v6694 = vadd.f32 %v4494, %v6693
      %v6695 = vpop.f32.mrf.mxu0
      %v6696 = vadd.f32 %v4498, %v6695
      %6697 = vmatprep.mubr.bf16.mxu0 %v4186
      %6698 = vmatmul.mubr.bf16.gmra.mxu0 %v4185
      %v6699 = vpop.f32.mrf.mxu0
      %v6700 = vadd.f32 %v4494, %v6699
      %v6701 = vpop.f32.mrf.mxu0
      %v6702 = vadd.f32 %v4498, %v6701
      %v6703 = vpop.f32.mrf.mxu0
      %v6704 = vadd.f32 %v4494, %v6703
      %v6705 = vpop.f32.mrf.mxu0
      %v6706 = vadd.f32 %v4498, %v6705
      %6707 = vmatprep.mubr.bf16.mxu0 %v4194
      %6708 = vmatmul.mubr.bf16.gmra.mxu0 %v4193
      %v6709 = vpop.f32.mrf.mxu0
      %v6710 = vadd.f32 %v4494, %v6709
      %v6711 = vpop.f32.mrf.mxu0
      %v6712 = vadd.f32 %v4498, %v6711
      %v6713 = vpop.f32.mrf.mxu0
      %v6714 = vadd.f32 %v4494, %v6713
      %v6715 = vpop.f32.mrf.mxu0
      %v6716 = vadd.f32 %v4498, %v6715
      %6717 = vmatprep.mubr.bf16.mxu0 %v4202
      %6718 = vmatmul.mubr.bf16.gmra.mxu0 %v4201
      %v6719 = vpop.f32.mrf.mxu0
      %v6720 = vadd.f32 %v4494, %v6719
      %v6721 = vpop.f32.mrf.mxu0
      %v6722 = vadd.f32 %v4498, %v6721
      %v6723 = vpop.f32.mrf.mxu0
      %v6724 = vadd.f32 %v4494, %v6723
      %v6725 = vpop.f32.mrf.mxu0
      %v6726 = vadd.f32 %v4498, %v6725
      %6727 = vmatprep.mubr.bf16.mxu0 %v4210
      %6728 = vmatmul.mubr.bf16.gmra.mxu0 %v4209
      %v6729 = vpop.f32.mrf.mxu0
      %v6730 = vadd.f32 %v4494, %v6729
      %v6731 = vpop.f32.mrf.mxu0
      %v6732 = vadd.f32 %v4498, %v6731
      %v6733 = vpop.f32.mrf.mxu0
      %v6734 = vadd.f32 %v4494, %v6733
      %v6735 = vpop.f32.mrf.mxu0
      %v6736 = vadd.f32 %v4498, %v6735
      %6737 = vmatprep.mubr.bf16.mxu0 %v4218
      %6738 = vmatmul.mubr.bf16.gmra.mxu0 %v4217
      %v6739 = vpop.f32.mrf.mxu0
      %v6740 = vadd.f32 %v4494, %v6739
      %v6741 = vpop.f32.mrf.mxu0
      %v6742 = vadd.f32 %v4498, %v6741
      %v6743 = vpop.f32.mrf.mxu0
      %v6744 = vadd.f32 %v4494, %v6743
      %v6745 = vpop.f32.mrf.mxu0
      %v6746 = vadd.f32 %v4498, %v6745
      %6747 = vdwg.mxu0
      %6748 = vmatprep.subr.bf16.mxu0 %v5366
      %6749 = vmatpush1.bf16.msra.mxu0 %v5365
      %6750 = vmatprep.subr.bf16.mxu0 %v5362
      %6751 = vmatpush1.bf16.msra.mxu0 %v5361
      %6752 = vmatprep.subr.bf16.mxu0 %v5358
      %6753 = vmatpush1.bf16.msra.mxu0 %v5357
      %6754 = vmatprep.subr.bf16.mxu0 %v5354
      %6755 = vmatpush1.bf16.msra.mxu0 %v5353
      %6756 = vmatprep.subr.bf16.mxu0 %v5350
      %6757 = vmatpush1.bf16.msra.mxu0 %v5349
      %6758 = vmatprep.subr.bf16.mxu0 %v5346
      %6759 = vmatpush1.bf16.msra.mxu0 %v5345
      %6760 = vmatprep.subr.bf16.mxu0 %v5342
      %6761 = vmatpush1.bf16.msra.mxu0 %v5341
      %6762 = vmatprep.subr.bf16.mxu0 %v5338
      %6763 = vmatpush1.bf16.msra.mxu0 %v5337
      %6764 = vmatprep.subr.bf16.mxu0 %v5398
      %6765 = vmatpush2.bf16.msra.mxu0 %v5397
      %6766 = vmatprep.subr.bf16.mxu0 %v5394
      %6767 = vmatpush2.bf16.msra.mxu0 %v5393
      %6768 = vmatprep.subr.bf16.mxu0 %v5390
      %6769 = vmatpush2.bf16.msra.mxu0 %v5389
      %6770 = vmatprep.subr.bf16.mxu0 %v5386
      %6771 = vmatpush2.bf16.msra.mxu0 %v5385
      %6772 = vmatprep.subr.bf16.mxu0 %v5382
      %6773 = vmatpush2.bf16.msra.mxu0 %v5381
      %6774 = vmatprep.subr.bf16.mxu0 %v5378
      %6775 = vmatpush2.bf16.msra.mxu0 %v5377
      %6776 = vmatprep.subr.bf16.mxu0 %v5374
      %6777 = vmatpush2.bf16.msra.mxu0 %v5373
      %6778 = vmatprep.subr.bf16.mxu0 %v5370
      %6779 = vmatpush2.bf16.msra.mxu0 %v5369
      %6780 = vmatprep.mubr.bf16.mxu0 %v4100
      %6781 = vmatmul.mubr.bf16.gmra.mxu0 %v4099
      %v6782 = vpop.f32.mrf.mxu0
      %v6783 = vadd.f32 %v6590, %v6782
      %v6784 = vpop.f32.mrf.mxu0
      %v6785 = vadd.f32 %v6592, %v6784
      %v6786 = vpop.f32.mrf.mxu0
      %v6787 = vadd.f32 %v6594, %v6786
      %v6788 = vpop.f32.mrf.mxu0
      %v6789 = vadd.f32 %v6596, %v6788
      %6790 = vmatprep.mubr.bf16.mxu0 %v4108
      %6791 = vmatmul.mubr.bf16.gmra.mxu0 %v4107
      %v6792 = vpop.f32.mrf.mxu0
      %v6793 = vadd.f32 %v6600, %v6792
      %v6794 = vpop.f32.mrf.mxu0
      %v6795 = vadd.f32 %v6602, %v6794
      %v6796 = vpop.f32.mrf.mxu0
      %v6797 = vadd.f32 %v6604, %v6796
      %v6798 = vpop.f32.mrf.mxu0
      %v6799 = vadd.f32 %v6606, %v6798
      %6800 = vmatprep.mubr.bf16.mxu0 %v4116
      %6801 = vmatmul.mubr.bf16.gmra.mxu0 %v4115
      %v6802 = vpop.f32.mrf.mxu0
      %v6803 = vadd.f32 %v6610, %v6802
      %v6804 = vpop.f32.mrf.mxu0
      %v6805 = vadd.f32 %v6612, %v6804
      %v6806 = vpop.f32.mrf.mxu0
      %v6807 = vadd.f32 %v6614, %v6806
      %v6808 = vpop.f32.mrf.mxu0
      %v6809 = vadd.f32 %v6616, %v6808
      %6810 = vmatprep.mubr.bf16.mxu0 %v4124
      %6811 = vmatmul.mubr.bf16.gmra.mxu0 %v4123
      %v6812 = vpop.f32.mrf.mxu0
      %v6813 = vadd.f32 %v6620, %v6812
      %v6814 = vpop.f32.mrf.mxu0
      %v6815 = vadd.f32 %v6622, %v6814
      %v6816 = vpop.f32.mrf.mxu0
      %v6817 = vadd.f32 %v6624, %v6816
      %v6818 = vpop.f32.mrf.mxu0
      %v6819 = vadd.f32 %v6626, %v6818
      %6820 = vmatprep.mubr.bf16.mxu0 %v4132
      %6821 = vmatmul.mubr.bf16.gmra.mxu0 %v4131
      %v6822 = vpop.f32.mrf.mxu0
      %v6823 = vadd.f32 %v6630, %v6822
      %v6824 = vpop.f32.mrf.mxu0
      %v6825 = vadd.f32 %v6632, %v6824
      %v6826 = vpop.f32.mrf.mxu0
      %v6827 = vadd.f32 %v6634, %v6826
      %v6828 = vpop.f32.mrf.mxu0
      %v6829 = vadd.f32 %v6636, %v6828
      %6830 = vmatprep.mubr.bf16.mxu0 %v4140
      %6831 = vmatmul.mubr.bf16.gmra.mxu0 %v4139
      %v6832 = vpop.f32.mrf.mxu0
      %v6833 = vadd.f32 %v6640, %v6832
      %v6834 = vpop.f32.mrf.mxu0
      %v6835 = vadd.f32 %v6642, %v6834
      %v6836 = vpop.f32.mrf.mxu0
      %v6837 = vadd.f32 %v6644, %v6836
      %v6838 = vpop.f32.mrf.mxu0
      %v6839 = vadd.f32 %v6646, %v6838
      %6840 = vmatprep.mubr.bf16.mxu0 %v4148
      %6841 = vmatmul.mubr.bf16.gmra.mxu0 %v4147
      %v6842 = vpop.f32.mrf.mxu0
      %v6843 = vadd.f32 %v6650, %v6842
      %v6844 = vpop.f32.mrf.mxu0
      %v6845 = vadd.f32 %v6652, %v6844
      %v6846 = vpop.f32.mrf.mxu0
      %v6847 = vadd.f32 %v6654, %v6846
      %v6848 = vpop.f32.mrf.mxu0
      %v6849 = vadd.f32 %v6656, %v6848
      %6850 = vmatprep.mubr.bf16.mxu0 %v4156
      %6851 = vmatmul.mubr.bf16.gmra.mxu0 %v4155
      %v6852 = vpop.f32.mrf.mxu0
      %v6853 = vadd.f32 %v6660, %v6852
      %v6854 = vpop.f32.mrf.mxu0
      %v6855 = vadd.f32 %v6662, %v6854
      %v6856 = vpop.f32.mrf.mxu0
      %v6857 = vadd.f32 %v6664, %v6856
      %v6858 = vpop.f32.mrf.mxu0
      %v6859 = vadd.f32 %v6666, %v6858
      %6860 = vmatprep.mubr.bf16.mxu0 %v4164
      %6861 = vmatmul.mubr.bf16.gmra.mxu0 %v4163
      %v6862 = vpop.f32.mrf.mxu0
      %v6863 = vadd.f32 %v6670, %v6862
      %v6864 = vpop.f32.mrf.mxu0
      %v6865 = vadd.f32 %v6672, %v6864
      %v6866 = vpop.f32.mrf.mxu0
      %v6867 = vadd.f32 %v6674, %v6866
      %v6868 = vpop.f32.mrf.mxu0
      %v6869 = vadd.f32 %v6676, %v6868
      %6870 = vmatprep.mubr.bf16.mxu0 %v4172
      %6871 = vmatmul.mubr.bf16.gmra.mxu0 %v4171
      %v6872 = vpop.f32.mrf.mxu0
      %v6873 = vadd.f32 %v6680, %v6872
      %v6874 = vpop.f32.mrf.mxu0
      %v6875 = vadd.f32 %v6682, %v6874
      %v6876 = vpop.f32.mrf.mxu0
      %v6877 = vadd.f32 %v6684, %v6876
      %v6878 = vpop.f32.mrf.mxu0
      %v6879 = vadd.f32 %v6686, %v6878
      %6880 = vmatprep.mubr.bf16.mxu0 %v4180
      %6881 = vmatmul.mubr.bf16.gmra.mxu0 %v4179
      %v6882 = vpop.f32.mrf.mxu0
      %v6883 = vadd.f32 %v6690, %v6882
      %v6884 = vpop.f32.mrf.mxu0
      %v6885 = vadd.f32 %v6692, %v6884
      %v6886 = vpop.f32.mrf.mxu0
      %v6887 = vadd.f32 %v6694, %v6886
      %v6888 = vpop.f32.mrf.mxu0
      %v6889 = vadd.f32 %v6696, %v6888
      %6890 = vmatprep.mubr.bf16.mxu0 %v4188
      %6891 = vmatmul.mubr.bf16.gmra.mxu0 %v4187
      %v6892 = vpop.f32.mrf.mxu0
      %v6893 = vadd.f32 %v6700, %v6892
      %v6894 = vpop.f32.mrf.mxu0
      %v6895 = vadd.f32 %v6702, %v6894
      %v6896 = vpop.f32.mrf.mxu0
      %v6897 = vadd.f32 %v6704, %v6896
      %v6898 = vpop.f32.mrf.mxu0
      %v6899 = vadd.f32 %v6706, %v6898
      %6900 = vmatprep.mubr.bf16.mxu0 %v4196
      %6901 = vmatmul.mubr.bf16.gmra.mxu0 %v4195
      %v6902 = vpop.f32.mrf.mxu0
      %v6903 = vadd.f32 %v6710, %v6902
      %v6904 = vpop.f32.mrf.mxu0
      %v6905 = vadd.f32 %v6712, %v6904
      %v6906 = vpop.f32.mrf.mxu0
      %v6907 = vadd.f32 %v6714, %v6906
      %v6908 = vpop.f32.mrf.mxu0
      %v6909 = vadd.f32 %v6716, %v6908
      %6910 = vmatprep.mubr.bf16.mxu0 %v4204
      %6911 = vmatmul.mubr.bf16.gmra.mxu0 %v4203
      %v6912 = vpop.f32.mrf.mxu0
      %v6913 = vadd.f32 %v6720, %v6912
      %v6914 = vpop.f32.mrf.mxu0
      %v6915 = vadd.f32 %v6722, %v6914
      %v6916 = vpop.f32.mrf.mxu0
      %v6917 = vadd.f32 %v6724, %v6916
      %v6918 = vpop.f32.mrf.mxu0
      %v6919 = vadd.f32 %v6726, %v6918
      %6920 = vmatprep.mubr.bf16.mxu0 %v4212
      %6921 = vmatmul.mubr.bf16.gmra.mxu0 %v4211
      %v6922 = vpop.f32.mrf.mxu0
      %v6923 = vadd.f32 %v6730, %v6922
      %v6924 = vpop.f32.mrf.mxu0
      %v6925 = vadd.f32 %v6732, %v6924
      %v6926 = vpop.f32.mrf.mxu0
      %v6927 = vadd.f32 %v6734, %v6926
      %v6928 = vpop.f32.mrf.mxu0
      %v6929 = vadd.f32 %v6736, %v6928
      %6930 = vmatprep.mubr.bf16.mxu0 %v4220
      %6931 = vmatmul.mubr.bf16.gmra.mxu0 %v4219
      %v6932 = vpop.f32.mrf.mxu0
      %v6933 = vadd.f32 %v6740, %v6932
      %v6934 = vpop.f32.mrf.mxu0
      %v6935 = vadd.f32 %v6742, %v6934
      %v6936 = vpop.f32.mrf.mxu0
      %v6937 = vadd.f32 %v6744, %v6936
      %v6938 = vpop.f32.mrf.mxu0
      %v6939 = vadd.f32 %v6746, %v6938
      %6940 = vdwg.mxu0
      %6941 = vmatprep.subr.bf16.mxu0 %v5430
      %6942 = vmatpush1.bf16.msra.mxu0 %v5429
      %6943 = vmatprep.subr.bf16.mxu0 %v5426
      %6944 = vmatpush1.bf16.msra.mxu0 %v5425
      %6945 = vmatprep.subr.bf16.mxu0 %v5422
      %6946 = vmatpush1.bf16.msra.mxu0 %v5421
      %6947 = vmatprep.subr.bf16.mxu0 %v5418
      %6948 = vmatpush1.bf16.msra.mxu0 %v5417
      %6949 = vmatprep.subr.bf16.mxu0 %v5414
      %6950 = vmatpush1.bf16.msra.mxu0 %v5413
      %6951 = vmatprep.subr.bf16.mxu0 %v5410
      %6952 = vmatpush1.bf16.msra.mxu0 %v5409
      %6953 = vmatprep.subr.bf16.mxu0 %v5406
      %6954 = vmatpush1.bf16.msra.mxu0 %v5405
      %6955 = vmatprep.subr.bf16.mxu0 %v5402
      %6956 = vmatpush1.bf16.msra.mxu0 %v5401
      %6957 = vmatprep.subr.bf16.mxu0 %v5462
      %6958 = vmatpush2.bf16.msra.mxu0 %v5461
      %6959 = vmatprep.subr.bf16.mxu0 %v5458
      %6960 = vmatpush2.bf16.msra.mxu0 %v5457
      %6961 = vmatprep.subr.bf16.mxu0 %v5454
      %6962 = vmatpush2.bf16.msra.mxu0 %v5453
      %6963 = vmatprep.subr.bf16.mxu0 %v5450
      %6964 = vmatpush2.bf16.msra.mxu0 %v5449
      %6965 = vmatprep.subr.bf16.mxu0 %v5446
      %6966 = vmatpush2.bf16.msra.mxu0 %v5445
      %6967 = vmatprep.subr.bf16.mxu0 %v5442
      %6968 = vmatpush2.bf16.msra.mxu0 %v5441
      %6969 = vmatprep.subr.bf16.mxu0 %v5438
      %6970 = vmatpush2.bf16.msra.mxu0 %v5437
      %6971 = vmatprep.subr.bf16.mxu0 %v5434
      %6972 = vmatpush2.bf16.msra.mxu0 %v5433
      %6973 = vmatprep.mubr.bf16.mxu0 %v4102
      %6974 = vmatmul.mubr.bf16.gmra.mxu0 %v4101
      %v6975 = vpop.f32.mrf.mxu0
      %v6976 = vadd.f32 %v6783, %v6975
      %v6977 = vpop.f32.mrf.mxu0
      %v6978 = vadd.f32 %v6785, %v6977
      %v6979 = vpop.f32.mrf.mxu0
      %v6980 = vadd.f32 %v6787, %v6979
      %v6981 = vpop.f32.mrf.mxu0
      %v6982 = vadd.f32 %v6789, %v6981
      %6983 = vmatprep.mubr.bf16.mxu0 %v4110
      %6984 = vmatmul.mubr.bf16.gmra.mxu0 %v4109
      %v6985 = vpop.f32.mrf.mxu0
      %v6986 = vadd.f32 %v6793, %v6985
      %v6987 = vpop.f32.mrf.mxu0
      %v6988 = vadd.f32 %v6795, %v6987
      %v6989 = vpop.f32.mrf.mxu0
      %v6990 = vadd.f32 %v6797, %v6989
      %v6991 = vpop.f32.mrf.mxu0
      %v6992 = vadd.f32 %v6799, %v6991
      %6993 = vmatprep.mubr.bf16.mxu0 %v4118
      %6994 = vmatmul.mubr.bf16.gmra.mxu0 %v4117
      %v6995 = vpop.f32.mrf.mxu0
      %v6996 = vadd.f32 %v6803, %v6995
      %v6997 = vpop.f32.mrf.mxu0
      %v6998 = vadd.f32 %v6805, %v6997
      %v6999 = vpop.f32.mrf.mxu0
      %v7000 = vadd.f32 %v6807, %v6999
      %v7001 = vpop.f32.mrf.mxu0
      %v7002 = vadd.f32 %v6809, %v7001
      %7003 = vmatprep.mubr.bf16.mxu0 %v4126
      %7004 = vmatmul.mubr.bf16.gmra.mxu0 %v4125
      %v7005 = vpop.f32.mrf.mxu0
      %v7006 = vadd.f32 %v6813, %v7005
      %v7007 = vpop.f32.mrf.mxu0
      %v7008 = vadd.f32 %v6815, %v7007
      %v7009 = vpop.f32.mrf.mxu0
      %v7010 = vadd.f32 %v6817, %v7009
      %v7011 = vpop.f32.mrf.mxu0
      %v7012 = vadd.f32 %v6819, %v7011
      %7013 = vmatprep.mubr.bf16.mxu0 %v4134
      %7014 = vmatmul.mubr.bf16.gmra.mxu0 %v4133
      %v7015 = vpop.f32.mrf.mxu0
      %v7016 = vadd.f32 %v6823, %v7015
      %v7017 = vpop.f32.mrf.mxu0
      %v7018 = vadd.f32 %v6825, %v7017
      %v7019 = vpop.f32.mrf.mxu0
      %v7020 = vadd.f32 %v6827, %v7019
      %v7021 = vpop.f32.mrf.mxu0
      %v7022 = vadd.f32 %v6829, %v7021
      %7023 = vmatprep.mubr.bf16.mxu0 %v4142
      %7024 = vmatmul.mubr.bf16.gmra.mxu0 %v4141
      %v7025 = vpop.f32.mrf.mxu0
      %v7026 = vadd.f32 %v6833, %v7025
      %v7027 = vpop.f32.mrf.mxu0
      %v7028 = vadd.f32 %v6835, %v7027
      %v7029 = vpop.f32.mrf.mxu0
      %v7030 = vadd.f32 %v6837, %v7029
      %v7031 = vpop.f32.mrf.mxu0
      %v7032 = vadd.f32 %v6839, %v7031
      %7033 = vmatprep.mubr.bf16.mxu0 %v4150
      %7034 = vmatmul.mubr.bf16.gmra.mxu0 %v4149
      %v7035 = vpop.f32.mrf.mxu0
      %v7036 = vadd.f32 %v6843, %v7035
      %v7037 = vpop.f32.mrf.mxu0
      %v7038 = vadd.f32 %v6845, %v7037
      %v7039 = vpop.f32.mrf.mxu0
      %v7040 = vadd.f32 %v6847, %v7039
      %v7041 = vpop.f32.mrf.mxu0
      %v7042 = vadd.f32 %v6849, %v7041
      %7043 = vmatprep.mubr.bf16.mxu0 %v4158
      %7044 = vmatmul.mubr.bf16.gmra.mxu0 %v4157
      %v7045 = vpop.f32.mrf.mxu0
      %v7046 = vadd.f32 %v6853, %v7045
      %v7047 = vpop.f32.mrf.mxu0
      %v7048 = vadd.f32 %v6855, %v7047
      %v7049 = vpop.f32.mrf.mxu0
      %v7050 = vadd.f32 %v6857, %v7049
      %v7051 = vpop.f32.mrf.mxu0
      %v7052 = vadd.f32 %v6859, %v7051
      %7053 = vmatprep.mubr.bf16.mxu0 %v4166
      %7054 = vmatmul.mubr.bf16.gmra.mxu0 %v4165
      %v7055 = vpop.f32.mrf.mxu0
      %v7056 = vadd.f32 %v6863, %v7055
      %v7057 = vpop.f32.mrf.mxu0
      %v7058 = vadd.f32 %v6865, %v7057
      %v7059 = vpop.f32.mrf.mxu0
      %v7060 = vadd.f32 %v6867, %v7059
      %v7061 = vpop.f32.mrf.mxu0
      %v7062 = vadd.f32 %v6869, %v7061
      %7063 = vmatprep.mubr.bf16.mxu0 %v4174
      %7064 = vmatmul.mubr.bf16.gmra.mxu0 %v4173
      %v7065 = vpop.f32.mrf.mxu0
      %v7066 = vadd.f32 %v6873, %v7065
      %v7067 = vpop.f32.mrf.mxu0
      %v7068 = vadd.f32 %v6875, %v7067
      %v7069 = vpop.f32.mrf.mxu0
      %v7070 = vadd.f32 %v6877, %v7069
      %v7071 = vpop.f32.mrf.mxu0
      %v7072 = vadd.f32 %v6879, %v7071
      %7073 = vmatprep.mubr.bf16.mxu0 %v4182
      %7074 = vmatmul.mubr.bf16.gmra.mxu0 %v4181
      %v7075 = vpop.f32.mrf.mxu0
      %v7076 = vadd.f32 %v6883, %v7075
      %v7077 = vpop.f32.mrf.mxu0
      %v7078 = vadd.f32 %v6885, %v7077
      %v7079 = vpop.f32.mrf.mxu0
      %v7080 = vadd.f32 %v6887, %v7079
      %v7081 = vpop.f32.mrf.mxu0
      %v7082 = vadd.f32 %v6889, %v7081
      %7083 = vmatprep.mubr.bf16.mxu0 %v4190
      %7084 = vmatmul.mubr.bf16.gmra.mxu0 %v4189
      %v7085 = vpop.f32.mrf.mxu0
      %v7086 = vadd.f32 %v6893, %v7085
      %v7087 = vpop.f32.mrf.mxu0
      %v7088 = vadd.f32 %v6895, %v7087
      %v7089 = vpop.f32.mrf.mxu0
      %v7090 = vadd.f32 %v6897, %v7089
      %v7091 = vpop.f32.mrf.mxu0
      %v7092 = vadd.f32 %v6899, %v7091
      %7093 = vmatprep.mubr.bf16.mxu0 %v4198
      %7094 = vmatmul.mubr.bf16.gmra.mxu0 %v4197
      %v7095 = vpop.f32.mrf.mxu0
      %v7096 = vadd.f32 %v6903, %v7095
      %v7097 = vpop.f32.mrf.mxu0
      %v7098 = vadd.f32 %v6905, %v7097
      %v7099 = vpop.f32.mrf.mxu0
      %v7100 = vadd.f32 %v6907, %v7099
      %v7101 = vpop.f32.mrf.mxu0
      %v7102 = vadd.f32 %v6909, %v7101
      %7103 = vmatprep.mubr.bf16.mxu0 %v4206
      %7104 = vmatmul.mubr.bf16.gmra.mxu0 %v4205
      %v7105 = vpop.f32.mrf.mxu0
      %v7106 = vadd.f32 %v6913, %v7105
      %v7107 = vpop.f32.mrf.mxu0
      %v7108 = vadd.f32 %v6915, %v7107
      %v7109 = vpop.f32.mrf.mxu0
      %v7110 = vadd.f32 %v6917, %v7109
      %v7111 = vpop.f32.mrf.mxu0
      %v7112 = vadd.f32 %v6919, %v7111
      %7113 = vmatprep.mubr.bf16.mxu0 %v4214
      %7114 = vmatmul.mubr.bf16.gmra.mxu0 %v4213
      %v7115 = vpop.f32.mrf.mxu0
      %v7116 = vadd.f32 %v6923, %v7115
      %v7117 = vpop.f32.mrf.mxu0
      %v7118 = vadd.f32 %v6925, %v7117
      %v7119 = vpop.f32.mrf.mxu0
      %v7120 = vadd.f32 %v6927, %v7119
      %v7121 = vpop.f32.mrf.mxu0
      %v7122 = vadd.f32 %v6929, %v7121
      %7123 = vmatprep.mubr.bf16.mxu0 %v4222
      %7124 = vmatmul.mubr.bf16.gmra.mxu0 %v4221
      %v7125 = vpop.f32.mrf.mxu0
      %v7126 = vadd.f32 %v6933, %v7125
      %v7127 = vpop.f32.mrf.mxu0
      %v7128 = vadd.f32 %v6935, %v7127
      %v7129 = vpop.f32.mrf.mxu0
      %v7130 = vadd.f32 %v6937, %v7129
      %v7131 = vpop.f32.mrf.mxu0
      %v7132 = vadd.f32 %v6939, %v7131
      %7133 = vdwg.mxu0
      %7134 = vmatprep.subr.bf16.mxu0 %v5494
      %7135 = vmatpush1.bf16.msra.mxu0 %v5493
      %7136 = vmatprep.subr.bf16.mxu0 %v5490
      %7137 = vmatpush1.bf16.msra.mxu0 %v5489
      %7138 = vmatprep.subr.bf16.mxu0 %v5486
      %7139 = vmatpush1.bf16.msra.mxu0 %v5485
      %7140 = vmatprep.subr.bf16.mxu0 %v5482
      %7141 = vmatpush1.bf16.msra.mxu0 %v5481
      %7142 = vmatprep.subr.bf16.mxu0 %v5478
      %7143 = vmatpush1.bf16.msra.mxu0 %v5477
      %7144 = vmatprep.subr.bf16.mxu0 %v5474
      %7145 = vmatpush1.bf16.msra.mxu0 %v5473
      %7146 = vmatprep.subr.bf16.mxu0 %v5470
      %7147 = vmatpush1.bf16.msra.mxu0 %v5469
      %7148 = vmatprep.subr.bf16.mxu0 %v5466
      %7149 = vmatpush1.bf16.msra.mxu0 %v5465
      %7150 = vmatprep.subr.bf16.mxu0 %v5526
      %7151 = vmatpush2.bf16.msra.mxu0 %v5525
      %7152 = vmatprep.subr.bf16.mxu0 %v5522
      %7153 = vmatpush2.bf16.msra.mxu0 %v5521
      %7154 = vmatprep.subr.bf16.mxu0 %v5518
      %7155 = vmatpush2.bf16.msra.mxu0 %v5517
      %7156 = vmatprep.subr.bf16.mxu0 %v5514
      %7157 = vmatpush2.bf16.msra.mxu0 %v5513
      %7158 = vmatprep.subr.bf16.mxu0 %v5510
      %7159 = vmatpush2.bf16.msra.mxu0 %v5509
      %7160 = vmatprep.subr.bf16.mxu0 %v5506
      %7161 = vmatpush2.bf16.msra.mxu0 %v5505
      %7162 = vmatprep.subr.bf16.mxu0 %v5502
      %7163 = vmatpush2.bf16.msra.mxu0 %v5501
      %7164 = vmatprep.subr.bf16.mxu0 %v5498
      %7165 = vmatpush2.bf16.msra.mxu0 %v5497
      %7166 = vmatprep.mubr.bf16.mxu0 %v4104
      %7167 = vmatmul.mubr.bf16.gmra.mxu0 %v4103
      %v7168 = vpop.f32.mrf.mxu0
      %v7169 = vadd.f32 %v6976, %v7168
      %v7170 = vpop.f32.mrf.mxu0
      %v7171 = vadd.f32 %v6978, %v7170
      %v7172 = vpop.f32.mrf.mxu0
      %v7173 = vadd.f32 %v6980, %v7172
      %v7174 = vpop.f32.mrf.mxu0
      %v7175 = vadd.f32 %v6982, %v7174
      %7176 = vmatprep.mubr.bf16.mxu0 %v4112
      %7177 = vmatmul.mubr.bf16.gmra.mxu0 %v4111
      %v7178 = vpop.f32.mrf.mxu0
      %v7179 = vadd.f32 %v6986, %v7178
      %v7180 = vpop.f32.mrf.mxu0
      %v7181 = vadd.f32 %v6988, %v7180
      %v7182 = vpop.f32.mrf.mxu0
      %v7183 = vadd.f32 %v6990, %v7182
      %v7184 = vpop.f32.mrf.mxu0
      %v7185 = vadd.f32 %v6992, %v7184
      %7186 = vmatprep.mubr.bf16.mxu0 %v4120
      %7187 = vmatmul.mubr.bf16.gmra.mxu0 %v4119
      %v7188 = vpop.f32.mrf.mxu0
      %v7189 = vadd.f32 %v6996, %v7188
      %v7190 = vpop.f32.mrf.mxu0
      %v7191 = vadd.f32 %v6998, %v7190
      %v7192 = vpop.f32.mrf.mxu0
      %v7193 = vadd.f32 %v7000, %v7192
      %v7194 = vpop.f32.mrf.mxu0
      %v7195 = vadd.f32 %v7002, %v7194
      %7196 = vmatprep.mubr.bf16.mxu0 %v4128
      %7197 = vmatmul.mubr.bf16.gmra.mxu0 %v4127
      %v7198 = vpop.f32.mrf.mxu0
      %v7199 = vadd.f32 %v7006, %v7198
      %v7200 = vpop.f32.mrf.mxu0
      %v7201 = vadd.f32 %v7008, %v7200
      %v7202 = vpop.f32.mrf.mxu0
      %v7203 = vadd.f32 %v7010, %v7202
      %v7204 = vpop.f32.mrf.mxu0
      %v7205 = vadd.f32 %v7012, %v7204
      %7206 = vmatprep.mubr.bf16.mxu0 %v4136
      %7207 = vmatmul.mubr.bf16.gmra.mxu0 %v4135
      %v7208 = vpop.f32.mrf.mxu0
      %v7209 = vadd.f32 %v7016, %v7208
      %v7210 = vpop.f32.mrf.mxu0
      %v7211 = vadd.f32 %v7018, %v7210
      %v7212 = vpop.f32.mrf.mxu0
      %v7213 = vadd.f32 %v7020, %v7212
      %v7214 = vpop.f32.mrf.mxu0
      %v7215 = vadd.f32 %v7022, %v7214
      %7216 = vmatprep.mubr.bf16.mxu0 %v4144
      %7217 = vmatmul.mubr.bf16.gmra.mxu0 %v4143
      %v7218 = vpop.f32.mrf.mxu0
      %v7219 = vadd.f32 %v7026, %v7218
      %v7220 = vpop.f32.mrf.mxu0
      %v7221 = vadd.f32 %v7028, %v7220
      %v7222 = vpop.f32.mrf.mxu0
      %v7223 = vadd.f32 %v7030, %v7222
      %v7224 = vpop.f32.mrf.mxu0
      %v7225 = vadd.f32 %v7032, %v7224
      %7226 = vmatprep.mubr.bf16.mxu0 %v4152
      %7227 = vmatmul.mubr.bf16.gmra.mxu0 %v4151
      %v7228 = vpop.f32.mrf.mxu0
      %v7229 = vadd.f32 %v7036, %v7228
      %v7230 = vpop.f32.mrf.mxu0
      %v7231 = vadd.f32 %v7038, %v7230
      %v7232 = vpop.f32.mrf.mxu0
      %v7233 = vadd.f32 %v7040, %v7232
      %v7234 = vpop.f32.mrf.mxu0
      %v7235 = vadd.f32 %v7042, %v7234
      %7236 = vmatprep.mubr.bf16.mxu0 %v4160
      %7237 = vmatmul.mubr.bf16.gmra.mxu0 %v4159
      %v7238 = vpop.f32.mrf.mxu0
      %v7239 = vadd.f32 %v7046, %v7238
      %v7240 = vpop.f32.mrf.mxu0
      %v7241 = vadd.f32 %v7048, %v7240
      %v7242 = vpop.f32.mrf.mxu0
      %v7243 = vadd.f32 %v7050, %v7242
      %v7244 = vpop.f32.mrf.mxu0
      %v7245 = vadd.f32 %v7052, %v7244
      %7246 = vmatprep.mubr.bf16.mxu0 %v4168
      %7247 = vmatmul.mubr.bf16.gmra.mxu0 %v4167
      %v7248 = vpop.f32.mrf.mxu0
      %v7249 = vadd.f32 %v7056, %v7248
      %v7250 = vpop.f32.mrf.mxu0
      %v7251 = vadd.f32 %v7058, %v7250
      %v7252 = vpop.f32.mrf.mxu0
      %v7253 = vadd.f32 %v7060, %v7252
      %v7254 = vpop.f32.mrf.mxu0
      %v7255 = vadd.f32 %v7062, %v7254
      %7256 = vmatprep.mubr.bf16.mxu0 %v4176
      %7257 = vmatmul.mubr.bf16.gmra.mxu0 %v4175
      %v7258 = vpop.f32.mrf.mxu0
      %v7259 = vadd.f32 %v7066, %v7258
      %v7260 = vpop.f32.mrf.mxu0
      %v7261 = vadd.f32 %v7068, %v7260
      %v7262 = vpop.f32.mrf.mxu0
      %v7263 = vadd.f32 %v7070, %v7262
      %v7264 = vpop.f32.mrf.mxu0
      %v7265 = vadd.f32 %v7072, %v7264
      %7266 = vmatprep.mubr.bf16.mxu0 %v4184
      %7267 = vmatmul.mubr.bf16.gmra.mxu0 %v4183
      %v7268 = vpop.f32.mrf.mxu0
      %v7269 = vadd.f32 %v7076, %v7268
      %v7270 = vpop.f32.mrf.mxu0
      %v7271 = vadd.f32 %v7078, %v7270
      %v7272 = vpop.f32.mrf.mxu0
      %v7273 = vadd.f32 %v7080, %v7272
      %v7274 = vpop.f32.mrf.mxu0
      %v7275 = vadd.f32 %v7082, %v7274
      %7276 = vmatprep.mubr.bf16.mxu0 %v4192
      %7277 = vmatmul.mubr.bf16.gmra.mxu0 %v4191
      %v7278 = vpop.f32.mrf.mxu0
      %v7279 = vadd.f32 %v7086, %v7278
      %v7280 = vpop.f32.mrf.mxu0
      %v7281 = vadd.f32 %v7088, %v7280
      %v7282 = vpop.f32.mrf.mxu0
      %v7283 = vadd.f32 %v7090, %v7282
      %v7284 = vpop.f32.mrf.mxu0
      %v7285 = vadd.f32 %v7092, %v7284
      %7286 = vmatprep.mubr.bf16.mxu0 %v4200
      %7287 = vmatmul.mubr.bf16.gmra.mxu0 %v4199
      %v7288 = vpop.f32.mrf.mxu0
      %v7289 = vadd.f32 %v7096, %v7288
      %v7290 = vpop.f32.mrf.mxu0
      %v7291 = vadd.f32 %v7098, %v7290
      %v7292 = vpop.f32.mrf.mxu0
      %v7293 = vadd.f32 %v7100, %v7292
      %v7294 = vpop.f32.mrf.mxu0
      %v7295 = vadd.f32 %v7102, %v7294
      %7296 = vmatprep.mubr.bf16.mxu0 %v4208
      %7297 = vmatmul.mubr.bf16.gmra.mxu0 %v4207
      %v7298 = vpop.f32.mrf.mxu0
      %v7299 = vadd.f32 %v7106, %v7298
      %v7300 = vpop.f32.mrf.mxu0
      %v7301 = vadd.f32 %v7108, %v7300
      %v7302 = vpop.f32.mrf.mxu0
      %v7303 = vadd.f32 %v7110, %v7302
      %v7304 = vpop.f32.mrf.mxu0
      %v7305 = vadd.f32 %v7112, %v7304
      %7306 = vmatprep.mubr.bf16.mxu0 %v4216
      %7307 = vmatmul.mubr.bf16.gmra.mxu0 %v4215
      %v7308 = vpop.f32.mrf.mxu0
      %v7309 = vadd.f32 %v7116, %v7308
      %v7310 = vpop.f32.mrf.mxu0
      %v7311 = vadd.f32 %v7118, %v7310
      %v7312 = vpop.f32.mrf.mxu0
      %v7313 = vadd.f32 %v7120, %v7312
      %v7314 = vpop.f32.mrf.mxu0
      %v7315 = vadd.f32 %v7122, %v7314
      %7316 = vmatprep.mubr.bf16.mxu0 %v4224
      %7317 = vmatmul.mubr.bf16.gmra.mxu0 %v4223
      %v7318 = vpop.f32.mrf.mxu0
      %v7319 = vadd.f32 %v7126, %v7318
      %v7320 = vpop.f32.mrf.mxu0
      %v7321 = vadd.f32 %v7128, %v7320
      %v7322 = vpop.f32.mrf.mxu0
      %v7323 = vadd.f32 %v7130, %v7322
      %v7324 = vpop.f32.mrf.mxu0
      %v7325 = vadd.f32 %v7132, %v7324
      %7326 = vdwg.mxu0
      %v7327 = vmul.f32 %v6397, 0.5
      %v7328 = vmul.f32 %v6399, 0.5
      %v7329 = vmul.f32 %v7169, 0.5
      %v7330 = vmul.f32 %v7171, 0.5
      %v7331 = vmul.f32 %v6401, 0.5
      %v7332 = vmul.f32 %v6403, 0.5
      %v7333 = vmul.f32 %v7173, 0.5
      %v7334 = vmul.f32 %v7175, 0.5
      %v7335 = vmul.f32 %v6407, 0.5
      %v7336 = vmul.f32 %v6409, 0.5
      %v7337 = vmul.f32 %v7179, 0.5
      %v7338 = vmul.f32 %v7181, 0.5
      %v7339 = vmul.f32 %v6411, 0.5
      %v7340 = vmul.f32 %v6413, 0.5
      %v7341 = vmul.f32 %v7183, 0.5
      %v7342 = vmul.f32 %v7185, 0.5
      %v7343 = vmul.f32 %v6417, 0.5
      %v7344 = vmul.f32 %v6419, 0.5
      %v7345 = vmul.f32 %v7189, 0.5
      %v7346 = vmul.f32 %v7191, 0.5
      %v7347 = vmul.f32 %v6421, 0.5
      %v7348 = vmul.f32 %v6423, 0.5
      %v7349 = vmul.f32 %v7193, 0.5
      %v7350 = vmul.f32 %v7195, 0.5
      %v7351 = vmul.f32 %v6427, 0.5
      %v7352 = vmul.f32 %v6429, 0.5
      %v7353 = vmul.f32 %v7199, 0.5
      %v7354 = vmul.f32 %v7201, 0.5
      %v7355 = vmul.f32 %v6431, 0.5
      %v7356 = vmul.f32 %v6433, 0.5
      %v7357 = vmul.f32 %v7203, 0.5
      %v7358 = vmul.f32 %v7205, 0.5
      %v7359 = vmul.f32 %v6437, 0.5
      %v7360 = vmul.f32 %v6439, 0.5
      %v7361 = vmul.f32 %v7209, 0.5
      %v7362 = vmul.f32 %v7211, 0.5
      %v7363 = vmul.f32 %v6441, 0.5
      %v7364 = vmul.f32 %v6443, 0.5
      %v7365 = vmul.f32 %v7213, 0.5
      %v7366 = vmul.f32 %v7215, 0.5
      %v7367 = vmul.f32 %v6447, 0.5
      %v7368 = vmul.f32 %v6449, 0.5
      %v7369 = vmul.f32 %v7219, 0.5
      %v7370 = vmul.f32 %v7221, 0.5
      %v7371 = vmul.f32 %v6451, 0.5
      %v7372 = vmul.f32 %v6453, 0.5
      %v7373 = vmul.f32 %v7223, 0.5
      %v7374 = vmul.f32 %v7225, 0.5
      %v7375 = vmul.f32 %v6457, 0.5
      %v7376 = vmul.f32 %v6459, 0.5
      %v7377 = vmul.f32 %v7229, 0.5
      %v7378 = vmul.f32 %v7231, 0.5
      %v7379 = vmul.f32 %v6461, 0.5
      %v7380 = vmul.f32 %v6463, 0.5
      %v7381 = vmul.f32 %v7233, 0.5
      %v7382 = vmul.f32 %v7235, 0.5
      %v7383 = vmul.f32 %v6467, 0.5
      %v7384 = vmul.f32 %v6469, 0.5
      %v7385 = vmul.f32 %v7239, 0.5
      %v7386 = vmul.f32 %v7241, 0.5
      %v7387 = vmul.f32 %v6471, 0.5
      %v7388 = vmul.f32 %v6473, 0.5
      %v7389 = vmul.f32 %v7243, 0.5
      %v7390 = vmul.f32 %v7245, 0.5
      %v7391 = vmul.f32 %v6477, 0.5
      %v7392 = vmul.f32 %v6479, 0.5
      %v7393 = vmul.f32 %v7249, 0.5
      %v7394 = vmul.f32 %v7251, 0.5
      %v7395 = vmul.f32 %v6481, 0.5
      %v7396 = vmul.f32 %v6483, 0.5
      %v7397 = vmul.f32 %v7253, 0.5
      %v7398 = vmul.f32 %v7255, 0.5
      %v7399 = vmul.f32 %v6487, 0.5
      %v7400 = vmul.f32 %v6489, 0.5
      %v7401 = vmul.f32 %v7259, 0.5
      %v7402 = vmul.f32 %v7261, 0.5
      %v7403 = vmul.f32 %v6491, 0.5
      %v7404 = vmul.f32 %v6493, 0.5
      %v7405 = vmul.f32 %v7263, 0.5
      %v7406 = vmul.f32 %v7265, 0.5
      %v7407 = vmul.f32 %v6497, 0.5
      %v7408 = vmul.f32 %v6499, 0.5
      %v7409 = vmul.f32 %v7269, 0.5
      %v7410 = vmul.f32 %v7271, 0.5
      %v7411 = vmul.f32 %v6501, 0.5
      %v7412 = vmul.f32 %v6503, 0.5
      %v7413 = vmul.f32 %v7273, 0.5
      %v7414 = vmul.f32 %v7275, 0.5
      %v7415 = vmul.f32 %v6507, 0.5
      %v7416 = vmul.f32 %v6509, 0.5
      %v7417 = vmul.f32 %v7279, 0.5
      %v7418 = vmul.f32 %v7281, 0.5
      %v7419 = vmul.f32 %v6511, 0.5
      %v7420 = vmul.f32 %v6513, 0.5
      %v7421 = vmul.f32 %v7283, 0.5
      %v7422 = vmul.f32 %v7285, 0.5
      %v7423 = vmul.f32 %v6517, 0.5
      %v7424 = vmul.f32 %v6519, 0.5
      %v7425 = vmul.f32 %v7289, 0.5
      %v7426 = vmul.f32 %v7291, 0.5
      %v7427 = vmul.f32 %v6521, 0.5
      %v7428 = vmul.f32 %v6523, 0.5
      %v7429 = vmul.f32 %v7293, 0.5
      %v7430 = vmul.f32 %v7295, 0.5
      %v7431 = vmul.f32 %v6527, 0.5
      %v7432 = vmul.f32 %v6529, 0.5
      %v7433 = vmul.f32 %v7299, 0.5
      %v7434 = vmul.f32 %v7301, 0.5
      %v7435 = vmul.f32 %v6531, 0.5
      %v7436 = vmul.f32 %v6533, 0.5
      %v7437 = vmul.f32 %v7303, 0.5
      %v7438 = vmul.f32 %v7305, 0.5
      %v7439 = vmul.f32 %v6537, 0.5
      %v7440 = vmul.f32 %v6539, 0.5
      %v7441 = vmul.f32 %v7309, 0.5
      %v7442 = vmul.f32 %v7311, 0.5
      %v7443 = vmul.f32 %v6541, 0.5
      %v7444 = vmul.f32 %v6543, 0.5
      %v7445 = vmul.f32 %v7313, 0.5
      %v7446 = vmul.f32 %v7315, 0.5
      %v7447 = vmul.f32 %v6547, 0.5
      %v7448 = vmul.f32 %v6549, 0.5
      %v7449 = vmul.f32 %v7319, 0.5
      %v7450 = vmul.f32 %v7321, 0.5
      %v7451 = vmul.f32 %v6551, 0.5
      %v7452 = vmul.f32 %v6553, 0.5
      %v7453 = vmul.f32 %v7323, 0.5
      %v7454 = vmul.f32 %v7325, 0.5
      %v7455 = vmul.f32 %v6397, 0.70710677
      %v7456 = vmul.f32 %v6399, 0.70710677
      %v7457 = vmul.f32 %v7169, 0.70710677
      %v7458 = vmul.f32 %v7171, 0.70710677
      %v7459 = vmul.f32 %v6401, 0.70710677
      %v7460 = vmul.f32 %v6403, 0.70710677
      %v7461 = vmul.f32 %v7173, 0.70710677
      %v7462 = vmul.f32 %v7175, 0.70710677
      %v7463 = vmul.f32 %v6407, 0.70710677
      %v7464 = vmul.f32 %v6409, 0.70710677
      %v7465 = vmul.f32 %v7179, 0.70710677
      %v7466 = vmul.f32 %v7181, 0.70710677
      %v7467 = vmul.f32 %v6411, 0.70710677
      %v7468 = vmul.f32 %v6413, 0.70710677
      %v7469 = vmul.f32 %v7183, 0.70710677
      %v7470 = vmul.f32 %v7185, 0.70710677
      %v7471 = vmul.f32 %v6417, 0.70710677
      %v7472 = vmul.f32 %v6419, 0.70710677
      %v7473 = vmul.f32 %v7189, 0.70710677
      %v7474 = vmul.f32 %v7191, 0.70710677
      %v7475 = vmul.f32 %v6421, 0.70710677
      %v7476 = vmul.f32 %v6423, 0.70710677
      %v7477 = vmul.f32 %v7193, 0.70710677
      %v7478 = vmul.f32 %v7195, 0.70710677
      %v7479 = vmul.f32 %v6427, 0.70710677
      %v7480 = vmul.f32 %v6429, 0.70710677
      %v7481 = vmul.f32 %v7199, 0.70710677
      %v7482 = vmul.f32 %v7201, 0.70710677
      %v7483 = vmul.f32 %v6431, 0.70710677
      %v7484 = vmul.f32 %v6433, 0.70710677
      %v7485 = vmul.f32 %v7203, 0.70710677
      %v7486 = vmul.f32 %v7205, 0.70710677
      %v7487 = vmul.f32 %v6437, 0.70710677
      %v7488 = vmul.f32 %v6439, 0.70710677
      %v7489 = vmul.f32 %v7209, 0.70710677
      %v7490 = vmul.f32 %v7211, 0.70710677
      %v7491 = vmul.f32 %v6441, 0.70710677
      %v7492 = vmul.f32 %v6443, 0.70710677
      %v7493 = vmul.f32 %v7213, 0.70710677
      %v7494 = vmul.f32 %v7215, 0.70710677
      %v7495 = vmul.f32 %v6447, 0.70710677
      %v7496 = vmul.f32 %v6449, 0.70710677
      %v7497 = vmul.f32 %v7219, 0.70710677
      %v7498 = vmul.f32 %v7221, 0.70710677
      %v7499 = vmul.f32 %v6451, 0.70710677
      %v7500 = vmul.f32 %v6453, 0.70710677
      %v7501 = vmul.f32 %v7223, 0.70710677
      %v7502 = vmul.f32 %v7225, 0.70710677
      %v7503 = vmul.f32 %v6457, 0.70710677
      %v7504 = vmul.f32 %v6459, 0.70710677
      %v7505 = vmul.f32 %v7229, 0.70710677
      %v7506 = vmul.f32 %v7231, 0.70710677
      %v7507 = vmul.f32 %v6461, 0.70710677
      %v7508 = vmul.f32 %v6463, 0.70710677
      %v7509 = vmul.f32 %v7233, 0.70710677
      %v7510 = vmul.f32 %v7235, 0.70710677
      %v7511 = vmul.f32 %v6467, 0.70710677
      %v7512 = vmul.f32 %v6469, 0.70710677
      %v7513 = vmul.f32 %v7239, 0.70710677
      %v7514 = vmul.f32 %v7241, 0.70710677
      %v7515 = vmul.f32 %v6471, 0.70710677
      %v7516 = vmul.f32 %v6473, 0.70710677
      %v7517 = vmul.f32 %v7243, 0.70710677
      %v7518 = vmul.f32 %v7245, 0.70710677
      %v7519 = vmul.f32 %v6477, 0.70710677
      %v7520 = vmul.f32 %v6479, 0.70710677
      %v7521 = vmul.f32 %v7249, 0.70710677
      %v7522 = vmul.f32 %v7251, 0.70710677
      %v7523 = vmul.f32 %v6481, 0.70710677
      %v7524 = vmul.f32 %v6483, 0.70710677
      %v7525 = vmul.f32 %v7253, 0.70710677
      %v7526 = vmul.f32 %v7255, 0.70710677
      %v7527 = vmul.f32 %v6487, 0.70710677
      %v7528 = vmul.f32 %v6489, 0.70710677
      %v7529 = vmul.f32 %v7259, 0.70710677
      %v7530 = vmul.f32 %v7261, 0.70710677
      %v7531 = vmul.f32 %v6491, 0.70710677
      %v7532 = vmul.f32 %v6493, 0.70710677
      %v7533 = vmul.f32 %v7263, 0.70710677
      %v7534 = vmul.f32 %v7265, 0.70710677
      %v7535 = vmul.f32 %v6497, 0.70710677
      %v7536 = vmul.f32 %v6499, 0.70710677
      %v7537 = vmul.f32 %v7269, 0.70710677
      %v7538 = vmul.f32 %v7271, 0.70710677
      %v7539 = vmul.f32 %v6501, 0.70710677
      %v7540 = vmul.f32 %v6503, 0.70710677
      %v7541 = vmul.f32 %v7273, 0.70710677
      %v7542 = vmul.f32 %v7275, 0.70710677
      %v7543 = vmul.f32 %v6507, 0.70710677
      %v7544 = vmul.f32 %v6509, 0.70710677
      %v7545 = vmul.f32 %v7279, 0.70710677
      %v7546 = vmul.f32 %v7281, 0.70710677
      %v7547 = vmul.f32 %v6511, 0.70710677
      %v7548 = vmul.f32 %v6513, 0.70710677
      %v7549 = vmul.f32 %v7283, 0.70710677
      %v7550 = vmul.f32 %v7285, 0.70710677
      %v7551 = vmul.f32 %v6517, 0.70710677
      %v7552 = vmul.f32 %v6519, 0.70710677
      %v7553 = vmul.f32 %v7289, 0.70710677
      %v7554 = vmul.f32 %v7291, 0.70710677
      %v7555 = vmul.f32 %v6521, 0.70710677
      %v7556 = vmul.f32 %v6523, 0.70710677
      %v7557 = vmul.f32 %v7293, 0.70710677
      %v7558 = vmul.f32 %v7295, 0.70710677
      %v7559 = vmul.f32 %v6527, 0.70710677
      %v7560 = vmul.f32 %v6529, 0.70710677
      %v7561 = vmul.f32 %v7299, 0.70710677
      %v7562 = vmul.f32 %v7301, 0.70710677
      %v7563 = vmul.f32 %v6531, 0.70710677
      %v7564 = vmul.f32 %v6533, 0.70710677
      %v7565 = vmul.f32 %v7303, 0.70710677
      %v7566 = vmul.f32 %v7305, 0.70710677
      %v7567 = vmul.f32 %v6537, 0.70710677
      %v7568 = vmul.f32 %v6539, 0.70710677
      %v7569 = vmul.f32 %v7309, 0.70710677
      %v7570 = vmul.f32 %v7311, 0.70710677
      %v7571 = vmul.f32 %v6541, 0.70710677
      %v7572 = vmul.f32 %v6543, 0.70710677
      %v7573 = vmul.f32 %v7313, 0.70710677
      %v7574 = vmul.f32 %v7315, 0.70710677
      %v7575 = vmul.f32 %v6547, 0.70710677
      %v7576 = vmul.f32 %v6549, 0.70710677
      %v7577 = vmul.f32 %v7319, 0.70710677
      %v7578 = vmul.f32 %v7321, 0.70710677
      %v7579 = vmul.f32 %v6551, 0.70710677
      %v7580 = vmul.f32 %v6553, 0.70710677
      %v7581 = vmul.f32 %v7323, 0.70710677
      %v7582 = vmul.f32 %v7325, 0.70710677
      %v7583 = verf.f32.pop %v7455
      %v7584 = verf.f32.pop %v7456
      %v7585 = verf.f32.pop %v7457
      %v7586 = verf.f32.pop %v7458
      %v7587 = verf.f32.pop %v7459
      %v7588 = verf.f32.pop %v7460
      %v7589 = verf.f32.pop %v7461
      %v7590 = verf.f32.pop %v7462
      %v7591 = verf.f32.pop %v7463
      %v7592 = verf.f32.pop %v7464
      %v7593 = verf.f32.pop %v7465
      %v7594 = verf.f32.pop %v7466
      %v7595 = verf.f32.pop %v7467
      %v7596 = verf.f32.pop %v7468
      %v7597 = verf.f32.pop %v7469
      %v7598 = verf.f32.pop %v7470
      %v7599 = verf.f32.pop %v7471
      %v7600 = verf.f32.pop %v7472
      %v7601 = verf.f32.pop %v7473
      %v7602 = verf.f32.pop %v7474
      %v7603 = verf.f32.pop %v7475
      %v7604 = verf.f32.pop %v7476
      %v7605 = verf.f32.pop %v7477
      %v7606 = verf.f32.pop %v7478
      %v7607 = verf.f32.pop %v7479
      %v7608 = verf.f32.pop %v7480
      %v7609 = verf.f32.pop %v7481
      %v7610 = verf.f32.pop %v7482
      %v7611 = verf.f32.pop %v7483
      %v7612 = verf.f32.pop %v7484
      %v7613 = verf.f32.pop %v7485
      %v7614 = verf.f32.pop %v7486
      %v7615 = verf.f32.pop %v7487
      %v7616 = verf.f32.pop %v7488
      %v7617 = verf.f32.pop %v7489
      %v7618 = verf.f32.pop %v7490
      %v7619 = verf.f32.pop %v7491
      %v7620 = verf.f32.pop %v7492
      %v7621 = verf.f32.pop %v7493
      %v7622 = verf.f32.pop %v7494
      %v7623 = verf.f32.pop %v7495
      %v7624 = verf.f32.pop %v7496
      %v7625 = verf.f32.pop %v7497
      %v7626 = verf.f32.pop %v7498
      %v7627 = verf.f32.pop %v7499
      %v7628 = verf.f32.pop %v7500
      %v7629 = verf.f32.pop %v7501
      %v7630 = verf.f32.pop %v7502
      %v7631 = verf.f32.pop %v7503
      %v7632 = verf.f32.pop %v7504
      %v7633 = verf.f32.pop %v7505
      %v7634 = verf.f32.pop %v7506
      %v7635 = verf.f32.pop %v7507
      %v7636 = verf.f32.pop %v7508
      %v7637 = verf.f32.pop %v7509
      %v7638 = verf.f32.pop %v7510
      %v7639 = verf.f32.pop %v7511
      %v7640 = verf.f32.pop %v7512
      %v7641 = verf.f32.pop %v7513
      %v7642 = verf.f32.pop %v7514
      %v7643 = verf.f32.pop %v7515
      %v7644 = verf.f32.pop %v7516
      %v7645 = verf.f32.pop %v7517
      %v7646 = verf.f32.pop %v7518
      %v7647 = verf.f32.pop %v7519
      %v7648 = verf.f32.pop %v7520
      %v7649 = verf.f32.pop %v7521
      %v7650 = verf.f32.pop %v7522
      %v7651 = verf.f32.pop %v7523
      %v7652 = verf.f32.pop %v7524
      %v7653 = verf.f32.pop %v7525
      %v7654 = verf.f32.pop %v7526
      %v7655 = verf.f32.pop %v7527
      %v7656 = verf.f32.pop %v7528
      %v7657 = verf.f32.pop %v7529
      %v7658 = verf.f32.pop %v7530
      %v7659 = verf.f32.pop %v7531
      %v7660 = verf.f32.pop %v7532
      %v7661 = verf.f32.pop %v7533
      %v7662 = verf.f32.pop %v7534
      %v7663 = verf.f32.pop %v7535
      %v7664 = verf.f32.pop %v7536
      %v7665 = verf.f32.pop %v7537
      %v7666 = verf.f32.pop %v7538
      %v7667 = verf.f32.pop %v7539
      %v7668 = verf.f32.pop %v7540
      %v7669 = verf.f32.pop %v7541
      %v7670 = verf.f32.pop %v7542
      %v7671 = verf.f32.pop %v7543
      %v7672 = verf.f32.pop %v7544
      %v7673 = verf.f32.pop %v7545
      %v7674 = verf.f32.pop %v7546
      %v7675 = verf.f32.pop %v7547
      %v7676 = verf.f32.pop %v7548
      %v7677 = verf.f32.pop %v7549
      %v7678 = verf.f32.pop %v7550
      %v7679 = verf.f32.pop %v7551
      %v7680 = verf.f32.pop %v7552
      %v7681 = verf.f32.pop %v7553
      %v7682 = verf.f32.pop %v7554
      %v7683 = verf.f32.pop %v7555
      %v7684 = verf.f32.pop %v7556
      %v7685 = verf.f32.pop %v7557
      %v7686 = verf.f32.pop %v7558
      %v7687 = verf.f32.pop %v7559
      %v7688 = verf.f32.pop %v7560
      %v7689 = verf.f32.pop %v7561
      %v7690 = verf.f32.pop %v7562
      %v7691 = verf.f32.pop %v7563
      %v7692 = verf.f32.pop %v7564
      %v7693 = verf.f32.pop %v7565
      %v7694 = verf.f32.pop %v7566
      %v7695 = verf.f32.pop %v7567
      %v7696 = verf.f32.pop %v7568
      %v7697 = verf.f32.pop %v7569
      %v7698 = verf.f32.pop %v7570
      %v7699 = verf.f32.pop %v7571
      %v7700 = verf.f32.pop %v7572
      %v7701 = verf.f32.pop %v7573
      %v7702 = verf.f32.pop %v7574
      %v7703 = verf.f32.pop %v7575
      %v7704 = verf.f32.pop %v7576
      %v7705 = verf.f32.pop %v7577
      %v7706 = verf.f32.pop %v7578
      %v7707 = verf.f32.pop %v7579
      %v7708 = verf.f32.pop %v7580
      %v7709 = verf.f32.pop %v7581
      %v7710 = verf.f32.pop %v7582
      %v7711 = vadd.f32 %v7583, 1.0
      %v7712 = vadd.f32 %v7584, 1.0
      %v7713 = vadd.f32 %v7585, 1.0
      %v7714 = vadd.f32 %v7586, 1.0
      %v7715 = vadd.f32 %v7587, 1.0
      %v7716 = vadd.f32 %v7588, 1.0
      %v7717 = vadd.f32 %v7589, 1.0
      %v7718 = vadd.f32 %v7590, 1.0
      %v7719 = vadd.f32 %v7591, 1.0
      %v7720 = vadd.f32 %v7592, 1.0
      %v7721 = vadd.f32 %v7593, 1.0
      %v7722 = vadd.f32 %v7594, 1.0
      %v7723 = vadd.f32 %v7595, 1.0
      %v7724 = vadd.f32 %v7596, 1.0
      %v7725 = vadd.f32 %v7597, 1.0
      %v7726 = vadd.f32 %v7598, 1.0
      %v7727 = vadd.f32 %v7599, 1.0
      %v7728 = vadd.f32 %v7600, 1.0
      %v7729 = vadd.f32 %v7601, 1.0
      %v7730 = vadd.f32 %v7602, 1.0
      %v7731 = vadd.f32 %v7603, 1.0
      %v7732 = vadd.f32 %v7604, 1.0
      %v7733 = vadd.f32 %v7605, 1.0
      %v7734 = vadd.f32 %v7606, 1.0
      %v7735 = vadd.f32 %v7607, 1.0
      %v7736 = vadd.f32 %v7608, 1.0
      %v7737 = vadd.f32 %v7609, 1.0
      %v7738 = vadd.f32 %v7610, 1.0
      %v7739 = vadd.f32 %v7611, 1.0
      %v7740 = vadd.f32 %v7612, 1.0
      %v7741 = vadd.f32 %v7613, 1.0
      %v7742 = vadd.f32 %v7614, 1.0
      %v7743 = vadd.f32 %v7615, 1.0
      %v7744 = vadd.f32 %v7616, 1.0
      %v7745 = vadd.f32 %v7617, 1.0
      %v7746 = vadd.f32 %v7618, 1.0
      %v7747 = vadd.f32 %v7619, 1.0
      %v7748 = vadd.f32 %v7620, 1.0
      %v7749 = vadd.f32 %v7621, 1.0
      %v7750 = vadd.f32 %v7622, 1.0
      %v7751 = vadd.f32 %v7623, 1.0
      %v7752 = vadd.f32 %v7624, 1.0
      %v7753 = vadd.f32 %v7625, 1.0
      %v7754 = vadd.f32 %v7626, 1.0
      %v7755 = vadd.f32 %v7627, 1.0
      %v7756 = vadd.f32 %v7628, 1.0
      %v7757 = vadd.f32 %v7629, 1.0
      %v7758 = vadd.f32 %v7630, 1.0
      %v7759 = vadd.f32 %v7631, 1.0
      %v7760 = vadd.f32 %v7632, 1.0
      %v7761 = vadd.f32 %v7633, 1.0
      %v7762 = vadd.f32 %v7634, 1.0
      %v7763 = vadd.f32 %v7635, 1.0
      %v7764 = vadd.f32 %v7636, 1.0
      %v7765 = vadd.f32 %v7637, 1.0
      %v7766 = vadd.f32 %v7638, 1.0
      %v7767 = vadd.f32 %v7639, 1.0
      %v7768 = vadd.f32 %v7640, 1.0
      %v7769 = vadd.f32 %v7641, 1.0
      %v7770 = vadd.f32 %v7642, 1.0
      %v7771 = vadd.f32 %v7643, 1.0
      %v7772 = vadd.f32 %v7644, 1.0
      %v7773 = vadd.f32 %v7645, 1.0
      %v7774 = vadd.f32 %v7646, 1.0
      %v7775 = vadd.f32 %v7647, 1.0
      %v7776 = vadd.f32 %v7648, 1.0
      %v7777 = vadd.f32 %v7649, 1.0
      %v7778 = vadd.f32 %v7650, 1.0
      %v7779 = vadd.f32 %v7651, 1.0
      %v7780 = vadd.f32 %v7652, 1.0
      %v7781 = vadd.f32 %v7653, 1.0
      %v7782 = vadd.f32 %v7654, 1.0
      %v7783 = vadd.f32 %v7655, 1.0
      %v7784 = vadd.f32 %v7656, 1.0
      %v7785 = vadd.f32 %v7657, 1.0
      %v7786 = vadd.f32 %v7658, 1.0
      %v7787 = vadd.f32 %v7659, 1.0
      %v7788 = vadd.f32 %v7660, 1.0
      %v7789 = vadd.f32 %v7661, 1.0
      %v7790 = vadd.f32 %v7662, 1.0
      %v7791 = vadd.f32 %v7663, 1.0
      %v7792 = vadd.f32 %v7664, 1.0
      %v7793 = vadd.f32 %v7665, 1.0
      %v7794 = vadd.f32 %v7666, 1.0
      %v7795 = vadd.f32 %v7667, 1.0
      %v7796 = vadd.f32 %v7668, 1.0
      %v7797 = vadd.f32 %v7669, 1.0
      %v7798 = vadd.f32 %v7670, 1.0
      %v7799 = vadd.f32 %v7671, 1.0
      %v7800 = vadd.f32 %v7672, 1.0
      %v7801 = vadd.f32 %v7673, 1.0
      %v7802 = vadd.f32 %v7674, 1.0
      %v7803 = vadd.f32 %v7675, 1.0
      %v7804 = vadd.f32 %v7676, 1.0
      %v7805 = vadd.f32 %v7677, 1.0
      %v7806 = vadd.f32 %v7678, 1.0
      %v7807 = vadd.f32 %v7679, 1.0
      %v7808 = vadd.f32 %v7680, 1.0
      %v7809 = vadd.f32 %v7681, 1.0
      %v7810 = vadd.f32 %v7682, 1.0
      %v7811 = vadd.f32 %v7683, 1.0
      %v7812 = vadd.f32 %v7684, 1.0
      %v7813 = vadd.f32 %v7685, 1.0
      %v7814 = vadd.f32 %v7686, 1.0
      %v7815 = vadd.f32 %v7687, 1.0
      %v7816 = vadd.f32 %v7688, 1.0
      %v7817 = vadd.f32 %v7689, 1.0
      %v7818 = vadd.f32 %v7690, 1.0
      %v7819 = vadd.f32 %v7691, 1.0
      %v7820 = vadd.f32 %v7692, 1.0
      %v7821 = vadd.f32 %v7693, 1.0
      %v7822 = vadd.f32 %v7694, 1.0
      %v7823 = vadd.f32 %v7695, 1.0
      %v7824 = vadd.f32 %v7696, 1.0
      %v7825 = vadd.f32 %v7697, 1.0
      %v7826 = vadd.f32 %v7698, 1.0
      %v7827 = vadd.f32 %v7699, 1.0
      %v7828 = vadd.f32 %v7700, 1.0
      %v7829 = vadd.f32 %v7701, 1.0
      %v7830 = vadd.f32 %v7702, 1.0
      %v7831 = vadd.f32 %v7703, 1.0
      %v7832 = vadd.f32 %v7704, 1.0
      %v7833 = vadd.f32 %v7705, 1.0
      %v7834 = vadd.f32 %v7706, 1.0
      %v7835 = vadd.f32 %v7707, 1.0
      %v7836 = vadd.f32 %v7708, 1.0
      %v7837 = vadd.f32 %v7709, 1.0
      %v7838 = vadd.f32 %v7710, 1.0
      %v7839 = vmul.f32 %v7327, %v7711
      %v7840 = vmul.f32 %v7328, %v7712
      %v7841 = vmul.f32 %v7329, %v7713
      %v7842 = vmul.f32 %v7330, %v7714
      %v7843 = vmul.f32 %v7331, %v7715
      %v7844 = vmul.f32 %v7332, %v7716
      %v7845 = vmul.f32 %v7333, %v7717
      %v7846 = vmul.f32 %v7334, %v7718
      %v7847 = vmul.f32 %v7335, %v7719
      %v7848 = vmul.f32 %v7336, %v7720
      %v7849 = vmul.f32 %v7337, %v7721
      %v7850 = vmul.f32 %v7338, %v7722
      %v7851 = vmul.f32 %v7339, %v7723
      %v7852 = vmul.f32 %v7340, %v7724
      %v7853 = vmul.f32 %v7341, %v7725
      %v7854 = vmul.f32 %v7342, %v7726
      %v7855 = vmul.f32 %v7343, %v7727
      %v7856 = vmul.f32 %v7344, %v7728
      %v7857 = vmul.f32 %v7345, %v7729
      %v7858 = vmul.f32 %v7346, %v7730
      %v7859 = vmul.f32 %v7347, %v7731
      %v7860 = vmul.f32 %v7348, %v7732
      %v7861 = vmul.f32 %v7349, %v7733
      %v7862 = vmul.f32 %v7350, %v7734
      %v7863 = vmul.f32 %v7351, %v7735
      %v7864 = vmul.f32 %v7352, %v7736
      %v7865 = vmul.f32 %v7353, %v7737
      %v7866 = vmul.f32 %v7354, %v7738
      %v7867 = vmul.f32 %v7355, %v7739
      %v7868 = vmul.f32 %v7356, %v7740
      %v7869 = vmul.f32 %v7357, %v7741
      %v7870 = vmul.f32 %v7358, %v7742
      %v7871 = vmul.f32 %v7359, %v7743
      %v7872 = vmul.f32 %v7360, %v7744
      %v7873 = vmul.f32 %v7361, %v7745
      %v7874 = vmul.f32 %v7362, %v7746
      %v7875 = vmul.f32 %v7363, %v7747
      %v7876 = vmul.f32 %v7364, %v7748
      %v7877 = vmul.f32 %v7365, %v7749
      %v7878 = vmul.f32 %v7366, %v7750
      %v7879 = vmul.f32 %v7367, %v7751
      %v7880 = vmul.f32 %v7368, %v7752
      %v7881 = vmul.f32 %v7369, %v7753
      %v7882 = vmul.f32 %v7370, %v7754
      %v7883 = vmul.f32 %v7371, %v7755
      %v7884 = vmul.f32 %v7372, %v7756
      %v7885 = vmul.f32 %v7373, %v7757
      %v7886 = vmul.f32 %v7374, %v7758
      %v7887 = vmul.f32 %v7375, %v7759
      %v7888 = vmul.f32 %v7376, %v7760
      %v7889 = vmul.f32 %v7377, %v7761
      %v7890 = vmul.f32 %v7378, %v7762
      %v7891 = vmul.f32 %v7379, %v7763
      %v7892 = vmul.f32 %v7380, %v7764
      %v7893 = vmul.f32 %v7381, %v7765
      %v7894 = vmul.f32 %v7382, %v7766
      %v7895 = vmul.f32 %v7383, %v7767
      %v7896 = vmul.f32 %v7384, %v7768
      %v7897 = vmul.f32 %v7385, %v7769
      %v7898 = vmul.f32 %v7386, %v7770
      %v7899 = vmul.f32 %v7387, %v7771
      %v7900 = vmul.f32 %v7388, %v7772
      %v7901 = vmul.f32 %v7389, %v7773
      %v7902 = vmul.f32 %v7390, %v7774
      %v7903 = vmul.f32 %v7391, %v7775
      %v7904 = vmul.f32 %v7392, %v7776
      %v7905 = vmul.f32 %v7393, %v7777
      %v7906 = vmul.f32 %v7394, %v7778
      %v7907 = vmul.f32 %v7395, %v7779
      %v7908 = vmul.f32 %v7396, %v7780
      %v7909 = vmul.f32 %v7397, %v7781
      %v7910 = vmul.f32 %v7398, %v7782
      %v7911 = vmul.f32 %v7399, %v7783
      %v7912 = vmul.f32 %v7400, %v7784
      %v7913 = vmul.f32 %v7401, %v7785
      %v7914 = vmul.f32 %v7402, %v7786
      %v7915 = vmul.f32 %v7403, %v7787
      %v7916 = vmul.f32 %v7404, %v7788
      %v7917 = vmul.f32 %v7405, %v7789
      %v7918 = vmul.f32 %v7406, %v7790
      %v7919 = vmul.f32 %v7407, %v7791
      %v7920 = vmul.f32 %v7408, %v7792
      %v7921 = vmul.f32 %v7409, %v7793
      %v7922 = vmul.f32 %v7410, %v7794
      %v7923 = vmul.f32 %v7411, %v7795
      %v7924 = vmul.f32 %v7412, %v7796
      %v7925 = vmul.f32 %v7413, %v7797
      %v7926 = vmul.f32 %v7414, %v7798
      %v7927 = vmul.f32 %v7415, %v7799
      %v7928 = vmul.f32 %v7416, %v7800
      %v7929 = vmul.f32 %v7417, %v7801
      %v7930 = vmul.f32 %v7418, %v7802
      %v7931 = vmul.f32 %v7419, %v7803
      %v7932 = vmul.f32 %v7420, %v7804
      %v7933 = vmul.f32 %v7421, %v7805
      %v7934 = vmul.f32 %v7422, %v7806
      %v7935 = vmul.f32 %v7423, %v7807
      %v7936 = vmul.f32 %v7424, %v7808
      %v7937 = vmul.f32 %v7425, %v7809
      %v7938 = vmul.f32 %v7426, %v7810
      %v7939 = vmul.f32 %v7427, %v7811
      %v7940 = vmul.f32 %v7428, %v7812
      %v7941 = vmul.f32 %v7429, %v7813
      %v7942 = vmul.f32 %v7430, %v7814
      %v7943 = vmul.f32 %v7431, %v7815
      %v7944 = vmul.f32 %v7432, %v7816
      %v7945 = vmul.f32 %v7433, %v7817
      %v7946 = vmul.f32 %v7434, %v7818
      %v7947 = vmul.f32 %v7435, %v7819
      %v7948 = vmul.f32 %v7436, %v7820
      %v7949 = vmul.f32 %v7437, %v7821
      %v7950 = vmul.f32 %v7438, %v7822
      %v7951 = vmul.f32 %v7439, %v7823
      %v7952 = vmul.f32 %v7440, %v7824
      %v7953 = vmul.f32 %v7441, %v7825
      %v7954 = vmul.f32 %v7442, %v7826
      %v7955 = vmul.f32 %v7443, %v7827
      %v7956 = vmul.f32 %v7444, %v7828
      %v7957 = vmul.f32 %v7445, %v7829
      %v7958 = vmul.f32 %v7446, %v7830
      %v7959 = vmul.f32 %v7447, %v7831
      %v7960 = vmul.f32 %v7448, %v7832
      %v7961 = vmul.f32 %v7449, %v7833
      %v7962 = vmul.f32 %v7450, %v7834
      %v7963 = vmul.f32 %v7451, %v7835
      %v7964 = vmul.f32 %v7452, %v7836
      %v7965 = vmul.f32 %v7453, %v7837
      %v7966 = vmul.f32 %v7454, %v7838
      %v7967 = vadd.f32 %v7839, %v7840
      %v7968 = vadd.f32 %v7967, %v7841
      %v7969 = vadd.f32 %v7968, %v7842
      %7970 = vadd.xlane.f32.xlu0 %v7969
      %v7971 = vpop.xlane.xlu0 %7970
      %v7972 = vadd.f32 %v7843, %v7844
      %v7973 = vadd.f32 %v7972, %v7845
      %v7974 = vadd.f32 %v7973, %v7846
      %7975 = vadd.xlane.f32.xlu0 %v7974
      %v7976 = vpop.xlane.xlu0 %7975
      %v7977 = vadd.f32 %v7847, %v7848
      %v7978 = vadd.f32 %v7977, %v7849
      %v7979 = vadd.f32 %v7978, %v7850
      %7980 = vadd.xlane.f32.xlu0 %v7979
      %v7981 = vpop.xlane.xlu0 %7980
      %v7982 = vadd.f32 %v7851, %v7852
      %v7983 = vadd.f32 %v7982, %v7853
      %v7984 = vadd.f32 %v7983, %v7854
      %7985 = vadd.xlane.f32.xlu0 %v7984
      %v7986 = vpop.xlane.xlu0 %7985
      %v7987 = vadd.f32 %v7855, %v7856
      %v7988 = vadd.f32 %v7987, %v7857
      %v7989 = vadd.f32 %v7988, %v7858
      %7990 = vadd.xlane.f32.xlu0 %v7989
      %v7991 = vpop.xlane.xlu0 %7990
      %v7992 = vadd.f32 %v7859, %v7860
      %v7993 = vadd.f32 %v7992, %v7861
      %v7994 = vadd.f32 %v7993, %v7862
      %7995 = vadd.xlane.f32.xlu0 %v7994
      %v7996 = vpop.xlane.xlu0 %7995
      %v7997 = vadd.f32 %v7863, %v7864
      %v7998 = vadd.f32 %v7997, %v7865
      %v7999 = vadd.f32 %v7998, %v7866
      %8000 = vadd.xlane.f32.xlu0 %v7999
      %v8001 = vpop.xlane.xlu0 %8000
      %v8002 = vadd.f32 %v7867, %v7868
      %v8003 = vadd.f32 %v8002, %v7869
      %v8004 = vadd.f32 %v8003, %v7870
      %8005 = vadd.xlane.f32.xlu0 %v8004
      %v8006 = vpop.xlane.xlu0 %8005
      %v8007 = vadd.f32 %v7871, %v7872
      %v8008 = vadd.f32 %v8007, %v7873
      %v8009 = vadd.f32 %v8008, %v7874
      %8010 = vadd.xlane.f32.xlu0 %v8009
      %v8011 = vpop.xlane.xlu0 %8010
      %v8012 = vadd.f32 %v7875, %v7876
      %v8013 = vadd.f32 %v8012, %v7877
      %v8014 = vadd.f32 %v8013, %v7878
      %8015 = vadd.xlane.f32.xlu0 %v8014
      %v8016 = vpop.xlane.xlu0 %8015
      %v8017 = vadd.f32 %v7879, %v7880
      %v8018 = vadd.f32 %v8017, %v7881
      %v8019 = vadd.f32 %v8018, %v7882
      %8020 = vadd.xlane.f32.xlu0 %v8019
      %v8021 = vpop.xlane.xlu0 %8020
      %v8022 = vadd.f32 %v7883, %v7884
      %v8023 = vadd.f32 %v8022, %v7885
      %v8024 = vadd.f32 %v8023, %v7886
      %8025 = vadd.xlane.f32.xlu0 %v8024
      %v8026 = vpop.xlane.xlu0 %8025
      %v8027 = vadd.f32 %v7887, %v7888
      %v8028 = vadd.f32 %v8027, %v7889
      %v8029 = vadd.f32 %v8028, %v7890
      %8030 = vadd.xlane.f32.xlu0 %v8029
      %v8031 = vpop.xlane.xlu0 %8030
      %v8032 = vadd.f32 %v7891, %v7892
      %v8033 = vadd.f32 %v8032, %v7893
      %v8034 = vadd.f32 %v8033, %v7894
      %8035 = vadd.xlane.f32.xlu0 %v8034
      %v8036 = vpop.xlane.xlu0 %8035
      %v8037 = vadd.f32 %v7895, %v7896
      %v8038 = vadd.f32 %v8037, %v7897
      %v8039 = vadd.f32 %v8038, %v7898
      %8040 = vadd.xlane.f32.xlu0 %v8039
      %v8041 = vpop.xlane.xlu0 %8040
      %v8042 = vadd.f32 %v7899, %v7900
      %v8043 = vadd.f32 %v8042, %v7901
      %v8044 = vadd.f32 %v8043, %v7902
      %8045 = vadd.xlane.f32.xlu0 %v8044
      %v8046 = vpop.xlane.xlu0 %8045
      %v8047 = vadd.f32 %v7903, %v7904
      %v8048 = vadd.f32 %v8047, %v7905
      %v8049 = vadd.f32 %v8048, %v7906
      %8050 = vadd.xlane.f32.xlu0 %v8049
      %v8051 = vpop.xlane.xlu0 %8050
      %v8052 = vadd.f32 %v7907, %v7908
      %v8053 = vadd.f32 %v8052, %v7909
      %v8054 = vadd.f32 %v8053, %v7910
      %8055 = vadd.xlane.f32.xlu0 %v8054
      %v8056 = vpop.xlane.xlu0 %8055
      %v8057 = vadd.f32 %v7911, %v7912
      %v8058 = vadd.f32 %v8057, %v7913
      %v8059 = vadd.f32 %v8058, %v7914
      %8060 = vadd.xlane.f32.xlu0 %v8059
      %v8061 = vpop.xlane.xlu0 %8060
      %v8062 = vadd.f32 %v7915, %v7916
      %v8063 = vadd.f32 %v8062, %v7917
      %v8064 = vadd.f32 %v8063, %v7918
      %8065 = vadd.xlane.f32.xlu0 %v8064
      %v8066 = vpop.xlane.xlu0 %8065
      %v8067 = vadd.f32 %v7919, %v7920
      %v8068 = vadd.f32 %v8067, %v7921
      %v8069 = vadd.f32 %v8068, %v7922
      %8070 = vadd.xlane.f32.xlu0 %v8069
      %v8071 = vpop.xlane.xlu0 %8070
      %v8072 = vadd.f32 %v7923, %v7924
      %v8073 = vadd.f32 %v8072, %v7925
      %v8074 = vadd.f32 %v8073, %v7926
      %8075 = vadd.xlane.f32.xlu0 %v8074
      %v8076 = vpop.xlane.xlu0 %8075
      %v8077 = vadd.f32 %v7927, %v7928
      %v8078 = vadd.f32 %v8077, %v7929
      %v8079 = vadd.f32 %v8078, %v7930
      %8080 = vadd.xlane.f32.xlu0 %v8079
      %v8081 = vpop.xlane.xlu0 %8080
      %v8082 = vadd.f32 %v7931, %v7932
      %v8083 = vadd.f32 %v8082, %v7933
      %v8084 = vadd.f32 %v8083, %v7934
      %8085 = vadd.xlane.f32.xlu0 %v8084
      %v8086 = vpop.xlane.xlu0 %8085
      %v8087 = vadd.f32 %v7935, %v7936
      %v8088 = vadd.f32 %v8087, %v7937
      %v8089 = vadd.f32 %v8088, %v7938
      %8090 = vadd.xlane.f32.xlu0 %v8089
      %v8091 = vpop.xlane.xlu0 %8090
      %v8092 = vadd.f32 %v7939, %v7940
      %v8093 = vadd.f32 %v8092, %v7941
      %v8094 = vadd.f32 %v8093, %v7942
      %8095 = vadd.xlane.f32.xlu0 %v8094
      %v8096 = vpop.xlane.xlu0 %8095
      %v8097 = vadd.f32 %v7943, %v7944
      %v8098 = vadd.f32 %v8097, %v7945
      %v8099 = vadd.f32 %v8098, %v7946
      %8100 = vadd.xlane.f32.xlu0 %v8099
      %v8101 = vpop.xlane.xlu0 %8100
      %v8102 = vadd.f32 %v7947, %v7948
      %v8103 = vadd.f32 %v8102, %v7949
      %v8104 = vadd.f32 %v8103, %v7950
      %8105 = vadd.xlane.f32.xlu0 %v8104
      %v8106 = vpop.xlane.xlu0 %8105
      %v8107 = vadd.f32 %v7951, %v7952
      %v8108 = vadd.f32 %v8107, %v7953
      %v8109 = vadd.f32 %v8108, %v7954
      %8110 = vadd.xlane.f32.xlu0 %v8109
      %v8111 = vpop.xlane.xlu0 %8110
      %v8112 = vadd.f32 %v7955, %v7956
      %v8113 = vadd.f32 %v8112, %v7957
      %v8114 = vadd.f32 %v8113, %v7958
      %8115 = vadd.xlane.f32.xlu0 %v8114
      %v8116 = vpop.xlane.xlu0 %8115
      %v8117 = vadd.f32 %v7959, %v7960
      %v8118 = vadd.f32 %v8117, %v7961
      %v8119 = vadd.f32 %v8118, %v7962
      %8120 = vadd.xlane.f32.xlu0 %v8119
      %v8121 = vpop.xlane.xlu0 %8120
      %v8122 = vadd.f32 %v7963, %v7964
      %v8123 = vadd.f32 %v8122, %v7965
      %v8124 = vadd.f32 %v8123, %v7966
      %8125 = vadd.xlane.f32.xlu0 %v8124
      %v8126 = vpop.xlane.xlu0 %8125
      %v8127 = vrcp.pop 512.0
      %v8128 = vmul.f32 %v7971, %v8127
      %v8129 = vmul.f32 %v7976, %v8127
      %v8130 = vmul.f32 %v7981, %v8127
      %v8131 = vmul.f32 %v7986, %v8127
      %v8132 = vmul.f32 %v7991, %v8127
      %v8133 = vmul.f32 %v7996, %v8127
      %v8134 = vmul.f32 %v8001, %v8127
      %v8135 = vmul.f32 %v8006, %v8127
      %v8136 = vmul.f32 %v8011, %v8127
      %v8137 = vmul.f32 %v8016, %v8127
      %v8138 = vmul.f32 %v8021, %v8127
      %v8139 = vmul.f32 %v8026, %v8127
      %v8140 = vmul.f32 %v8031, %v8127
      %v8141 = vmul.f32 %v8036, %v8127
      %v8142 = vmul.f32 %v8041, %v8127
      %v8143 = vmul.f32 %v8046, %v8127
      %v8144 = vmul.f32 %v8051, %v8127
      %v8145 = vmul.f32 %v8056, %v8127
      %v8146 = vmul.f32 %v8061, %v8127
      %v8147 = vmul.f32 %v8066, %v8127
      %v8148 = vmul.f32 %v8071, %v8127
      %v8149 = vmul.f32 %v8076, %v8127
      %v8150 = vmul.f32 %v8081, %v8127
      %v8151 = vmul.f32 %v8086, %v8127
      %v8152 = vmul.f32 %v8091, %v8127
      %v8153 = vmul.f32 %v8096, %v8127
      %v8154 = vmul.f32 %v8101, %v8127
      %v8155 = vmul.f32 %v8106, %v8127
      %v8156 = vmul.f32 %v8111, %v8127
      %v8157 = vmul.f32 %v8116, %v8127
      %v8158 = vmul.f32 %v8121, %v8127
      %v8159 = vmul.f32 %v8126, %v8127
      %v8160 = vsub.f32 %v7839, %v8128
      %v8161 = vsub.f32 %v7840, %v8128
      %v8162 = vsub.f32 %v7841, %v8128
      %v8163 = vsub.f32 %v7842, %v8128
      %v8164 = vsub.f32 %v7843, %v8129
      %v8165 = vsub.f32 %v7844, %v8129
      %v8166 = vsub.f32 %v7845, %v8129
      %v8167 = vsub.f32 %v7846, %v8129
      %v8168 = vsub.f32 %v7847, %v8130
      %v8169 = vsub.f32 %v7848, %v8130
      %v8170 = vsub.f32 %v7849, %v8130
      %v8171 = vsub.f32 %v7850, %v8130
      %v8172 = vsub.f32 %v7851, %v8131
      %v8173 = vsub.f32 %v7852, %v8131
      %v8174 = vsub.f32 %v7853, %v8131
      %v8175 = vsub.f32 %v7854, %v8131
      %v8176 = vsub.f32 %v7855, %v8132
      %v8177 = vsub.f32 %v7856, %v8132
      %v8178 = vsub.f32 %v7857, %v8132
      %v8179 = vsub.f32 %v7858, %v8132
      %v8180 = vsub.f32 %v7859, %v8133
      %v8181 = vsub.f32 %v7860, %v8133
      %v8182 = vsub.f32 %v7861, %v8133
      %v8183 = vsub.f32 %v7862, %v8133
      %v8184 = vsub.f32 %v7863, %v8134
      %v8185 = vsub.f32 %v7864, %v8134
      %v8186 = vsub.f32 %v7865, %v8134
      %v8187 = vsub.f32 %v7866, %v8134
      %v8188 = vsub.f32 %v7867, %v8135
      %v8189 = vsub.f32 %v7868, %v8135
      %v8190 = vsub.f32 %v7869, %v8135
      %v8191 = vsub.f32 %v7870, %v8135
      %v8192 = vsub.f32 %v7871, %v8136
      %v8193 = vsub.f32 %v7872, %v8136
      %v8194 = vsub.f32 %v7873, %v8136
      %v8195 = vsub.f32 %v7874, %v8136
      %v8196 = vsub.f32 %v7875, %v8137
      %v8197 = vsub.f32 %v7876, %v8137
      %v8198 = vsub.f32 %v7877, %v8137
      %v8199 = vsub.f32 %v7878, %v8137
      %v8200 = vsub.f32 %v7879, %v8138
      %v8201 = vsub.f32 %v7880, %v8138
      %v8202 = vsub.f32 %v7881, %v8138
      %v8203 = vsub.f32 %v7882, %v8138
      %v8204 = vsub.f32 %v7883, %v8139
      %v8205 = vsub.f32 %v7884, %v8139
      %v8206 = vsub.f32 %v7885, %v8139
      %v8207 = vsub.f32 %v7886, %v8139
      %v8208 = vsub.f32 %v7887, %v8140
      %v8209 = vsub.f32 %v7888, %v8140
      %v8210 = vsub.f32 %v7889, %v8140
      %v8211 = vsub.f32 %v7890, %v8140
      %v8212 = vsub.f32 %v7891, %v8141
      %v8213 = vsub.f32 %v7892, %v8141
      %v8214 = vsub.f32 %v7893, %v8141
      %v8215 = vsub.f32 %v7894, %v8141
      %v8216 = vsub.f32 %v7895, %v8142
      %v8217 = vsub.f32 %v7896, %v8142
      %v8218 = vsub.f32 %v7897, %v8142
      %v8219 = vsub.f32 %v7898, %v8142
      %v8220 = vsub.f32 %v7899, %v8143
      %v8221 = vsub.f32 %v7900, %v8143
      %v8222 = vsub.f32 %v7901, %v8143
      %v8223 = vsub.f32 %v7902, %v8143
      %v8224 = vsub.f32 %v7903, %v8144
      %v8225 = vsub.f32 %v7904, %v8144
      %v8226 = vsub.f32 %v7905, %v8144
      %v8227 = vsub.f32 %v7906, %v8144
      %v8228 = vsub.f32 %v7907, %v8145
      %v8229 = vsub.f32 %v7908, %v8145
      %v8230 = vsub.f32 %v7909, %v8145
      %v8231 = vsub.f32 %v7910, %v8145
      %v8232 = vsub.f32 %v7911, %v8146
      %v8233 = vsub.f32 %v7912, %v8146
      %v8234 = vsub.f32 %v7913, %v8146
      %v8235 = vsub.f32 %v7914, %v8146
      %v8236 = vsub.f32 %v7915, %v8147
      %v8237 = vsub.f32 %v7916, %v8147
      %v8238 = vsub.f32 %v7917, %v8147
      %v8239 = vsub.f32 %v7918, %v8147
      %v8240 = vsub.f32 %v7919, %v8148
      %v8241 = vsub.f32 %v7920, %v8148
      %v8242 = vsub.f32 %v7921, %v8148
      %v8243 = vsub.f32 %v7922, %v8148
      %v8244 = vsub.f32 %v7923, %v8149
      %v8245 = vsub.f32 %v7924, %v8149
      %v8246 = vsub.f32 %v7925, %v8149
      %v8247 = vsub.f32 %v7926, %v8149
      %v8248 = vsub.f32 %v7927, %v8150
      %v8249 = vsub.f32 %v7928, %v8150
      %v8250 = vsub.f32 %v7929, %v8150
      %v8251 = vsub.f32 %v7930, %v8150
      %v8252 = vsub.f32 %v7931, %v8151
      %v8253 = vsub.f32 %v7932, %v8151
      %v8254 = vsub.f32 %v7933, %v8151
      %v8255 = vsub.f32 %v7934, %v8151
      %v8256 = vsub.f32 %v7935, %v8152
      %v8257 = vsub.f32 %v7936, %v8152
      %v8258 = vsub.f32 %v7937, %v8152
      %v8259 = vsub.f32 %v7938, %v8152
      %v8260 = vsub.f32 %v7939, %v8153
      %v8261 = vsub.f32 %v7940, %v8153
      %v8262 = vsub.f32 %v7941, %v8153
      %v8263 = vsub.f32 %v7942, %v8153
      %v8264 = vsub.f32 %v7943, %v8154
      %v8265 = vsub.f32 %v7944, %v8154
      %v8266 = vsub.f32 %v7945, %v8154
      %v8267 = vsub.f32 %v7946, %v8154
      %v8268 = vsub.f32 %v7947, %v8155
      %v8269 = vsub.f32 %v7948, %v8155
      %v8270 = vsub.f32 %v7949, %v8155
      %v8271 = vsub.f32 %v7950, %v8155
      %v8272 = vsub.f32 %v7951, %v8156
      %v8273 = vsub.f32 %v7952, %v8156
      %v8274 = vsub.f32 %v7953, %v8156
      %v8275 = vsub.f32 %v7954, %v8156
      %v8276 = vsub.f32 %v7955, %v8157
      %v8277 = vsub.f32 %v7956, %v8157
      %v8278 = vsub.f32 %v7957, %v8157
      %v8279 = vsub.f32 %v7958, %v8157
      %v8280 = vsub.f32 %v7959, %v8158
      %v8281 = vsub.f32 %v7960, %v8158
      %v8282 = vsub.f32 %v7961, %v8158
      %v8283 = vsub.f32 %v7962, %v8158
      %v8284 = vsub.f32 %v7963, %v8159
      %v8285 = vsub.f32 %v7964, %v8159
      %v8286 = vsub.f32 %v7965, %v8159
      %v8287 = vsub.f32 %v7966, %v8159
      %v8288 = vmul.f32 %v8160, %v8160
      %v8289 = vmul.f32 %v8161, %v8161
      %v8290 = vmul.f32 %v8162, %v8162
      %v8291 = vmul.f32 %v8163, %v8163
      %v8292 = vmul.f32 %v8164, %v8164
      %v8293 = vmul.f32 %v8165, %v8165
      %v8294 = vmul.f32 %v8166, %v8166
      %v8295 = vmul.f32 %v8167, %v8167
      %v8296 = vmul.f32 %v8168, %v8168
      %v8297 = vmul.f32 %v8169, %v8169
      %v8298 = vmul.f32 %v8170, %v8170
      %v8299 = vmul.f32 %v8171, %v8171
      %v8300 = vmul.f32 %v8172, %v8172
      %v8301 = vmul.f32 %v8173, %v8173
      %v8302 = vmul.f32 %v8174, %v8174
      %v8303 = vmul.f32 %v8175, %v8175
      %v8304 = vmul.f32 %v8176, %v8176
      %v8305 = vmul.f32 %v8177, %v8177
      %v8306 = vmul.f32 %v8178, %v8178
      %v8307 = vmul.f32 %v8179, %v8179
      %v8308 = vmul.f32 %v8180, %v8180
      %v8309 = vmul.f32 %v8181, %v8181
      %v8310 = vmul.f32 %v8182, %v8182
      %v8311 = vmul.f32 %v8183, %v8183
      %v8312 = vmul.f32 %v8184, %v8184
      %v8313 = vmul.f32 %v8185, %v8185
      %v8314 = vmul.f32 %v8186, %v8186
      %v8315 = vmul.f32 %v8187, %v8187
      %v8316 = vmul.f32 %v8188, %v8188
      %v8317 = vmul.f32 %v8189, %v8189
      %v8318 = vmul.f32 %v8190, %v8190
      %v8319 = vmul.f32 %v8191, %v8191
      %v8320 = vmul.f32 %v8192, %v8192
      %v8321 = vmul.f32 %v8193, %v8193
      %v8322 = vmul.f32 %v8194, %v8194
      %v8323 = vmul.f32 %v8195, %v8195
      %v8324 = vmul.f32 %v8196, %v8196
      %v8325 = vmul.f32 %v8197, %v8197
      %v8326 = vmul.f32 %v8198, %v8198
      %v8327 = vmul.f32 %v8199, %v8199
      %v8328 = vmul.f32 %v8200, %v8200
      %v8329 = vmul.f32 %v8201, %v8201
      %v8330 = vmul.f32 %v8202, %v8202
      %v8331 = vmul.f32 %v8203, %v8203
      %v8332 = vmul.f32 %v8204, %v8204
      %v8333 = vmul.f32 %v8205, %v8205
      %v8334 = vmul.f32 %v8206, %v8206
      %v8335 = vmul.f32 %v8207, %v8207
      %v8336 = vmul.f32 %v8208, %v8208
      %v8337 = vmul.f32 %v8209, %v8209
      %v8338 = vmul.f32 %v8210, %v8210
      %v8339 = vmul.f32 %v8211, %v8211
      %v8340 = vmul.f32 %v8212, %v8212
      %v8341 = vmul.f32 %v8213, %v8213
      %v8342 = vmul.f32 %v8214, %v8214
      %v8343 = vmul.f32 %v8215, %v8215
      %v8344 = vmul.f32 %v8216, %v8216
      %v8345 = vmul.f32 %v8217, %v8217
      %v8346 = vmul.f32 %v8218, %v8218
      %v8347 = vmul.f32 %v8219, %v8219
      %v8348 = vmul.f32 %v8220, %v8220
      %v8349 = vmul.f32 %v8221, %v8221
      %v8350 = vmul.f32 %v8222, %v8222
      %v8351 = vmul.f32 %v8223, %v8223
      %v8352 = vmul.f32 %v8224, %v8224
      %v8353 = vmul.f32 %v8225, %v8225
      %v8354 = vmul.f32 %v8226, %v8226
      %v8355 = vmul.f32 %v8227, %v8227
      %v8356 = vmul.f32 %v8228, %v8228
      %v8357 = vmul.f32 %v8229, %v8229
      %v8358 = vmul.f32 %v8230, %v8230
      %v8359 = vmul.f32 %v8231, %v8231
      %v8360 = vmul.f32 %v8232, %v8232
      %v8361 = vmul.f32 %v8233, %v8233
      %v8362 = vmul.f32 %v8234, %v8234
      %v8363 = vmul.f32 %v8235, %v8235
      %v8364 = vmul.f32 %v8236, %v8236
      %v8365 = vmul.f32 %v8237, %v8237
      %v8366 = vmul.f32 %v8238, %v8238
      %v8367 = vmul.f32 %v8239, %v8239
      %v8368 = vmul.f32 %v8240, %v8240
      %v8369 = vmul.f32 %v8241, %v8241
      %v8370 = vmul.f32 %v8242, %v8242
      %v8371 = vmul.f32 %v8243, %v8243
      %v8372 = vmul.f32 %v8244, %v8244
      %v8373 = vmul.f32 %v8245, %v8245
      %v8374 = vmul.f32 %v8246, %v8246
      %v8375 = vmul.f32 %v8247, %v8247
      %v8376 = vmul.f32 %v8248, %v8248
      %v8377 = vmul.f32 %v8249, %v8249
      %v8378 = vmul.f32 %v8250, %v8250
      %v8379 = vmul.f32 %v8251, %v8251
      %v8380 = vmul.f32 %v8252, %v8252
      %v8381 = vmul.f32 %v8253, %v8253
      %v8382 = vmul.f32 %v8254, %v8254
      %v8383 = vmul.f32 %v8255, %v8255
      %v8384 = vmul.f32 %v8256, %v8256
      %v8385 = vmul.f32 %v8257, %v8257
      %v8386 = vmul.f32 %v8258, %v8258
      %v8387 = vmul.f32 %v8259, %v8259
      %v8388 = vmul.f32 %v8260, %v8260
      %v8389 = vmul.f32 %v8261, %v8261
      %v8390 = vmul.f32 %v8262, %v8262
      %v8391 = vmul.f32 %v8263, %v8263
      %v8392 = vmul.f32 %v8264, %v8264
      %v8393 = vmul.f32 %v8265, %v8265
      %v8394 = vmul.f32 %v8266, %v8266
      %v8395 = vmul.f32 %v8267, %v8267
      %v8396 = vmul.f32 %v8268, %v8268
      %v8397 = vmul.f32 %v8269, %v8269
      %v8398 = vmul.f32 %v8270, %v8270
      %v8399 = vmul.f32 %v8271, %v8271
      %v8400 = vmul.f32 %v8272, %v8272
      %v8401 = vmul.f32 %v8273, %v8273
      %v8402 = vmul.f32 %v8274, %v8274
      %v8403 = vmul.f32 %v8275, %v8275
      %v8404 = vmul.f32 %v8276, %v8276
      %v8405 = vmul.f32 %v8277, %v8277
      %v8406 = vmul.f32 %v8278, %v8278
      %v8407 = vmul.f32 %v8279, %v8279
      %v8408 = vmul.f32 %v8280, %v8280
      %v8409 = vmul.f32 %v8281, %v8281
      %v8410 = vmul.f32 %v8282, %v8282
      %v8411 = vmul.f32 %v8283, %v8283
      %v8412 = vmul.f32 %v8284, %v8284
      %v8413 = vmul.f32 %v8285, %v8285
      %v8414 = vmul.f32 %v8286, %v8286
      %v8415 = vmul.f32 %v8287, %v8287
      %v8416 = vadd.f32 %v8288, %v8289
      %v8417 = vadd.f32 %v8416, %v8290
      %v8418 = vadd.f32 %v8417, %v8291
      %8419 = vadd.xlane.f32.xlu0 %v8418
      %v8420 = vpop.xlane.xlu0 %8419
      %v8421 = vadd.f32 %v8292, %v8293
      %v8422 = vadd.f32 %v8421, %v8294
      %v8423 = vadd.f32 %v8422, %v8295
      %8424 = vadd.xlane.f32.xlu0 %v8423
      %v8425 = vpop.xlane.xlu0 %8424
      %v8426 = vadd.f32 %v8296, %v8297
      %v8427 = vadd.f32 %v8426, %v8298
      %v8428 = vadd.f32 %v8427, %v8299
      %8429 = vadd.xlane.f32.xlu0 %v8428
      %v8430 = vpop.xlane.xlu0 %8429
      %v8431 = vadd.f32 %v8300, %v8301
      %v8432 = vadd.f32 %v8431, %v8302
      %v8433 = vadd.f32 %v8432, %v8303
      %8434 = vadd.xlane.f32.xlu0 %v8433
      %v8435 = vpop.xlane.xlu0 %8434
      %v8436 = vadd.f32 %v8304, %v8305
      %v8437 = vadd.f32 %v8436, %v8306
      %v8438 = vadd.f32 %v8437, %v8307
      %8439 = vadd.xlane.f32.xlu0 %v8438
      %v8440 = vpop.xlane.xlu0 %8439
      %v8441 = vadd.f32 %v8308, %v8309
      %v8442 = vadd.f32 %v8441, %v8310
      %v8443 = vadd.f32 %v8442, %v8311
      %8444 = vadd.xlane.f32.xlu0 %v8443
      %v8445 = vpop.xlane.xlu0 %8444
      %v8446 = vadd.f32 %v8312, %v8313
      %v8447 = vadd.f32 %v8446, %v8314
      %v8448 = vadd.f32 %v8447, %v8315
      %8449 = vadd.xlane.f32.xlu0 %v8448
      %v8450 = vpop.xlane.xlu0 %8449
      %v8451 = vadd.f32 %v8316, %v8317
      %v8452 = vadd.f32 %v8451, %v8318
      %v8453 = vadd.f32 %v8452, %v8319
      %8454 = vadd.xlane.f32.xlu0 %v8453
      %v8455 = vpop.xlane.xlu0 %8454
      %v8456 = vadd.f32 %v8320, %v8321
      %v8457 = vadd.f32 %v8456, %v8322
      %v8458 = vadd.f32 %v8457, %v8323
      %8459 = vadd.xlane.f32.xlu0 %v8458
      %v8460 = vpop.xlane.xlu0 %8459
      %v8461 = vadd.f32 %v8324, %v8325
      %v8462 = vadd.f32 %v8461, %v8326
      %v8463 = vadd.f32 %v8462, %v8327
      %8464 = vadd.xlane.f32.xlu0 %v8463
      %v8465 = vpop.xlane.xlu0 %8464
      %v8466 = vadd.f32 %v8328, %v8329
      %v8467 = vadd.f32 %v8466, %v8330
      %v8468 = vadd.f32 %v8467, %v8331
      %8469 = vadd.xlane.f32.xlu0 %v8468
      %v8470 = vpop.xlane.xlu0 %8469
      %v8471 = vadd.f32 %v8332, %v8333
      %v8472 = vadd.f32 %v8471, %v8334
      %v8473 = vadd.f32 %v8472, %v8335
      %8474 = vadd.xlane.f32.xlu0 %v8473
      %v8475 = vpop.xlane.xlu0 %8474
      %v8476 = vadd.f32 %v8336, %v8337
      %v8477 = vadd.f32 %v8476, %v8338
      %v8478 = vadd.f32 %v8477, %v8339
      %8479 = vadd.xlane.f32.xlu0 %v8478
      %v8480 = vpop.xlane.xlu0 %8479
      %v8481 = vadd.f32 %v8340, %v8341
      %v8482 = vadd.f32 %v8481, %v8342
      %v8483 = vadd.f32 %v8482, %v8343
      %8484 = vadd.xlane.f32.xlu0 %v8483
      %v8485 = vpop.xlane.xlu0 %8484
      %v8486 = vadd.f32 %v8344, %v8345
      %v8487 = vadd.f32 %v8486, %v8346
      %v8488 = vadd.f32 %v8487, %v8347
      %8489 = vadd.xlane.f32.xlu0 %v8488
      %v8490 = vpop.xlane.xlu0 %8489
      %v8491 = vadd.f32 %v8348, %v8349
      %v8492 = vadd.f32 %v8491, %v8350
      %v8493 = vadd.f32 %v8492, %v8351
      %8494 = vadd.xlane.f32.xlu0 %v8493
      %v8495 = vpop.xlane.xlu0 %8494
      %v8496 = vadd.f32 %v8352, %v8353
      %v8497 = vadd.f32 %v8496, %v8354
      %v8498 = vadd.f32 %v8497, %v8355
      %8499 = vadd.xlane.f32.xlu0 %v8498
      %v8500 = vpop.xlane.xlu0 %8499
      %v8501 = vadd.f32 %v8356, %v8357
      %v8502 = vadd.f32 %v8501, %v8358
      %v8503 = vadd.f32 %v8502, %v8359
      %8504 = vadd.xlane.f32.xlu0 %v8503
      %v8505 = vpop.xlane.xlu0 %8504
      %v8506 = vadd.f32 %v8360, %v8361
      %v8507 = vadd.f32 %v8506, %v8362
      %v8508 = vadd.f32 %v8507, %v8363
      %8509 = vadd.xlane.f32.xlu0 %v8508
      %v8510 = vpop.xlane.xlu0 %8509
      %v8511 = vadd.f32 %v8364, %v8365
      %v8512 = vadd.f32 %v8511, %v8366
      %v8513 = vadd.f32 %v8512, %v8367
      %8514 = vadd.xlane.f32.xlu0 %v8513
      %v8515 = vpop.xlane.xlu0 %8514
      %v8516 = vadd.f32 %v8368, %v8369
      %v8517 = vadd.f32 %v8516, %v8370
      %v8518 = vadd.f32 %v8517, %v8371
      %8519 = vadd.xlane.f32.xlu0 %v8518
      %v8520 = vpop.xlane.xlu0 %8519
      %v8521 = vadd.f32 %v8372, %v8373
      %v8522 = vadd.f32 %v8521, %v8374
      %v8523 = vadd.f32 %v8522, %v8375
      %8524 = vadd.xlane.f32.xlu0 %v8523
      %v8525 = vpop.xlane.xlu0 %8524
      %v8526 = vadd.f32 %v8376, %v8377
      %v8527 = vadd.f32 %v8526, %v8378
      %v8528 = vadd.f32 %v8527, %v8379
      %8529 = vadd.xlane.f32.xlu0 %v8528
      %v8530 = vpop.xlane.xlu0 %8529
      %v8531 = vadd.f32 %v8380, %v8381
      %v8532 = vadd.f32 %v8531, %v8382
      %v8533 = vadd.f32 %v8532, %v8383
      %8534 = vadd.xlane.f32.xlu0 %v8533
      %v8535 = vpop.xlane.xlu0 %8534
      %v8536 = vadd.f32 %v8384, %v8385
      %v8537 = vadd.f32 %v8536, %v8386
      %v8538 = vadd.f32 %v8537, %v8387
      %8539 = vadd.xlane.f32.xlu0 %v8538
      %v8540 = vpop.xlane.xlu0 %8539
      %v8541 = vadd.f32 %v8388, %v8389
      %v8542 = vadd.f32 %v8541, %v8390
      %v8543 = vadd.f32 %v8542, %v8391
      %8544 = vadd.xlane.f32.xlu0 %v8543
      %v8545 = vpop.xlane.xlu0 %8544
      %v8546 = vadd.f32 %v8392, %v8393
      %v8547 = vadd.f32 %v8546, %v8394
      %v8548 = vadd.f32 %v8547, %v8395
      %8549 = vadd.xlane.f32.xlu0 %v8548
      %v8550 = vpop.xlane.xlu0 %8549
      %v8551 = vadd.f32 %v8396, %v8397
      %v8552 = vadd.f32 %v8551, %v8398
      %v8553 = vadd.f32 %v8552, %v8399
      %8554 = vadd.xlane.f32.xlu0 %v8553
      %v8555 = vpop.xlane.xlu0 %8554
      %v8556 = vadd.f32 %v8400, %v8401
      %v8557 = vadd.f32 %v8556, %v8402
      %v8558 = vadd.f32 %v8557, %v8403
      %8559 = vadd.xlane.f32.xlu0 %v8558
      %v8560 = vpop.xlane.xlu0 %8559
      %v8561 = vadd.f32 %v8404, %v8405
      %v8562 = vadd.f32 %v8561, %v8406
      %v8563 = vadd.f32 %v8562, %v8407
      %8564 = vadd.xlane.f32.xlu0 %v8563
      %v8565 = vpop.xlane.xlu0 %8564
      %v8566 = vadd.f32 %v8408, %v8409
      %v8567 = vadd.f32 %v8566, %v8410
      %v8568 = vadd.f32 %v8567, %v8411
      %8569 = vadd.xlane.f32.xlu0 %v8568
      %v8570 = vpop.xlane.xlu0 %8569
      %v8571 = vadd.f32 %v8412, %v8413
      %v8572 = vadd.f32 %v8571, %v8414
      %v8573 = vadd.f32 %v8572, %v8415
      %8574 = vadd.xlane.f32.xlu0 %v8573
      %v8575 = vpop.xlane.xlu0 %8574
      %v8576 = vmul.f32 %v8420, %v8127
      %v8577 = vmul.f32 %v8425, %v8127
      %v8578 = vmul.f32 %v8430, %v8127
      %v8579 = vmul.f32 %v8435, %v8127
      %v8580 = vmul.f32 %v8440, %v8127
      %v8581 = vmul.f32 %v8445, %v8127
      %v8582 = vmul.f32 %v8450, %v8127
      %v8583 = vmul.f32 %v8455, %v8127
      %v8584 = vmul.f32 %v8460, %v8127
      %v8585 = vmul.f32 %v8465, %v8127
      %v8586 = vmul.f32 %v8470, %v8127
      %v8587 = vmul.f32 %v8475, %v8127
      %v8588 = vmul.f32 %v8480, %v8127
      %v8589 = vmul.f32 %v8485, %v8127
      %v8590 = vmul.f32 %v8490, %v8127
      %v8591 = vmul.f32 %v8495, %v8127
      %v8592 = vmul.f32 %v8500, %v8127
      %v8593 = vmul.f32 %v8505, %v8127
      %v8594 = vmul.f32 %v8510, %v8127
      %v8595 = vmul.f32 %v8515, %v8127
      %v8596 = vmul.f32 %v8520, %v8127
      %v8597 = vmul.f32 %v8525, %v8127
      %v8598 = vmul.f32 %v8530, %v8127
      %v8599 = vmul.f32 %v8535, %v8127
      %v8600 = vmul.f32 %v8540, %v8127
      %v8601 = vmul.f32 %v8545, %v8127
      %v8602 = vmul.f32 %v8550, %v8127
      %v8603 = vmul.f32 %v8555, %v8127
      %v8604 = vmul.f32 %v8560, %v8127
      %v8605 = vmul.f32 %v8565, %v8127
      %v8606 = vmul.f32 %v8570, %v8127
      %v8607 = vmul.f32 %v8575, %v8127
      %v8608 = vadd.f32 %v8576, 1e-05
      %v8609 = vadd.f32 %v8577, 1e-05
      %v8610 = vadd.f32 %v8578, 1e-05
      %v8611 = vadd.f32 %v8579, 1e-05
      %v8612 = vadd.f32 %v8580, 1e-05
      %v8613 = vadd.f32 %v8581, 1e-05
      %v8614 = vadd.f32 %v8582, 1e-05
      %v8615 = vadd.f32 %v8583, 1e-05
      %v8616 = vadd.f32 %v8584, 1e-05
      %v8617 = vadd.f32 %v8585, 1e-05
      %v8618 = vadd.f32 %v8586, 1e-05
      %v8619 = vadd.f32 %v8587, 1e-05
      %v8620 = vadd.f32 %v8588, 1e-05
      %v8621 = vadd.f32 %v8589, 1e-05
      %v8622 = vadd.f32 %v8590, 1e-05
      %v8623 = vadd.f32 %v8591, 1e-05
      %v8624 = vadd.f32 %v8592, 1e-05
      %v8625 = vadd.f32 %v8593, 1e-05
      %v8626 = vadd.f32 %v8594, 1e-05
      %v8627 = vadd.f32 %v8595, 1e-05
      %v8628 = vadd.f32 %v8596, 1e-05
      %v8629 = vadd.f32 %v8597, 1e-05
      %v8630 = vadd.f32 %v8598, 1e-05
      %v8631 = vadd.f32 %v8599, 1e-05
      %v8632 = vadd.f32 %v8600, 1e-05
      %v8633 = vadd.f32 %v8601, 1e-05
      %v8634 = vadd.f32 %v8602, 1e-05
      %v8635 = vadd.f32 %v8603, 1e-05
      %v8636 = vadd.f32 %v8604, 1e-05
      %v8637 = vadd.f32 %v8605, 1e-05
      %v8638 = vadd.f32 %v8606, 1e-05
      %v8639 = vadd.f32 %v8607, 1e-05
      %v8640 = vrsqrt.pop %v8608
      %v8641 = vrsqrt.pop %v8609
      %v8642 = vrsqrt.pop %v8610
      %v8643 = vrsqrt.pop %v8611
      %v8644 = vrsqrt.pop %v8612
      %v8645 = vrsqrt.pop %v8613
      %v8646 = vrsqrt.pop %v8614
      %v8647 = vrsqrt.pop %v8615
      %v8648 = vrsqrt.pop %v8616
      %v8649 = vrsqrt.pop %v8617
      %v8650 = vrsqrt.pop %v8618
      %v8651 = vrsqrt.pop %v8619
      %v8652 = vrsqrt.pop %v8620
      %v8653 = vrsqrt.pop %v8621
      %v8654 = vrsqrt.pop %v8622
      %v8655 = vrsqrt.pop %v8623
      %v8656 = vrsqrt.pop %v8624
      %v8657 = vrsqrt.pop %v8625
      %v8658 = vrsqrt.pop %v8626
      %v8659 = vrsqrt.pop %v8627
      %v8660 = vrsqrt.pop %v8628
      %v8661 = vrsqrt.pop %v8629
      %v8662 = vrsqrt.pop %v8630
      %v8663 = vrsqrt.pop %v8631
      %v8664 = vrsqrt.pop %v8632
      %v8665 = vrsqrt.pop %v8633
      %v8666 = vrsqrt.pop %v8634
      %v8667 = vrsqrt.pop %v8635
      %v8668 = vrsqrt.pop %v8636
      %v8669 = vrsqrt.pop %v8637
      %v8670 = vrsqrt.pop %v8638
      %v8671 = vrsqrt.pop %v8639
      %v8672 = vmul.f32 %v8160, %v8640
      %v8673 = vmul.f32 %v8161, %v8640
      %v8674 = vmul.f32 %v8162, %v8640
      %v8675 = vmul.f32 %v8163, %v8640
      %v8676 = vmul.f32 %v8164, %v8641
      %v8677 = vmul.f32 %v8165, %v8641
      %v8678 = vmul.f32 %v8166, %v8641
      %v8679 = vmul.f32 %v8167, %v8641
      %v8680 = vmul.f32 %v8168, %v8642
      %v8681 = vmul.f32 %v8169, %v8642
      %v8682 = vmul.f32 %v8170, %v8642
      %v8683 = vmul.f32 %v8171, %v8642
      %v8684 = vmul.f32 %v8172, %v8643
      %v8685 = vmul.f32 %v8173, %v8643
      %v8686 = vmul.f32 %v8174, %v8643
      %v8687 = vmul.f32 %v8175, %v8643
      %v8688 = vmul.f32 %v8176, %v8644
      %v8689 = vmul.f32 %v8177, %v8644
      %v8690 = vmul.f32 %v8178, %v8644
      %v8691 = vmul.f32 %v8179, %v8644
      %v8692 = vmul.f32 %v8180, %v8645
      %v8693 = vmul.f32 %v8181, %v8645
      %v8694 = vmul.f32 %v8182, %v8645
      %v8695 = vmul.f32 %v8183, %v8645
      %v8696 = vmul.f32 %v8184, %v8646
      %v8697 = vmul.f32 %v8185, %v8646
      %v8698 = vmul.f32 %v8186, %v8646
      %v8699 = vmul.f32 %v8187, %v8646
      %v8700 = vmul.f32 %v8188, %v8647
      %v8701 = vmul.f32 %v8189, %v8647
      %v8702 = vmul.f32 %v8190, %v8647
      %v8703 = vmul.f32 %v8191, %v8647
      %v8704 = vmul.f32 %v8192, %v8648
      %v8705 = vmul.f32 %v8193, %v8648
      %v8706 = vmul.f32 %v8194, %v8648
      %v8707 = vmul.f32 %v8195, %v8648
      %v8708 = vmul.f32 %v8196, %v8649
      %v8709 = vmul.f32 %v8197, %v8649
      %v8710 = vmul.f32 %v8198, %v8649
      %v8711 = vmul.f32 %v8199, %v8649
      %v8712 = vmul.f32 %v8200, %v8650
      %v8713 = vmul.f32 %v8201, %v8650
      %v8714 = vmul.f32 %v8202, %v8650
      %v8715 = vmul.f32 %v8203, %v8650
      %v8716 = vmul.f32 %v8204, %v8651
      %v8717 = vmul.f32 %v8205, %v8651
      %v8718 = vmul.f32 %v8206, %v8651
      %v8719 = vmul.f32 %v8207, %v8651
      %v8720 = vmul.f32 %v8208, %v8652
      %v8721 = vmul.f32 %v8209, %v8652
      %v8722 = vmul.f32 %v8210, %v8652
      %v8723 = vmul.f32 %v8211, %v8652
      %v8724 = vmul.f32 %v8212, %v8653
      %v8725 = vmul.f32 %v8213, %v8653
      %v8726 = vmul.f32 %v8214, %v8653
      %v8727 = vmul.f32 %v8215, %v8653
      %v8728 = vmul.f32 %v8216, %v8654
      %v8729 = vmul.f32 %v8217, %v8654
      %v8730 = vmul.f32 %v8218, %v8654
      %v8731 = vmul.f32 %v8219, %v8654
      %v8732 = vmul.f32 %v8220, %v8655
      %v8733 = vmul.f32 %v8221, %v8655
      %v8734 = vmul.f32 %v8222, %v8655
      %v8735 = vmul.f32 %v8223, %v8655
      %v8736 = vmul.f32 %v8224, %v8656
      %v8737 = vmul.f32 %v8225, %v8656
      %v8738 = vmul.f32 %v8226, %v8656
      %v8739 = vmul.f32 %v8227, %v8656
      %v8740 = vmul.f32 %v8228, %v8657
      %v8741 = vmul.f32 %v8229, %v8657
      %v8742 = vmul.f32 %v8230, %v8657
      %v8743 = vmul.f32 %v8231, %v8657
      %v8744 = vmul.f32 %v8232, %v8658
      %v8745 = vmul.f32 %v8233, %v8658
      %v8746 = vmul.f32 %v8234, %v8658
      %v8747 = vmul.f32 %v8235, %v8658
      %v8748 = vmul.f32 %v8236, %v8659
      %v8749 = vmul.f32 %v8237, %v8659
      %v8750 = vmul.f32 %v8238, %v8659
      %v8751 = vmul.f32 %v8239, %v8659
      %v8752 = vmul.f32 %v8240, %v8660
      %v8753 = vmul.f32 %v8241, %v8660
      %v8754 = vmul.f32 %v8242, %v8660
      %v8755 = vmul.f32 %v8243, %v8660
      %v8756 = vmul.f32 %v8244, %v8661
      %v8757 = vmul.f32 %v8245, %v8661
      %v8758 = vmul.f32 %v8246, %v8661
      %v8759 = vmul.f32 %v8247, %v8661
      %v8760 = vmul.f32 %v8248, %v8662
      %v8761 = vmul.f32 %v8249, %v8662
      %v8762 = vmul.f32 %v8250, %v8662
      %v8763 = vmul.f32 %v8251, %v8662
      %v8764 = vmul.f32 %v8252, %v8663
      %v8765 = vmul.f32 %v8253, %v8663
      %v8766 = vmul.f32 %v8254, %v8663
      %v8767 = vmul.f32 %v8255, %v8663
      %v8768 = vmul.f32 %v8256, %v8664
      %v8769 = vmul.f32 %v8257, %v8664
      %v8770 = vmul.f32 %v8258, %v8664
      %v8771 = vmul.f32 %v8259, %v8664
      %v8772 = vmul.f32 %v8260, %v8665
      %v8773 = vmul.f32 %v8261, %v8665
      %v8774 = vmul.f32 %v8262, %v8665
      %v8775 = vmul.f32 %v8263, %v8665
      %v8776 = vmul.f32 %v8264, %v8666
      %v8777 = vmul.f32 %v8265, %v8666
      %v8778 = vmul.f32 %v8266, %v8666
      %v8779 = vmul.f32 %v8267, %v8666
      %v8780 = vmul.f32 %v8268, %v8667
      %v8781 = vmul.f32 %v8269, %v8667
      %v8782 = vmul.f32 %v8270, %v8667
      %v8783 = vmul.f32 %v8271, %v8667
      %v8784 = vmul.f32 %v8272, %v8668
      %v8785 = vmul.f32 %v8273, %v8668
      %v8786 = vmul.f32 %v8274, %v8668
      %v8787 = vmul.f32 %v8275, %v8668
      %v8788 = vmul.f32 %v8276, %v8669
      %v8789 = vmul.f32 %v8277, %v8669
      %v8790 = vmul.f32 %v8278, %v8669
      %v8791 = vmul.f32 %v8279, %v8669
      %v8792 = vmul.f32 %v8280, %v8670
      %v8793 = vmul.f32 %v8281, %v8670
      %v8794 = vmul.f32 %v8282, %v8670
      %v8795 = vmul.f32 %v8283, %v8670
      %v8796 = vmul.f32 %v8284, %v8671
      %v8797 = vmul.f32 %v8285, %v8671
      %v8798 = vmul.f32 %v8286, %v8671
      %v8799 = vmul.f32 %v8287, %v8671
      %v8800 = vpack.c.bf16 %v8676, %v8672
      %v8801 = vpack.c.bf16 %v8677, %v8673
      %v8802 = vpack.c.bf16 %v8678, %v8674
      %v8803 = vpack.c.bf16 %v8679, %v8675
      %v8804 = vpack.c.bf16 %v8684, %v8680
      %v8805 = vpack.c.bf16 %v8685, %v8681
      %v8806 = vpack.c.bf16 %v8686, %v8682
      %v8807 = vpack.c.bf16 %v8687, %v8683
      %v8808 = vpack.c.bf16 %v8692, %v8688
      %v8809 = vpack.c.bf16 %v8693, %v8689
      %v8810 = vpack.c.bf16 %v8694, %v8690
      %v8811 = vpack.c.bf16 %v8695, %v8691
      %v8812 = vpack.c.bf16 %v8700, %v8696
      %v8813 = vpack.c.bf16 %v8701, %v8697
      %v8814 = vpack.c.bf16 %v8702, %v8698
      %v8815 = vpack.c.bf16 %v8703, %v8699
      %v8816 = vpack.c.bf16 %v8708, %v8704
      %v8817 = vpack.c.bf16 %v8709, %v8705
      %v8818 = vpack.c.bf16 %v8710, %v8706
      %v8819 = vpack.c.bf16 %v8711, %v8707
      %v8820 = vpack.c.bf16 %v8716, %v8712
      %v8821 = vpack.c.bf16 %v8717, %v8713
      %v8822 = vpack.c.bf16 %v8718, %v8714
      %v8823 = vpack.c.bf16 %v8719, %v8715
      %v8824 = vpack.c.bf16 %v8724, %v8720
      %v8825 = vpack.c.bf16 %v8725, %v8721
      %v8826 = vpack.c.bf16 %v8726, %v8722
      %v8827 = vpack.c.bf16 %v8727, %v8723
      %v8828 = vpack.c.bf16 %v8732, %v8728
      %v8829 = vpack.c.bf16 %v8733, %v8729
      %v8830 = vpack.c.bf16 %v8734, %v8730
      %v8831 = vpack.c.bf16 %v8735, %v8731
      %v8832 = vpack.c.bf16 %v8740, %v8736
      %v8833 = vpack.c.bf16 %v8741, %v8737
      %v8834 = vpack.c.bf16 %v8742, %v8738
      %v8835 = vpack.c.bf16 %v8743, %v8739
      %v8836 = vpack.c.bf16 %v8748, %v8744
      %v8837 = vpack.c.bf16 %v8749, %v8745
      %v8838 = vpack.c.bf16 %v8750, %v8746
      %v8839 = vpack.c.bf16 %v8751, %v8747
      %v8840 = vpack.c.bf16 %v8756, %v8752
      %v8841 = vpack.c.bf16 %v8757, %v8753
      %v8842 = vpack.c.bf16 %v8758, %v8754
      %v8843 = vpack.c.bf16 %v8759, %v8755
      %v8844 = vpack.c.bf16 %v8764, %v8760
      %v8845 = vpack.c.bf16 %v8765, %v8761
      %v8846 = vpack.c.bf16 %v8766, %v8762
      %v8847 = vpack.c.bf16 %v8767, %v8763
      %v8848 = vpack.c.bf16 %v8772, %v8768
      %v8849 = vpack.c.bf16 %v8773, %v8769
      %v8850 = vpack.c.bf16 %v8774, %v8770
      %v8851 = vpack.c.bf16 %v8775, %v8771
      %v8852 = vpack.c.bf16 %v8780, %v8776
      %v8853 = vpack.c.bf16 %v8781, %v8777
      %v8854 = vpack.c.bf16 %v8782, %v8778
      %v8855 = vpack.c.bf16 %v8783, %v8779
      %v8856 = vpack.c.bf16 %v8788, %v8784
      %v8857 = vpack.c.bf16 %v8789, %v8785
      %v8858 = vpack.c.bf16 %v8790, %v8786
      %v8859 = vpack.c.bf16 %v8791, %v8787
      %v8860 = vpack.c.bf16 %v8796, %v8792
      %v8861 = vpack.c.bf16 %v8797, %v8793
      %v8862 = vpack.c.bf16 %v8798, %v8794
      %v8863 = vpack.c.bf16 %v8799, %v8795
      %v8864 = vld [vmem:[%s5] sm:$0xff]
      %v8865 = vld [vmem:[%s5 + $0x8] sm:$0xff]
      %v8866 = vld [vmem:[%s5 + $0x10] sm:$0xff]
      %v8867 = vld [vmem:[%s5 + $0x18] sm:$0xff]
      %v8868 = vld [vmem:[%s5 + $0x20] sm:$0xff]
      %v8869 = vld [vmem:[%s5 + $0x28] sm:$0xff]
      %v8870 = vld [vmem:[%s5 + $0x30] sm:$0xff]
      %v8871 = vld [vmem:[%s5 + $0x38] sm:$0xff]
      %v8872 = vld [vmem:[%s5 + $0x40] sm:$0xff]
      %v8873 = vld [vmem:[%s5 + $0x48] sm:$0xff]
      %v8874 = vld [vmem:[%s5 + $0x50] sm:$0xff]
      %v8875 = vld [vmem:[%s5 + $0x58] sm:$0xff]
      %v8876 = vld [vmem:[%s5 + $0x60] sm:$0xff]
      %v8877 = vld [vmem:[%s5 + $0x68] sm:$0xff]
      %v8878 = vld [vmem:[%s5 + $0x70] sm:$0xff]
      %v8879 = vld [vmem:[%s5 + $0x78] sm:$0xff]
      %v8880 = vld [vmem:[%s5 + $0x80] sm:$0xff]
      %v8881 = vld [vmem:[%s5 + $0x88] sm:$0xff]
      %v8882 = vld [vmem:[%s5 + $0x90] sm:$0xff]
      %v8883 = vld [vmem:[%s5 + $0x98] sm:$0xff]
      %v8884 = vld [vmem:[%s5 + $0xa0] sm:$0xff]
      %v8885 = vld [vmem:[%s5 + $0xa8] sm:$0xff]
      %v8886 = vld [vmem:[%s5 + $0xb0] sm:$0xff]
      %v8887 = vld [vmem:[%s5 + $0xb8] sm:$0xff]
      %v8888 = vld [vmem:[%s5 + $0xc0] sm:$0xff]
      %v8889 = vld [vmem:[%s5 + $0xc8] sm:$0xff]
      %v8890 = vld [vmem:[%s5 + $0xd0] sm:$0xff]
      %v8891 = vld [vmem:[%s5 + $0xd8] sm:$0xff]
      %v8892 = vld [vmem:[%s5 + $0xe0] sm:$0xff]
      %v8893 = vld [vmem:[%s5 + $0xe8] sm:$0xff]
      %v8894 = vld [vmem:[%s5 + $0xf0] sm:$0xff]
      %v8895 = vld [vmem:[%s5 + $0xf8] sm:$0xff]
      %v8896 = vld [vmem:[%s5 + $0x100] sm:$0xff]
      %v8897 = vld [vmem:[%s5 + $0x108] sm:$0xff]
      %v8898 = vld [vmem:[%s5 + $0x110] sm:$0xff]
      %v8899 = vld [vmem:[%s5 + $0x118] sm:$0xff]
      %v8900 = vld [vmem:[%s5 + $0x120] sm:$0xff]
      %v8901 = vld [vmem:[%s5 + $0x128] sm:$0xff]
      %v8902 = vld [vmem:[%s5 + $0x130] sm:$0xff]
      %v8903 = vld [vmem:[%s5 + $0x138] sm:$0xff]
      %v8904 = vld [vmem:[%s5 + $0x140] sm:$0xff]
      %v8905 = vld [vmem:[%s5 + $0x148] sm:$0xff]
      %v8906 = vld [vmem:[%s5 + $0x150] sm:$0xff]
      %v8907 = vld [vmem:[%s5 + $0x158] sm:$0xff]
      %v8908 = vld [vmem:[%s5 + $0x160] sm:$0xff]
      %v8909 = vld [vmem:[%s5 + $0x168] sm:$0xff]
      %v8910 = vld [vmem:[%s5 + $0x170] sm:$0xff]
      %v8911 = vld [vmem:[%s5 + $0x178] sm:$0xff]
      %v8912 = vld [vmem:[%s5 + $0x180] sm:$0xff]
      %v8913 = vld [vmem:[%s5 + $0x188] sm:$0xff]
      %v8914 = vld [vmem:[%s5 + $0x190] sm:$0xff]
      %v8915 = vld [vmem:[%s5 + $0x198] sm:$0xff]
      %v8916 = vld [vmem:[%s5 + $0x1a0] sm:$0xff]
      %v8917 = vld [vmem:[%s5 + $0x1a8] sm:$0xff]
      %v8918 = vld [vmem:[%s5 + $0x1b0] sm:$0xff]
      %v8919 = vld [vmem:[%s5 + $0x1b8] sm:$0xff]
      %v8920 = vld [vmem:[%s5 + $0x1c0] sm:$0xff]
      %v8921 = vld [vmem:[%s5 + $0x1c8] sm:$0xff]
      %v8922 = vld [vmem:[%s5 + $0x1d0] sm:$0xff]
      %v8923 = vld [vmem:[%s5 + $0x1d8] sm:$0xff]
      %v8924 = vld [vmem:[%s5 + $0x1e0] sm:$0xff]
      %v8925 = vld [vmem:[%s5 + $0x1e8] sm:$0xff]
      %v8926 = vld [vmem:[%s5 + $0x1f0] sm:$0xff]
      %v8927 = vld [vmem:[%s5 + $0x1f8] sm:$0xff]
      %v8928 = vld [vmem:[%s6] sm:$0x3]
      %v8930 = vlaneseq
      %v8931 = vshrl.u32 %v8930, 7
      %v8932 = vsub.s32 0, %v8931
      %v8933 = vrot.slane %v8928, %v8932
      %v8934 = vlaneseq
      %v8935 = vshrl.u32 %v8934, 7
      %v8936 = vsub.s32 1, %v8935
      %v8937 = vrot.slane %v8928, %v8936
      %v9004 = vunpack.c.l.b16 %v8864
      %v9005 = vunpack.c.h.b16 %v8864
      %v9006 = vunpack.c.l.b16 %v8865
      %v9007 = vunpack.c.h.b16 %v8865
      %v9008 = vunpack.c.l.b16 %v8866
      %v9009 = vunpack.c.h.b16 %v8866
      %v9010 = vunpack.c.l.b16 %v8867
      %v9011 = vunpack.c.h.b16 %v8867
      %v9012 = vunpack.c.l.b16 %v8868
      %v9013 = vunpack.c.h.b16 %v8868
      %v9014 = vunpack.c.l.b16 %v8869
      %v9015 = vunpack.c.h.b16 %v8869
      %v9016 = vunpack.c.l.b16 %v8870
      %v9017 = vunpack.c.h.b16 %v8870
      %v9018 = vunpack.c.l.b16 %v8871
      %v9019 = vunpack.c.h.b16 %v8871
      %v9020 = vunpack.c.l.b16 %v8872
      %v9021 = vunpack.c.h.b16 %v8872
      %v9022 = vunpack.c.l.b16 %v8873
      %v9023 = vunpack.c.h.b16 %v8873
      %v9024 = vunpack.c.l.b16 %v8874
      %v9025 = vunpack.c.h.b16 %v8874
      %v9026 = vunpack.c.l.b16 %v8875
      %v9027 = vunpack.c.h.b16 %v8875
      %v9028 = vunpack.c.l.b16 %v8876
      %v9029 = vunpack.c.h.b16 %v8876
      %v9030 = vunpack.c.l.b16 %v8877
      %v9031 = vunpack.c.h.b16 %v8877
      %v9032 = vunpack.c.l.b16 %v8878
      %v9033 = vunpack.c.h.b16 %v8878
      %v9034 = vunpack.c.l.b16 %v8879
      %v9035 = vunpack.c.h.b16 %v8879
      %v9036 = vunpack.c.l.b16 %v8880
      %v9037 = vunpack.c.h.b16 %v8880
      %v9038 = vunpack.c.l.b16 %v8881
      %v9039 = vunpack.c.h.b16 %v8881
      %v9040 = vunpack.c.l.b16 %v8882
      %v9041 = vunpack.c.h.b16 %v8882
      %v9042 = vunpack.c.l.b16 %v8883
      %v9043 = vunpack.c.h.b16 %v8883
      %v9044 = vunpack.c.l.b16 %v8884
      %v9045 = vunpack.c.h.b16 %v8884
      %v9046 = vunpack.c.l.b16 %v8885
      %v9047 = vunpack.c.h.b16 %v8885
      %v9048 = vunpack.c.l.b16 %v8886
      %v9049 = vunpack.c.h.b16 %v8886
      %v9050 = vunpack.c.l.b16 %v8887
      %v9051 = vunpack.c.h.b16 %v8887
      %v9052 = vunpack.c.l.b16 %v8888
      %v9053 = vunpack.c.h.b16 %v8888
      %v9054 = vunpack.c.l.b16 %v8889
      %v9055 = vunpack.c.h.b16 %v8889
      %v9056 = vunpack.c.l.b16 %v8890
      %v9057 = vunpack.c.h.b16 %v8890
      %v9058 = vunpack.c.l.b16 %v8891
      %v9059 = vunpack.c.h.b16 %v8891
      %v9060 = vunpack.c.l.b16 %v8892
      %v9061 = vunpack.c.h.b16 %v8892
      %v9062 = vunpack.c.l.b16 %v8893
      %v9063 = vunpack.c.h.b16 %v8893
      %v9064 = vunpack.c.l.b16 %v8894
      %v9065 = vunpack.c.h.b16 %v8894
      %v9066 = vunpack.c.l.b16 %v8895
      %v9067 = vunpack.c.h.b16 %v8895
      %v9068 = vunpack.c.l.b16 %v8896
      %v9069 = vunpack.c.h.b16 %v8896
      %v9070 = vunpack.c.l.b16 %v8897
      %v9071 = vunpack.c.h.b16 %v8897
      %v9072 = vunpack.c.l.b16 %v8898
      %v9073 = vunpack.c.h.b16 %v8898
      %v9074 = vunpack.c.l.b16 %v8899
      %v9075 = vunpack.c.h.b16 %v8899
      %v9076 = vunpack.c.l.b16 %v8900
      %v9077 = vunpack.c.h.b16 %v8900
      %v9078 = vunpack.c.l.b16 %v8901
      %v9079 = vunpack.c.h.b16 %v8901
      %v9080 = vunpack.c.l.b16 %v8902
      %v9081 = vunpack.c.h.b16 %v8902
      %v9082 = vunpack.c.l.b16 %v8903
      %v9083 = vunpack.c.h.b16 %v8903
      %v9084 = vunpack.c.l.b16 %v8904
      %v9085 = vunpack.c.h.b16 %v8904
      %v9086 = vunpack.c.l.b16 %v8905
      %v9087 = vunpack.c.h.b16 %v8905
      %v9088 = vunpack.c.l.b16 %v8906
      %v9089 = vunpack.c.h.b16 %v8906
      %v9090 = vunpack.c.l.b16 %v8907
      %v9091 = vunpack.c.h.b16 %v8907
      %v9092 = vunpack.c.l.b16 %v8908
      %v9093 = vunpack.c.h.b16 %v8908
      %v9094 = vunpack.c.l.b16 %v8909
      %v9095 = vunpack.c.h.b16 %v8909
      %v9096 = vunpack.c.l.b16 %v8910
      %v9097 = vunpack.c.h.b16 %v8910
      %v9098 = vunpack.c.l.b16 %v8911
      %v9099 = vunpack.c.h.b16 %v8911
      %v9100 = vunpack.c.l.b16 %v8912
      %v9101 = vunpack.c.h.b16 %v8912
      %v9102 = vunpack.c.l.b16 %v8913
      %v9103 = vunpack.c.h.b16 %v8913
      %v9104 = vunpack.c.l.b16 %v8914
      %v9105 = vunpack.c.h.b16 %v8914
      %v9106 = vunpack.c.l.b16 %v8915
      %v9107 = vunpack.c.h.b16 %v8915
      %v9108 = vunpack.c.l.b16 %v8916
      %v9109 = vunpack.c.h.b16 %v8916
      %v9110 = vunpack.c.l.b16 %v8917
      %v9111 = vunpack.c.h.b16 %v8917
      %v9112 = vunpack.c.l.b16 %v8918
      %v9113 = vunpack.c.h.b16 %v8918
      %v9114 = vunpack.c.l.b16 %v8919
      %v9115 = vunpack.c.h.b16 %v8919
      %v9116 = vunpack.c.l.b16 %v8920
      %v9117 = vunpack.c.h.b16 %v8920
      %v9118 = vunpack.c.l.b16 %v8921
      %v9119 = vunpack.c.h.b16 %v8921
      %v9120 = vunpack.c.l.b16 %v8922
      %v9121 = vunpack.c.h.b16 %v8922
      %v9122 = vunpack.c.l.b16 %v8923
      %v9123 = vunpack.c.h.b16 %v8923
      %v9124 = vunpack.c.l.b16 %v8924
      %v9125 = vunpack.c.h.b16 %v8924
      %v9126 = vunpack.c.l.b16 %v8925
      %v9127 = vunpack.c.h.b16 %v8925
      %v9128 = vunpack.c.l.b16 %v8926
      %v9129 = vunpack.c.h.b16 %v8926
      %v9130 = vunpack.c.l.b16 %v8927
      %v9131 = vunpack.c.h.b16 %v8927
      %v9132 = vpack.c.b16 %v9006, %v9004
      %v9133 = vpack.c.b16 %v9007, %v9005
      %v9134 = vpack.c.b16 %v9010, %v9008
      %v9135 = vpack.c.b16 %v9011, %v9009
      %v9136 = vpack.c.b16 %v9014, %v9012
      %v9137 = vpack.c.b16 %v9015, %v9013
      %v9138 = vpack.c.b16 %v9018, %v9016
      %v9139 = vpack.c.b16 %v9019, %v9017
      %v9140 = vpack.c.b16 %v9022, %v9020
      %v9141 = vpack.c.b16 %v9023, %v9021
      %v9142 = vpack.c.b16 %v9026, %v9024
      %v9143 = vpack.c.b16 %v9027, %v9025
      %v9144 = vpack.c.b16 %v9030, %v9028
      %v9145 = vpack.c.b16 %v9031, %v9029
      %v9146 = vpack.c.b16 %v9034, %v9032
      %v9147 = vpack.c.b16 %v9035, %v9033
      %v9148 = vpack.c.b16 %v9038, %v9036
      %v9149 = vpack.c.b16 %v9039, %v9037
      %v9150 = vpack.c.b16 %v9042, %v9040
      %v9151 = vpack.c.b16 %v9043, %v9041
      %v9152 = vpack.c.b16 %v9046, %v9044
      %v9153 = vpack.c.b16 %v9047, %v9045
      %v9154 = vpack.c.b16 %v9050, %v9048
      %v9155 = vpack.c.b16 %v9051, %v9049
      %v9156 = vpack.c.b16 %v9054, %v9052
      %v9157 = vpack.c.b16 %v9055, %v9053
      %v9158 = vpack.c.b16 %v9058, %v9056
      %v9159 = vpack.c.b16 %v9059, %v9057
      %v9160 = vpack.c.b16 %v9062, %v9060
      %v9161 = vpack.c.b16 %v9063, %v9061
      %v9162 = vpack.c.b16 %v9066, %v9064
      %v9163 = vpack.c.b16 %v9067, %v9065
      %v9164 = vpack.c.b16 %v9070, %v9068
      %v9165 = vpack.c.b16 %v9071, %v9069
      %v9166 = vpack.c.b16 %v9074, %v9072
      %v9167 = vpack.c.b16 %v9075, %v9073
      %v9168 = vpack.c.b16 %v9078, %v9076
      %v9169 = vpack.c.b16 %v9079, %v9077
      %v9170 = vpack.c.b16 %v9082, %v9080
      %v9171 = vpack.c.b16 %v9083, %v9081
      %v9172 = vpack.c.b16 %v9086, %v9084
      %v9173 = vpack.c.b16 %v9087, %v9085
      %v9174 = vpack.c.b16 %v9090, %v9088
      %v9175 = vpack.c.b16 %v9091, %v9089
      %v9176 = vpack.c.b16 %v9094, %v9092
      %v9177 = vpack.c.b16 %v9095, %v9093
      %v9178 = vpack.c.b16 %v9098, %v9096
      %v9179 = vpack.c.b16 %v9099, %v9097
      %v9180 = vpack.c.b16 %v9102, %v9100
      %v9181 = vpack.c.b16 %v9103, %v9101
      %v9182 = vpack.c.b16 %v9106, %v9104
      %v9183 = vpack.c.b16 %v9107, %v9105
      %v9184 = vpack.c.b16 %v9110, %v9108
      %v9185 = vpack.c.b16 %v9111, %v9109
      %v9186 = vpack.c.b16 %v9114, %v9112
      %v9187 = vpack.c.b16 %v9115, %v9113
      %v9188 = vpack.c.b16 %v9118, %v9116
      %v9189 = vpack.c.b16 %v9119, %v9117
      %v9190 = vpack.c.b16 %v9122, %v9120
      %v9191 = vpack.c.b16 %v9123, %v9121
      %v9192 = vpack.c.b16 %v9126, %v9124
      %v9193 = vpack.c.b16 %v9127, %v9125
      %v9194 = vpack.c.b16 %v9130, %v9128
      %v9195 = vpack.c.b16 %v9131, %v9129
      %9260 = vmatprep.subr.bf16.mxu0 %v9147
      %9261 = vmatpush1.bf16.msra.mxu0 %v9146
      %9262 = vmatprep.subr.bf16.mxu0 %v9145
      %9263 = vmatpush1.bf16.msra.mxu0 %v9144
      %9264 = vmatprep.subr.bf16.mxu0 %v9143
      %9265 = vmatpush1.bf16.msra.mxu0 %v9142
      %9266 = vmatprep.subr.bf16.mxu0 %v9141
      %9267 = vmatpush1.bf16.msra.mxu0 %v9140
      %9268 = vmatprep.subr.bf16.mxu0 %v9139
      %9269 = vmatpush1.bf16.msra.mxu0 %v9138
      %9270 = vmatprep.subr.bf16.mxu0 %v9137
      %9271 = vmatpush1.bf16.msra.mxu0 %v9136
      %9272 = vmatprep.subr.bf16.mxu0 %v9135
      %9273 = vmatpush1.bf16.msra.mxu0 %v9134
      %9274 = vmatprep.subr.bf16.mxu0 %v9133
      %9275 = vmatpush1.bf16.msra.mxu0 %v9132
      %9276 = vmatprep.subr.bf16.mxu0 %v9163
      %9277 = vmatpush2.bf16.msra.mxu0 %v9162
      %9278 = vmatprep.subr.bf16.mxu0 %v9161
      %9279 = vmatpush2.bf16.msra.mxu0 %v9160
      %9280 = vmatprep.subr.bf16.mxu0 %v9159
      %9281 = vmatpush2.bf16.msra.mxu0 %v9158
      %9282 = vmatprep.subr.bf16.mxu0 %v9157
      %9283 = vmatpush2.bf16.msra.mxu0 %v9156
      %9284 = vmatprep.subr.bf16.mxu0 %v9155
      %9285 = vmatpush2.bf16.msra.mxu0 %v9154
      %9286 = vmatprep.subr.bf16.mxu0 %v9153
      %9287 = vmatpush2.bf16.msra.mxu0 %v9152
      %9288 = vmatprep.subr.bf16.mxu0 %v9151
      %9289 = vmatpush2.bf16.msra.mxu0 %v9150
      %9290 = vmatprep.subr.bf16.mxu0 %v9149
      %9291 = vmatpush2.bf16.msra.mxu0 %v9148
      %9292 = vmatprep.mubr.bf16.mxu0 %v8801
      %9293 = vmatmul.mubr.bf16.gmra.mxu0 %v8800
      %v9294 = vpop.f32.mrf.mxu0
      %v9295 = vadd.f32 %v8933, %v9294
      %v9296 = vpop.f32.mrf.mxu0
      %v9297 = vadd.f32 %v8937, %v9296
      %v9298 = vpop.f32.mrf.mxu0
      %v9299 = vadd.f32 %v8933, %v9298
      %v9300 = vpop.f32.mrf.mxu0
      %v9301 = vadd.f32 %v8937, %v9300
      %9302 = vmatprep.mubr.bf16.mxu0 %v8805
      %9303 = vmatmul.mubr.bf16.gmra.mxu0 %v8804
      %v9304 = vpop.f32.mrf.mxu0
      %v9305 = vadd.f32 %v8933, %v9304
      %v9306 = vpop.f32.mrf.mxu0
      %v9307 = vadd.f32 %v8937, %v9306
      %v9308 = vpop.f32.mrf.mxu0
      %v9309 = vadd.f32 %v8933, %v9308
      %v9310 = vpop.f32.mrf.mxu0
      %v9311 = vadd.f32 %v8937, %v9310
      %9312 = vmatprep.mubr.bf16.mxu0 %v8809
      %9313 = vmatmul.mubr.bf16.gmra.mxu0 %v8808
      %v9314 = vpop.f32.mrf.mxu0
      %v9315 = vadd.f32 %v8933, %v9314
      %v9316 = vpop.f32.mrf.mxu0
      %v9317 = vadd.f32 %v8937, %v9316
      %v9318 = vpop.f32.mrf.mxu0
      %v9319 = vadd.f32 %v8933, %v9318
      %v9320 = vpop.f32.mrf.mxu0
      %v9321 = vadd.f32 %v8937, %v9320
      %9322 = vmatprep.mubr.bf16.mxu0 %v8813
      %9323 = vmatmul.mubr.bf16.gmra.mxu0 %v8812
      %v9324 = vpop.f32.mrf.mxu0
      %v9325 = vadd.f32 %v8933, %v9324
      %v9326 = vpop.f32.mrf.mxu0
      %v9327 = vadd.f32 %v8937, %v9326
      %v9328 = vpop.f32.mrf.mxu0
      %v9329 = vadd.f32 %v8933, %v9328
      %v9330 = vpop.f32.mrf.mxu0
      %v9331 = vadd.f32 %v8937, %v9330
      %9332 = vmatprep.mubr.bf16.mxu0 %v8817
      %9333 = vmatmul.mubr.bf16.gmra.mxu0 %v8816
      %v9334 = vpop.f32.mrf.mxu0
      %v9335 = vadd.f32 %v8933, %v9334
      %v9336 = vpop.f32.mrf.mxu0
      %v9337 = vadd.f32 %v8937, %v9336
      %v9338 = vpop.f32.mrf.mxu0
      %v9339 = vadd.f32 %v8933, %v9338
      %v9340 = vpop.f32.mrf.mxu0
      %v9341 = vadd.f32 %v8937, %v9340
      %9342 = vmatprep.mubr.bf16.mxu0 %v8821
      %9343 = vmatmul.mubr.bf16.gmra.mxu0 %v8820
      %v9344 = vpop.f32.mrf.mxu0
      %v9345 = vadd.f32 %v8933, %v9344
      %v9346 = vpop.f32.mrf.mxu0
      %v9347 = vadd.f32 %v8937, %v9346
      %v9348 = vpop.f32.mrf.mxu0
      %v9349 = vadd.f32 %v8933, %v9348
      %v9350 = vpop.f32.mrf.mxu0
      %v9351 = vadd.f32 %v8937, %v9350
      %9352 = vmatprep.mubr.bf16.mxu0 %v8825
      %9353 = vmatmul.mubr.bf16.gmra.mxu0 %v8824
      %v9354 = vpop.f32.mrf.mxu0
      %v9355 = vadd.f32 %v8933, %v9354
      %v9356 = vpop.f32.mrf.mxu0
      %v9357 = vadd.f32 %v8937, %v9356
      %v9358 = vpop.f32.mrf.mxu0
      %v9359 = vadd.f32 %v8933, %v9358
      %v9360 = vpop.f32.mrf.mxu0
      %v9361 = vadd.f32 %v8937, %v9360
      %9362 = vmatprep.mubr.bf16.mxu0 %v8829
      %9363 = vmatmul.mubr.bf16.gmra.mxu0 %v8828
      %v9364 = vpop.f32.mrf.mxu0
      %v9365 = vadd.f32 %v8933, %v9364
      %v9366 = vpop.f32.mrf.mxu0
      %v9367 = vadd.f32 %v8937, %v9366
      %v9368 = vpop.f32.mrf.mxu0
      %v9369 = vadd.f32 %v8933, %v9368
      %v9370 = vpop.f32.mrf.mxu0
      %v9371 = vadd.f32 %v8937, %v9370
      %9372 = vmatprep.mubr.bf16.mxu0 %v8833
      %9373 = vmatmul.mubr.bf16.gmra.mxu0 %v8832
      %v9374 = vpop.f32.mrf.mxu0
      %v9375 = vadd.f32 %v8933, %v9374
      %v9376 = vpop.f32.mrf.mxu0
      %v9377 = vadd.f32 %v8937, %v9376
      %v9378 = vpop.f32.mrf.mxu0
      %v9379 = vadd.f32 %v8933, %v9378
      %v9380 = vpop.f32.mrf.mxu0
      %v9381 = vadd.f32 %v8937, %v9380
      %9382 = vmatprep.mubr.bf16.mxu0 %v8837
      %9383 = vmatmul.mubr.bf16.gmra.mxu0 %v8836
      %v9384 = vpop.f32.mrf.mxu0
      %v9385 = vadd.f32 %v8933, %v9384
      %v9386 = vpop.f32.mrf.mxu0
      %v9387 = vadd.f32 %v8937, %v9386
      %v9388 = vpop.f32.mrf.mxu0
      %v9389 = vadd.f32 %v8933, %v9388
      %v9390 = vpop.f32.mrf.mxu0
      %v9391 = vadd.f32 %v8937, %v9390
      %9392 = vmatprep.mubr.bf16.mxu0 %v8841
      %9393 = vmatmul.mubr.bf16.gmra.mxu0 %v8840
      %v9394 = vpop.f32.mrf.mxu0
      %v9395 = vadd.f32 %v8933, %v9394
      %v9396 = vpop.f32.mrf.mxu0
      %v9397 = vadd.f32 %v8937, %v9396
      %v9398 = vpop.f32.mrf.mxu0
      %v9399 = vadd.f32 %v8933, %v9398
      %v9400 = vpop.f32.mrf.mxu0
      %v9401 = vadd.f32 %v8937, %v9400
      %9402 = vmatprep.mubr.bf16.mxu0 %v8845
      %9403 = vmatmul.mubr.bf16.gmra.mxu0 %v8844
      %v9404 = vpop.f32.mrf.mxu0
      %v9405 = vadd.f32 %v8933, %v9404
      %v9406 = vpop.f32.mrf.mxu0
      %v9407 = vadd.f32 %v8937, %v9406
      %v9408 = vpop.f32.mrf.mxu0
      %v9409 = vadd.f32 %v8933, %v9408
      %v9410 = vpop.f32.mrf.mxu0
      %v9411 = vadd.f32 %v8937, %v9410
      %9412 = vmatprep.mubr.bf16.mxu0 %v8849
      %9413 = vmatmul.mubr.bf16.gmra.mxu0 %v8848
      %v9414 = vpop.f32.mrf.mxu0
      %v9415 = vadd.f32 %v8933, %v9414
      %v9416 = vpop.f32.mrf.mxu0
      %v9417 = vadd.f32 %v8937, %v9416
      %v9418 = vpop.f32.mrf.mxu0
      %v9419 = vadd.f32 %v8933, %v9418
      %v9420 = vpop.f32.mrf.mxu0
      %v9421 = vadd.f32 %v8937, %v9420
      %9422 = vmatprep.mubr.bf16.mxu0 %v8853
      %9423 = vmatmul.mubr.bf16.gmra.mxu0 %v8852
      %v9424 = vpop.f32.mrf.mxu0
      %v9425 = vadd.f32 %v8933, %v9424
      %v9426 = vpop.f32.mrf.mxu0
      %v9427 = vadd.f32 %v8937, %v9426
      %v9428 = vpop.f32.mrf.mxu0
      %v9429 = vadd.f32 %v8933, %v9428
      %v9430 = vpop.f32.mrf.mxu0
      %v9431 = vadd.f32 %v8937, %v9430
      %9432 = vmatprep.mubr.bf16.mxu0 %v8857
      %9433 = vmatmul.mubr.bf16.gmra.mxu0 %v8856
      %v9434 = vpop.f32.mrf.mxu0
      %v9435 = vadd.f32 %v8933, %v9434
      %v9436 = vpop.f32.mrf.mxu0
      %v9437 = vadd.f32 %v8937, %v9436
      %v9438 = vpop.f32.mrf.mxu0
      %v9439 = vadd.f32 %v8933, %v9438
      %v9440 = vpop.f32.mrf.mxu0
      %v9441 = vadd.f32 %v8937, %v9440
      %9442 = vmatprep.mubr.bf16.mxu0 %v8861
      %9443 = vmatmul.mubr.bf16.gmra.mxu0 %v8860
      %v9444 = vpop.f32.mrf.mxu0
      %v9445 = vadd.f32 %v8933, %v9444
      %v9446 = vpop.f32.mrf.mxu0
      %v9447 = vadd.f32 %v8937, %v9446
      %v9448 = vpop.f32.mrf.mxu0
      %v9449 = vadd.f32 %v8933, %v9448
      %v9450 = vpop.f32.mrf.mxu0
      %v9451 = vadd.f32 %v8937, %v9450
      %9452 = vdwg.mxu0
      %9453 = vmatprep.subr.bf16.mxu0 %v9179
      %9454 = vmatpush1.bf16.msra.mxu0 %v9178
      %9455 = vmatprep.subr.bf16.mxu0 %v9177
      %9456 = vmatpush1.bf16.msra.mxu0 %v9176
      %9457 = vmatprep.subr.bf16.mxu0 %v9175
      %9458 = vmatpush1.bf16.msra.mxu0 %v9174
      %9459 = vmatprep.subr.bf16.mxu0 %v9173
      %9460 = vmatpush1.bf16.msra.mxu0 %v9172
      %9461 = vmatprep.subr.bf16.mxu0 %v9171
      %9462 = vmatpush1.bf16.msra.mxu0 %v9170
      %9463 = vmatprep.subr.bf16.mxu0 %v9169
      %9464 = vmatpush1.bf16.msra.mxu0 %v9168
      %9465 = vmatprep.subr.bf16.mxu0 %v9167
      %9466 = vmatpush1.bf16.msra.mxu0 %v9166
      %9467 = vmatprep.subr.bf16.mxu0 %v9165
      %9468 = vmatpush1.bf16.msra.mxu0 %v9164
      %9469 = vmatprep.subr.bf16.mxu0 %v9195
      %9470 = vmatpush2.bf16.msra.mxu0 %v9194
      %9471 = vmatprep.subr.bf16.mxu0 %v9193
      %9472 = vmatpush2.bf16.msra.mxu0 %v9192
      %9473 = vmatprep.subr.bf16.mxu0 %v9191
      %9474 = vmatpush2.bf16.msra.mxu0 %v9190
      %9475 = vmatprep.subr.bf16.mxu0 %v9189
      %9476 = vmatpush2.bf16.msra.mxu0 %v9188
      %9477 = vmatprep.subr.bf16.mxu0 %v9187
      %9478 = vmatpush2.bf16.msra.mxu0 %v9186
      %9479 = vmatprep.subr.bf16.mxu0 %v9185
      %9480 = vmatpush2.bf16.msra.mxu0 %v9184
      %9481 = vmatprep.subr.bf16.mxu0 %v9183
      %9482 = vmatpush2.bf16.msra.mxu0 %v9182
      %9483 = vmatprep.subr.bf16.mxu0 %v9181
      %9484 = vmatpush2.bf16.msra.mxu0 %v9180
      %9485 = vmatprep.mubr.bf16.mxu0 %v8803
      %9486 = vmatmul.mubr.bf16.gmra.mxu0 %v8802
      %v9487 = vpop.f32.mrf.mxu0
      %v9488 = vadd.f32 %v9295, %v9487
      %v9489 = vpop.f32.mrf.mxu0
      %v9490 = vadd.f32 %v9297, %v9489
      %v9491 = vpop.f32.mrf.mxu0
      %v9492 = vadd.f32 %v9299, %v9491
      %v9493 = vpop.f32.mrf.mxu0
      %v9494 = vadd.f32 %v9301, %v9493
      %9495 = vmatprep.mubr.bf16.mxu0 %v8807
      %9496 = vmatmul.mubr.bf16.gmra.mxu0 %v8806
      %v9497 = vpop.f32.mrf.mxu0
      %v9498 = vadd.f32 %v9305, %v9497
      %v9499 = vpop.f32.mrf.mxu0
      %v9500 = vadd.f32 %v9307, %v9499
      %v9501 = vpop.f32.mrf.mxu0
      %v9502 = vadd.f32 %v9309, %v9501
      %v9503 = vpop.f32.mrf.mxu0
      %v9504 = vadd.f32 %v9311, %v9503
      %9505 = vmatprep.mubr.bf16.mxu0 %v8811
      %9506 = vmatmul.mubr.bf16.gmra.mxu0 %v8810
      %v9507 = vpop.f32.mrf.mxu0
      %v9508 = vadd.f32 %v9315, %v9507
      %v9509 = vpop.f32.mrf.mxu0
      %v9510 = vadd.f32 %v9317, %v9509
      %v9511 = vpop.f32.mrf.mxu0
      %v9512 = vadd.f32 %v9319, %v9511
      %v9513 = vpop.f32.mrf.mxu0
      %v9514 = vadd.f32 %v9321, %v9513
      %9515 = vmatprep.mubr.bf16.mxu0 %v8815
      %9516 = vmatmul.mubr.bf16.gmra.mxu0 %v8814
      %v9517 = vpop.f32.mrf.mxu0
      %v9518 = vadd.f32 %v9325, %v9517
      %v9519 = vpop.f32.mrf.mxu0
      %v9520 = vadd.f32 %v9327, %v9519
      %v9521 = vpop.f32.mrf.mxu0
      %v9522 = vadd.f32 %v9329, %v9521
      %v9523 = vpop.f32.mrf.mxu0
      %v9524 = vadd.f32 %v9331, %v9523
      %9525 = vmatprep.mubr.bf16.mxu0 %v8819
      %9526 = vmatmul.mubr.bf16.gmra.mxu0 %v8818
      %v9527 = vpop.f32.mrf.mxu0
      %v9528 = vadd.f32 %v9335, %v9527
      %v9529 = vpop.f32.mrf.mxu0
      %v9530 = vadd.f32 %v9337, %v9529
      %v9531 = vpop.f32.mrf.mxu0
      %v9532 = vadd.f32 %v9339, %v9531
      %v9533 = vpop.f32.mrf.mxu0
      %v9534 = vadd.f32 %v9341, %v9533
      %9535 = vmatprep.mubr.bf16.mxu0 %v8823
      %9536 = vmatmul.mubr.bf16.gmra.mxu0 %v8822
      %v9537 = vpop.f32.mrf.mxu0
      %v9538 = vadd.f32 %v9345, %v9537
      %v9539 = vpop.f32.mrf.mxu0
      %v9540 = vadd.f32 %v9347, %v9539
      %v9541 = vpop.f32.mrf.mxu0
      %v9542 = vadd.f32 %v9349, %v9541
      %v9543 = vpop.f32.mrf.mxu0
      %v9544 = vadd.f32 %v9351, %v9543
      %9545 = vmatprep.mubr.bf16.mxu0 %v8827
      %9546 = vmatmul.mubr.bf16.gmra.mxu0 %v8826
      %v9547 = vpop.f32.mrf.mxu0
      %v9548 = vadd.f32 %v9355, %v9547
      %v9549 = vpop.f32.mrf.mxu0
      %v9550 = vadd.f32 %v9357, %v9549
      %v9551 = vpop.f32.mrf.mxu0
      %v9552 = vadd.f32 %v9359, %v9551
      %v9553 = vpop.f32.mrf.mxu0
      %v9554 = vadd.f32 %v9361, %v9553
      %9555 = vmatprep.mubr.bf16.mxu0 %v8831
      %9556 = vmatmul.mubr.bf16.gmra.mxu0 %v8830
      %v9557 = vpop.f32.mrf.mxu0
      %v9558 = vadd.f32 %v9365, %v9557
      %v9559 = vpop.f32.mrf.mxu0
      %v9560 = vadd.f32 %v9367, %v9559
      %v9561 = vpop.f32.mrf.mxu0
      %v9562 = vadd.f32 %v9369, %v9561
      %v9563 = vpop.f32.mrf.mxu0
      %v9564 = vadd.f32 %v9371, %v9563
      %9565 = vmatprep.mubr.bf16.mxu0 %v8835
      %9566 = vmatmul.mubr.bf16.gmra.mxu0 %v8834
      %v9567 = vpop.f32.mrf.mxu0
      %v9568 = vadd.f32 %v9375, %v9567
      %v9569 = vpop.f32.mrf.mxu0
      %v9570 = vadd.f32 %v9377, %v9569
      %v9571 = vpop.f32.mrf.mxu0
      %v9572 = vadd.f32 %v9379, %v9571
      %v9573 = vpop.f32.mrf.mxu0
      %v9574 = vadd.f32 %v9381, %v9573
      %9575 = vmatprep.mubr.bf16.mxu0 %v8839
      %9576 = vmatmul.mubr.bf16.gmra.mxu0 %v8838
      %v9577 = vpop.f32.mrf.mxu0
      %v9578 = vadd.f32 %v9385, %v9577
      %v9579 = vpop.f32.mrf.mxu0
      %v9580 = vadd.f32 %v9387, %v9579
      %v9581 = vpop.f32.mrf.mxu0
      %v9582 = vadd.f32 %v9389, %v9581
      %v9583 = vpop.f32.mrf.mxu0
      %v9584 = vadd.f32 %v9391, %v9583
      %9585 = vmatprep.mubr.bf16.mxu0 %v8843
      %9586 = vmatmul.mubr.bf16.gmra.mxu0 %v8842
      %v9587 = vpop.f32.mrf.mxu0
      %v9588 = vadd.f32 %v9395, %v9587
      %v9589 = vpop.f32.mrf.mxu0
      %v9590 = vadd.f32 %v9397, %v9589
      %v9591 = vpop.f32.mrf.mxu0
      %v9592 = vadd.f32 %v9399, %v9591
      %v9593 = vpop.f32.mrf.mxu0
      %v9594 = vadd.f32 %v9401, %v9593
      %9595 = vmatprep.mubr.bf16.mxu0 %v8847
      %9596 = vmatmul.mubr.bf16.gmra.mxu0 %v8846
      %v9597 = vpop.f32.mrf.mxu0
      %v9598 = vadd.f32 %v9405, %v9597
      %v9599 = vpop.f32.mrf.mxu0
      %v9600 = vadd.f32 %v9407, %v9599
      %v9601 = vpop.f32.mrf.mxu0
      %v9602 = vadd.f32 %v9409, %v9601
      %v9603 = vpop.f32.mrf.mxu0
      %v9604 = vadd.f32 %v9411, %v9603
      %9605 = vmatprep.mubr.bf16.mxu0 %v8851
      %9606 = vmatmul.mubr.bf16.gmra.mxu0 %v8850
      %v9607 = vpop.f32.mrf.mxu0
      %v9608 = vadd.f32 %v9415, %v9607
      %v9609 = vpop.f32.mrf.mxu0
      %v9610 = vadd.f32 %v9417, %v9609
      %v9611 = vpop.f32.mrf.mxu0
      %v9612 = vadd.f32 %v9419, %v9611
      %v9613 = vpop.f32.mrf.mxu0
      %v9614 = vadd.f32 %v9421, %v9613
      %9615 = vmatprep.mubr.bf16.mxu0 %v8855
      %9616 = vmatmul.mubr.bf16.gmra.mxu0 %v8854
      %v9617 = vpop.f32.mrf.mxu0
      %v9618 = vadd.f32 %v9425, %v9617
      %v9619 = vpop.f32.mrf.mxu0
      %v9620 = vadd.f32 %v9427, %v9619
      %v9621 = vpop.f32.mrf.mxu0
      %v9622 = vadd.f32 %v9429, %v9621
      %v9623 = vpop.f32.mrf.mxu0
      %v9624 = vadd.f32 %v9431, %v9623
      %9625 = vmatprep.mubr.bf16.mxu0 %v8859
      %9626 = vmatmul.mubr.bf16.gmra.mxu0 %v8858
      %v9627 = vpop.f32.mrf.mxu0
      %v9628 = vadd.f32 %v9435, %v9627
      %v9629 = vpop.f32.mrf.mxu0
      %v9630 = vadd.f32 %v9437, %v9629
      %v9631 = vpop.f32.mrf.mxu0
      %v9632 = vadd.f32 %v9439, %v9631
      %v9633 = vpop.f32.mrf.mxu0
      %v9634 = vadd.f32 %v9441, %v9633
      %9635 = vmatprep.mubr.bf16.mxu0 %v8863
      %9636 = vmatmul.mubr.bf16.gmra.mxu0 %v8862
      %v9637 = vpop.f32.mrf.mxu0
      %v9638 = vadd.f32 %v9445, %v9637
      %v9639 = vpop.f32.mrf.mxu0
      %v9640 = vadd.f32 %v9447, %v9639
      %v9641 = vpop.f32.mrf.mxu0
      %v9642 = vadd.f32 %v9449, %v9641
      %v9643 = vpop.f32.mrf.mxu0
      %v9644 = vadd.f32 %v9451, %v9643
      %9645 = vdwg.mxu0
      %v9646 = vmul.f32 %v9488, 0.5
      %v9647 = vmul.f32 %v9490, 0.5
      %v9648 = vmul.f32 %v9492, 0.5
      %v9649 = vmul.f32 %v9494, 0.5
      %v9650 = vmul.f32 %v9498, 0.5
      %v9651 = vmul.f32 %v9500, 0.5
      %v9652 = vmul.f32 %v9502, 0.5
      %v9653 = vmul.f32 %v9504, 0.5
      %v9654 = vmul.f32 %v9508, 0.5
      %v9655 = vmul.f32 %v9510, 0.5
      %v9656 = vmul.f32 %v9512, 0.5
      %v9657 = vmul.f32 %v9514, 0.5
      %v9658 = vmul.f32 %v9518, 0.5
      %v9659 = vmul.f32 %v9520, 0.5
      %v9660 = vmul.f32 %v9522, 0.5
      %v9661 = vmul.f32 %v9524, 0.5
      %v9662 = vmul.f32 %v9528, 0.5
      %v9663 = vmul.f32 %v9530, 0.5
      %v9664 = vmul.f32 %v9532, 0.5
      %v9665 = vmul.f32 %v9534, 0.5
      %v9666 = vmul.f32 %v9538, 0.5
      %v9667 = vmul.f32 %v9540, 0.5
      %v9668 = vmul.f32 %v9542, 0.5
      %v9669 = vmul.f32 %v9544, 0.5
      %v9670 = vmul.f32 %v9548, 0.5
      %v9671 = vmul.f32 %v9550, 0.5
      %v9672 = vmul.f32 %v9552, 0.5
      %v9673 = vmul.f32 %v9554, 0.5
      %v9674 = vmul.f32 %v9558, 0.5
      %v9675 = vmul.f32 %v9560, 0.5
      %v9676 = vmul.f32 %v9562, 0.5
      %v9677 = vmul.f32 %v9564, 0.5
      %v9678 = vmul.f32 %v9568, 0.5
      %v9679 = vmul.f32 %v9570, 0.5
      %v9680 = vmul.f32 %v9572, 0.5
      %v9681 = vmul.f32 %v9574, 0.5
      %v9682 = vmul.f32 %v9578, 0.5
      %v9683 = vmul.f32 %v9580, 0.5
      %v9684 = vmul.f32 %v9582, 0.5
      %v9685 = vmul.f32 %v9584, 0.5
      %v9686 = vmul.f32 %v9588, 0.5
      %v9687 = vmul.f32 %v9590, 0.5
      %v9688 = vmul.f32 %v9592, 0.5
      %v9689 = vmul.f32 %v9594, 0.5
      %v9690 = vmul.f32 %v9598, 0.5
      %v9691 = vmul.f32 %v9600, 0.5
      %v9692 = vmul.f32 %v9602, 0.5
      %v9693 = vmul.f32 %v9604, 0.5
      %v9694 = vmul.f32 %v9608, 0.5
      %v9695 = vmul.f32 %v9610, 0.5
      %v9696 = vmul.f32 %v9612, 0.5
      %v9697 = vmul.f32 %v9614, 0.5
      %v9698 = vmul.f32 %v9618, 0.5
      %v9699 = vmul.f32 %v9620, 0.5
      %v9700 = vmul.f32 %v9622, 0.5
      %v9701 = vmul.f32 %v9624, 0.5
      %v9702 = vmul.f32 %v9628, 0.5
      %v9703 = vmul.f32 %v9630, 0.5
      %v9704 = vmul.f32 %v9632, 0.5
      %v9705 = vmul.f32 %v9634, 0.5
      %v9706 = vmul.f32 %v9638, 0.5
      %v9707 = vmul.f32 %v9640, 0.5
      %v9708 = vmul.f32 %v9642, 0.5
      %v9709 = vmul.f32 %v9644, 0.5
      %v9710 = vmul.f32 %v9488, 0.70710677
      %v9711 = vmul.f32 %v9490, 0.70710677
      %v9712 = vmul.f32 %v9492, 0.70710677
      %v9713 = vmul.f32 %v9494, 0.70710677
      %v9714 = vmul.f32 %v9498, 0.70710677
      %v9715 = vmul.f32 %v9500, 0.70710677
      %v9716 = vmul.f32 %v9502, 0.70710677
      %v9717 = vmul.f32 %v9504, 0.70710677
      %v9718 = vmul.f32 %v9508, 0.70710677
      %v9719 = vmul.f32 %v9510, 0.70710677
      %v9720 = vmul.f32 %v9512, 0.70710677
      %v9721 = vmul.f32 %v9514, 0.70710677
      %v9722 = vmul.f32 %v9518, 0.70710677
      %v9723 = vmul.f32 %v9520, 0.70710677
      %v9724 = vmul.f32 %v9522, 0.70710677
      %v9725 = vmul.f32 %v9524, 0.70710677
      %v9726 = vmul.f32 %v9528, 0.70710677
      %v9727 = vmul.f32 %v9530, 0.70710677
      %v9728 = vmul.f32 %v9532, 0.70710677
      %v9729 = vmul.f32 %v9534, 0.70710677
      %v9730 = vmul.f32 %v9538, 0.70710677
      %v9731 = vmul.f32 %v9540, 0.70710677
      %v9732 = vmul.f32 %v9542, 0.70710677
      %v9733 = vmul.f32 %v9544, 0.70710677
      %v9734 = vmul.f32 %v9548, 0.70710677
      %v9735 = vmul.f32 %v9550, 0.70710677
      %v9736 = vmul.f32 %v9552, 0.70710677
      %v9737 = vmul.f32 %v9554, 0.70710677
      %v9738 = vmul.f32 %v9558, 0.70710677
      %v9739 = vmul.f32 %v9560, 0.70710677
      %v9740 = vmul.f32 %v9562, 0.70710677
      %v9741 = vmul.f32 %v9564, 0.70710677
      %v9742 = vmul.f32 %v9568, 0.70710677
      %v9743 = vmul.f32 %v9570, 0.70710677
      %v9744 = vmul.f32 %v9572, 0.70710677
      %v9745 = vmul.f32 %v9574, 0.70710677
      %v9746 = vmul.f32 %v9578, 0.70710677
      %v9747 = vmul.f32 %v9580, 0.70710677
      %v9748 = vmul.f32 %v9582, 0.70710677
      %v9749 = vmul.f32 %v9584, 0.70710677
      %v9750 = vmul.f32 %v9588, 0.70710677
      %v9751 = vmul.f32 %v9590, 0.70710677
      %v9752 = vmul.f32 %v9592, 0.70710677
      %v9753 = vmul.f32 %v9594, 0.70710677
      %v9754 = vmul.f32 %v9598, 0.70710677
      %v9755 = vmul.f32 %v9600, 0.70710677
      %v9756 = vmul.f32 %v9602, 0.70710677
      %v9757 = vmul.f32 %v9604, 0.70710677
      %v9758 = vmul.f32 %v9608, 0.70710677
      %v9759 = vmul.f32 %v9610, 0.70710677
      %v9760 = vmul.f32 %v9612, 0.70710677
      %v9761 = vmul.f32 %v9614, 0.70710677
      %v9762 = vmul.f32 %v9618, 0.70710677
      %v9763 = vmul.f32 %v9620, 0.70710677
      %v9764 = vmul.f32 %v9622, 0.70710677
      %v9765 = vmul.f32 %v9624, 0.70710677
      %v9766 = vmul.f32 %v9628, 0.70710677
      %v9767 = vmul.f32 %v9630, 0.70710677
      %v9768 = vmul.f32 %v9632, 0.70710677
      %v9769 = vmul.f32 %v9634, 0.70710677
      %v9770 = vmul.f32 %v9638, 0.70710677
      %v9771 = vmul.f32 %v9640, 0.70710677
      %v9772 = vmul.f32 %v9642, 0.70710677
      %v9773 = vmul.f32 %v9644, 0.70710677
      %v9774 = verf.f32.pop %v9710
      %v9775 = verf.f32.pop %v9711
      %v9776 = verf.f32.pop %v9712
      %v9777 = verf.f32.pop %v9713
      %v9778 = verf.f32.pop %v9714
      %v9779 = verf.f32.pop %v9715
      %v9780 = verf.f32.pop %v9716
      %v9781 = verf.f32.pop %v9717
      %v9782 = verf.f32.pop %v9718
      %v9783 = verf.f32.pop %v9719
      %v9784 = verf.f32.pop %v9720
      %v9785 = verf.f32.pop %v9721
      %v9786 = verf.f32.pop %v9722
      %v9787 = verf.f32.pop %v9723
      %v9788 = verf.f32.pop %v9724
      %v9789 = verf.f32.pop %v9725
      %v9790 = verf.f32.pop %v9726
      %v9791 = verf.f32.pop %v9727
      %v9792 = verf.f32.pop %v9728
      %v9793 = verf.f32.pop %v9729
      %v9794 = verf.f32.pop %v9730
      %v9795 = verf.f32.pop %v9731
      %v9796 = verf.f32.pop %v9732
      %v9797 = verf.f32.pop %v9733
      %v9798 = verf.f32.pop %v9734
      %v9799 = verf.f32.pop %v9735
      %v9800 = verf.f32.pop %v9736
      %v9801 = verf.f32.pop %v9737
      %v9802 = verf.f32.pop %v9738
      %v9803 = verf.f32.pop %v9739
      %v9804 = verf.f32.pop %v9740
      %v9805 = verf.f32.pop %v9741
      %v9806 = verf.f32.pop %v9742
      %v9807 = verf.f32.pop %v9743
      %v9808 = verf.f32.pop %v9744
      %v9809 = verf.f32.pop %v9745
      %v9810 = verf.f32.pop %v9746
      %v9811 = verf.f32.pop %v9747
      %v9812 = verf.f32.pop %v9748
      %v9813 = verf.f32.pop %v9749
      %v9814 = verf.f32.pop %v9750
      %v9815 = verf.f32.pop %v9751
      %v9816 = verf.f32.pop %v9752
      %v9817 = verf.f32.pop %v9753
      %v9818 = verf.f32.pop %v9754
      %v9819 = verf.f32.pop %v9755
      %v9820 = verf.f32.pop %v9756
      %v9821 = verf.f32.pop %v9757
      %v9822 = verf.f32.pop %v9758
      %v9823 = verf.f32.pop %v9759
      %v9824 = verf.f32.pop %v9760
      %v9825 = verf.f32.pop %v9761
      %v9826 = verf.f32.pop %v9762
      %v9827 = verf.f32.pop %v9763
      %v9828 = verf.f32.pop %v9764
      %v9829 = verf.f32.pop %v9765
      %v9830 = verf.f32.pop %v9766
      %v9831 = verf.f32.pop %v9767
      %v9832 = verf.f32.pop %v9768
      %v9833 = verf.f32.pop %v9769
      %v9834 = verf.f32.pop %v9770
      %v9835 = verf.f32.pop %v9771
      %v9836 = verf.f32.pop %v9772
      %v9837 = verf.f32.pop %v9773
      %v9838 = vadd.f32 %v9774, 1.0
      %v9839 = vadd.f32 %v9775, 1.0
      %v9840 = vadd.f32 %v9776, 1.0
      %v9841 = vadd.f32 %v9777, 1.0
      %v9842 = vadd.f32 %v9778, 1.0
      %v9843 = vadd.f32 %v9779, 1.0
      %v9844 = vadd.f32 %v9780, 1.0
      %v9845 = vadd.f32 %v9781, 1.0
      %v9846 = vadd.f32 %v9782, 1.0
      %v9847 = vadd.f32 %v9783, 1.0
      %v9848 = vadd.f32 %v9784, 1.0
      %v9849 = vadd.f32 %v9785, 1.0
      %v9850 = vadd.f32 %v9786, 1.0
      %v9851 = vadd.f32 %v9787, 1.0
      %v9852 = vadd.f32 %v9788, 1.0
      %v9853 = vadd.f32 %v9789, 1.0
      %v9854 = vadd.f32 %v9790, 1.0
      %v9855 = vadd.f32 %v9791, 1.0
      %v9856 = vadd.f32 %v9792, 1.0
      %v9857 = vadd.f32 %v9793, 1.0
      %v9858 = vadd.f32 %v9794, 1.0
      %v9859 = vadd.f32 %v9795, 1.0
      %v9860 = vadd.f32 %v9796, 1.0
      %v9861 = vadd.f32 %v9797, 1.0
      %v9862 = vadd.f32 %v9798, 1.0
      %v9863 = vadd.f32 %v9799, 1.0
      %v9864 = vadd.f32 %v9800, 1.0
      %v9865 = vadd.f32 %v9801, 1.0
      %v9866 = vadd.f32 %v9802, 1.0
      %v9867 = vadd.f32 %v9803, 1.0
      %v9868 = vadd.f32 %v9804, 1.0
      %v9869 = vadd.f32 %v9805, 1.0
      %v9870 = vadd.f32 %v9806, 1.0
      %v9871 = vadd.f32 %v9807, 1.0
      %v9872 = vadd.f32 %v9808, 1.0
      %v9873 = vadd.f32 %v9809, 1.0
      %v9874 = vadd.f32 %v9810, 1.0
      %v9875 = vadd.f32 %v9811, 1.0
      %v9876 = vadd.f32 %v9812, 1.0
      %v9877 = vadd.f32 %v9813, 1.0
      %v9878 = vadd.f32 %v9814, 1.0
      %v9879 = vadd.f32 %v9815, 1.0
      %v9880 = vadd.f32 %v9816, 1.0
      %v9881 = vadd.f32 %v9817, 1.0
      %v9882 = vadd.f32 %v9818, 1.0
      %v9883 = vadd.f32 %v9819, 1.0
      %v9884 = vadd.f32 %v9820, 1.0
      %v9885 = vadd.f32 %v9821, 1.0
      %v9886 = vadd.f32 %v9822, 1.0
      %v9887 = vadd.f32 %v9823, 1.0
      %v9888 = vadd.f32 %v9824, 1.0
      %v9889 = vadd.f32 %v9825, 1.0
      %v9890 = vadd.f32 %v9826, 1.0
      %v9891 = vadd.f32 %v9827, 1.0
      %v9892 = vadd.f32 %v9828, 1.0
      %v9893 = vadd.f32 %v9829, 1.0
      %v9894 = vadd.f32 %v9830, 1.0
      %v9895 = vadd.f32 %v9831, 1.0
      %v9896 = vadd.f32 %v9832, 1.0
      %v9897 = vadd.f32 %v9833, 1.0
      %v9898 = vadd.f32 %v9834, 1.0
      %v9899 = vadd.f32 %v9835, 1.0
      %v9900 = vadd.f32 %v9836, 1.0
      %v9901 = vadd.f32 %v9837, 1.0
      %v9902 = vmul.f32 %v9646, %v9838
      %v9903 = vmul.f32 %v9647, %v9839
      %v9904 = vmul.f32 %v9648, %v9840
      %v9905 = vmul.f32 %v9649, %v9841
      %v9906 = vmul.f32 %v9650, %v9842
      %v9907 = vmul.f32 %v9651, %v9843
      %v9908 = vmul.f32 %v9652, %v9844
      %v9909 = vmul.f32 %v9653, %v9845
      %v9910 = vmul.f32 %v9654, %v9846
      %v9911 = vmul.f32 %v9655, %v9847
      %v9912 = vmul.f32 %v9656, %v9848
      %v9913 = vmul.f32 %v9657, %v9849
      %v9914 = vmul.f32 %v9658, %v9850
      %v9915 = vmul.f32 %v9659, %v9851
      %v9916 = vmul.f32 %v9660, %v9852
      %v9917 = vmul.f32 %v9661, %v9853
      %v9918 = vmul.f32 %v9662, %v9854
      %v9919 = vmul.f32 %v9663, %v9855
      %v9920 = vmul.f32 %v9664, %v9856
      %v9921 = vmul.f32 %v9665, %v9857
      %v9922 = vmul.f32 %v9666, %v9858
      %v9923 = vmul.f32 %v9667, %v9859
      %v9924 = vmul.f32 %v9668, %v9860
      %v9925 = vmul.f32 %v9669, %v9861
      %v9926 = vmul.f32 %v9670, %v9862
      %v9927 = vmul.f32 %v9671, %v9863
      %v9928 = vmul.f32 %v9672, %v9864
      %v9929 = vmul.f32 %v9673, %v9865
      %v9930 = vmul.f32 %v9674, %v9866
      %v9931 = vmul.f32 %v9675, %v9867
      %v9932 = vmul.f32 %v9676, %v9868
      %v9933 = vmul.f32 %v9677, %v9869
      %v9934 = vmul.f32 %v9678, %v9870
      %v9935 = vmul.f32 %v9679, %v9871
      %v9936 = vmul.f32 %v9680, %v9872
      %v9937 = vmul.f32 %v9681, %v9873
      %v9938 = vmul.f32 %v9682, %v9874
      %v9939 = vmul.f32 %v9683, %v9875
      %v9940 = vmul.f32 %v9684, %v9876
      %v9941 = vmul.f32 %v9685, %v9877
      %v9942 = vmul.f32 %v9686, %v9878
      %v9943 = vmul.f32 %v9687, %v9879
      %v9944 = vmul.f32 %v9688, %v9880
      %v9945 = vmul.f32 %v9689, %v9881
      %v9946 = vmul.f32 %v9690, %v9882
      %v9947 = vmul.f32 %v9691, %v9883
      %v9948 = vmul.f32 %v9692, %v9884
      %v9949 = vmul.f32 %v9693, %v9885
      %v9950 = vmul.f32 %v9694, %v9886
      %v9951 = vmul.f32 %v9695, %v9887
      %v9952 = vmul.f32 %v9696, %v9888
      %v9953 = vmul.f32 %v9697, %v9889
      %v9954 = vmul.f32 %v9698, %v9890
      %v9955 = vmul.f32 %v9699, %v9891
      %v9956 = vmul.f32 %v9700, %v9892
      %v9957 = vmul.f32 %v9701, %v9893
      %v9958 = vmul.f32 %v9702, %v9894
      %v9959 = vmul.f32 %v9703, %v9895
      %v9960 = vmul.f32 %v9704, %v9896
      %v9961 = vmul.f32 %v9705, %v9897
      %v9962 = vmul.f32 %v9706, %v9898
      %v9963 = vmul.f32 %v9707, %v9899
      %v9964 = vmul.f32 %v9708, %v9900
      %v9965 = vmul.f32 %v9709, %v9901
      %v9966 = vadd.f32 %v9902, %v9903
      %9967 = vadd.xlane.f32.xlu0 %v9966
      %v9968 = vpop.xlane.xlu0 %9967
      %v9969 = vadd.f32 %v9904, %v9905
      %9970 = vadd.xlane.f32.xlu0 %v9969
      %v9971 = vpop.xlane.xlu0 %9970
      %v9972 = vadd.f32 %v9906, %v9907
      %9973 = vadd.xlane.f32.xlu0 %v9972
      %v9974 = vpop.xlane.xlu0 %9973
      %v9975 = vadd.f32 %v9908, %v9909
      %9976 = vadd.xlane.f32.xlu0 %v9975
      %v9977 = vpop.xlane.xlu0 %9976
      %v9978 = vadd.f32 %v9910, %v9911
      %9979 = vadd.xlane.f32.xlu0 %v9978
      %v9980 = vpop.xlane.xlu0 %9979
      %v9981 = vadd.f32 %v9912, %v9913
      %9982 = vadd.xlane.f32.xlu0 %v9981
      %v9983 = vpop.xlane.xlu0 %9982
      %v9984 = vadd.f32 %v9914, %v9915
      %9985 = vadd.xlane.f32.xlu0 %v9984
      %v9986 = vpop.xlane.xlu0 %9985
      %v9987 = vadd.f32 %v9916, %v9917
      %9988 = vadd.xlane.f32.xlu0 %v9987
      %v9989 = vpop.xlane.xlu0 %9988
      %v9990 = vadd.f32 %v9918, %v9919
      %9991 = vadd.xlane.f32.xlu0 %v9990
      %v9992 = vpop.xlane.xlu0 %9991
      %v9993 = vadd.f32 %v9920, %v9921
      %9994 = vadd.xlane.f32.xlu0 %v9993
      %v9995 = vpop.xlane.xlu0 %9994
      %v9996 = vadd.f32 %v9922, %v9923
      %9997 = vadd.xlane.f32.xlu0 %v9996
      %v9998 = vpop.xlane.xlu0 %9997
      %v9999 = vadd.f32 %v9924, %v9925
      %10000 = vadd.xlane.f32.xlu0 %v9999
      %v10001 = vpop.xlane.xlu0 %10000
      %v10002 = vadd.f32 %v9926, %v9927
      %10003 = vadd.xlane.f32.xlu0 %v10002
      %v10004 = vpop.xlane.xlu0 %10003
      %v10005 = vadd.f32 %v9928, %v9929
      %10006 = vadd.xlane.f32.xlu0 %v10005
      %v10007 = vpop.xlane.xlu0 %10006
      %v10008 = vadd.f32 %v9930, %v9931
      %10009 = vadd.xlane.f32.xlu0 %v10008
      %v10010 = vpop.xlane.xlu0 %10009
      %v10011 = vadd.f32 %v9932, %v9933
      %10012 = vadd.xlane.f32.xlu0 %v10011
      %v10013 = vpop.xlane.xlu0 %10012
      %v10014 = vadd.f32 %v9934, %v9935
      %10015 = vadd.xlane.f32.xlu0 %v10014
      %v10016 = vpop.xlane.xlu0 %10015
      %v10017 = vadd.f32 %v9936, %v9937
      %10018 = vadd.xlane.f32.xlu0 %v10017
      %v10019 = vpop.xlane.xlu0 %10018
      %v10020 = vadd.f32 %v9938, %v9939
      %10021 = vadd.xlane.f32.xlu0 %v10020
      %v10022 = vpop.xlane.xlu0 %10021
      %v10023 = vadd.f32 %v9940, %v9941
      %10024 = vadd.xlane.f32.xlu0 %v10023
      %v10025 = vpop.xlane.xlu0 %10024
      %v10026 = vadd.f32 %v9942, %v9943
      %10027 = vadd.xlane.f32.xlu0 %v10026
      %v10028 = vpop.xlane.xlu0 %10027
      %v10029 = vadd.f32 %v9944, %v9945
      %10030 = vadd.xlane.f32.xlu0 %v10029
      %v10031 = vpop.xlane.xlu0 %10030
      %v10032 = vadd.f32 %v9946, %v9947
      %10033 = vadd.xlane.f32.xlu0 %v10032
      %v10034 = vpop.xlane.xlu0 %10033
      %v10035 = vadd.f32 %v9948, %v9949
      %10036 = vadd.xlane.f32.xlu0 %v10035
      %v10037 = vpop.xlane.xlu0 %10036
      %v10038 = vadd.f32 %v9950, %v9951
      %10039 = vadd.xlane.f32.xlu0 %v10038
      %v10040 = vpop.xlane.xlu0 %10039
      %v10041 = vadd.f32 %v9952, %v9953
      %10042 = vadd.xlane.f32.xlu0 %v10041
      %v10043 = vpop.xlane.xlu0 %10042
      %v10044 = vadd.f32 %v9954, %v9955
      %10045 = vadd.xlane.f32.xlu0 %v10044
      %v10046 = vpop.xlane.xlu0 %10045
      %v10047 = vadd.f32 %v9956, %v9957
      %10048 = vadd.xlane.f32.xlu0 %v10047
      %v10049 = vpop.xlane.xlu0 %10048
      %v10050 = vadd.f32 %v9958, %v9959
      %10051 = vadd.xlane.f32.xlu0 %v10050
      %v10052 = vpop.xlane.xlu0 %10051
      %v10053 = vadd.f32 %v9960, %v9961
      %10054 = vadd.xlane.f32.xlu0 %v10053
      %v10055 = vpop.xlane.xlu0 %10054
      %v10056 = vadd.f32 %v9962, %v9963
      %10057 = vadd.xlane.f32.xlu0 %v10056
      %v10058 = vpop.xlane.xlu0 %10057
      %v10059 = vadd.f32 %v9964, %v9965
      %10060 = vadd.xlane.f32.xlu0 %v10059
      %v10061 = vpop.xlane.xlu0 %10060
      %v10062 = vrcp.pop 256.0
      %v10063 = vmul.f32 %v9968, %v10062
      %v10064 = vmul.f32 %v9971, %v10062
      %v10065 = vmul.f32 %v9974, %v10062
      %v10066 = vmul.f32 %v9977, %v10062
      %v10067 = vmul.f32 %v9980, %v10062
      %v10068 = vmul.f32 %v9983, %v10062
      %v10069 = vmul.f32 %v9986, %v10062
      %v10070 = vmul.f32 %v9989, %v10062
      %v10071 = vmul.f32 %v9992, %v10062
      %v10072 = vmul.f32 %v9995, %v10062
      %v10073 = vmul.f32 %v9998, %v10062
      %v10074 = vmul.f32 %v10001, %v10062
      %v10075 = vmul.f32 %v10004, %v10062
      %v10076 = vmul.f32 %v10007, %v10062
      %v10077 = vmul.f32 %v10010, %v10062
      %v10078 = vmul.f32 %v10013, %v10062
      %v10079 = vmul.f32 %v10016, %v10062
      %v10080 = vmul.f32 %v10019, %v10062
      %v10081 = vmul.f32 %v10022, %v10062
      %v10082 = vmul.f32 %v10025, %v10062
      %v10083 = vmul.f32 %v10028, %v10062
      %v10084 = vmul.f32 %v10031, %v10062
      %v10085 = vmul.f32 %v10034, %v10062
      %v10086 = vmul.f32 %v10037, %v10062
      %v10087 = vmul.f32 %v10040, %v10062
      %v10088 = vmul.f32 %v10043, %v10062
      %v10089 = vmul.f32 %v10046, %v10062
      %v10090 = vmul.f32 %v10049, %v10062
      %v10091 = vmul.f32 %v10052, %v10062
      %v10092 = vmul.f32 %v10055, %v10062
      %v10093 = vmul.f32 %v10058, %v10062
      %v10094 = vmul.f32 %v10061, %v10062
      %v10095 = vsub.f32 %v9902, %v10063
      %v10096 = vsub.f32 %v9903, %v10063
      %v10097 = vsub.f32 %v9904, %v10064
      %v10098 = vsub.f32 %v9905, %v10064
      %v10099 = vsub.f32 %v9906, %v10065
      %v10100 = vsub.f32 %v9907, %v10065
      %v10101 = vsub.f32 %v9908, %v10066
      %v10102 = vsub.f32 %v9909, %v10066
      %v10103 = vsub.f32 %v9910, %v10067
      %v10104 = vsub.f32 %v9911, %v10067
      %v10105 = vsub.f32 %v9912, %v10068
      %v10106 = vsub.f32 %v9913, %v10068
      %v10107 = vsub.f32 %v9914, %v10069
      %v10108 = vsub.f32 %v9915, %v10069
      %v10109 = vsub.f32 %v9916, %v10070
      %v10110 = vsub.f32 %v9917, %v10070
      %v10111 = vsub.f32 %v9918, %v10071
      %v10112 = vsub.f32 %v9919, %v10071
      %v10113 = vsub.f32 %v9920, %v10072
      %v10114 = vsub.f32 %v9921, %v10072
      %v10115 = vsub.f32 %v9922, %v10073
      %v10116 = vsub.f32 %v9923, %v10073
      %v10117 = vsub.f32 %v9924, %v10074
      %v10118 = vsub.f32 %v9925, %v10074
      %v10119 = vsub.f32 %v9926, %v10075
      %v10120 = vsub.f32 %v9927, %v10075
      %v10121 = vsub.f32 %v9928, %v10076
      %v10122 = vsub.f32 %v9929, %v10076
      %v10123 = vsub.f32 %v9930, %v10077
      %v10124 = vsub.f32 %v9931, %v10077
      %v10125 = vsub.f32 %v9932, %v10078
      %v10126 = vsub.f32 %v9933, %v10078
      %v10127 = vsub.f32 %v9934, %v10079
      %v10128 = vsub.f32 %v9935, %v10079
      %v10129 = vsub.f32 %v9936, %v10080
      %v10130 = vsub.f32 %v9937, %v10080
      %v10131 = vsub.f32 %v9938, %v10081
      %v10132 = vsub.f32 %v9939, %v10081
      %v10133 = vsub.f32 %v9940, %v10082
      %v10134 = vsub.f32 %v9941, %v10082
      %v10135 = vsub.f32 %v9942, %v10083
      %v10136 = vsub.f32 %v9943, %v10083
      %v10137 = vsub.f32 %v9944, %v10084
      %v10138 = vsub.f32 %v9945, %v10084
      %v10139 = vsub.f32 %v9946, %v10085
      %v10140 = vsub.f32 %v9947, %v10085
      %v10141 = vsub.f32 %v9948, %v10086
      %v10142 = vsub.f32 %v9949, %v10086
      %v10143 = vsub.f32 %v9950, %v10087
      %v10144 = vsub.f32 %v9951, %v10087
      %v10145 = vsub.f32 %v9952, %v10088
      %v10146 = vsub.f32 %v9953, %v10088
      %v10147 = vsub.f32 %v9954, %v10089
      %v10148 = vsub.f32 %v9955, %v10089
      %v10149 = vsub.f32 %v9956, %v10090
      %v10150 = vsub.f32 %v9957, %v10090
      %v10151 = vsub.f32 %v9958, %v10091
      %v10152 = vsub.f32 %v9959, %v10091
      %v10153 = vsub.f32 %v9960, %v10092
      %v10154 = vsub.f32 %v9961, %v10092
      %v10155 = vsub.f32 %v9962, %v10093
      %v10156 = vsub.f32 %v9963, %v10093
      %v10157 = vsub.f32 %v9964, %v10094
      %v10158 = vsub.f32 %v9965, %v10094
      %v10159 = vmul.f32 %v10095, %v10095
      %v10160 = vmul.f32 %v10096, %v10096
      %v10161 = vmul.f32 %v10097, %v10097
      %v10162 = vmul.f32 %v10098, %v10098
      %v10163 = vmul.f32 %v10099, %v10099
      %v10164 = vmul.f32 %v10100, %v10100
      %v10165 = vmul.f32 %v10101, %v10101
      %v10166 = vmul.f32 %v10102, %v10102
      %v10167 = vmul.f32 %v10103, %v10103
      %v10168 = vmul.f32 %v10104, %v10104
      %v10169 = vmul.f32 %v10105, %v10105
      %v10170 = vmul.f32 %v10106, %v10106
      %v10171 = vmul.f32 %v10107, %v10107
      %v10172 = vmul.f32 %v10108, %v10108
      %v10173 = vmul.f32 %v10109, %v10109
      %v10174 = vmul.f32 %v10110, %v10110
      %v10175 = vmul.f32 %v10111, %v10111
      %v10176 = vmul.f32 %v10112, %v10112
      %v10177 = vmul.f32 %v10113, %v10113
      %v10178 = vmul.f32 %v10114, %v10114
      %v10179 = vmul.f32 %v10115, %v10115
      %v10180 = vmul.f32 %v10116, %v10116
      %v10181 = vmul.f32 %v10117, %v10117
      %v10182 = vmul.f32 %v10118, %v10118
      %v10183 = vmul.f32 %v10119, %v10119
      %v10184 = vmul.f32 %v10120, %v10120
      %v10185 = vmul.f32 %v10121, %v10121
      %v10186 = vmul.f32 %v10122, %v10122
      %v10187 = vmul.f32 %v10123, %v10123
      %v10188 = vmul.f32 %v10124, %v10124
      %v10189 = vmul.f32 %v10125, %v10125
      %v10190 = vmul.f32 %v10126, %v10126
      %v10191 = vmul.f32 %v10127, %v10127
      %v10192 = vmul.f32 %v10128, %v10128
      %v10193 = vmul.f32 %v10129, %v10129
      %v10194 = vmul.f32 %v10130, %v10130
      %v10195 = vmul.f32 %v10131, %v10131
      %v10196 = vmul.f32 %v10132, %v10132
      %v10197 = vmul.f32 %v10133, %v10133
      %v10198 = vmul.f32 %v10134, %v10134
      %v10199 = vmul.f32 %v10135, %v10135
      %v10200 = vmul.f32 %v10136, %v10136
      %v10201 = vmul.f32 %v10137, %v10137
      %v10202 = vmul.f32 %v10138, %v10138
      %v10203 = vmul.f32 %v10139, %v10139
      %v10204 = vmul.f32 %v10140, %v10140
      %v10205 = vmul.f32 %v10141, %v10141
      %v10206 = vmul.f32 %v10142, %v10142
      %v10207 = vmul.f32 %v10143, %v10143
      %v10208 = vmul.f32 %v10144, %v10144
      %v10209 = vmul.f32 %v10145, %v10145
      %v10210 = vmul.f32 %v10146, %v10146
      %v10211 = vmul.f32 %v10147, %v10147
      %v10212 = vmul.f32 %v10148, %v10148
      %v10213 = vmul.f32 %v10149, %v10149
      %v10214 = vmul.f32 %v10150, %v10150
      %v10215 = vmul.f32 %v10151, %v10151
      %v10216 = vmul.f32 %v10152, %v10152
      %v10217 = vmul.f32 %v10153, %v10153
      %v10218 = vmul.f32 %v10154, %v10154
      %v10219 = vmul.f32 %v10155, %v10155
      %v10220 = vmul.f32 %v10156, %v10156
      %v10221 = vmul.f32 %v10157, %v10157
      %v10222 = vmul.f32 %v10158, %v10158
      %v10223 = vadd.f32 %v10159, %v10160
      %10224 = vadd.xlane.f32.xlu0 %v10223
      %v10225 = vpop.xlane.xlu0 %10224
      %v10226 = vadd.f32 %v10161, %v10162
      %10227 = vadd.xlane.f32.xlu0 %v10226
      %v10228 = vpop.xlane.xlu0 %10227
      %v10229 = vadd.f32 %v10163, %v10164
      %10230 = vadd.xlane.f32.xlu0 %v10229
      %v10231 = vpop.xlane.xlu0 %10230
      %v10232 = vadd.f32 %v10165, %v10166
      %10233 = vadd.xlane.f32.xlu0 %v10232
      %v10234 = vpop.xlane.xlu0 %10233
      %v10235 = vadd.f32 %v10167, %v10168
      %10236 = vadd.xlane.f32.xlu0 %v10235
      %v10237 = vpop.xlane.xlu0 %10236
      %v10238 = vadd.f32 %v10169, %v10170
      %10239 = vadd.xlane.f32.xlu0 %v10238
      %v10240 = vpop.xlane.xlu0 %10239
      %v10241 = vadd.f32 %v10171, %v10172
      %10242 = vadd.xlane.f32.xlu0 %v10241
      %v10243 = vpop.xlane.xlu0 %10242
      %v10244 = vadd.f32 %v10173, %v10174
      %10245 = vadd.xlane.f32.xlu0 %v10244
      %v10246 = vpop.xlane.xlu0 %10245
      %v10247 = vadd.f32 %v10175, %v10176
      %10248 = vadd.xlane.f32.xlu0 %v10247
      %v10249 = vpop.xlane.xlu0 %10248
      %v10250 = vadd.f32 %v10177, %v10178
      %10251 = vadd.xlane.f32.xlu0 %v10250
      %v10252 = vpop.xlane.xlu0 %10251
      %v10253 = vadd.f32 %v10179, %v10180
      %10254 = vadd.xlane.f32.xlu0 %v10253
      %v10255 = vpop.xlane.xlu0 %10254
      %v10256 = vadd.f32 %v10181, %v10182
      %10257 = vadd.xlane.f32.xlu0 %v10256
      %v10258 = vpop.xlane.xlu0 %10257
      %v10259 = vadd.f32 %v10183, %v10184
      %10260 = vadd.xlane.f32.xlu0 %v10259
      %v10261 = vpop.xlane.xlu0 %10260
      %v10262 = vadd.f32 %v10185, %v10186
      %10263 = vadd.xlane.f32.xlu0 %v10262
      %v10264 = vpop.xlane.xlu0 %10263
      %v10265 = vadd.f32 %v10187, %v10188
      %10266 = vadd.xlane.f32.xlu0 %v10265
      %v10267 = vpop.xlane.xlu0 %10266
      %v10268 = vadd.f32 %v10189, %v10190
      %10269 = vadd.xlane.f32.xlu0 %v10268
      %v10270 = vpop.xlane.xlu0 %10269
      %v10271 = vadd.f32 %v10191, %v10192
      %10272 = vadd.xlane.f32.xlu0 %v10271
      %v10273 = vpop.xlane.xlu0 %10272
      %v10274 = vadd.f32 %v10193, %v10194
      %10275 = vadd.xlane.f32.xlu0 %v10274
      %v10276 = vpop.xlane.xlu0 %10275
      %v10277 = vadd.f32 %v10195, %v10196
      %10278 = vadd.xlane.f32.xlu0 %v10277
      %v10279 = vpop.xlane.xlu0 %10278
      %v10280 = vadd.f32 %v10197, %v10198
      %10281 = vadd.xlane.f32.xlu0 %v10280
      %v10282 = vpop.xlane.xlu0 %10281
      %v10283 = vadd.f32 %v10199, %v10200
      %10284 = vadd.xlane.f32.xlu0 %v10283
      %v10285 = vpop.xlane.xlu0 %10284
      %v10286 = vadd.f32 %v10201, %v10202
      %10287 = vadd.xlane.f32.xlu0 %v10286
      %v10288 = vpop.xlane.xlu0 %10287
      %v10289 = vadd.f32 %v10203, %v10204
      %10290 = vadd.xlane.f32.xlu0 %v10289
      %v10291 = vpop.xlane.xlu0 %10290
      %v10292 = vadd.f32 %v10205, %v10206
      %10293 = vadd.xlane.f32.xlu0 %v10292
      %v10294 = vpop.xlane.xlu0 %10293
      %v10295 = vadd.f32 %v10207, %v10208
      %10296 = vadd.xlane.f32.xlu0 %v10295
      %v10297 = vpop.xlane.xlu0 %10296
      %v10298 = vadd.f32 %v10209, %v10210
      %10299 = vadd.xlane.f32.xlu0 %v10298
      %v10300 = vpop.xlane.xlu0 %10299
      %v10301 = vadd.f32 %v10211, %v10212
      %10302 = vadd.xlane.f32.xlu0 %v10301
      %v10303 = vpop.xlane.xlu0 %10302
      %v10304 = vadd.f32 %v10213, %v10214
      %10305 = vadd.xlane.f32.xlu0 %v10304
      %v10306 = vpop.xlane.xlu0 %10305
      %v10307 = vadd.f32 %v10215, %v10216
      %10308 = vadd.xlane.f32.xlu0 %v10307
      %v10309 = vpop.xlane.xlu0 %10308
      %v10310 = vadd.f32 %v10217, %v10218
      %10311 = vadd.xlane.f32.xlu0 %v10310
      %v10312 = vpop.xlane.xlu0 %10311
      %v10313 = vadd.f32 %v10219, %v10220
      %10314 = vadd.xlane.f32.xlu0 %v10313
      %v10315 = vpop.xlane.xlu0 %10314
      %v10316 = vadd.f32 %v10221, %v10222
      %10317 = vadd.xlane.f32.xlu0 %v10316
      %v10318 = vpop.xlane.xlu0 %10317
      %v10319 = vmul.f32 %v10225, %v10062
      %v10320 = vmul.f32 %v10228, %v10062
      %v10321 = vmul.f32 %v10231, %v10062
      %v10322 = vmul.f32 %v10234, %v10062
      %v10323 = vmul.f32 %v10237, %v10062
      %v10324 = vmul.f32 %v10240, %v10062
      %v10325 = vmul.f32 %v10243, %v10062
      %v10326 = vmul.f32 %v10246, %v10062
      %v10327 = vmul.f32 %v10249, %v10062
      %v10328 = vmul.f32 %v10252, %v10062
      %v10329 = vmul.f32 %v10255, %v10062
      %v10330 = vmul.f32 %v10258, %v10062
      %v10331 = vmul.f32 %v10261, %v10062
      %v10332 = vmul.f32 %v10264, %v10062
      %v10333 = vmul.f32 %v10267, %v10062
      %v10334 = vmul.f32 %v10270, %v10062
      %v10335 = vmul.f32 %v10273, %v10062
      %v10336 = vmul.f32 %v10276, %v10062
      %v10337 = vmul.f32 %v10279, %v10062
      %v10338 = vmul.f32 %v10282, %v10062
      %v10339 = vmul.f32 %v10285, %v10062
      %v10340 = vmul.f32 %v10288, %v10062
      %v10341 = vmul.f32 %v10291, %v10062
      %v10342 = vmul.f32 %v10294, %v10062
      %v10343 = vmul.f32 %v10297, %v10062
      %v10344 = vmul.f32 %v10300, %v10062
      %v10345 = vmul.f32 %v10303, %v10062
      %v10346 = vmul.f32 %v10306, %v10062
      %v10347 = vmul.f32 %v10309, %v10062
      %v10348 = vmul.f32 %v10312, %v10062
      %v10349 = vmul.f32 %v10315, %v10062
      %v10350 = vmul.f32 %v10318, %v10062
      %v10351 = vadd.f32 %v10319, 1e-05
      %v10352 = vadd.f32 %v10320, 1e-05
      %v10353 = vadd.f32 %v10321, 1e-05
      %v10354 = vadd.f32 %v10322, 1e-05
      %v10355 = vadd.f32 %v10323, 1e-05
      %v10356 = vadd.f32 %v10324, 1e-05
      %v10357 = vadd.f32 %v10325, 1e-05
      %v10358 = vadd.f32 %v10326, 1e-05
      %v10359 = vadd.f32 %v10327, 1e-05
      %v10360 = vadd.f32 %v10328, 1e-05
      %v10361 = vadd.f32 %v10329, 1e-05
      %v10362 = vadd.f32 %v10330, 1e-05
      %v10363 = vadd.f32 %v10331, 1e-05
      %v10364 = vadd.f32 %v10332, 1e-05
      %v10365 = vadd.f32 %v10333, 1e-05
      %v10366 = vadd.f32 %v10334, 1e-05
      %v10367 = vadd.f32 %v10335, 1e-05
      %v10368 = vadd.f32 %v10336, 1e-05
      %v10369 = vadd.f32 %v10337, 1e-05
      %v10370 = vadd.f32 %v10338, 1e-05
      %v10371 = vadd.f32 %v10339, 1e-05
      %v10372 = vadd.f32 %v10340, 1e-05
      %v10373 = vadd.f32 %v10341, 1e-05
      %v10374 = vadd.f32 %v10342, 1e-05
      %v10375 = vadd.f32 %v10343, 1e-05
      %v10376 = vadd.f32 %v10344, 1e-05
      %v10377 = vadd.f32 %v10345, 1e-05
      %v10378 = vadd.f32 %v10346, 1e-05
      %v10379 = vadd.f32 %v10347, 1e-05
      %v10380 = vadd.f32 %v10348, 1e-05
      %v10381 = vadd.f32 %v10349, 1e-05
      %v10382 = vadd.f32 %v10350, 1e-05
      %v10383 = vrsqrt.pop %v10351
      %v10384 = vrsqrt.pop %v10352
      %v10385 = vrsqrt.pop %v10353
      %v10386 = vrsqrt.pop %v10354
      %v10387 = vrsqrt.pop %v10355
      %v10388 = vrsqrt.pop %v10356
      %v10389 = vrsqrt.pop %v10357
      %v10390 = vrsqrt.pop %v10358
      %v10391 = vrsqrt.pop %v10359
      %v10392 = vrsqrt.pop %v10360
      %v10393 = vrsqrt.pop %v10361
      %v10394 = vrsqrt.pop %v10362
      %v10395 = vrsqrt.pop %v10363
      %v10396 = vrsqrt.pop %v10364
      %v10397 = vrsqrt.pop %v10365
      %v10398 = vrsqrt.pop %v10366
      %v10399 = vrsqrt.pop %v10367
      %v10400 = vrsqrt.pop %v10368
      %v10401 = vrsqrt.pop %v10369
      %v10402 = vrsqrt.pop %v10370
      %v10403 = vrsqrt.pop %v10371
      %v10404 = vrsqrt.pop %v10372
      %v10405 = vrsqrt.pop %v10373
      %v10406 = vrsqrt.pop %v10374
      %v10407 = vrsqrt.pop %v10375
      %v10408 = vrsqrt.pop %v10376
      %v10409 = vrsqrt.pop %v10377
      %v10410 = vrsqrt.pop %v10378
      %v10411 = vrsqrt.pop %v10379
      %v10412 = vrsqrt.pop %v10380
      %v10413 = vrsqrt.pop %v10381
      %v10414 = vrsqrt.pop %v10382
      %v10415 = vmul.f32 %v10095, %v10383
      %v10416 = vmul.f32 %v10096, %v10383
      %v10417 = vmul.f32 %v10097, %v10384
      %v10418 = vmul.f32 %v10098, %v10384
      %v10419 = vmul.f32 %v10099, %v10385
      %v10420 = vmul.f32 %v10100, %v10385
      %v10421 = vmul.f32 %v10101, %v10386
      %v10422 = vmul.f32 %v10102, %v10386
      %v10423 = vmul.f32 %v10103, %v10387
      %v10424 = vmul.f32 %v10104, %v10387
      %v10425 = vmul.f32 %v10105, %v10388
      %v10426 = vmul.f32 %v10106, %v10388
      %v10427 = vmul.f32 %v10107, %v10389
      %v10428 = vmul.f32 %v10108, %v10389
      %v10429 = vmul.f32 %v10109, %v10390
      %v10430 = vmul.f32 %v10110, %v10390
      %v10431 = vmul.f32 %v10111, %v10391
      %v10432 = vmul.f32 %v10112, %v10391
      %v10433 = vmul.f32 %v10113, %v10392
      %v10434 = vmul.f32 %v10114, %v10392
      %v10435 = vmul.f32 %v10115, %v10393
      %v10436 = vmul.f32 %v10116, %v10393
      %v10437 = vmul.f32 %v10117, %v10394
      %v10438 = vmul.f32 %v10118, %v10394
      %v10439 = vmul.f32 %v10119, %v10395
      %v10440 = vmul.f32 %v10120, %v10395
      %v10441 = vmul.f32 %v10121, %v10396
      %v10442 = vmul.f32 %v10122, %v10396
      %v10443 = vmul.f32 %v10123, %v10397
      %v10444 = vmul.f32 %v10124, %v10397
      %v10445 = vmul.f32 %v10125, %v10398
      %v10446 = vmul.f32 %v10126, %v10398
      %v10447 = vmul.f32 %v10127, %v10399
      %v10448 = vmul.f32 %v10128, %v10399
      %v10449 = vmul.f32 %v10129, %v10400
      %v10450 = vmul.f32 %v10130, %v10400
      %v10451 = vmul.f32 %v10131, %v10401
      %v10452 = vmul.f32 %v10132, %v10401
      %v10453 = vmul.f32 %v10133, %v10402
      %v10454 = vmul.f32 %v10134, %v10402
      %v10455 = vmul.f32 %v10135, %v10403
      %v10456 = vmul.f32 %v10136, %v10403
      %v10457 = vmul.f32 %v10137, %v10404
      %v10458 = vmul.f32 %v10138, %v10404
      %v10459 = vmul.f32 %v10139, %v10405
      %v10460 = vmul.f32 %v10140, %v10405
      %v10461 = vmul.f32 %v10141, %v10406
      %v10462 = vmul.f32 %v10142, %v10406
      %v10463 = vmul.f32 %v10143, %v10407
      %v10464 = vmul.f32 %v10144, %v10407
      %v10465 = vmul.f32 %v10145, %v10408
      %v10466 = vmul.f32 %v10146, %v10408
      %v10467 = vmul.f32 %v10147, %v10409
      %v10468 = vmul.f32 %v10148, %v10409
      %v10469 = vmul.f32 %v10149, %v10410
      %v10470 = vmul.f32 %v10150, %v10410
      %v10471 = vmul.f32 %v10151, %v10411
      %v10472 = vmul.f32 %v10152, %v10411
      %v10473 = vmul.f32 %v10153, %v10412
      %v10474 = vmul.f32 %v10154, %v10412
      %v10475 = vmul.f32 %v10155, %v10413
      %v10476 = vmul.f32 %v10156, %v10413
      %v10477 = vmul.f32 %v10157, %v10414
      %v10478 = vmul.f32 %v10158, %v10414
      %v10479 = vpack.c.bf16 %v10417, %v10415
      %v10480 = vpack.c.bf16 %v10418, %v10416
      %v10481 = vpack.c.bf16 %v10421, %v10419
      %v10482 = vpack.c.bf16 %v10422, %v10420
      %v10483 = vpack.c.bf16 %v10425, %v10423
      %v10484 = vpack.c.bf16 %v10426, %v10424
      %v10485 = vpack.c.bf16 %v10429, %v10427
      %v10486 = vpack.c.bf16 %v10430, %v10428
      %v10487 = vpack.c.bf16 %v10433, %v10431
      %v10488 = vpack.c.bf16 %v10434, %v10432
      %v10489 = vpack.c.bf16 %v10437, %v10435
      %v10490 = vpack.c.bf16 %v10438, %v10436
      %v10491 = vpack.c.bf16 %v10441, %v10439
      %v10492 = vpack.c.bf16 %v10442, %v10440
      %v10493 = vpack.c.bf16 %v10445, %v10443
      %v10494 = vpack.c.bf16 %v10446, %v10444
      %v10495 = vpack.c.bf16 %v10449, %v10447
      %v10496 = vpack.c.bf16 %v10450, %v10448
      %v10497 = vpack.c.bf16 %v10453, %v10451
      %v10498 = vpack.c.bf16 %v10454, %v10452
      %v10499 = vpack.c.bf16 %v10457, %v10455
      %v10500 = vpack.c.bf16 %v10458, %v10456
      %v10501 = vpack.c.bf16 %v10461, %v10459
      %v10502 = vpack.c.bf16 %v10462, %v10460
      %v10503 = vpack.c.bf16 %v10465, %v10463
      %v10504 = vpack.c.bf16 %v10466, %v10464
      %v10505 = vpack.c.bf16 %v10469, %v10467
      %v10506 = vpack.c.bf16 %v10470, %v10468
      %v10507 = vpack.c.bf16 %v10473, %v10471
      %v10508 = vpack.c.bf16 %v10474, %v10472
      %v10509 = vpack.c.bf16 %v10477, %v10475
      %v10510 = vpack.c.bf16 %v10478, %v10476
      %v10511 = vld [vmem:[%s7] sm:$0xf]
      %v10512 = vld [vmem:[%s7 + $0x4] sm:$0xf]
      %v10513 = vld [vmem:[%s7 + $0x8] sm:$0xf]
      %v10514 = vld [vmem:[%s7 + $0xc] sm:$0xf]
      %v10515 = vld [vmem:[%s7 + $0x10] sm:$0xf]
      %v10516 = vld [vmem:[%s7 + $0x14] sm:$0xf]
      %v10517 = vld [vmem:[%s7 + $0x18] sm:$0xf]
      %v10518 = vld [vmem:[%s7 + $0x1c] sm:$0xf]
      %v10519 = vld [vmem:[%s7 + $0x20] sm:$0xf]
      %v10520 = vld [vmem:[%s7 + $0x24] sm:$0xf]
      %v10521 = vld [vmem:[%s7 + $0x28] sm:$0xf]
      %v10522 = vld [vmem:[%s7 + $0x2c] sm:$0xf]
      %v10523 = vld [vmem:[%s7 + $0x30] sm:$0xf]
      %v10524 = vld [vmem:[%s7 + $0x34] sm:$0xf]
      %v10525 = vld [vmem:[%s7 + $0x38] sm:$0xf]
      %v10526 = vld [vmem:[%s7 + $0x3c] sm:$0xf]
      %v10527 = vld [vmem:[%s7 + $0x40] sm:$0xf]
      %v10528 = vld [vmem:[%s7 + $0x44] sm:$0xf]
      %v10529 = vld [vmem:[%s7 + $0x48] sm:$0xf]
      %v10530 = vld [vmem:[%s7 + $0x4c] sm:$0xf]
      %v10531 = vld [vmem:[%s7 + $0x50] sm:$0xf]
      %v10532 = vld [vmem:[%s7 + $0x54] sm:$0xf]
      %v10533 = vld [vmem:[%s7 + $0x58] sm:$0xf]
      %v10534 = vld [vmem:[%s7 + $0x5c] sm:$0xf]
      %v10535 = vld [vmem:[%s7 + $0x60] sm:$0xf]
      %v10536 = vld [vmem:[%s7 + $0x64] sm:$0xf]
      %v10537 = vld [vmem:[%s7 + $0x68] sm:$0xf]
      %v10538 = vld [vmem:[%s7 + $0x6c] sm:$0xf]
      %v10539 = vld [vmem:[%s7 + $0x70] sm:$0xf]
      %v10540 = vld [vmem:[%s7 + $0x74] sm:$0xf]
      %v10541 = vld [vmem:[%s7 + $0x78] sm:$0xf]
      %v10542 = vld [vmem:[%s7 + $0x7c] sm:$0xf]
      %v10543 = vld [vmem:[%s8] sm:$0x1]
      %v10545 = vlaneseq
      %v10546 = vshrl.u32 %v10545, 7
      %v10547 = vsub.s32 0, %v10546
      %v10548 = vrot.slane %v10543, %v10547
      %v10582 = vunpack.c.l.b16 %v10511
      %v10583 = vunpack.c.l.b16 %v10512
      %v10584 = vunpack.c.l.b16 %v10513
      %v10585 = vunpack.c.l.b16 %v10514
      %v10586 = vunpack.c.l.b16 %v10515
      %v10587 = vunpack.c.l.b16 %v10516
      %v10588 = vunpack.c.l.b16 %v10517
      %v10589 = vunpack.c.l.b16 %v10518
      %v10590 = vunpack.c.l.b16 %v10519
      %v10591 = vunpack.c.l.b16 %v10520
      %v10592 = vunpack.c.l.b16 %v10521
      %v10593 = vunpack.c.l.b16 %v10522
      %v10594 = vunpack.c.l.b16 %v10523
      %v10595 = vunpack.c.l.b16 %v10524
      %v10596 = vunpack.c.l.b16 %v10525
      %v10597 = vunpack.c.l.b16 %v10526
      %v10598 = vunpack.c.l.b16 %v10527
      %v10599 = vunpack.c.l.b16 %v10528
      %v10600 = vunpack.c.l.b16 %v10529
      %v10601 = vunpack.c.l.b16 %v10530
      %v10602 = vunpack.c.l.b16 %v10531
      %v10603 = vunpack.c.l.b16 %v10532
      %v10604 = vunpack.c.l.b16 %v10533
      %v10605 = vunpack.c.l.b16 %v10534
      %v10606 = vunpack.c.l.b16 %v10535
      %v10607 = vunpack.c.l.b16 %v10536
      %v10608 = vunpack.c.l.b16 %v10537
      %v10609 = vunpack.c.l.b16 %v10538
      %v10610 = vunpack.c.l.b16 %v10539
      %v10611 = vunpack.c.l.b16 %v10540
      %v10612 = vunpack.c.l.b16 %v10541
      %v10613 = vunpack.c.l.b16 %v10542
      %v10614 = vpack.c.b16 %v10583, %v10582
      %v10615 = vpack.c.b16 %v10585, %v10584
      %v10616 = vpack.c.b16 %v10587, %v10586
      %v10617 = vpack.c.b16 %v10589, %v10588
      %v10618 = vpack.c.b16 %v10591, %v10590
      %v10619 = vpack.c.b16 %v10593, %v10592
      %v10620 = vpack.c.b16 %v10595, %v10594
      %v10621 = vpack.c.b16 %v10597, %v10596
      %v10622 = vpack.c.b16 %v10599, %v10598
      %v10623 = vpack.c.b16 %v10601, %v10600
      %v10624 = vpack.c.b16 %v10603, %v10602
      %v10625 = vpack.c.b16 %v10605, %v10604
      %v10626 = vpack.c.b16 %v10607, %v10606
      %v10627 = vpack.c.b16 %v10609, %v10608
      %v10628 = vpack.c.b16 %v10611, %v10610
      %v10629 = vpack.c.b16 %v10613, %v10612
      %10646 = vmatprep.subr.bf16.mxu0 0
      %10647 = vmatpush1.bf16.msra.mxu0 %v10621
      %10648 = vmatprep.subr.bf16.mxu0 0
      %10649 = vmatpush1.bf16.msra.mxu0 %v10620
      %10650 = vmatprep.subr.bf16.mxu0 0
      %10651 = vmatpush1.bf16.msra.mxu0 %v10619
      %10652 = vmatprep.subr.bf16.mxu0 0
      %10653 = vmatpush1.bf16.msra.mxu0 %v10618
      %10654 = vmatprep.subr.bf16.mxu0 0
      %10655 = vmatpush1.bf16.msra.mxu0 %v10617
      %10656 = vmatprep.subr.bf16.mxu0 0
      %10657 = vmatpush1.bf16.msra.mxu0 %v10616
      %10658 = vmatprep.subr.bf16.mxu0 0
      %10659 = vmatpush1.bf16.msra.mxu0 %v10615
      %10660 = vmatprep.subr.bf16.mxu0 0
      %10661 = vmatpush1.bf16.msra.mxu0 %v10614
      %10662 = vmatprep.subr.bf16.mxu0 0
      %10663 = vmatpush2.bf16.msra.mxu0 %v10629
      %10664 = vmatprep.subr.bf16.mxu0 0
      %10665 = vmatpush2.bf16.msra.mxu0 %v10628
      %10666 = vmatprep.subr.bf16.mxu0 0
      %10667 = vmatpush2.bf16.msra.mxu0 %v10627
      %10668 = vmatprep.subr.bf16.mxu0 0
      %10669 = vmatpush2.bf16.msra.mxu0 %v10626
      %10670 = vmatprep.subr.bf16.mxu0 0
      %10671 = vmatpush2.bf16.msra.mxu0 %v10625
      %10672 = vmatprep.subr.bf16.mxu0 0
      %10673 = vmatpush2.bf16.msra.mxu0 %v10624
      %10674 = vmatprep.subr.bf16.mxu0 0
      %10675 = vmatpush2.bf16.msra.mxu0 %v10623
      %10676 = vmatprep.subr.bf16.mxu0 0
      %10677 = vmatpush2.bf16.msra.mxu0 %v10622
      %10678 = vmatprep.mubr.bf16.mxu0 %v10480
      %10679 = vmatmul.mubr.bf16.gmra.mxu0 %v10479
      %v10680 = vpop.f32.mrf.mxu0
      %v10681 = vadd.f32 %v10548, %v10680
      %v10682 = vpop.f32.mrf.mxu0
      %v10683 = vpop.f32.mrf.mxu0
      %v10684 = vadd.f32 %v10548, %v10683
      %v10685 = vpop.f32.mrf.mxu0
      %10686 = vmatprep.mubr.bf16.mxu0 %v10482
      %10687 = vmatmul.mubr.bf16.gmra.mxu0 %v10481
      %v10688 = vpop.f32.mrf.mxu0
      %v10689 = vadd.f32 %v10548, %v10688
      %v10690 = vpop.f32.mrf.mxu0
      %v10691 = vpop.f32.mrf.mxu0
      %v10692 = vadd.f32 %v10548, %v10691
      %v10693 = vpop.f32.mrf.mxu0
      %10694 = vmatprep.mubr.bf16.mxu0 %v10484
      %10695 = vmatmul.mubr.bf16.gmra.mxu0 %v10483
      %v10696 = vpop.f32.mrf.mxu0
      %v10697 = vadd.f32 %v10548, %v10696
      %v10698 = vpop.f32.mrf.mxu0
      %v10699 = vpop.f32.mrf.mxu0
      %v10700 = vadd.f32 %v10548, %v10699
      %v10701 = vpop.f32.mrf.mxu0
      %10702 = vmatprep.mubr.bf16.mxu0 %v10486
      %10703 = vmatmul.mubr.bf16.gmra.mxu0 %v10485
      %v10704 = vpop.f32.mrf.mxu0
      %v10705 = vadd.f32 %v10548, %v10704
      %v10706 = vpop.f32.mrf.mxu0
      %v10707 = vpop.f32.mrf.mxu0
      %v10708 = vadd.f32 %v10548, %v10707
      %v10709 = vpop.f32.mrf.mxu0
      %10710 = vmatprep.mubr.bf16.mxu0 %v10488
      %10711 = vmatmul.mubr.bf16.gmra.mxu0 %v10487
      %v10712 = vpop.f32.mrf.mxu0
      %v10713 = vadd.f32 %v10548, %v10712
      %v10714 = vpop.f32.mrf.mxu0
      %v10715 = vpop.f32.mrf.mxu0
      %v10716 = vadd.f32 %v10548, %v10715
      %v10717 = vpop.f32.mrf.mxu0
      %10718 = vmatprep.mubr.bf16.mxu0 %v10490
      %10719 = vmatmul.mubr.bf16.gmra.mxu0 %v10489
      %v10720 = vpop.f32.mrf.mxu0
      %v10721 = vadd.f32 %v10548, %v10720
      %v10722 = vpop.f32.mrf.mxu0
      %v10723 = vpop.f32.mrf.mxu0
      %v10724 = vadd.f32 %v10548, %v10723
      %v10725 = vpop.f32.mrf.mxu0
      %10726 = vmatprep.mubr.bf16.mxu0 %v10492
      %10727 = vmatmul.mubr.bf16.gmra.mxu0 %v10491
      %v10728 = vpop.f32.mrf.mxu0
      %v10729 = vadd.f32 %v10548, %v10728
      %v10730 = vpop.f32.mrf.mxu0
      %v10731 = vpop.f32.mrf.mxu0
      %v10732 = vadd.f32 %v10548, %v10731
      %v10733 = vpop.f32.mrf.mxu0
      %10734 = vmatprep.mubr.bf16.mxu0 %v10494
      %10735 = vmatmul.mubr.bf16.gmra.mxu0 %v10493
      %v10736 = vpop.f32.mrf.mxu0
      %v10737 = vadd.f32 %v10548, %v10736
      %v10738 = vpop.f32.mrf.mxu0
      %v10739 = vpop.f32.mrf.mxu0
      %v10740 = vadd.f32 %v10548, %v10739
      %v10741 = vpop.f32.mrf.mxu0
      %10742 = vmatprep.mubr.bf16.mxu0 %v10496
      %10743 = vmatmul.mubr.bf16.gmra.mxu0 %v10495
      %v10744 = vpop.f32.mrf.mxu0
      %v10745 = vadd.f32 %v10548, %v10744
      %v10746 = vpop.f32.mrf.mxu0
      %v10747 = vpop.f32.mrf.mxu0
      %v10748 = vadd.f32 %v10548, %v10747
      %v10749 = vpop.f32.mrf.mxu0
      %10750 = vmatprep.mubr.bf16.mxu0 %v10498
      %10751 = vmatmul.mubr.bf16.gmra.mxu0 %v10497
      %v10752 = vpop.f32.mrf.mxu0
      %v10753 = vadd.f32 %v10548, %v10752
      %v10754 = vpop.f32.mrf.mxu0
      %v10755 = vpop.f32.mrf.mxu0
      %v10756 = vadd.f32 %v10548, %v10755
      %v10757 = vpop.f32.mrf.mxu0
      %10758 = vmatprep.mubr.bf16.mxu0 %v10500
      %10759 = vmatmul.mubr.bf16.gmra.mxu0 %v10499
      %v10760 = vpop.f32.mrf.mxu0
      %v10761 = vadd.f32 %v10548, %v10760
      %v10762 = vpop.f32.mrf.mxu0
      %v10763 = vpop.f32.mrf.mxu0
      %v10764 = vadd.f32 %v10548, %v10763
      %v10765 = vpop.f32.mrf.mxu0
      %10766 = vmatprep.mubr.bf16.mxu0 %v10502
      %10767 = vmatmul.mubr.bf16.gmra.mxu0 %v10501
      %v10768 = vpop.f32.mrf.mxu0
      %v10769 = vadd.f32 %v10548, %v10768
      %v10770 = vpop.f32.mrf.mxu0
      %v10771 = vpop.f32.mrf.mxu0
      %v10772 = vadd.f32 %v10548, %v10771
      %v10773 = vpop.f32.mrf.mxu0
      %10774 = vmatprep.mubr.bf16.mxu0 %v10504
      %10775 = vmatmul.mubr.bf16.gmra.mxu0 %v10503
      %v10776 = vpop.f32.mrf.mxu0
      %v10777 = vadd.f32 %v10548, %v10776
      %v10778 = vpop.f32.mrf.mxu0
      %v10779 = vpop.f32.mrf.mxu0
      %v10780 = vadd.f32 %v10548, %v10779
      %v10781 = vpop.f32.mrf.mxu0
      %10782 = vmatprep.mubr.bf16.mxu0 %v10506
      %10783 = vmatmul.mubr.bf16.gmra.mxu0 %v10505
      %v10784 = vpop.f32.mrf.mxu0
      %v10785 = vadd.f32 %v10548, %v10784
      %v10786 = vpop.f32.mrf.mxu0
      %v10787 = vpop.f32.mrf.mxu0
      %v10788 = vadd.f32 %v10548, %v10787
      %v10789 = vpop.f32.mrf.mxu0
      %10790 = vmatprep.mubr.bf16.mxu0 %v10508
      %10791 = vmatmul.mubr.bf16.gmra.mxu0 %v10507
      %v10792 = vpop.f32.mrf.mxu0
      %v10793 = vadd.f32 %v10548, %v10792
      %v10794 = vpop.f32.mrf.mxu0
      %v10795 = vpop.f32.mrf.mxu0
      %v10796 = vadd.f32 %v10548, %v10795
      %v10797 = vpop.f32.mrf.mxu0
      %10798 = vmatprep.mubr.bf16.mxu0 %v10510
      %10799 = vmatmul.mubr.bf16.gmra.mxu0 %v10509
      %v10800 = vpop.f32.mrf.mxu0
      %v10801 = vadd.f32 %v10548, %v10800
      %v10802 = vpop.f32.mrf.mxu0
      %v10803 = vpop.f32.mrf.mxu0
      %v10804 = vadd.f32 %v10548, %v10803
      %v10805 = vpop.f32.mrf.mxu0
      %10806 = vdwg.mxu0
      %10807 = vst [vmem:[%s334] sm:$0xff] %v10681
      %10808 = vst [vmem:[%s334 + $0x8] sm:$0xff] %v10684
      %10809 = vst [vmem:[%s334 + $0x10] sm:$0xff] %v10689
      %10810 = vst [vmem:[%s334 + $0x18] sm:$0xff] %v10692
      %10811 = vst [vmem:[%s334 + $0x20] sm:$0xff] %v10697
      %10812 = vst [vmem:[%s334 + $0x28] sm:$0xff] %v10700
      %10813 = vst [vmem:[%s334 + $0x30] sm:$0xff] %v10705
      %10814 = vst [vmem:[%s334 + $0x38] sm:$0xff] %v10708
      %10815 = vst [vmem:[%s334 + $0x40] sm:$0xff] %v10713
      %10816 = vst [vmem:[%s334 + $0x48] sm:$0xff] %v10716
      %10817 = vst [vmem:[%s334 + $0x50] sm:$0xff] %v10721
      %10818 = vst [vmem:[%s334 + $0x58] sm:$0xff] %v10724
      %10819 = vst [vmem:[%s334 + $0x60] sm:$0xff] %v10729
      %10820 = vst [vmem:[%s334 + $0x68] sm:$0xff] %v10732
      %10821 = vst [vmem:[%s334 + $0x70] sm:$0xff] %v10737
      %10822 = vst [vmem:[%s334 + $0x78] sm:$0xff] %v10740
      %10823 = vst [vmem:[%s334 + $0x80] sm:$0xff] %v10745
      %10824 = vst [vmem:[%s334 + $0x88] sm:$0xff] %v10748
      %10825 = vst [vmem:[%s334 + $0x90] sm:$0xff] %v10753
      %10826 = vst [vmem:[%s334 + $0x98] sm:$0xff] %v10756
      %10827 = vst [vmem:[%s334 + $0xa0] sm:$0xff] %v10761
      %10828 = vst [vmem:[%s334 + $0xa8] sm:$0xff] %v10764
      %10829 = vst [vmem:[%s334 + $0xb0] sm:$0xff] %v10769
      %10830 = vst [vmem:[%s334 + $0xb8] sm:$0xff] %v10772
      %10831 = vst [vmem:[%s334 + $0xc0] sm:$0xff] %v10777
      %10832 = vst [vmem:[%s334 + $0xc8] sm:$0xff] %v10780
      %10833 = vst [vmem:[%s334 + $0xd0] sm:$0xff] %v10785
      %10834 = vst [vmem:[%s334 + $0xd8] sm:$0xff] %v10788
      %10835 = vst [vmem:[%s334 + $0xe0] sm:$0xff] %v10793
      %10836 = vst [vmem:[%s334 + $0xe8] sm:$0xff] %v10796
      %10837 = vst [vmem:[%s334 + $0xf0] sm:$0xff] %v10801
      %10838 = vst [vmem:[%s334 + $0xf8] sm:$0xff] %v10804
      %s10839 = smul.u32 32, %s20
      %p10840 = scmp.lt.s32.totalorder %s10839, 63
      %s10841 = scalar_select %p10840, %s10839, 63
      %s10842 = smul.addr %s10841, 8
      %s10843 = scalar_lea.vmem %s9, %s10842
      // Predicated region
      $region57: #{mlp_block.1} parent=55 // pred_check
        %p10844 = pneg %p232
      $region58: #{mlp_block.1} parent=55 // pred_check_branch
        %10846 = sbr.rel (%p10844) target = $region60
      $region59: #{mlp_block.1} parent=55 // pred_region
        %s10847 = smul.u32 32, %s20
      $region60: #{mlp_block.1} parent=55 // pred_fallthru
        _
    $region56: #{mlp_block.1} parent=5 // pred_fallthru
      _
    %p10848 = scmp.le.s32.totalorder 2, %s15
    // Predicated region
    $region61: #{mlp_block.1} parent=5 // pred_check
      %p10849 = pneg %p10848
    $region62: #{mlp_block.1} parent=5 // pred_check_branch
      %10851 = sbr.rel (%p10849) target = $region64
    $region63: #{mlp_block.1} parent=5 // pred_region
      %s10852 = ssub.s32 %s15, 2
      // Predicated region
      $region65: #{mlp_block.1} parent=63 // pred_check
        %p10853 = pneg %p238
      $region66: #{mlp_block.1} parent=63 // pred_check_branch
        %10855 = sbr.rel (%p10853) target = $region68
      $region67: #{mlp_block.1} parent=63 // pred_region
        %s10856 = smul.u32 32, %s21
        %p10857 = scmp.lt.s32.totalorder %s10856, 63
        %s10858 = scalar_select %p10857, %s10856, 63
        %s10859 = smul.addr %s10858, 8
        %s10860 = scalar_lea.vmem %s9, %s10859
      $region68: #{mlp_block.1} parent=63 // pred_fallthru
        _
    $region64: #{mlp_block.1} parent=5 // pred_fallthru
      _
  $region6: #{mlp_block.1} parent=0 // loop_footer
    %s19 = sadd.s32 1, %s15
  $region7: #{mlp_block.1} parent=0 // loop_footer_branch
    %14 = sbr.rel target = $region3
  $region8: #{mlp_block.1} parent=0 // loop_exit
    _

</llo_original>
